<compile_context>
chip_gen: v7x
topology: tpu7x:2x2x1
jax: 0.10.0
libtpu: 0.0.40
codegen_flags: <defaults>
</compile_context>

<pallas_src>
import functools

import jax
import jax.numpy as jnp
from jax.experimental import pallas as pl
from jax.experimental.pallas import tpu as pltpu

# TODO(synk): constants.ReLU_FACTOR is not defined in the provided snippet;
#             using 0.2 (same as the decoder's LeakyReLU slope). PyTorch default is 0.01.
RELU_FACTOR = 0.2
BN_EPS = 1e-5


# ---------------------------------------------------------------------------
# Pallas kernel: fused  (X @ W) * scale + bias  -> activation
# ---------------------------------------------------------------------------
def _fused_matmul_kernel(x_ref, w_ref, s_ref, b_ref, o_ref, *, act, alpha):
    # bf16 x bf16 -> f32 accumulate on the MXU; epilogue entirely in f32
    # (v5e VPU/EUP have no bf16 path) with a single final cast to the output dtype.
    y = jnp.dot(x_ref[...], w_ref[...], preferred_element_type=jnp.float32)
    y = y * s_ref[...] + b_ref[...]
    if act in ("leaky_relu", "leaky_relu_sigmoid"):
        y = jnp.where(y >= 0.0, y, alpha * y)
    if act == "leaky_relu_sigmoid":
        # Sigmoid commutes with PixelShuffle (pure permutation), so it is fused here.
        y = jax.nn.sigmoid(y)
    o_ref[...] = y.astype(o_ref.dtype)


def _pick_tm(m):
    """Per-layer M tile: single block if it fits, otherwise largest even divisor."""
    if m <= 1024:
        return m                      # block == full dim -> always layout-legal
    for cand in (1024, 512, 256, 128):
        if m % cand == 0:
            return cand
    return 512                        # divisible by 8; Pallas masks the partial tail block


def fused_matmul(x, w, scale, bias, *, act="leaky_relu", alpha=RELU_FACTOR,
                 out_dtype=jnp.float32, tm=None):
    """x: (M, K), w: (K, N) [bf16 ok], scale/bias: (N,) f32.  Returns (M, N) out_dtype."""
    M, K = x.shape
    K2, N = w.shape
    assert K == K2
    if tm is None:
        tm = _pick_tm(M)
    grid_m = pl.cdiv(M, tm)

    out_itemsize = jnp.dtype(out_dtype).itemsize
    cost = pl.CostEstimate(
        flops=2 * M * K * N,
        transcendentals=(M * N) if act == "leaky_relu_sigmoid" else 0,
        bytes_accessed=(M * K * x.dtype.itemsize + K * N * w.dtype.itemsize
                        + 2 * N * 4 + M * N * out_itemsize),
    )

    kernel = functools.partial(_fused_matmul_kernel, act=act, alpha=alpha)
    return pl.pallas_call(
        kernel,
        out_shape=jax.ShapeDtypeStruct((M, N), out_dtype),
        grid_spec=pltpu.PrefetchScalarGridSpec(
            num_scalar_prefetch=0,
            grid=(grid_m,),
            in_specs=[
                # x: tiled over M only; K (<= 1800) is a single VMEM block.
                pl.BlockSpec((tm, K), lambda i: (i, 0)),
                # Weights / scale / bias: constant index_map -> stay VMEM-resident.
                pl.BlockSpec((K, N), lambda i: (0, 0)),
                pl.BlockSpec((1, N), lambda i: (0, 0)),
                pl.BlockSpec((1, N), lambda i: (0, 0)),
            ],
            out_specs=pl.BlockSpec((tm, N), lambda i: (i, 0)),
        ),
        compiler_params=pltpu.CompilerParams(
            dimension_semantics=("parallel",)),
        cost_estimate=cost,
    )(x, w, scale.reshape(1, N), bias.reshape(1, N))


# ---------------------------------------------------------------------------
# Plain-JAX glue: im2col, maxpool (floor / crop like PyTorch), pixel shuffle
# ---------------------------------------------------------------------------
def im2col(x, k):
    """x: (N, H, W, C) -> (N*Ho*Wo, k*k*C), patch order = (kh, kw, c). k is a Python int."""
    n, h, w, c = x.shape
    ho, wo = h - k + 1, w - k + 1
    cols = [x[:, dh:dh + ho, dw:dw + wo, :] for dh in range(k) for dw in range(k)]
    p = jnp.concatenate(cols, axis=-1)  # (N, Ho, Wo, k*k*C)
    return p.reshape(n * ho * wo, k * k * c), (n, ho, wo)


def maxpool2(x):
    """2x2 max-pool, stride 2, NHWC. Crops trailing odd row/col (PyTorch floor)."""
    n, h, w, c = x.shape
    h2, w2 = (h // 2) * 2, (w // 2) * 2
    x = x[:, :h2, :w2, :]
    return jnp.max(x.reshape(n, h2 // 2, 2, w2 // 2, 2, c), axis=(2, 4))


def pixel_shuffle_nhwc_to_nchw(y, r):
    """y: (N, H, W, C*r*r) NHWC -> (N, C, H*r, W*r) NCHW, PyTorch semantics."""
    n, h, w, crr = y.shape
    c = crr // (r * r)
    y = y.reshape(n, h, w, c, r, r)
    y = jnp.transpose(y, (0, 3, 1, 4, 2, 5))  # (N, C, H, r, W, r)
    return y.reshape(n, c, h * r, w * r)


# ---------------------------------------------------------------------------
# Parameters (deterministic, synthetic).  BN uses inference statistics folded
# together with the conv bias into a per-output-channel (scale, bias).
# Only arrays live in the params pytree (no static ints -> jit-safe).
# ---------------------------------------------------------------------------
def make_conv_bn_params(key, c_in, c_out, ksize):
    kw, kb, kg, kbt, km, kv = jax.random.split(key, 6)
    w = 0.1 * jax.random.normal(kw, (c_out, c_in, ksize, ksize), jnp.float32)
    b = 0.1 * jax.random.normal(kb, (c_out,), jnp.float32)
    gamma = 1.0 + 0.1 * jax.random.normal(kg, (c_out,), jnp.float32)
    beta = 0.1 * jax.random.normal(kbt, (c_out,), jnp.float32)
    mean = 0.1 * jax.random.normal(km, (c_out,), jnp.float32)
    var = jax.random.uniform(kv, (c_out,), jnp.float32, 0.5, 1.5)
    scale = gamma / jnp.sqrt(var + BN_EPS)
    bias = beta + scale * (b - mean)
    # PyTorch weight (C_out, C_in, kH, kW) -> (kH, kW, C_in, C_out) -> GEMM (kk*C_in, C_out)
    w2d = jnp.transpose(w, (2, 3, 1, 0)).reshape(ksize * ksize * c_in, c_out)
    return {"w2d": w2d.astype(jnp.bfloat16), "scale": scale, "bias": bias}


def make_params(seed=1):
    channels = [3, 100, 200, 400]
    keys = jax.random.split(jax.random.PRNGKey(seed), len(channels))
    enc = [make_conv_bn_params(keys[i], channels[i], channels[i + 1], 3)
           for i in range(len(channels) - 1)]
    dec = make_conv_bn_params(keys[-1], 400, 768, 1)
    return {"encoder": enc, "decoder": dec}


# ---------------------------------------------------------------------------
# Forward pass
# ---------------------------------------------------------------------------
def subpixel_conv_forward(x_nchw, params):
    # NCHW -> NHWC; bf16 activations halve HBM traffic and feed the MXU natively.
    x = jnp.transpose(x_nchw, (0, 2, 3, 1)).astype(jnp.bfloat16)

    # Encoder: 3 x (Conv3x3 + BN + LeakyReLU  [fused Pallas GEMM]) -> MaxPool2
    for p in params["encoder"]:
        cols, (n, ho, wo) = im2col(x, 3)
        y = fused_matmul(cols, p["w2d"], p["scale"], p["bias"],
                         act="leaky_relu", alpha=RELU_FACTOR,
                         out_dtype=jnp.bfloat16)
        x = maxpool2(y.reshape(n, ho, wo, -1))

    # Decoder: Conv1x1 + BN + LeakyReLU(0.2) + Sigmoid (fused), then PixelShuffle(16)
    dp = params["decoder"]
    n, h, w, c = x.shape
    y = fused_matmul(x.reshape(n * h * w, c), dp["w2d"], dp["scale"], dp["bias"],
                     act="leaky_relu_sigmoid", alpha=0.2,
                     out_dtype=jnp.float32)
    y = y.reshape(n, h, w, 768)
    return pixel_shuffle_nhwc_to_nchw(y, 16)  # (N, 3, H*16, W*16), NCHW


if __name__ == "__main__":
    key = jax.random.PRNGKey(0)
    # NCHW input, 3 channels; 34x34 -> encoder output 2x2 -> decoder output 32x32
    x = jax.random.normal(key, (2, 3, 34, 34), dtype=jnp.float32)
    params = make_params(seed=1)

    fwd = jax.jit(subpixel_conv_forward)
    out = fwd(x, params)
    out = jax.block_until_ready(out)

    assert out.shape == (2, 3, 32, 32), out.shape
    assert out.dtype == jnp.float32
    assert bool(jnp.all(jnp.isfinite(out)))
    assert bool(jnp.all((out >= 0.0) & (out <= 1.0)))  # sigmoid output range
    print("KERNEL_OK")
</pallas_src>

<mosaic_0001>
module attributes {stable_mosaic.version = 11 : i64} {
  func.func @_fused_matmul_kernel(%arg0: i32, %arg1: memref<1024x27xbf16, #tpu.memory_space<vmem>>, %arg2: memref<27x100xbf16, #tpu.memory_space<vmem>>, %arg3: memref<1x100xf32, #tpu.memory_space<vmem>>, %arg4: memref<1x100xf32, #tpu.memory_space<vmem>>, %arg5: memref<1024x100xbf16, #tpu.memory_space<vmem>>) attributes {dimension_semantics = [#tpu.dimension_semantics<parallel>], iteration_bounds = array<i64: 2>, scalar_prefetch = 0 : i64, scratch_operands = 0 : i64, tpu.core_type = #tpu.core_type<tc>, window_params = [{transform_indices = @transform_0, window_bounds = array<i64: 1024, 27>}, {pipeline_mode = #tpu.pipeline_mode<synchronous>, transform_indices = @transform_1, window_bounds = array<i64: 27, 100>}, {pipeline_mode = #tpu.pipeline_mode<synchronous>, transform_indices = @transform_2, window_bounds = array<i64: 1, 100>}, {pipeline_mode = #tpu.pipeline_mode<synchronous>, transform_indices = @transform_3, window_bounds = array<i64: 1, 100>}, {transform_indices = @transform_4, window_bounds = array<i64: 1024, 100>}]} {
    %c0 = arith.constant 0 : index
    %c0_0 = arith.constant 0 : index
    %0 = vector.load %arg1[%c0, %c0_0] : memref<1024x27xbf16, #tpu.memory_space<vmem>>, vector<1024x27xbf16>
    %c0_1 = arith.constant 0 : index
    %c0_2 = arith.constant 0 : index
    %1 = vector.load %arg2[%c0_1, %c0_2] : memref<27x100xbf16, #tpu.memory_space<vmem>>, vector<27x100xbf16>
    %cst = arith.constant dense<0.000000e+00> : vector<1024x100xf32>
    %2 = tpu.matmul %0, %1, %cst {dimension_numbers = #tpu.dot_dimension_numbers<[1], [0], [0], [1], [0, 0, 1, 1], [], []>} : vector<1024x27xbf16>, vector<27x100xbf16>, vector<1024x100xf32> -> vector<1024x100xf32>
    %c0_3 = arith.constant 0 : index
    %c0_4 = arith.constant 0 : index
    %3 = vector.load %arg3[%c0_3, %c0_4] : memref<1x100xf32, #tpu.memory_space<vmem>>, vector<1x100xf32>
    %4 = vector.broadcast %3 : vector<1x100xf32> to vector<1024x100xf32>
    %5 = arith.mulf %2, %4 : vector<1024x100xf32>
    %c0_5 = arith.constant 0 : index
    %c0_6 = arith.constant 0 : index
    %6 = vector.load %arg4[%c0_5, %c0_6] : memref<1x100xf32, #tpu.memory_space<vmem>>, vector<1x100xf32>
    %7 = vector.broadcast %6 : vector<1x100xf32> to vector<1024x100xf32>
    %8 = arith.addf %5, %7 : vector<1024x100xf32>
    %cst_7 = arith.constant 0.000000e+00 : f32
    %9 = vector.broadcast %cst_7 : f32 to vector<1024x100xf32>
    %10 = arith.cmpf oge, %8, %9 : vector<1024x100xf32>
    %cst_8 = arith.constant 2.000000e-01 : f32
    %11 = vector.broadcast %cst_8 : f32 to vector<1024x100xf32>
    %12 = arith.mulf %11, %8 : vector<1024x100xf32>
    %13 = arith.select %10, %8, %12 : vector<1024x100xi1>, vector<1024x100xf32>
    %14 = arith.truncf %13 : vector<1024x100xf32> to vector<1024x100xbf16>
    %c0_9 = arith.constant 0 : index
    %c0_10 = arith.constant 0 : index
    %15 = vector.load %arg5[%c0_9, %c0_10] : memref<1024x100xbf16, #tpu.memory_space<vmem>>, vector<1024x100xbf16>
    tpu.vector_store %arg5[%c0_9, %c0_10], %14 {strides = array<i32>} : memref<1024x100xbf16, #tpu.memory_space<vmem>>, vector<1024x100xbf16>,
    return
  }
  func.func @transform_0(%arg0: i32) -> (i32, i32) {
    %c0_i32 = arith.constant 0 : i32
    %c0_i32_0 = arith.constant 0 : i32
    return %arg0, %c0_i32 : i32, i32
  }
  func.func @transform_1(%arg0: i32) -> (i32, i32) {
    %c0_i32 = arith.constant 0 : i32
    %c0_i32_0 = arith.constant 0 : i32
    %c0_i32_1 = arith.constant 0 : i32
    return %c0_i32, %c0_i32_0 : i32, i32
  }
  func.func @transform_2(%arg0: i32) -> (i32, i32) {
    %c0_i32 = arith.constant 0 : i32
    %c0_i32_0 = arith.constant 0 : i32
    %c0_i32_1 = arith.constant 0 : i32
    return %c0_i32, %c0_i32_0 : i32, i32
  }
  func.func @transform_3(%arg0: i32) -> (i32, i32) {
    %c0_i32 = arith.constant 0 : i32
    %c0_i32_0 = arith.constant 0 : i32
    %c0_i32_1 = arith.constant 0 : i32
    return %c0_i32, %c0_i32_0 : i32, i32
  }
  func.func @transform_4(%arg0: i32) -> (i32, i32) {
    %c0_i32 = arith.constant 0 : i32
    %c0_i32_0 = arith.constant 0 : i32
    return %arg0, %c0_i32 : i32, i32
  }
}

module attributes {stable_mosaic.version = 11 : i64} {
  func.func @_fused_matmul_kernel(%arg0: i32, %arg1: memref<392x900xbf16, #tpu.memory_space<vmem>>, %arg2: memref<900x200xbf16, #tpu.memory_space<vmem>>, %arg3: memref<1x200xf32, #tpu.memory_space<vmem>>, %arg4: memref<1x200xf32, #tpu.memory_space<vmem>>, %arg5: memref<392x200xbf16, #tpu.memory_space<vmem>>) attributes {dimension_semantics = [#tpu.dimension_semantics<parallel>], iteration_bounds = array<i64: 1>, scalar_prefetch = 0 : i64, scratch_operands = 0 : i64, tpu.core_type = #tpu.core_type<tc>, window_params = [{transform_indices = @transform_0, window_bounds = array<i64: 392, 900>}, {pipeline_mode = #tpu.pipeline_mode<synchronous>, transform_indices = @transform_1, window_bounds = array<i64: 900, 200>}, {pipeline_mode = #tpu.pipeline_mode<synchronous>, transform_indices = @transform_2, window_bounds = array<i64: 1, 200>}, {pipeline_mode = #tpu.pipeline_mode<synchronous>, transform_indices = @transform_3, window_bounds = array<i64: 1, 200>}, {transform_indices = @transform_4, window_bounds = array<i64: 392, 200>}]} {
    %c0 = arith.constant 0 : index
    %c0_0 = arith.constant 0 : index
    %0 = vector.load %arg1[%c0, %c0_0] : memref<392x900xbf16, #tpu.memory_space<vmem>>, vector<392x900xbf16>
    %c0_1 = arith.constant 0 : index
    %c0_2 = arith.constant 0 : index
    %1 = vector.load %arg2[%c0_1, %c0_2] : memref<900x200xbf16, #tpu.memory_space<vmem>>, vector<900x200xbf16>
    %cst = arith.constant dense<0.000000e+00> : vector<392x200xf32>
    %2 = tpu.matmul %0, %1, %cst {dimension_numbers = #tpu.dot_dimension_numbers<[1], [0], [0], [1], [0, 0, 1, 1], [], []>} : vector<392x900xbf16>, vector<900x200xbf16>, vector<392x200xf32> -> vector<392x200xf32>
    %c0_3 = arith.constant 0 : index
    %c0_4 = arith.constant 0 : index
    %3 = vector.load %arg3[%c0_3, %c0_4] : memref<1x200xf32, #tpu.memory_space<vmem>>, vector<1x200xf32>
    %4 = vector.broadcast %3 : vector<1x200xf32> to vector<392x200xf32>
    %5 = arith.mulf %2, %4 : vector<392x200xf32>
    %c0_5 = arith.constant 0 : index
    %c0_6 = arith.constant 0 : index
    %6 = vector.load %arg4[%c0_5, %c0_6] : memref<1x200xf32, #tpu.memory_space<vmem>>, vector<1x200xf32>
    %7 = vector.broadcast %6 : vector<1x200xf32> to vector<392x200xf32>
    %8 = arith.addf %5, %7 : vector<392x200xf32>
    %cst_7 = arith.constant 0.000000e+00 : f32
    %9 = vector.broadcast %cst_7 : f32 to vector<392x200xf32>
    %10 = arith.cmpf oge, %8, %9 : vector<392x200xf32>
    %cst_8 = arith.constant 2.000000e-01 : f32
    %11 = vector.broadcast %cst_8 : f32 to vector<392x200xf32>
    %12 = arith.mulf %11, %8 : vector<392x200xf32>
    %13 = arith.select %10, %8, %12 : vector<392x200xi1>, vector<392x200xf32>
    %14 = arith.truncf %13 : vector<392x200xf32> to vector<392x200xbf16>
    %c0_9 = arith.constant 0 : index
    %c0_10 = arith.constant 0 : index
    %15 = vector.load %arg5[%c0_9, %c0_10] : memref<392x200xbf16, #tpu.memory_space<vmem>>, vector<392x200xbf16>
    tpu.vector_store %arg5[%c0_9, %c0_10], %14 {strides = array<i32>} : memref<392x200xbf16, #tpu.memory_space<vmem>>, vector<392x200xbf16>,
    return
  }
  func.func @transform_0(%arg0: i32) -> (i32, i32) {
    %c0_i32 = arith.constant 0 : i32
    %c0_i32_0 = arith.constant 0 : i32
    return %arg0, %c0_i32 : i32, i32
  }
  func.func @transform_1(%arg0: i32) -> (i32, i32) {
    %c0_i32 = arith.constant 0 : i32
    %c0_i32_0 = arith.constant 0 : i32
    %c0_i32_1 = arith.constant 0 : i32
    return %c0_i32, %c0_i32_0 : i32, i32
  }
  func.func @transform_2(%arg0: i32) -> (i32, i32) {
    %c0_i32 = arith.constant 0 : i32
    %c0_i32_0 = arith.constant 0 : i32
    %c0_i32_1 = arith.constant 0 : i32
    return %c0_i32, %c0_i32_0 : i32, i32
  }
  func.func @transform_3(%arg0: i32) -> (i32, i32) {
    %c0_i32 = arith.constant 0 : i32
    %c0_i32_0 = arith.constant 0 : i32
    %c0_i32_1 = arith.constant 0 : i32
    return %c0_i32, %c0_i32_0 : i32, i32
  }
  func.func @transform_4(%arg0: i32) -> (i32, i32) {
    %c0_i32 = arith.constant 0 : i32
    %c0_i32_0 = arith.constant 0 : i32
    return %arg0, %c0_i32 : i32, i32
  }
}

module attributes {stable_mosaic.version = 11 : i64} {
  func.func @_fused_matmul_kernel(%arg0: i32, %arg1: memref<50x1800xbf16, #tpu.memory_space<vmem>>, %arg2: memref<1800x400xbf16, #tpu.memory_space<vmem>>, %arg3: memref<1x400xf32, #tpu.memory_space<vmem>>, %arg4: memref<1x400xf32, #tpu.memory_space<vmem>>, %arg5: memref<50x400xbf16, #tpu.memory_space<vmem>>) attributes {dimension_semantics = [#tpu.dimension_semantics<parallel>], iteration_bounds = array<i64: 1>, scalar_prefetch = 0 : i64, scratch_operands = 0 : i64, tpu.core_type = #tpu.core_type<tc>, window_params = [{transform_indices = @transform_0, window_bounds = array<i64: 50, 1800>}, {pipeline_mode = #tpu.pipeline_mode<synchronous>, transform_indices = @transform_1, window_bounds = array<i64: 1800, 400>}, {pipeline_mode = #tpu.pipeline_mode<synchronous>, transform_indices = @transform_2, window_bounds = array<i64: 1, 400>}, {pipeline_mode = #tpu.pipeline_mode<synchronous>, transform_indices = @transform_3, window_bounds = array<i64: 1, 400>}, {transform_indices = @transform_4, window_bounds = array<i64: 50, 400>}]} {
    %c0 = arith.constant 0 : index
    %c0_0 = arith.constant 0 : index
    %0 = vector.load %arg1[%c0, %c0_0] : memref<50x1800xbf16, #tpu.memory_space<vmem>>, vector<50x1800xbf16>
    %c0_1 = arith.constant 0 : index
    %c0_2 = arith.constant 0 : index
    %1 = vector.load %arg2[%c0_1, %c0_2] : memref<1800x400xbf16, #tpu.memory_space<vmem>>, vector<1800x400xbf16>
    %cst = arith.constant dense<0.000000e+00> : vector<50x400xf32>
    %2 = tpu.matmul %0, %1, %cst {dimension_numbers = #tpu.dot_dimension_numbers<[1], [0], [0], [1], [0, 0, 1, 1], [], []>} : vector<50x1800xbf16>, vector<1800x400xbf16>, vector<50x400xf32> -> vector<50x400xf32>
    %c0_3 = arith.constant 0 : index
    %c0_4 = arith.constant 0 : index
    %3 = vector.load %arg3[%c0_3, %c0_4] : memref<1x400xf32, #tpu.memory_space<vmem>>, vector<1x400xf32>
    %4 = vector.broadcast %3 : vector<1x400xf32> to vector<50x400xf32>
    %5 = arith.mulf %2, %4 : vector<50x400xf32>
    %c0_5 = arith.constant 0 : index
    %c0_6 = arith.constant 0 : index
    %6 = vector.load %arg4[%c0_5, %c0_6] : memref<1x400xf32, #tpu.memory_space<vmem>>, vector<1x400xf32>
    %7 = vector.broadcast %6 : vector<1x400xf32> to vector<50x400xf32>
    %8 = arith.addf %5, %7 : vector<50x400xf32>
    %cst_7 = arith.constant 0.000000e+00 : f32
    %9 = vector.broadcast %cst_7 : f32 to vector<50x400xf32>
    %10 = arith.cmpf oge, %8, %9 : vector<50x400xf32>
    %cst_8 = arith.constant 2.000000e-01 : f32
    %11 = vector.broadcast %cst_8 : f32 to vector<50x400xf32>
    %12 = arith.mulf %11, %8 : vector<50x400xf32>
    %13 = arith.select %10, %8, %12 : vector<50x400xi1>, vector<50x400xf32>
    %14 = arith.truncf %13 : vector<50x400xf32> to vector<50x400xbf16>
    %c0_9 = arith.constant 0 : index
    %c0_10 = arith.constant 0 : index
    %15 = vector.load %arg5[%c0_9, %c0_10] : memref<50x400xbf16, #tpu.memory_space<vmem>>, vector<50x400xbf16>
    tpu.vector_store %arg5[%c0_9, %c0_10], %14 {strides = array<i32>} : memref<50x400xbf16, #tpu.memory_space<vmem>>, vector<50x400xbf16>,
    return
  }
  func.func @transform_0(%arg0: i32) -> (i32, i32) {
    %c0_i32 = arith.constant 0 : i32
    %c0_i32_0 = arith.constant 0 : i32
    return %arg0, %c0_i32 : i32, i32
  }
  func.func @transform_1(%arg0: i32) -> (i32, i32) {
    %c0_i32 = arith.constant 0 : i32
    %c0_i32_0 = arith.constant 0 : i32
    %c0_i32_1 = arith.constant 0 : i32
    return %c0_i32, %c0_i32_0 : i32, i32
  }
  func.func @transform_2(%arg0: i32) -> (i32, i32) {
    %c0_i32 = arith.constant 0 : i32
    %c0_i32_0 = arith.constant 0 : i32
    %c0_i32_1 = arith.constant 0 : i32
    return %c0_i32, %c0_i32_0 : i32, i32
  }
  func.func @transform_3(%arg0: i32) -> (i32, i32) {
    %c0_i32 = arith.constant 0 : i32
    %c0_i32_0 = arith.constant 0 : i32
    %c0_i32_1 = arith.constant 0 : i32
    return %c0_i32, %c0_i32_0 : i32, i32
  }
  func.func @transform_4(%arg0: i32) -> (i32, i32) {
    %c0_i32 = arith.constant 0 : i32
    %c0_i32_0 = arith.constant 0 : i32
    return %arg0, %c0_i32 : i32, i32
  }
}

module attributes {stable_mosaic.version = 11 : i64} {
  func.func @_fused_matmul_kernel(%arg0: i32, %arg1: memref<8x400xbf16, #tpu.memory_space<vmem>>, %arg2: memref<400x768xbf16, #tpu.memory_space<vmem>>, %arg3: memref<1x768xf32, #tpu.memory_space<vmem>>, %arg4: memref<1x768xf32, #tpu.memory_space<vmem>>, %arg5: memref<8x768xf32, #tpu.memory_space<vmem>>) attributes {dimension_semantics = [#tpu.dimension_semantics<parallel>], iteration_bounds = array<i64: 1>, scalar_prefetch = 0 : i64, scratch_operands = 0 : i64, tpu.core_type = #tpu.core_type<tc>, window_params = [{transform_indices = @transform_0, window_bounds = array<i64: 8, 400>}, {pipeline_mode = #tpu.pipeline_mode<synchronous>, transform_indices = @transform_1, window_bounds = array<i64: 400, 768>}, {pipeline_mode = #tpu.pipeline_mode<synchronous>, transform_indices = @transform_2, window_bounds = array<i64: 1, 768>}, {pipeline_mode = #tpu.pipeline_mode<synchronous>, transform_indices = @transform_3, window_bounds = array<i64: 1, 768>}, {transform_indices = @transform_4, window_bounds = array<i64: 8, 768>}]} {
    %c0 = arith.constant 0 : index
    %c0_0 = arith.constant 0 : index
    %0 = vector.load %arg1[%c0, %c0_0] : memref<8x400xbf16, #tpu.memory_space<vmem>>, vector<8x400xbf16>
    %c0_1 = arith.constant 0 : index
    %c0_2 = arith.constant 0 : index
    %1 = vector.load %arg2[%c0_1, %c0_2] : memref<400x768xbf16, #tpu.memory_space<vmem>>, vector<400x768xbf16>
    %cst = arith.constant dense<0.000000e+00> : vector<8x768xf32>
    %2 = tpu.matmul %0, %1, %cst {dimension_numbers = #tpu.dot_dimension_numbers<[1], [0], [0], [1], [0, 0, 1, 1], [], []>} : vector<8x400xbf16>, vector<400x768xbf16>, vector<8x768xf32> -> vector<8x768xf32>
    %c0_3 = arith.constant 0 : index
    %c0_4 = arith.constant 0 : index
    %3 = vector.load %arg3[%c0_3, %c0_4] : memref<1x768xf32, #tpu.memory_space<vmem>>, vector<1x768xf32>
    %4 = vector.broadcast %3 : vector<1x768xf32> to vector<8x768xf32>
    %5 = arith.mulf %2, %4 : vector<8x768xf32>
    %c0_5 = arith.constant 0 : index
    %c0_6 = arith.constant 0 : index
    %6 = vector.load %arg4[%c0_5, %c0_6] : memref<1x768xf32, #tpu.memory_space<vmem>>, vector<1x768xf32>
    %7 = vector.broadcast %6 : vector<1x768xf32> to vector<8x768xf32>
    %8 = arith.addf %5, %7 : vector<8x768xf32>
    %cst_7 = arith.constant 0.000000e+00 : f32
    %9 = vector.broadcast %cst_7 : f32 to vector<8x768xf32>
    %10 = arith.cmpf oge, %8, %9 : vector<8x768xf32>
    %cst_8 = arith.constant 2.000000e-01 : f32
    %11 = vector.broadcast %cst_8 : f32 to vector<8x768xf32>
    %12 = arith.mulf %11, %8 : vector<8x768xf32>
    %13 = arith.select %10, %8, %12 : vector<8x768xi1>, vector<8x768xf32>
    %14 = arith.negf %13 : vector<8x768xf32>
    %15 = math.exp %14 : vector<8x768xf32>
    %cst_9 = arith.constant 1.000000e+00 : f32
    %16 = vector.broadcast %cst_9 : f32 to vector<8x768xf32>
    %17 = arith.addf %16, %15 : vector<8x768xf32>
    %18 = arith.divf %16, %17 : vector<8x768xf32>
    %c0_10 = arith.constant 0 : index
    %c0_11 = arith.constant 0 : index
    %19 = vector.load %arg5[%c0_10, %c0_11] : memref<8x768xf32, #tpu.memory_space<vmem>>, vector<8x768xf32>
    tpu.vector_store %arg5[%c0_10, %c0_11], %18 {strides = array<i32>} : memref<8x768xf32, #tpu.memory_space<vmem>>, vector<8x768xf32>,
    return
  }
  func.func @transform_0(%arg0: i32) -> (i32, i32) {
    %c0_i32 = arith.constant 0 : i32
    %c0_i32_0 = arith.constant 0 : i32
    return %arg0, %c0_i32 : i32, i32
  }
  func.func @transform_1(%arg0: i32) -> (i32, i32) {
    %c0_i32 = arith.constant 0 : i32
    %c0_i32_0 = arith.constant 0 : i32
    %c0_i32_1 = arith.constant 0 : i32
    return %c0_i32, %c0_i32_0 : i32, i32
  }
  func.func @transform_2(%arg0: i32) -> (i32, i32) {
    %c0_i32 = arith.constant 0 : i32
    %c0_i32_0 = arith.constant 0 : i32
    %c0_i32_1 = arith.constant 0 : i32
    return %c0_i32, %c0_i32_0 : i32, i32
  }
  func.func @transform_3(%arg0: i32) -> (i32, i32) {
    %c0_i32 = arith.constant 0 : i32
    %c0_i32_0 = arith.constant 0 : i32
    %c0_i32_1 = arith.constant 0 : i32
    return %c0_i32, %c0_i32_0 : i32, i32
  }
  func.func @transform_4(%arg0: i32) -> (i32, i32) {
    %c0_i32 = arith.constant 0 : i32
    %c0_i32_0 = arith.constant 0 : i32
    return %arg0, %c0_i32 : i32, i32
  }
}

</mosaic_0001>

<llo_original>
// kernel: subpixel_conv_forward.4
$region0: #{subpixel_conv_forward.4}
  #allocation0 [shape = 'u32[]', space=smem, size = 0x4, offset = 0x4, fixed_abs, tag = 'smem constant byte address 0x4 - core index']
  #allocation1 [shape = 'u32[144,128]{1,0:T(1,128)}', space=vmem, size = 0x12000, scoped, tag = 'internal scratch']
  %s0 = inlined_call_operand.vmem [shape: bf16[2048,27], index: 0, kind: input, shape index: {}]
  %s1 = inlined_call_operand.vmem [shape: bf16[27,100], index: 1, kind: input, shape index: {}]
  %s2 = inlined_call_operand.vmem [shape: f32[1,100], index: 2, kind: input, shape index: {}]
  %s3 = inlined_call_operand.vmem [shape: f32[1,100], index: 3, kind: input, shape index: {}]
  %s4 = inlined_call_operand.vmem [shape: bf16[2048,100], index: 4, kind: output, shape index: {}]
  %s5 = sld [smem:[#allocation0]]
  $region49: #{subpixel_conv_forward.4} parent=0
    _
  %s7 = ssub.s32 1, %s5
  %s8 = scalar_select 0, %s7, %s5
  loop: start=0, step=1, limit=4
  $region2: #{subpixel_conv_forward.4} parent=0 // loop_pre_header
    _
  $region3: #{subpixel_conv_forward.4} parent=0 // loop_header
    %s10 = sphi 0, %s14
    %p11 = scmp.ge.s32.totalorder %s10, 4
    %s20 = sphi 0, %s22
    %s23 = sphi 0, %s20
    %s24 = sphi 0, %s23
    %s40 = sphi 0, %s24
    %s44 = sphi 0, %s44
    %s46 = sphi 0, %s44
    %s47 = sphi 0, %s46
    %s61 = sphi 0, %s47
    %s65 = sphi 0, %s65
    %s67 = sphi 0, %s65
    %s68 = sphi 0, %s67
    %s82 = sphi 0, %s68
    %s86 = sphi 0, %s86
    %s88 = sphi 0, %s86
    %s89 = sphi 0, %s88
    %s103 = sphi 0, %s89
    %s109 = sphi 0, %s111
    %s112 = sphi 0, %s109
    %s113 = sphi 0, %s112
    %s129 = sphi 0, %s113
  $region4: #{subpixel_conv_forward.4} parent=0 // loop_header_branch
    %13 = sbr.rel (%p11) target = $region8
  $region5: #{subpixel_conv_forward.4} parent=0 // loop_body
    %s15 = ssub.s32 %s10, 1
    %s16 = ssub.s32 %s10, 2
    %s17 = sadd.s32 %s10, 1
    %s18 = ssub.s32 %s10, %s17
    %p19 = scmp.eq.s32.totalorder %s18, 0
    %s21 = sadd.s32 %s20, 1
    %s22 = scalar_select %p19, %s20, %s21
    %p25 = pneg %p19
    %p26 = scmp.eq.s32.totalorder %s10, 1
    %p27 = por %p25, %p26
    %p28 = scmp.ne.s32.totalorder %s20, %s23
    %p29 = scmp.eq.s32.totalorder %s10, 0
    %p30 = por %p28, %p29
    %p31 = scmp.ne.s32.totalorder %s20, %s23
    %p32 = scmp.eq.s32.totalorder %s15, 1
    %p33 = por %p31, %p32
    %p34 = scmp.ne.s32.totalorder %s23, %s24
    %p35 = scmp.eq.s32.totalorder %s15, 0
    %p36 = por %p34, %p35
    %p37 = scmp.ne.s32.totalorder %s23, %s24
    %p38 = scmp.eq.s32.totalorder %s16, 1
    %p39 = por %p37, %p38
    %p41 = scmp.ne.s32.totalorder %s24, %s40
    %p42 = scmp.eq.s32.totalorder %s16, 0
    %p43 = por %p41, %p42
    %s45 = sadd.s32 %s44, 1
    %p48 = scmp.eq.s32.totalorder %s10, 1
    %p49 = scmp.ne.s32.totalorder %s44, %s46
    %p50 = scmp.eq.s32.totalorder %s10, 0
    %p51 = por %p49, %p50
    %p52 = scmp.ne.s32.totalorder %s44, %s46
    %p53 = scmp.eq.s32.totalorder %s15, 1
    %p54 = por %p52, %p53
    %p55 = scmp.ne.s32.totalorder %s46, %s47
    %p56 = scmp.eq.s32.totalorder %s15, 0
    %p57 = por %p55, %p56
    %p58 = scmp.ne.s32.totalorder %s46, %s47
    %p59 = scmp.eq.s32.totalorder %s16, 1
    %p60 = por %p58, %p59
    %p62 = scmp.ne.s32.totalorder %s47, %s61
    %p63 = scmp.eq.s32.totalorder %s16, 0
    %p64 = por %p62, %p63
    %s66 = sadd.s32 %s65, 1
    %p69 = scmp.eq.s32.totalorder %s10, 1
    %p70 = scmp.ne.s32.totalorder %s65, %s67
    %p71 = scmp.eq.s32.totalorder %s10, 0
    %p72 = por %p70, %p71
    %p73 = scmp.ne.s32.totalorder %s65, %s67
    %p74 = scmp.eq.s32.totalorder %s15, 1
    %p75 = por %p73, %p74
    %p76 = scmp.ne.s32.totalorder %s67, %s68
    %p77 = scmp.eq.s32.totalorder %s15, 0
    %p78 = por %p76, %p77
    %p79 = scmp.ne.s32.totalorder %s67, %s68
    %p80 = scmp.eq.s32.totalorder %s16, 1
    %p81 = por %p79, %p80
    %p83 = scmp.ne.s32.totalorder %s68, %s82
    %p84 = scmp.eq.s32.totalorder %s16, 0
    %p85 = por %p83, %p84
    %s87 = sadd.s32 %s86, 1
    %p90 = scmp.eq.s32.totalorder %s10, 1
    %p91 = scmp.ne.s32.totalorder %s86, %s88
    %p92 = scmp.eq.s32.totalorder %s10, 0
    %p93 = por %p91, %p92
    %p94 = scmp.ne.s32.totalorder %s86, %s88
    %p95 = scmp.eq.s32.totalorder %s15, 1
    %p96 = por %p94, %p95
    %p97 = scmp.ne.s32.totalorder %s88, %s89
    %p98 = scmp.eq.s32.totalorder %s15, 0
    %p99 = por %p97, %p98
    %p100 = scmp.ne.s32.totalorder %s88, %s89
    %p101 = scmp.eq.s32.totalorder %s16, 1
    %p102 = por %p100, %p101
    %p104 = scmp.ne.s32.totalorder %s89, %s103
    %p105 = scmp.eq.s32.totalorder %s16, 0
    %p106 = por %p104, %p105
    %s107 = ssub.s32 %s10, %s17
    %p108 = scmp.eq.s32.totalorder %s107, 0
    %s110 = sadd.s32 %s109, 1
    %s111 = scalar_select %p108, %s109, %s110
    %p114 = pneg %p108
    %p115 = scmp.eq.s32.totalorder %s10, 1
    %p116 = por %p114, %p115
    %p117 = scmp.ne.s32.totalorder %s109, %s112
    %p118 = scmp.eq.s32.totalorder %s10, 0
    %p119 = por %p117, %p118
    %p120 = scmp.ne.s32.totalorder %s109, %s112
    %p121 = scmp.eq.s32.totalorder %s15, 1
    %p122 = por %p120, %p121
    %p123 = scmp.ne.s32.totalorder %s112, %s113
    %p124 = scmp.eq.s32.totalorder %s15, 0
    %p125 = por %p123, %p124
    %p126 = scmp.ne.s32.totalorder %s112, %s113
    %p127 = scmp.eq.s32.totalorder %s16, 1
    %p128 = por %p126, %p127
    %p130 = scmp.ne.s32.totalorder %s113, %s129
    %p131 = scmp.eq.s32.totalorder %s16, 0
    %p132 = por %p130, %p131
    %p133 = scmp.le.s32.totalorder 1, %s10
    %p134 = scmp.lt.s32.totalorder %s10, 3
    %p135 = pnand %p133, %p134
    %p136 = pneg %p135
    // Predicated region
    $region9: #{subpixel_conv_forward.4} parent=5 // pred_check
      _
    $region10: #{subpixel_conv_forward.4} parent=5 // pred_check_branch
      %138 = sbr.rel (%p135) target = $region12
    $region11: #{subpixel_conv_forward.4} parent=5 // pred_region
      %s139 = ssub.s32 %s10, 1
      // Predicated region
      $region13: #{subpixel_conv_forward.4} parent=11 // pred_check
        %p140 = pneg %p57
      $region14: #{subpixel_conv_forward.4} parent=11 // pred_check_branch
        %142 = sbr.rel (%p140) target = $region16
      $region15: #{subpixel_conv_forward.4} parent=11 // pred_region
        _
      $region16: #{subpixel_conv_forward.4} parent=11 // pred_fallthru
        _
      // Predicated region
      $region17: #{subpixel_conv_forward.4} parent=11 // pred_check
        %p143 = pneg %p78
      $region18: #{subpixel_conv_forward.4} parent=11 // pred_check_branch
        %145 = sbr.rel (%p143) target = $region20
      $region19: #{subpixel_conv_forward.4} parent=11 // pred_region
        _
      $region20: #{subpixel_conv_forward.4} parent=11 // pred_fallthru
        _
      // Predicated region
      $region21: #{subpixel_conv_forward.4} parent=11 // pred_check
        %p146 = pneg %p99
      $region22: #{subpixel_conv_forward.4} parent=11 // pred_check_branch
        %148 = sbr.rel (%p146) target = $region24
      $region23: #{subpixel_conv_forward.4} parent=11 // pred_region
        _
      $region24: #{subpixel_conv_forward.4} parent=11 // pred_fallthru
        _
    $region12: #{subpixel_conv_forward.4} parent=5 // pred_fallthru
      _
    %p149 = scmp.lt.s32.totalorder %s10, 2
    // Predicated region
    $region25: #{subpixel_conv_forward.4} parent=5 // pred_check
      %p150 = pneg %p149
    $region26: #{subpixel_conv_forward.4} parent=5 // pred_check_branch
      %152 = sbr.rel (%p150) target = $region28
    $region27: #{subpixel_conv_forward.4} parent=5 // pred_region
      // Predicated region
      $region29: #{subpixel_conv_forward.4} parent=27 // pred_check
        %p153 = pneg %p30
      $region30: #{subpixel_conv_forward.4} parent=27 // pred_check_branch
        %155 = sbr.rel (%p153) target = $region32
      $region31: #{subpixel_conv_forward.4} parent=27 // pred_region
        %s156 = smul.u32 128, %s10
        %p157 = scmp.lt.s32.totalorder %s156, 255
        %s158 = scalar_select %p157, %s156, 255
        %s159 = smul.addr %s158, 4
        %s160 = scalar_lea.vmem %s0, %s159
        %s161 = smul.u32 128, %s10
      $region32: #{subpixel_conv_forward.4} parent=27 // pred_fallthru
        _
    $region28: #{subpixel_conv_forward.4} parent=5 // pred_fallthru
      _
    %p162 = scmp.le.s32.totalorder 1, %s10
    %p163 = scmp.lt.s32.totalorder %s10, 3
    %p164 = pnand %p162, %p163
    %p165 = pneg %p164
    // Predicated region
    $region33: #{subpixel_conv_forward.4} parent=5 // pred_check
      _
    $region34: #{subpixel_conv_forward.4} parent=5 // pred_check_branch
      %167 = sbr.rel (%p164) target = $region36
    $region35: #{subpixel_conv_forward.4} parent=5 // pred_region
      %s168 = ssub.s32 %s10, 1
      %s169 = smul.u32 128, %s15
      %p170 = scmp.lt.s32.totalorder %s169, 255
      %s171 = scalar_select %p170, %s169, 255
      %s172 = smul.addr %s171, 4
      %s173 = scalar_lea.vmem %s0, %s172
      %p174 = pneg %p36
      %p175 = pneg %p33
      %p176 = pneg %p57
      %p177 = pneg %p54
      %p178 = pneg %p78
      %p179 = pneg %p75
      %p180 = pneg %p99
      %p181 = pneg %p96
      %p182 = pneg %p125
      %p183 = pneg %p122
      %s184 = smul.u32 128, %s15
      %p185 = scmp.lt.s32.totalorder %s184, 255
      %s186 = scalar_select %p185, %s184, 255
      %s187 = smul.addr %s186, 4
      %s188 = scalar_lea.vmem %s4, %s187
      %s189 = smul.u32 128, %s15
      %p190 = scmp.lt.s32.totalorder %s189, 255
      %s191 = scalar_select %p190, %s189, 255
      %s192 = smul.addr %s191, 4
      %s193 = scalar_lea.vmem %s0, %s192
      %s194 = smul.u32 128, %s15
      %s195 = smul.u32 128, %s15
      %p196 = scmp.lt.s32.totalorder %s195, 255
      %s197 = scalar_select %p196, %s195, 255
      %s198 = smul.addr %s197, 4
      %s199 = scalar_lea.vmem %s4, %s198
      %s200 = smul.u32 128, %s15
      %v202 = vld [vmem:[%s193] sm:$0xf]
      %v203 = vld [vmem:[%s193 + $0x4] sm:$0xf]
      %v204 = vld [vmem:[%s193 + $0x8] sm:$0xf]
      %v205 = vld [vmem:[%s193 + $0xc] sm:$0xf]
      %v206 = vld [vmem:[%s193 + $0x10] sm:$0xf]
      %v207 = vld [vmem:[%s193 + $0x14] sm:$0xf]
      %v208 = vld [vmem:[%s193 + $0x18] sm:$0xf]
      %v209 = vld [vmem:[%s193 + $0x1c] sm:$0xf]
      %v210 = vld [vmem:[%s193 + $0x20] sm:$0xf]
      %v211 = vld [vmem:[%s193 + $0x24] sm:$0xf]
      %v212 = vld [vmem:[%s193 + $0x28] sm:$0xf]
      %v213 = vld [vmem:[%s193 + $0x2c] sm:$0xf]
      %v214 = vld [vmem:[%s193 + $0x30] sm:$0xf]
      %v215 = vld [vmem:[%s193 + $0x34] sm:$0xf]
      %v216 = vld [vmem:[%s193 + $0x38] sm:$0xf]
      %v217 = vld [vmem:[%s193 + $0x3c] sm:$0xf]
      %v218 = vld [vmem:[%s193 + $0x40] sm:$0xf]
      %v219 = vld [vmem:[%s193 + $0x44] sm:$0xf]
      %v220 = vld [vmem:[%s193 + $0x48] sm:$0xf]
      %v221 = vld [vmem:[%s193 + $0x4c] sm:$0xf]
      %v222 = vld [vmem:[%s193 + $0x50] sm:$0xf]
      %v223 = vld [vmem:[%s193 + $0x54] sm:$0xf]
      %v224 = vld [vmem:[%s193 + $0x58] sm:$0xf]
      %v225 = vld [vmem:[%s193 + $0x5c] sm:$0xf]
      %v226 = vld [vmem:[%s193 + $0x60] sm:$0xf]
      %v227 = vld [vmem:[%s193 + $0x64] sm:$0xf]
      %v228 = vld [vmem:[%s193 + $0x68] sm:$0xf]
      %v229 = vld [vmem:[%s193 + $0x6c] sm:$0xf]
      %v230 = vld [vmem:[%s193 + $0x70] sm:$0xf]
      %v231 = vld [vmem:[%s193 + $0x74] sm:$0xf]
      %v232 = vld [vmem:[%s193 + $0x78] sm:$0xf]
      %v233 = vld [vmem:[%s193 + $0x7c] sm:$0xf]
      %v234 = vld [vmem:[%s193 + $0x80] sm:$0xf]
      %v235 = vld [vmem:[%s193 + $0x84] sm:$0xf]
      %v236 = vld [vmem:[%s193 + $0x88] sm:$0xf]
      %v237 = vld [vmem:[%s193 + $0x8c] sm:$0xf]
      %v238 = vld [vmem:[%s193 + $0x90] sm:$0xf]
      %v239 = vld [vmem:[%s193 + $0x94] sm:$0xf]
      %v240 = vld [vmem:[%s193 + $0x98] sm:$0xf]
      %v241 = vld [vmem:[%s193 + $0x9c] sm:$0xf]
      %v242 = vld [vmem:[%s193 + $0xa0] sm:$0xf]
      %v243 = vld [vmem:[%s193 + $0xa4] sm:$0xf]
      %v244 = vld [vmem:[%s193 + $0xa8] sm:$0xf]
      %v245 = vld [vmem:[%s193 + $0xac] sm:$0xf]
      %v246 = vld [vmem:[%s193 + $0xb0] sm:$0xf]
      %v247 = vld [vmem:[%s193 + $0xb4] sm:$0xf]
      %v248 = vld [vmem:[%s193 + $0xb8] sm:$0xf]
      %v249 = vld [vmem:[%s193 + $0xbc] sm:$0xf]
      %v250 = vld [vmem:[%s193 + $0xc0] sm:$0xf]
      %v251 = vld [vmem:[%s193 + $0xc4] sm:$0xf]
      %v252 = vld [vmem:[%s193 + $0xc8] sm:$0xf]
      %v253 = vld [vmem:[%s193 + $0xcc] sm:$0xf]
      %v254 = vld [vmem:[%s193 + $0xd0] sm:$0xf]
      %v255 = vld [vmem:[%s193 + $0xd4] sm:$0xf]
      %v256 = vld [vmem:[%s193 + $0xd8] sm:$0xf]
      %v257 = vld [vmem:[%s193 + $0xdc] sm:$0xf]
      %v258 = vld [vmem:[%s193 + $0xe0] sm:$0xf]
      %v259 = vld [vmem:[%s193 + $0xe4] sm:$0xf]
      %v260 = vld [vmem:[%s193 + $0xe8] sm:$0xf]
      %v261 = vld [vmem:[%s193 + $0xec] sm:$0xf]
      %v262 = vld [vmem:[%s193 + $0xf0] sm:$0xf]
      %v263 = vld [vmem:[%s193 + $0xf4] sm:$0xf]
      %v264 = vld [vmem:[%s193 + $0xf8] sm:$0xf]
      %v265 = vld [vmem:[%s193 + $0xfc] sm:$0xf]
      %v266 = vld [vmem:[%s193 + $0x100] sm:$0xf]
      %v267 = vld [vmem:[%s193 + $0x104] sm:$0xf]
      %v268 = vld [vmem:[%s193 + $0x108] sm:$0xf]
      %v269 = vld [vmem:[%s193 + $0x10c] sm:$0xf]
      %v270 = vld [vmem:[%s193 + $0x110] sm:$0xf]
      %v271 = vld [vmem:[%s193 + $0x114] sm:$0xf]
      %v272 = vld [vmem:[%s193 + $0x118] sm:$0xf]
      %v273 = vld [vmem:[%s193 + $0x11c] sm:$0xf]
      %v274 = vld [vmem:[%s193 + $0x120] sm:$0xf]
      %v275 = vld [vmem:[%s193 + $0x124] sm:$0xf]
      %v276 = vld [vmem:[%s193 + $0x128] sm:$0xf]
      %v277 = vld [vmem:[%s193 + $0x12c] sm:$0xf]
      %v278 = vld [vmem:[%s193 + $0x130] sm:$0xf]
      %v279 = vld [vmem:[%s193 + $0x134] sm:$0xf]
      %v280 = vld [vmem:[%s193 + $0x138] sm:$0xf]
      %v281 = vld [vmem:[%s193 + $0x13c] sm:$0xf]
      %v282 = vld [vmem:[%s193 + $0x140] sm:$0xf]
      %v283 = vld [vmem:[%s193 + $0x144] sm:$0xf]
      %v284 = vld [vmem:[%s193 + $0x148] sm:$0xf]
      %v285 = vld [vmem:[%s193 + $0x14c] sm:$0xf]
      %v286 = vld [vmem:[%s193 + $0x150] sm:$0xf]
      %v287 = vld [vmem:[%s193 + $0x154] sm:$0xf]
      %v288 = vld [vmem:[%s193 + $0x158] sm:$0xf]
      %v289 = vld [vmem:[%s193 + $0x15c] sm:$0xf]
      %v290 = vld [vmem:[%s193 + $0x160] sm:$0xf]
      %v291 = vld [vmem:[%s193 + $0x164] sm:$0xf]
      %v292 = vld [vmem:[%s193 + $0x168] sm:$0xf]
      %v293 = vld [vmem:[%s193 + $0x16c] sm:$0xf]
      %v294 = vld [vmem:[%s193 + $0x170] sm:$0xf]
      %v295 = vld [vmem:[%s193 + $0x174] sm:$0xf]
      %v296 = vld [vmem:[%s193 + $0x178] sm:$0xf]
      %v297 = vld [vmem:[%s193 + $0x17c] sm:$0xf]
      %v298 = vld [vmem:[%s193 + $0x180] sm:$0xf]
      %v299 = vld [vmem:[%s193 + $0x184] sm:$0xf]
      %v300 = vld [vmem:[%s193 + $0x188] sm:$0xf]
      %v301 = vld [vmem:[%s193 + $0x18c] sm:$0xf]
      %v302 = vld [vmem:[%s193 + $0x190] sm:$0xf]
      %v303 = vld [vmem:[%s193 + $0x194] sm:$0xf]
      %v304 = vld [vmem:[%s193 + $0x198] sm:$0xf]
      %v305 = vld [vmem:[%s193 + $0x19c] sm:$0xf]
      %v306 = vld [vmem:[%s193 + $0x1a0] sm:$0xf]
      %v307 = vld [vmem:[%s193 + $0x1a4] sm:$0xf]
      %v308 = vld [vmem:[%s193 + $0x1a8] sm:$0xf]
      %v309 = vld [vmem:[%s193 + $0x1ac] sm:$0xf]
      %v310 = vld [vmem:[%s193 + $0x1b0] sm:$0xf]
      %v311 = vld [vmem:[%s193 + $0x1b4] sm:$0xf]
      %v312 = vld [vmem:[%s193 + $0x1b8] sm:$0xf]
      %v313 = vld [vmem:[%s193 + $0x1bc] sm:$0xf]
      %v314 = vld [vmem:[%s193 + $0x1c0] sm:$0xf]
      %v315 = vld [vmem:[%s193 + $0x1c4] sm:$0xf]
      %v316 = vld [vmem:[%s193 + $0x1c8] sm:$0xf]
      %v317 = vld [vmem:[%s193 + $0x1cc] sm:$0xf]
      %v318 = vld [vmem:[%s193 + $0x1d0] sm:$0xf]
      %v319 = vld [vmem:[%s193 + $0x1d4] sm:$0xf]
      %v320 = vld [vmem:[%s193 + $0x1d8] sm:$0xf]
      %v321 = vld [vmem:[%s193 + $0x1dc] sm:$0xf]
      %v322 = vld [vmem:[%s193 + $0x1e0] sm:$0xf]
      %v323 = vld [vmem:[%s193 + $0x1e4] sm:$0xf]
      %v324 = vld [vmem:[%s193 + $0x1e8] sm:$0xf]
      %v325 = vld [vmem:[%s193 + $0x1ec] sm:$0xf]
      %v326 = vld [vmem:[%s193 + $0x1f0] sm:$0xf]
      %v327 = vld [vmem:[%s193 + $0x1f4] sm:$0xf]
      %v328 = vld [vmem:[%s193 + $0x1f8] sm:$0xf]
      %v329 = vld [vmem:[%s193 + $0x1fc] sm:$0xf]
      %v330 = vld [vmem:[%s1] sm:$0xf]
      %v331 = vld [vmem:[%s1 + $0x4] sm:$0xf]
      %v332 = vld [vmem:[%s1 + $0x8] sm:$0xf]
      %v333 = vld [vmem:[%s1 + $0xc] sm:$0x3]
      %v462 = vunpack.c.l.b16 %v202
      %v463 = vunpack.c.l.b16 %v203
      %v464 = vunpack.c.l.b16 %v204
      %v465 = vunpack.c.l.b16 %v205
      %v466 = vunpack.c.l.b16 %v206
      %v467 = vunpack.c.l.b16 %v207
      %v468 = vunpack.c.l.b16 %v208
      %v469 = vunpack.c.l.b16 %v209
      %v470 = vunpack.c.l.b16 %v210
      %v471 = vunpack.c.l.b16 %v211
      %v472 = vunpack.c.l.b16 %v212
      %v473 = vunpack.c.l.b16 %v213
      %v474 = vunpack.c.l.b16 %v214
      %v475 = vunpack.c.l.b16 %v215
      %v476 = vunpack.c.l.b16 %v216
      %v477 = vunpack.c.l.b16 %v217
      %v478 = vunpack.c.l.b16 %v218
      %v479 = vunpack.c.l.b16 %v219
      %v480 = vunpack.c.l.b16 %v220
      %v481 = vunpack.c.l.b16 %v221
      %v482 = vunpack.c.l.b16 %v222
      %v483 = vunpack.c.l.b16 %v223
      %v484 = vunpack.c.l.b16 %v224
      %v485 = vunpack.c.l.b16 %v225
      %v486 = vunpack.c.l.b16 %v226
      %v487 = vunpack.c.l.b16 %v227
      %v488 = vunpack.c.l.b16 %v228
      %v489 = vunpack.c.l.b16 %v229
      %v490 = vunpack.c.l.b16 %v230
      %v491 = vunpack.c.l.b16 %v231
      %v492 = vunpack.c.l.b16 %v232
      %v493 = vunpack.c.l.b16 %v233
      %v494 = vunpack.c.l.b16 %v234
      %v495 = vunpack.c.l.b16 %v235
      %v496 = vunpack.c.l.b16 %v236
      %v497 = vunpack.c.l.b16 %v237
      %v498 = vunpack.c.l.b16 %v238
      %v499 = vunpack.c.l.b16 %v239
      %v500 = vunpack.c.l.b16 %v240
      %v501 = vunpack.c.l.b16 %v241
      %v502 = vunpack.c.l.b16 %v242
      %v503 = vunpack.c.l.b16 %v243
      %v504 = vunpack.c.l.b16 %v244
      %v505 = vunpack.c.l.b16 %v245
      %v506 = vunpack.c.l.b16 %v246
      %v507 = vunpack.c.l.b16 %v247
      %v508 = vunpack.c.l.b16 %v248
      %v509 = vunpack.c.l.b16 %v249
      %v510 = vunpack.c.l.b16 %v250
      %v511 = vunpack.c.l.b16 %v251
      %v512 = vunpack.c.l.b16 %v252
      %v513 = vunpack.c.l.b16 %v253
      %v514 = vunpack.c.l.b16 %v254
      %v515 = vunpack.c.l.b16 %v255
      %v516 = vunpack.c.l.b16 %v256
      %v517 = vunpack.c.l.b16 %v257
      %v518 = vunpack.c.l.b16 %v258
      %v519 = vunpack.c.l.b16 %v259
      %v520 = vunpack.c.l.b16 %v260
      %v521 = vunpack.c.l.b16 %v261
      %v522 = vunpack.c.l.b16 %v262
      %v523 = vunpack.c.l.b16 %v263
      %v524 = vunpack.c.l.b16 %v264
      %v525 = vunpack.c.l.b16 %v265
      %v526 = vunpack.c.l.b16 %v266
      %v527 = vunpack.c.l.b16 %v267
      %v528 = vunpack.c.l.b16 %v268
      %v529 = vunpack.c.l.b16 %v269
      %v530 = vunpack.c.l.b16 %v270
      %v531 = vunpack.c.l.b16 %v271
      %v532 = vunpack.c.l.b16 %v272
      %v533 = vunpack.c.l.b16 %v273
      %v534 = vunpack.c.l.b16 %v274
      %v535 = vunpack.c.l.b16 %v275
      %v536 = vunpack.c.l.b16 %v276
      %v537 = vunpack.c.l.b16 %v277
      %v538 = vunpack.c.l.b16 %v278
      %v539 = vunpack.c.l.b16 %v279
      %v540 = vunpack.c.l.b16 %v280
      %v541 = vunpack.c.l.b16 %v281
      %v542 = vunpack.c.l.b16 %v282
      %v543 = vunpack.c.l.b16 %v283
      %v544 = vunpack.c.l.b16 %v284
      %v545 = vunpack.c.l.b16 %v285
      %v546 = vunpack.c.l.b16 %v286
      %v547 = vunpack.c.l.b16 %v287
      %v548 = vunpack.c.l.b16 %v288
      %v549 = vunpack.c.l.b16 %v289
      %v550 = vunpack.c.l.b16 %v290
      %v551 = vunpack.c.l.b16 %v291
      %v552 = vunpack.c.l.b16 %v292
      %v553 = vunpack.c.l.b16 %v293
      %v554 = vunpack.c.l.b16 %v294
      %v555 = vunpack.c.l.b16 %v295
      %v556 = vunpack.c.l.b16 %v296
      %v557 = vunpack.c.l.b16 %v297
      %v558 = vunpack.c.l.b16 %v298
      %v559 = vunpack.c.l.b16 %v299
      %v560 = vunpack.c.l.b16 %v300
      %v561 = vunpack.c.l.b16 %v301
      %v562 = vunpack.c.l.b16 %v302
      %v563 = vunpack.c.l.b16 %v303
      %v564 = vunpack.c.l.b16 %v304
      %v565 = vunpack.c.l.b16 %v305
      %v566 = vunpack.c.l.b16 %v306
      %v567 = vunpack.c.l.b16 %v307
      %v568 = vunpack.c.l.b16 %v308
      %v569 = vunpack.c.l.b16 %v309
      %v570 = vunpack.c.l.b16 %v310
      %v571 = vunpack.c.l.b16 %v311
      %v572 = vunpack.c.l.b16 %v312
      %v573 = vunpack.c.l.b16 %v313
      %v574 = vunpack.c.l.b16 %v314
      %v575 = vunpack.c.l.b16 %v315
      %v576 = vunpack.c.l.b16 %v316
      %v577 = vunpack.c.l.b16 %v317
      %v578 = vunpack.c.l.b16 %v318
      %v579 = vunpack.c.l.b16 %v319
      %v580 = vunpack.c.l.b16 %v320
      %v581 = vunpack.c.l.b16 %v321
      %v582 = vunpack.c.l.b16 %v322
      %v583 = vunpack.c.l.b16 %v323
      %v584 = vunpack.c.l.b16 %v324
      %v585 = vunpack.c.l.b16 %v325
      %v586 = vunpack.c.l.b16 %v326
      %v587 = vunpack.c.l.b16 %v327
      %v588 = vunpack.c.l.b16 %v328
      %v589 = vunpack.c.l.b16 %v329
      %v590 = vpack.c.b16 %v463, %v462
      %v591 = vpack.c.b16 %v465, %v464
      %v592 = vpack.c.b16 %v467, %v466
      %v593 = vpack.c.b16 %v469, %v468
      %v594 = vpack.c.b16 %v471, %v470
      %v595 = vpack.c.b16 %v473, %v472
      %v596 = vpack.c.b16 %v475, %v474
      %v597 = vpack.c.b16 %v477, %v476
      %v598 = vpack.c.b16 %v479, %v478
      %v599 = vpack.c.b16 %v481, %v480
      %v600 = vpack.c.b16 %v483, %v482
      %v601 = vpack.c.b16 %v485, %v484
      %v602 = vpack.c.b16 %v487, %v486
      %v603 = vpack.c.b16 %v489, %v488
      %v604 = vpack.c.b16 %v491, %v490
      %v605 = vpack.c.b16 %v493, %v492
      %v606 = vpack.c.b16 %v495, %v494
      %v607 = vpack.c.b16 %v497, %v496
      %v608 = vpack.c.b16 %v499, %v498
      %v609 = vpack.c.b16 %v501, %v500
      %v610 = vpack.c.b16 %v503, %v502
      %v611 = vpack.c.b16 %v505, %v504
      %v612 = vpack.c.b16 %v507, %v506
      %v613 = vpack.c.b16 %v509, %v508
      %v614 = vpack.c.b16 %v511, %v510
      %v615 = vpack.c.b16 %v513, %v512
      %v616 = vpack.c.b16 %v515, %v514
      %v617 = vpack.c.b16 %v517, %v516
      %v618 = vpack.c.b16 %v519, %v518
      %v619 = vpack.c.b16 %v521, %v520
      %v620 = vpack.c.b16 %v523, %v522
      %v621 = vpack.c.b16 %v525, %v524
      %v622 = vpack.c.b16 %v527, %v526
      %v623 = vpack.c.b16 %v529, %v528
      %v624 = vpack.c.b16 %v531, %v530
      %v625 = vpack.c.b16 %v533, %v532
      %v626 = vpack.c.b16 %v535, %v534
      %v627 = vpack.c.b16 %v537, %v536
      %v628 = vpack.c.b16 %v539, %v538
      %v629 = vpack.c.b16 %v541, %v540
      %v630 = vpack.c.b16 %v543, %v542
      %v631 = vpack.c.b16 %v545, %v544
      %v632 = vpack.c.b16 %v547, %v546
      %v633 = vpack.c.b16 %v549, %v548
      %v634 = vpack.c.b16 %v551, %v550
      %v635 = vpack.c.b16 %v553, %v552
      %v636 = vpack.c.b16 %v555, %v554
      %v637 = vpack.c.b16 %v557, %v556
      %v638 = vpack.c.b16 %v559, %v558
      %v639 = vpack.c.b16 %v561, %v560
      %v640 = vpack.c.b16 %v563, %v562
      %v641 = vpack.c.b16 %v565, %v564
      %v642 = vpack.c.b16 %v567, %v566
      %v643 = vpack.c.b16 %v569, %v568
      %v644 = vpack.c.b16 %v571, %v570
      %v645 = vpack.c.b16 %v573, %v572
      %v646 = vpack.c.b16 %v575, %v574
      %v647 = vpack.c.b16 %v577, %v576
      %v648 = vpack.c.b16 %v579, %v578
      %v649 = vpack.c.b16 %v581, %v580
      %v650 = vpack.c.b16 %v583, %v582
      %v651 = vpack.c.b16 %v585, %v584
      %v652 = vpack.c.b16 %v587, %v586
      %v653 = vpack.c.b16 %v589, %v588
      %v658 = vunpack.c.l.b16 %v330
      %v659 = vunpack.c.l.b16 %v331
      %v660 = vunpack.c.l.b16 %v332
      %v661 = vunpack.c.l.b16 %v333
      %v662 = vpack.c.b16 %v659, %v658
      %v663 = vpack.c.b16 %v661, %v660
      %vm665 = vcmask 220160
      %v667 = vsel %vm665, %v590, 0
      %v670 = vsel %vm665, %v591, 0
      %v673 = vsel %vm665, %v592, 0
      %v676 = vsel %vm665, %v593, 0
      %v679 = vsel %vm665, %v594, 0
      %v682 = vsel %vm665, %v595, 0
      %v685 = vsel %vm665, %v596, 0
      %v688 = vsel %vm665, %v597, 0
      %v691 = vsel %vm665, %v598, 0
      %v694 = vsel %vm665, %v599, 0
      %v697 = vsel %vm665, %v600, 0
      %v700 = vsel %vm665, %v601, 0
      %v703 = vsel %vm665, %v602, 0
      %v706 = vsel %vm665, %v603, 0
      %v709 = vsel %vm665, %v604, 0
      %v712 = vsel %vm665, %v605, 0
      %v715 = vsel %vm665, %v606, 0
      %v718 = vsel %vm665, %v607, 0
      %v721 = vsel %vm665, %v608, 0
      %v724 = vsel %vm665, %v609, 0
      %v727 = vsel %vm665, %v610, 0
      %v730 = vsel %vm665, %v611, 0
      %v733 = vsel %vm665, %v612, 0
      %v736 = vsel %vm665, %v613, 0
      %v739 = vsel %vm665, %v614, 0
      %v742 = vsel %vm665, %v615, 0
      %v745 = vsel %vm665, %v616, 0
      %v748 = vsel %vm665, %v617, 0
      %v751 = vsel %vm665, %v618, 0
      %v754 = vsel %vm665, %v619, 0
      %v757 = vsel %vm665, %v620, 0
      %v760 = vsel %vm665, %v621, 0
      %v763 = vsel %vm665, %v622, 0
      %v766 = vsel %vm665, %v623, 0
      %v769 = vsel %vm665, %v624, 0
      %v772 = vsel %vm665, %v625, 0
      %v775 = vsel %vm665, %v626, 0
      %v778 = vsel %vm665, %v627, 0
      %v781 = vsel %vm665, %v628, 0
      %v784 = vsel %vm665, %v629, 0
      %v787 = vsel %vm665, %v630, 0
      %v790 = vsel %vm665, %v631, 0
      %v793 = vsel %vm665, %v632, 0
      %v796 = vsel %vm665, %v633, 0
      %v799 = vsel %vm665, %v634, 0
      %v802 = vsel %vm665, %v635, 0
      %v805 = vsel %vm665, %v636, 0
      %v808 = vsel %vm665, %v637, 0
      %v811 = vsel %vm665, %v638, 0
      %v814 = vsel %vm665, %v639, 0
      %v817 = vsel %vm665, %v640, 0
      %v820 = vsel %vm665, %v641, 0
      %v823 = vsel %vm665, %v642, 0
      %v826 = vsel %vm665, %v643, 0
      %v829 = vsel %vm665, %v644, 0
      %v832 = vsel %vm665, %v645, 0
      %v835 = vsel %vm665, %v646, 0
      %v838 = vsel %vm665, %v647, 0
      %v841 = vsel %vm665, %v648, 0
      %v844 = vsel %vm665, %v649, 0
      %v847 = vsel %vm665, %v650, 0
      %v850 = vsel %vm665, %v651, 0
      %v853 = vsel %vm665, %v652, 0
      %v856 = vsel %vm665, %v653, 0
      %vm858 = vcmask 1044480
      %vm859 = vcmask 1045504
      %v860 = vsel %vm858, 4294967295, 65535
      %v861 = vsel %vm859, %v860, 0
      %v863 = vand.u32 %v663, %v861
      %865 = vmatprep.subr.bf16.mxu0 0
      %866 = vmatpush1.bf16.msra.mxu0 %v662
      %867 = vmatprep.subr.bf16.mxu0 0
      %868 = vmatpush1.bf16.msra.mxu0 %v863
      %869 = vmatprep.subr.bf16.mxu0 0
      %870 = vmatpush1.bf16.msra.mxu0 0
      %871 = vmatprep.subr.bf16.mxu0 0
      %872 = vmatpush1.bf16.msra.mxu0 0
      %873 = vmatprep.subr.bf16.mxu0 0
      %874 = vmatpush1.bf16.msra.mxu0 0
      %875 = vmatprep.subr.bf16.mxu0 0
      %876 = vmatpush1.bf16.msra.mxu0 0
      %877 = vmatprep.subr.bf16.mxu0 0
      %878 = vmatpush1.bf16.msra.mxu0 0
      %879 = vmatprep.subr.bf16.mxu0 0
      %880 = vmatpush1.bf16.msra.mxu0 0
      %881 = vmatprep.subr.bf16.mxu0 0
      %882 = vmatpush1.bf16.msra.mxu0 0
      %883 = vmatprep.subr.bf16.mxu0 0
      %884 = vmatpush1.bf16.msra.mxu0 0
      %885 = vmatprep.subr.bf16.mxu0 0
      %886 = vmatpush1.bf16.msra.mxu0 0
      %887 = vmatprep.subr.bf16.mxu0 0
      %888 = vmatpush1.bf16.msra.mxu0 0
      %889 = vmatprep.subr.bf16.mxu0 0
      %890 = vmatpush1.bf16.msra.mxu0 0
      %891 = vmatprep.subr.bf16.mxu0 0
      %892 = vmatpush1.bf16.msra.mxu0 0
      %893 = vmatprep.subr.bf16.mxu0 0
      %894 = vmatpush1.bf16.msra.mxu0 0
      %895 = vmatprep.subr.bf16.mxu0 0
      %896 = vmatpush1.bf16.msra.mxu0 0
      %897 = vmatprep.mubr.bf16.mxu0 0
      %898 = vmatmul.mubr.bf16.gmra.mrb[0].mxu0 %v667
      %v899 = vpop.f32.mrb[0].mxu0
      %v900 = vadd.f32 0.0, %v899
      %v901 = vpop.f32.mrb[0].mxu0
      %v902 = vpop.f32.mrb[0].mxu0
      %v903 = vadd.f32 0.0, %v902
      %v904 = vpop.f32.mrb[0].mxu0
      %905 = vmatprep.mubr.bf16.mxu0 0
      %906 = vmatmul.mubr.bf16.gmra.mrb[0].mxu0 %v670
      %v907 = vpop.f32.mrb[0].mxu0
      %v908 = vadd.f32 0.0, %v907
      %v909 = vpop.f32.mrb[0].mxu0
      %v910 = vpop.f32.mrb[0].mxu0
      %v911 = vadd.f32 0.0, %v910
      %v912 = vpop.f32.mrb[0].mxu0
      %913 = vmatprep.mubr.bf16.mxu0 0
      %914 = vmatmul.mubr.bf16.gmra.mrb[0].mxu0 %v673
      %v915 = vpop.f32.mrb[0].mxu0
      %v916 = vadd.f32 0.0, %v915
      %v917 = vpop.f32.mrb[0].mxu0
      %v918 = vpop.f32.mrb[0].mxu0
      %v919 = vadd.f32 0.0, %v918
      %v920 = vpop.f32.mrb[0].mxu0
      %921 = vmatprep.mubr.bf16.mxu0 0
      %922 = vmatmul.mubr.bf16.gmra.mrb[0].mxu0 %v676
      %v923 = vpop.f32.mrb[0].mxu0
      %v924 = vadd.f32 0.0, %v923
      %v925 = vpop.f32.mrb[0].mxu0
      %v926 = vpop.f32.mrb[0].mxu0
      %v927 = vadd.f32 0.0, %v926
      %v928 = vpop.f32.mrb[0].mxu0
      %929 = vmatprep.mubr.bf16.mxu0 0
      %930 = vmatmul.mubr.bf16.gmra.mrb[0].mxu0 %v679
      %v931 = vpop.f32.mrb[0].mxu0
      %v932 = vadd.f32 0.0, %v931
      %v933 = vpop.f32.mrb[0].mxu0
      %v934 = vpop.f32.mrb[0].mxu0
      %v935 = vadd.f32 0.0, %v934
      %v936 = vpop.f32.mrb[0].mxu0
      %937 = vmatprep.mubr.bf16.mxu0 0
      %938 = vmatmul.mubr.bf16.gmra.mrb[0].mxu0 %v682
      %v939 = vpop.f32.mrb[0].mxu0
      %v940 = vadd.f32 0.0, %v939
      %v941 = vpop.f32.mrb[0].mxu0
      %v942 = vpop.f32.mrb[0].mxu0
      %v943 = vadd.f32 0.0, %v942
      %v944 = vpop.f32.mrb[0].mxu0
      %945 = vmatprep.mubr.bf16.mxu0 0
      %946 = vmatmul.mubr.bf16.gmra.mrb[0].mxu0 %v685
      %v947 = vpop.f32.mrb[0].mxu0
      %v948 = vadd.f32 0.0, %v947
      %v949 = vpop.f32.mrb[0].mxu0
      %v950 = vpop.f32.mrb[0].mxu0
      %v951 = vadd.f32 0.0, %v950
      %v952 = vpop.f32.mrb[0].mxu0
      %953 = vmatprep.mubr.bf16.mxu0 0
      %954 = vmatmul.mubr.bf16.gmra.mrb[0].mxu0 %v688
      %v955 = vpop.f32.mrb[0].mxu0
      %v956 = vadd.f32 0.0, %v955
      %v957 = vpop.f32.mrb[0].mxu0
      %v958 = vpop.f32.mrb[0].mxu0
      %v959 = vadd.f32 0.0, %v958
      %v960 = vpop.f32.mrb[0].mxu0
      %961 = vmatprep.mubr.bf16.mxu0 0
      %962 = vmatmul.mubr.bf16.gmra.mrb[0].mxu0 %v691
      %v963 = vpop.f32.mrb[0].mxu0
      %v964 = vadd.f32 0.0, %v963
      %v965 = vpop.f32.mrb[0].mxu0
      %v966 = vpop.f32.mrb[0].mxu0
      %v967 = vadd.f32 0.0, %v966
      %v968 = vpop.f32.mrb[0].mxu0
      %969 = vmatprep.mubr.bf16.mxu0 0
      %970 = vmatmul.mubr.bf16.gmra.mrb[0].mxu0 %v694
      %v971 = vpop.f32.mrb[0].mxu0
      %v972 = vadd.f32 0.0, %v971
      %v973 = vpop.f32.mrb[0].mxu0
      %v974 = vpop.f32.mrb[0].mxu0
      %v975 = vadd.f32 0.0, %v974
      %v976 = vpop.f32.mrb[0].mxu0
      %977 = vmatprep.mubr.bf16.mxu0 0
      %978 = vmatmul.mubr.bf16.gmra.mrb[0].mxu0 %v697
      %v979 = vpop.f32.mrb[0].mxu0
      %v980 = vadd.f32 0.0, %v979
      %v981 = vpop.f32.mrb[0].mxu0
      %v982 = vpop.f32.mrb[0].mxu0
      %v983 = vadd.f32 0.0, %v982
      %v984 = vpop.f32.mrb[0].mxu0
      %985 = vmatprep.mubr.bf16.mxu0 0
      %986 = vmatmul.mubr.bf16.gmra.mrb[0].mxu0 %v700
      %v987 = vpop.f32.mrb[0].mxu0
      %v988 = vadd.f32 0.0, %v987
      %v989 = vpop.f32.mrb[0].mxu0
      %v990 = vpop.f32.mrb[0].mxu0
      %v991 = vadd.f32 0.0, %v990
      %v992 = vpop.f32.mrb[0].mxu0
      %993 = vmatprep.mubr.bf16.mxu0 0
      %994 = vmatmul.mubr.bf16.gmra.mrb[0].mxu0 %v703
      %v995 = vpop.f32.mrb[0].mxu0
      %v996 = vadd.f32 0.0, %v995
      %v997 = vpop.f32.mrb[0].mxu0
      %v998 = vpop.f32.mrb[0].mxu0
      %v999 = vadd.f32 0.0, %v998
      %v1000 = vpop.f32.mrb[0].mxu0
      %1001 = vmatprep.mubr.bf16.mxu0 0
      %1002 = vmatmul.mubr.bf16.gmra.mrb[0].mxu0 %v706
      %v1003 = vpop.f32.mrb[0].mxu0
      %v1004 = vadd.f32 0.0, %v1003
      %v1005 = vpop.f32.mrb[0].mxu0
      %v1006 = vpop.f32.mrb[0].mxu0
      %v1007 = vadd.f32 0.0, %v1006
      %v1008 = vpop.f32.mrb[0].mxu0
      %1009 = vmatprep.mubr.bf16.mxu0 0
      %1010 = vmatmul.mubr.bf16.gmra.mrb[0].mxu0 %v709
      %v1011 = vpop.f32.mrb[0].mxu0
      %v1012 = vadd.f32 0.0, %v1011
      %v1013 = vpop.f32.mrb[0].mxu0
      %v1014 = vpop.f32.mrb[0].mxu0
      %v1015 = vadd.f32 0.0, %v1014
      %v1016 = vpop.f32.mrb[0].mxu0
      %1017 = vmatprep.mubr.bf16.mxu0 0
      %1018 = vmatmul.mubr.bf16.gmra.mrb[0].mxu0 %v712
      %v1019 = vpop.f32.mrb[0].mxu0
      %v1020 = vadd.f32 0.0, %v1019
      %v1021 = vpop.f32.mrb[0].mxu0
      %v1022 = vpop.f32.mrb[0].mxu0
      %v1023 = vadd.f32 0.0, %v1022
      %v1024 = vpop.f32.mrb[0].mxu0
      %1025 = vmatprep.mubr.bf16.mxu0 0
      %1026 = vmatmul.mubr.bf16.gmra.mrb[0].mxu0 %v715
      %v1027 = vpop.f32.mrb[0].mxu0
      %v1028 = vadd.f32 0.0, %v1027
      %v1029 = vpop.f32.mrb[0].mxu0
      %v1030 = vpop.f32.mrb[0].mxu0
      %v1031 = vadd.f32 0.0, %v1030
      %v1032 = vpop.f32.mrb[0].mxu0
      %1033 = vmatprep.mubr.bf16.mxu0 0
      %1034 = vmatmul.mubr.bf16.gmra.mrb[0].mxu0 %v718
      %v1035 = vpop.f32.mrb[0].mxu0
      %v1036 = vadd.f32 0.0, %v1035
      %v1037 = vpop.f32.mrb[0].mxu0
      %v1038 = vpop.f32.mrb[0].mxu0
      %v1039 = vadd.f32 0.0, %v1038
      %v1040 = vpop.f32.mrb[0].mxu0
      %1041 = vmatprep.mubr.bf16.mxu0 0
      %1042 = vmatmul.mubr.bf16.gmra.mrb[0].mxu0 %v721
      %v1043 = vpop.f32.mrb[0].mxu0
      %v1044 = vadd.f32 0.0, %v1043
      %v1045 = vpop.f32.mrb[0].mxu0
      %v1046 = vpop.f32.mrb[0].mxu0
      %v1047 = vadd.f32 0.0, %v1046
      %v1048 = vpop.f32.mrb[0].mxu0
      %1049 = vmatprep.mubr.bf16.mxu0 0
      %1050 = vmatmul.mubr.bf16.gmra.mrb[0].mxu0 %v724
      %v1051 = vpop.f32.mrb[0].mxu0
      %v1052 = vadd.f32 0.0, %v1051
      %v1053 = vpop.f32.mrb[0].mxu0
      %v1054 = vpop.f32.mrb[0].mxu0
      %v1055 = vadd.f32 0.0, %v1054
      %v1056 = vpop.f32.mrb[0].mxu0
      %1057 = vmatprep.mubr.bf16.mxu0 0
      %1058 = vmatmul.mubr.bf16.gmra.mrb[0].mxu0 %v727
      %v1059 = vpop.f32.mrb[0].mxu0
      %v1060 = vadd.f32 0.0, %v1059
      %v1061 = vpop.f32.mrb[0].mxu0
      %v1062 = vpop.f32.mrb[0].mxu0
      %v1063 = vadd.f32 0.0, %v1062
      %v1064 = vpop.f32.mrb[0].mxu0
      %1065 = vmatprep.mubr.bf16.mxu0 0
      %1066 = vmatmul.mubr.bf16.gmra.mrb[0].mxu0 %v730
      %v1067 = vpop.f32.mrb[0].mxu0
      %v1068 = vadd.f32 0.0, %v1067
      %v1069 = vpop.f32.mrb[0].mxu0
      %v1070 = vpop.f32.mrb[0].mxu0
      %v1071 = vadd.f32 0.0, %v1070
      %v1072 = vpop.f32.mrb[0].mxu0
      %1073 = vmatprep.mubr.bf16.mxu0 0
      %1074 = vmatmul.mubr.bf16.gmra.mrb[0].mxu0 %v733
      %v1075 = vpop.f32.mrb[0].mxu0
      %v1076 = vadd.f32 0.0, %v1075
      %v1077 = vpop.f32.mrb[0].mxu0
      %v1078 = vpop.f32.mrb[0].mxu0
      %v1079 = vadd.f32 0.0, %v1078
      %v1080 = vpop.f32.mrb[0].mxu0
      %1081 = vmatprep.mubr.bf16.mxu0 0
      %1082 = vmatmul.mubr.bf16.gmra.mrb[0].mxu0 %v736
      %v1083 = vpop.f32.mrb[0].mxu0
      %v1084 = vadd.f32 0.0, %v1083
      %v1085 = vpop.f32.mrb[0].mxu0
      %v1086 = vpop.f32.mrb[0].mxu0
      %v1087 = vadd.f32 0.0, %v1086
      %v1088 = vpop.f32.mrb[0].mxu0
      %1089 = vmatprep.mubr.bf16.mxu0 0
      %1090 = vmatmul.mubr.bf16.gmra.mrb[0].mxu0 %v739
      %v1091 = vpop.f32.mrb[0].mxu0
      %v1092 = vadd.f32 0.0, %v1091
      %v1093 = vpop.f32.mrb[0].mxu0
      %v1094 = vpop.f32.mrb[0].mxu0
      %v1095 = vadd.f32 0.0, %v1094
      %v1096 = vpop.f32.mrb[0].mxu0
      %1097 = vmatprep.mubr.bf16.mxu0 0
      %1098 = vmatmul.mubr.bf16.gmra.mrb[0].mxu0 %v742
      %v1099 = vpop.f32.mrb[0].mxu0
      %v1100 = vadd.f32 0.0, %v1099
      %v1101 = vpop.f32.mrb[0].mxu0
      %v1102 = vpop.f32.mrb[0].mxu0
      %v1103 = vadd.f32 0.0, %v1102
      %v1104 = vpop.f32.mrb[0].mxu0
      %1105 = vmatprep.mubr.bf16.mxu0 0
      %1106 = vmatmul.mubr.bf16.gmra.mrb[0].mxu0 %v745
      %v1107 = vpop.f32.mrb[0].mxu0
      %v1108 = vadd.f32 0.0, %v1107
      %v1109 = vpop.f32.mrb[0].mxu0
      %v1110 = vpop.f32.mrb[0].mxu0
      %v1111 = vadd.f32 0.0, %v1110
      %v1112 = vpop.f32.mrb[0].mxu0
      %1113 = vmatprep.mubr.bf16.mxu0 0
      %1114 = vmatmul.mubr.bf16.gmra.mrb[0].mxu0 %v748
      %v1115 = vpop.f32.mrb[0].mxu0
      %v1116 = vadd.f32 0.0, %v1115
      %v1117 = vpop.f32.mrb[0].mxu0
      %v1118 = vpop.f32.mrb[0].mxu0
      %v1119 = vadd.f32 0.0, %v1118
      %v1120 = vpop.f32.mrb[0].mxu0
      %1121 = vmatprep.mubr.bf16.mxu0 0
      %1122 = vmatmul.mubr.bf16.gmra.mrb[0].mxu0 %v751
      %v1123 = vpop.f32.mrb[0].mxu0
      %v1124 = vadd.f32 0.0, %v1123
      %v1125 = vpop.f32.mrb[0].mxu0
      %v1126 = vpop.f32.mrb[0].mxu0
      %v1127 = vadd.f32 0.0, %v1126
      %v1128 = vpop.f32.mrb[0].mxu0
      %1129 = vmatprep.mubr.bf16.mxu0 0
      %1130 = vmatmul.mubr.bf16.gmra.mrb[0].mxu0 %v754
      %v1131 = vpop.f32.mrb[0].mxu0
      %v1132 = vadd.f32 0.0, %v1131
      %v1133 = vpop.f32.mrb[0].mxu0
      %v1134 = vpop.f32.mrb[0].mxu0
      %v1135 = vadd.f32 0.0, %v1134
      %v1136 = vpop.f32.mrb[0].mxu0
      %1137 = vmatprep.mubr.bf16.mxu0 0
      %1138 = vmatmul.mubr.bf16.gmra.mrb[0].mxu0 %v757
      %v1139 = vpop.f32.mrb[0].mxu0
      %v1140 = vadd.f32 0.0, %v1139
      %v1141 = vpop.f32.mrb[0].mxu0
      %v1142 = vpop.f32.mrb[0].mxu0
      %v1143 = vadd.f32 0.0, %v1142
      %v1144 = vpop.f32.mrb[0].mxu0
      %1145 = vmatprep.mubr.bf16.mxu0 0
      %1146 = vmatmul.mubr.bf16.gmra.mrb[0].mxu0 %v760
      %v1147 = vpop.f32.mrb[0].mxu0
      %v1148 = vadd.f32 0.0, %v1147
      %v1149 = vpop.f32.mrb[0].mxu0
      %v1150 = vpop.f32.mrb[0].mxu0
      %v1151 = vadd.f32 0.0, %v1150
      %v1152 = vpop.f32.mrb[0].mxu0
      %1153 = vmatprep.mubr.bf16.mxu0 0
      %1154 = vmatmul.mubr.bf16.gmra.mrb[0].mxu0 %v763
      %v1155 = vpop.f32.mrb[0].mxu0
      %v1156 = vadd.f32 0.0, %v1155
      %v1157 = vpop.f32.mrb[0].mxu0
      %v1158 = vpop.f32.mrb[0].mxu0
      %v1159 = vadd.f32 0.0, %v1158
      %v1160 = vpop.f32.mrb[0].mxu0
      %1161 = vmatprep.mubr.bf16.mxu0 0
      %1162 = vmatmul.mubr.bf16.gmra.mrb[0].mxu0 %v766
      %v1163 = vpop.f32.mrb[0].mxu0
      %v1164 = vadd.f32 0.0, %v1163
      %v1165 = vpop.f32.mrb[0].mxu0
      %v1166 = vpop.f32.mrb[0].mxu0
      %v1167 = vadd.f32 0.0, %v1166
      %v1168 = vpop.f32.mrb[0].mxu0
      %1169 = vmatprep.mubr.bf16.mxu0 0
      %1170 = vmatmul.mubr.bf16.gmra.mrb[0].mxu0 %v769
      %v1171 = vpop.f32.mrb[0].mxu0
      %v1172 = vadd.f32 0.0, %v1171
      %v1173 = vpop.f32.mrb[0].mxu0
      %v1174 = vpop.f32.mrb[0].mxu0
      %v1175 = vadd.f32 0.0, %v1174
      %v1176 = vpop.f32.mrb[0].mxu0
      %1177 = vmatprep.mubr.bf16.mxu0 0
      %1178 = vmatmul.mubr.bf16.gmra.mrb[0].mxu0 %v772
      %v1179 = vpop.f32.mrb[0].mxu0
      %v1180 = vadd.f32 0.0, %v1179
      %v1181 = vpop.f32.mrb[0].mxu0
      %v1182 = vpop.f32.mrb[0].mxu0
      %v1183 = vadd.f32 0.0, %v1182
      %v1184 = vpop.f32.mrb[0].mxu0
      %1185 = vmatprep.mubr.bf16.mxu0 0
      %1186 = vmatmul.mubr.bf16.gmra.mrb[0].mxu0 %v775
      %v1187 = vpop.f32.mrb[0].mxu0
      %v1188 = vadd.f32 0.0, %v1187
      %v1189 = vpop.f32.mrb[0].mxu0
      %v1190 = vpop.f32.mrb[0].mxu0
      %v1191 = vadd.f32 0.0, %v1190
      %v1192 = vpop.f32.mrb[0].mxu0
      %1193 = vmatprep.mubr.bf16.mxu0 0
      %1194 = vmatmul.mubr.bf16.gmra.mrb[0].mxu0 %v778
      %v1195 = vpop.f32.mrb[0].mxu0
      %v1196 = vadd.f32 0.0, %v1195
      %v1197 = vpop.f32.mrb[0].mxu0
      %v1198 = vpop.f32.mrb[0].mxu0
      %v1199 = vadd.f32 0.0, %v1198
      %v1200 = vpop.f32.mrb[0].mxu0
      %1201 = vmatprep.mubr.bf16.mxu0 0
      %1202 = vmatmul.mubr.bf16.gmra.mrb[0].mxu0 %v781
      %v1203 = vpop.f32.mrb[0].mxu0
      %v1204 = vadd.f32 0.0, %v1203
      %v1205 = vpop.f32.mrb[0].mxu0
      %v1206 = vpop.f32.mrb[0].mxu0
      %v1207 = vadd.f32 0.0, %v1206
      %v1208 = vpop.f32.mrb[0].mxu0
      %1209 = vmatprep.mubr.bf16.mxu0 0
      %1210 = vmatmul.mubr.bf16.gmra.mrb[0].mxu0 %v784
      %v1211 = vpop.f32.mrb[0].mxu0
      %v1212 = vadd.f32 0.0, %v1211
      %v1213 = vpop.f32.mrb[0].mxu0
      %v1214 = vpop.f32.mrb[0].mxu0
      %v1215 = vadd.f32 0.0, %v1214
      %v1216 = vpop.f32.mrb[0].mxu0
      %1217 = vmatprep.mubr.bf16.mxu0 0
      %1218 = vmatmul.mubr.bf16.gmra.mrb[0].mxu0 %v787
      %v1219 = vpop.f32.mrb[0].mxu0
      %v1220 = vadd.f32 0.0, %v1219
      %v1221 = vpop.f32.mrb[0].mxu0
      %v1222 = vpop.f32.mrb[0].mxu0
      %v1223 = vadd.f32 0.0, %v1222
      %v1224 = vpop.f32.mrb[0].mxu0
      %1225 = vmatprep.mubr.bf16.mxu0 0
      %1226 = vmatmul.mubr.bf16.gmra.mrb[0].mxu0 %v790
      %v1227 = vpop.f32.mrb[0].mxu0
      %v1228 = vadd.f32 0.0, %v1227
      %v1229 = vpop.f32.mrb[0].mxu0
      %v1230 = vpop.f32.mrb[0].mxu0
      %v1231 = vadd.f32 0.0, %v1230
      %v1232 = vpop.f32.mrb[0].mxu0
      %1233 = vmatprep.mubr.bf16.mxu0 0
      %1234 = vmatmul.mubr.bf16.gmra.mrb[0].mxu0 %v793
      %v1235 = vpop.f32.mrb[0].mxu0
      %v1236 = vadd.f32 0.0, %v1235
      %v1237 = vpop.f32.mrb[0].mxu0
      %v1238 = vpop.f32.mrb[0].mxu0
      %v1239 = vadd.f32 0.0, %v1238
      %v1240 = vpop.f32.mrb[0].mxu0
      %1241 = vmatprep.mubr.bf16.mxu0 0
      %1242 = vmatmul.mubr.bf16.gmra.mrb[0].mxu0 %v796
      %v1243 = vpop.f32.mrb[0].mxu0
      %v1244 = vadd.f32 0.0, %v1243
      %v1245 = vpop.f32.mrb[0].mxu0
      %v1246 = vpop.f32.mrb[0].mxu0
      %v1247 = vadd.f32 0.0, %v1246
      %v1248 = vpop.f32.mrb[0].mxu0
      %1249 = vmatprep.mubr.bf16.mxu0 0
      %1250 = vmatmul.mubr.bf16.gmra.mrb[0].mxu0 %v799
      %v1251 = vpop.f32.mrb[0].mxu0
      %v1252 = vadd.f32 0.0, %v1251
      %v1253 = vpop.f32.mrb[0].mxu0
      %v1254 = vpop.f32.mrb[0].mxu0
      %v1255 = vadd.f32 0.0, %v1254
      %v1256 = vpop.f32.mrb[0].mxu0
      %1257 = vmatprep.mubr.bf16.mxu0 0
      %1258 = vmatmul.mubr.bf16.gmra.mrb[0].mxu0 %v802
      %v1259 = vpop.f32.mrb[0].mxu0
      %v1260 = vadd.f32 0.0, %v1259
      %v1261 = vpop.f32.mrb[0].mxu0
      %v1262 = vpop.f32.mrb[0].mxu0
      %v1263 = vadd.f32 0.0, %v1262
      %v1264 = vpop.f32.mrb[0].mxu0
      %1265 = vmatprep.mubr.bf16.mxu0 0
      %1266 = vmatmul.mubr.bf16.gmra.mrb[0].mxu0 %v805
      %v1267 = vpop.f32.mrb[0].mxu0
      %v1268 = vadd.f32 0.0, %v1267
      %v1269 = vpop.f32.mrb[0].mxu0
      %v1270 = vpop.f32.mrb[0].mxu0
      %v1271 = vadd.f32 0.0, %v1270
      %v1272 = vpop.f32.mrb[0].mxu0
      %1273 = vmatprep.mubr.bf16.mxu0 0
      %1274 = vmatmul.mubr.bf16.gmra.mrb[0].mxu0 %v808
      %v1275 = vpop.f32.mrb[0].mxu0
      %v1276 = vadd.f32 0.0, %v1275
      %v1277 = vpop.f32.mrb[0].mxu0
      %v1278 = vpop.f32.mrb[0].mxu0
      %v1279 = vadd.f32 0.0, %v1278
      %v1280 = vpop.f32.mrb[0].mxu0
      %1281 = vmatprep.mubr.bf16.mxu0 0
      %1282 = vmatmul.mubr.bf16.gmra.mrb[0].mxu0 %v811
      %v1283 = vpop.f32.mrb[0].mxu0
      %v1284 = vadd.f32 0.0, %v1283
      %v1285 = vpop.f32.mrb[0].mxu0
      %v1286 = vpop.f32.mrb[0].mxu0
      %v1287 = vadd.f32 0.0, %v1286
      %v1288 = vpop.f32.mrb[0].mxu0
      %1289 = vmatprep.mubr.bf16.mxu0 0
      %1290 = vmatmul.mubr.bf16.gmra.mrb[0].mxu0 %v814
      %v1291 = vpop.f32.mrb[0].mxu0
      %v1292 = vadd.f32 0.0, %v1291
      %v1293 = vpop.f32.mrb[0].mxu0
      %v1294 = vpop.f32.mrb[0].mxu0
      %v1295 = vadd.f32 0.0, %v1294
      %v1296 = vpop.f32.mrb[0].mxu0
      %1297 = vmatprep.mubr.bf16.mxu0 0
      %1298 = vmatmul.mubr.bf16.gmra.mrb[0].mxu0 %v817
      %v1299 = vpop.f32.mrb[0].mxu0
      %v1300 = vadd.f32 0.0, %v1299
      %v1301 = vpop.f32.mrb[0].mxu0
      %v1302 = vpop.f32.mrb[0].mxu0
      %v1303 = vadd.f32 0.0, %v1302
      %v1304 = vpop.f32.mrb[0].mxu0
      %1305 = vmatprep.mubr.bf16.mxu0 0
      %1306 = vmatmul.mubr.bf16.gmra.mrb[0].mxu0 %v820
      %v1307 = vpop.f32.mrb[0].mxu0
      %v1308 = vadd.f32 0.0, %v1307
      %v1309 = vpop.f32.mrb[0].mxu0
      %v1310 = vpop.f32.mrb[0].mxu0
      %v1311 = vadd.f32 0.0, %v1310
      %v1312 = vpop.f32.mrb[0].mxu0
      %1313 = vmatprep.mubr.bf16.mxu0 0
      %1314 = vmatmul.mubr.bf16.gmra.mrb[0].mxu0 %v823
      %v1315 = vpop.f32.mrb[0].mxu0
      %v1316 = vadd.f32 0.0, %v1315
      %v1317 = vpop.f32.mrb[0].mxu0
      %v1318 = vpop.f32.mrb[0].mxu0
      %v1319 = vadd.f32 0.0, %v1318
      %v1320 = vpop.f32.mrb[0].mxu0
      %1321 = vmatprep.mubr.bf16.mxu0 0
      %1322 = vmatmul.mubr.bf16.gmra.mrb[0].mxu0 %v826
      %v1323 = vpop.f32.mrb[0].mxu0
      %v1324 = vadd.f32 0.0, %v1323
      %v1325 = vpop.f32.mrb[0].mxu0
      %v1326 = vpop.f32.mrb[0].mxu0
      %v1327 = vadd.f32 0.0, %v1326
      %v1328 = vpop.f32.mrb[0].mxu0
      %1329 = vmatprep.mubr.bf16.mxu0 0
      %1330 = vmatmul.mubr.bf16.gmra.mrb[0].mxu0 %v829
      %v1331 = vpop.f32.mrb[0].mxu0
      %v1332 = vadd.f32 0.0, %v1331
      %v1333 = vpop.f32.mrb[0].mxu0
      %v1334 = vpop.f32.mrb[0].mxu0
      %v1335 = vadd.f32 0.0, %v1334
      %v1336 = vpop.f32.mrb[0].mxu0
      %1337 = vmatprep.mubr.bf16.mxu0 0
      %1338 = vmatmul.mubr.bf16.gmra.mrb[0].mxu0 %v832
      %v1339 = vpop.f32.mrb[0].mxu0
      %v1340 = vadd.f32 0.0, %v1339
      %v1341 = vpop.f32.mrb[0].mxu0
      %v1342 = vpop.f32.mrb[0].mxu0
      %v1343 = vadd.f32 0.0, %v1342
      %v1344 = vpop.f32.mrb[0].mxu0
      %1345 = vmatprep.mubr.bf16.mxu0 0
      %1346 = vmatmul.mubr.bf16.gmra.mrb[0].mxu0 %v835
      %v1347 = vpop.f32.mrb[0].mxu0
      %v1348 = vadd.f32 0.0, %v1347
      %v1349 = vpop.f32.mrb[0].mxu0
      %v1350 = vpop.f32.mrb[0].mxu0
      %v1351 = vadd.f32 0.0, %v1350
      %v1352 = vpop.f32.mrb[0].mxu0
      %1353 = vmatprep.mubr.bf16.mxu0 0
      %1354 = vmatmul.mubr.bf16.gmra.mrb[0].mxu0 %v838
      %v1355 = vpop.f32.mrb[0].mxu0
      %v1356 = vadd.f32 0.0, %v1355
      %v1357 = vpop.f32.mrb[0].mxu0
      %v1358 = vpop.f32.mrb[0].mxu0
      %v1359 = vadd.f32 0.0, %v1358
      %v1360 = vpop.f32.mrb[0].mxu0
      %1361 = vmatprep.mubr.bf16.mxu0 0
      %1362 = vmatmul.mubr.bf16.gmra.mrb[0].mxu0 %v841
      %v1363 = vpop.f32.mrb[0].mxu0
      %v1364 = vadd.f32 0.0, %v1363
      %v1365 = vpop.f32.mrb[0].mxu0
      %v1366 = vpop.f32.mrb[0].mxu0
      %v1367 = vadd.f32 0.0, %v1366
      %v1368 = vpop.f32.mrb[0].mxu0
      %1369 = vmatprep.mubr.bf16.mxu0 0
      %1370 = vmatmul.mubr.bf16.gmra.mrb[0].mxu0 %v844
      %v1371 = vpop.f32.mrb[0].mxu0
      %v1372 = vadd.f32 0.0, %v1371
      %v1373 = vpop.f32.mrb[0].mxu0
      %v1374 = vpop.f32.mrb[0].mxu0
      %v1375 = vadd.f32 0.0, %v1374
      %v1376 = vpop.f32.mrb[0].mxu0
      %1377 = vmatprep.mubr.bf16.mxu0 0
      %1378 = vmatmul.mubr.bf16.gmra.mrb[0].mxu0 %v847
      %v1379 = vpop.f32.mrb[0].mxu0
      %v1380 = vadd.f32 0.0, %v1379
      %v1381 = vpop.f32.mrb[0].mxu0
      %v1382 = vpop.f32.mrb[0].mxu0
      %v1383 = vadd.f32 0.0, %v1382
      %v1384 = vpop.f32.mrb[0].mxu0
      %1385 = vmatprep.mubr.bf16.mxu0 0
      %1386 = vmatmul.mubr.bf16.gmra.mrb[0].mxu0 %v850
      %v1387 = vpop.f32.mrb[0].mxu0
      %v1388 = vadd.f32 0.0, %v1387
      %v1389 = vpop.f32.mrb[0].mxu0
      %v1390 = vpop.f32.mrb[0].mxu0
      %v1391 = vadd.f32 0.0, %v1390
      %v1392 = vpop.f32.mrb[0].mxu0
      %1393 = vmatprep.mubr.bf16.mxu0 0
      %1394 = vmatmul.mubr.bf16.gmra.mrb[0].mxu0 %v853
      %v1395 = vpop.f32.mrb[0].mxu0
      %v1396 = vadd.f32 0.0, %v1395
      %v1397 = vpop.f32.mrb[0].mxu0
      %v1398 = vpop.f32.mrb[0].mxu0
      %v1399 = vadd.f32 0.0, %v1398
      %v1400 = vpop.f32.mrb[0].mxu0
      %1401 = vmatprep.mubr.bf16.mxu0 0
      %1402 = vmatmul.mubr.bf16.gmra.mrb[0].mxu0 %v856
      %v1403 = vpop.f32.mrb[0].mxu0
      %v1404 = vadd.f32 0.0, %v1403
      %v1405 = vpop.f32.mrb[0].mxu0
      %v1406 = vpop.f32.mrb[0].mxu0
      %v1407 = vadd.f32 0.0, %v1406
      %v1408 = vpop.f32.mrb[0].mxu0
      %1409 = vdwg.mxu0
      %v1410 = vld [vmem:[%s2] sm:$0x1]
      %v1412 = vlaneseq
      %v1413 = vshrl.u32 %v1412, 7
      %v1414 = vsub.s32 0, %v1413
      %v1415 = vrot.slane %v1410, %v1414
      %v1417 = vmul.f32 %v900, %v1415
      %v1418 = vmul.f32 %v903, %v1415
      %v1419 = vmul.f32 %v908, %v1415
      %v1420 = vmul.f32 %v911, %v1415
      %v1421 = vmul.f32 %v916, %v1415
      %v1422 = vmul.f32 %v919, %v1415
      %v1423 = vmul.f32 %v924, %v1415
      %v1424 = vmul.f32 %v927, %v1415
      %v1425 = vmul.f32 %v932, %v1415
      %v1426 = vmul.f32 %v935, %v1415
      %v1427 = vmul.f32 %v940, %v1415
      %v1428 = vmul.f32 %v943, %v1415
      %v1429 = vmul.f32 %v948, %v1415
      %v1430 = vmul.f32 %v951, %v1415
      %v1431 = vmul.f32 %v956, %v1415
      %v1432 = vmul.f32 %v959, %v1415
      %v1433 = vmul.f32 %v964, %v1415
      %v1434 = vmul.f32 %v967, %v1415
      %v1435 = vmul.f32 %v972, %v1415
      %v1436 = vmul.f32 %v975, %v1415
      %v1437 = vmul.f32 %v980, %v1415
      %v1438 = vmul.f32 %v983, %v1415
      %v1439 = vmul.f32 %v988, %v1415
      %v1440 = vmul.f32 %v991, %v1415
      %v1441 = vmul.f32 %v996, %v1415
      %v1442 = vmul.f32 %v999, %v1415
      %v1443 = vmul.f32 %v1004, %v1415
      %v1444 = vmul.f32 %v1007, %v1415
      %v1445 = vmul.f32 %v1012, %v1415
      %v1446 = vmul.f32 %v1015, %v1415
      %v1447 = vmul.f32 %v1020, %v1415
      %v1448 = vmul.f32 %v1023, %v1415
      %v1449 = vmul.f32 %v1028, %v1415
      %v1450 = vmul.f32 %v1031, %v1415
      %v1451 = vmul.f32 %v1036, %v1415
      %v1452 = vmul.f32 %v1039, %v1415
      %v1453 = vmul.f32 %v1044, %v1415
      %v1454 = vmul.f32 %v1047, %v1415
      %v1455 = vmul.f32 %v1052, %v1415
      %v1456 = vmul.f32 %v1055, %v1415
      %v1457 = vmul.f32 %v1060, %v1415
      %v1458 = vmul.f32 %v1063, %v1415
      %v1459 = vmul.f32 %v1068, %v1415
      %v1460 = vmul.f32 %v1071, %v1415
      %v1461 = vmul.f32 %v1076, %v1415
      %v1462 = vmul.f32 %v1079, %v1415
      %v1463 = vmul.f32 %v1084, %v1415
      %v1464 = vmul.f32 %v1087, %v1415
      %v1465 = vmul.f32 %v1092, %v1415
      %v1466 = vmul.f32 %v1095, %v1415
      %v1467 = vmul.f32 %v1100, %v1415
      %v1468 = vmul.f32 %v1103, %v1415
      %v1469 = vmul.f32 %v1108, %v1415
      %v1470 = vmul.f32 %v1111, %v1415
      %v1471 = vmul.f32 %v1116, %v1415
      %v1472 = vmul.f32 %v1119, %v1415
      %v1473 = vmul.f32 %v1124, %v1415
      %v1474 = vmul.f32 %v1127, %v1415
      %v1475 = vmul.f32 %v1132, %v1415
      %v1476 = vmul.f32 %v1135, %v1415
      %v1477 = vmul.f32 %v1140, %v1415
      %v1478 = vmul.f32 %v1143, %v1415
      %v1479 = vmul.f32 %v1148, %v1415
      %v1480 = vmul.f32 %v1151, %v1415
      %v1481 = vmul.f32 %v1156, %v1415
      %v1482 = vmul.f32 %v1159, %v1415
      %v1483 = vmul.f32 %v1164, %v1415
      %v1484 = vmul.f32 %v1167, %v1415
      %v1485 = vmul.f32 %v1172, %v1415
      %v1486 = vmul.f32 %v1175, %v1415
      %v1487 = vmul.f32 %v1180, %v1415
      %v1488 = vmul.f32 %v1183, %v1415
      %v1489 = vmul.f32 %v1188, %v1415
      %v1490 = vmul.f32 %v1191, %v1415
      %v1491 = vmul.f32 %v1196, %v1415
      %v1492 = vmul.f32 %v1199, %v1415
      %v1493 = vmul.f32 %v1204, %v1415
      %v1494 = vmul.f32 %v1207, %v1415
      %v1495 = vmul.f32 %v1212, %v1415
      %v1496 = vmul.f32 %v1215, %v1415
      %v1497 = vmul.f32 %v1220, %v1415
      %v1498 = vmul.f32 %v1223, %v1415
      %v1499 = vmul.f32 %v1228, %v1415
      %v1500 = vmul.f32 %v1231, %v1415
      %v1501 = vmul.f32 %v1236, %v1415
      %v1502 = vmul.f32 %v1239, %v1415
      %v1503 = vmul.f32 %v1244, %v1415
      %v1504 = vmul.f32 %v1247, %v1415
      %v1505 = vmul.f32 %v1252, %v1415
      %v1506 = vmul.f32 %v1255, %v1415
      %v1507 = vmul.f32 %v1260, %v1415
      %v1508 = vmul.f32 %v1263, %v1415
      %v1509 = vmul.f32 %v1268, %v1415
      %v1510 = vmul.f32 %v1271, %v1415
      %v1511 = vmul.f32 %v1276, %v1415
      %v1512 = vmul.f32 %v1279, %v1415
      %v1513 = vmul.f32 %v1284, %v1415
      %v1514 = vmul.f32 %v1287, %v1415
      %v1515 = vmul.f32 %v1292, %v1415
      %v1516 = vmul.f32 %v1295, %v1415
      %v1517 = vmul.f32 %v1300, %v1415
      %v1518 = vmul.f32 %v1303, %v1415
      %v1519 = vmul.f32 %v1308, %v1415
      %v1520 = vmul.f32 %v1311, %v1415
      %v1521 = vmul.f32 %v1316, %v1415
      %v1522 = vmul.f32 %v1319, %v1415
      %v1523 = vmul.f32 %v1324, %v1415
      %v1524 = vmul.f32 %v1327, %v1415
      %v1525 = vmul.f32 %v1332, %v1415
      %v1526 = vmul.f32 %v1335, %v1415
      %v1527 = vmul.f32 %v1340, %v1415
      %v1528 = vmul.f32 %v1343, %v1415
      %v1529 = vmul.f32 %v1348, %v1415
      %v1530 = vmul.f32 %v1351, %v1415
      %v1531 = vmul.f32 %v1356, %v1415
      %v1532 = vmul.f32 %v1359, %v1415
      %v1533 = vmul.f32 %v1364, %v1415
      %v1534 = vmul.f32 %v1367, %v1415
      %v1535 = vmul.f32 %v1372, %v1415
      %v1536 = vmul.f32 %v1375, %v1415
      %v1537 = vmul.f32 %v1380, %v1415
      %v1538 = vmul.f32 %v1383, %v1415
      %v1539 = vmul.f32 %v1388, %v1415
      %v1540 = vmul.f32 %v1391, %v1415
      %v1541 = vmul.f32 %v1396, %v1415
      %v1542 = vmul.f32 %v1399, %v1415
      %v1543 = vmul.f32 %v1404, %v1415
      %v1544 = vmul.f32 %v1407, %v1415
      %v1545 = vld [vmem:[%s3] sm:$0x1]
      %v1547 = vlaneseq
      %v1548 = vshrl.u32 %v1547, 7
      %v1549 = vsub.s32 0, %v1548
      %v1550 = vrot.slane %v1545, %v1549
      %v1552 = vadd.f32 %v1417, %v1550
      %v1553 = vadd.f32 %v1418, %v1550
      %v1554 = vadd.f32 %v1419, %v1550
      %v1555 = vadd.f32 %v1420, %v1550
      %v1556 = vadd.f32 %v1421, %v1550
      %v1557 = vadd.f32 %v1422, %v1550
      %v1558 = vadd.f32 %v1423, %v1550
      %v1559 = vadd.f32 %v1424, %v1550
      %v1560 = vadd.f32 %v1425, %v1550
      %v1561 = vadd.f32 %v1426, %v1550
      %v1562 = vadd.f32 %v1427, %v1550
      %v1563 = vadd.f32 %v1428, %v1550
      %v1564 = vadd.f32 %v1429, %v1550
      %v1565 = vadd.f32 %v1430, %v1550
      %v1566 = vadd.f32 %v1431, %v1550
      %v1567 = vadd.f32 %v1432, %v1550
      %v1568 = vadd.f32 %v1433, %v1550
      %v1569 = vadd.f32 %v1434, %v1550
      %v1570 = vadd.f32 %v1435, %v1550
      %v1571 = vadd.f32 %v1436, %v1550
      %v1572 = vadd.f32 %v1437, %v1550
      %v1573 = vadd.f32 %v1438, %v1550
      %v1574 = vadd.f32 %v1439, %v1550
      %v1575 = vadd.f32 %v1440, %v1550
      %v1576 = vadd.f32 %v1441, %v1550
      %v1577 = vadd.f32 %v1442, %v1550
      %v1578 = vadd.f32 %v1443, %v1550
      %v1579 = vadd.f32 %v1444, %v1550
      %v1580 = vadd.f32 %v1445, %v1550
      %v1581 = vadd.f32 %v1446, %v1550
      %v1582 = vadd.f32 %v1447, %v1550
      %v1583 = vadd.f32 %v1448, %v1550
      %v1584 = vadd.f32 %v1449, %v1550
      %v1585 = vadd.f32 %v1450, %v1550
      %v1586 = vadd.f32 %v1451, %v1550
      %v1587 = vadd.f32 %v1452, %v1550
      %v1588 = vadd.f32 %v1453, %v1550
      %v1589 = vadd.f32 %v1454, %v1550
      %v1590 = vadd.f32 %v1455, %v1550
      %v1591 = vadd.f32 %v1456, %v1550
      %v1592 = vadd.f32 %v1457, %v1550
      %v1593 = vadd.f32 %v1458, %v1550
      %v1594 = vadd.f32 %v1459, %v1550
      %v1595 = vadd.f32 %v1460, %v1550
      %v1596 = vadd.f32 %v1461, %v1550
      %v1597 = vadd.f32 %v1462, %v1550
      %v1598 = vadd.f32 %v1463, %v1550
      %v1599 = vadd.f32 %v1464, %v1550
      %v1600 = vadd.f32 %v1465, %v1550
      %v1601 = vadd.f32 %v1466, %v1550
      %v1602 = vadd.f32 %v1467, %v1550
      %v1603 = vadd.f32 %v1468, %v1550
      %v1604 = vadd.f32 %v1469, %v1550
      %v1605 = vadd.f32 %v1470, %v1550
      %v1606 = vadd.f32 %v1471, %v1550
      %v1607 = vadd.f32 %v1472, %v1550
      %v1608 = vadd.f32 %v1473, %v1550
      %v1609 = vadd.f32 %v1474, %v1550
      %v1610 = vadd.f32 %v1475, %v1550
      %v1611 = vadd.f32 %v1476, %v1550
      %v1612 = vadd.f32 %v1477, %v1550
      %v1613 = vadd.f32 %v1478, %v1550
      %v1614 = vadd.f32 %v1479, %v1550
      %v1615 = vadd.f32 %v1480, %v1550
      %v1616 = vadd.f32 %v1481, %v1550
      %v1617 = vadd.f32 %v1482, %v1550
      %v1618 = vadd.f32 %v1483, %v1550
      %v1619 = vadd.f32 %v1484, %v1550
      %v1620 = vadd.f32 %v1485, %v1550
      %v1621 = vadd.f32 %v1486, %v1550
      %v1622 = vadd.f32 %v1487, %v1550
      %v1623 = vadd.f32 %v1488, %v1550
      %v1624 = vadd.f32 %v1489, %v1550
      %v1625 = vadd.f32 %v1490, %v1550
      %v1626 = vadd.f32 %v1491, %v1550
      %v1627 = vadd.f32 %v1492, %v1550
      %v1628 = vadd.f32 %v1493, %v1550
      %v1629 = vadd.f32 %v1494, %v1550
      %v1630 = vadd.f32 %v1495, %v1550
      %v1631 = vadd.f32 %v1496, %v1550
      %v1632 = vadd.f32 %v1497, %v1550
      %v1633 = vadd.f32 %v1498, %v1550
      %v1634 = vadd.f32 %v1499, %v1550
      %v1635 = vadd.f32 %v1500, %v1550
      %v1636 = vadd.f32 %v1501, %v1550
      %v1637 = vadd.f32 %v1502, %v1550
      %v1638 = vadd.f32 %v1503, %v1550
      %v1639 = vadd.f32 %v1504, %v1550
      %v1640 = vadd.f32 %v1505, %v1550
      %v1641 = vadd.f32 %v1506, %v1550
      %v1642 = vadd.f32 %v1507, %v1550
      %v1643 = vadd.f32 %v1508, %v1550
      %v1644 = vadd.f32 %v1509, %v1550
      %v1645 = vadd.f32 %v1510, %v1550
      %v1646 = vadd.f32 %v1511, %v1550
      %v1647 = vadd.f32 %v1512, %v1550
      %v1648 = vadd.f32 %v1513, %v1550
      %v1649 = vadd.f32 %v1514, %v1550
      %v1650 = vadd.f32 %v1515, %v1550
      %v1651 = vadd.f32 %v1516, %v1550
      %v1652 = vadd.f32 %v1517, %v1550
      %v1653 = vadd.f32 %v1518, %v1550
      %v1654 = vadd.f32 %v1519, %v1550
      %v1655 = vadd.f32 %v1520, %v1550
      %v1656 = vadd.f32 %v1521, %v1550
      %v1657 = vadd.f32 %v1522, %v1550
      %v1658 = vadd.f32 %v1523, %v1550
      %v1659 = vadd.f32 %v1524, %v1550
      %v1660 = vadd.f32 %v1525, %v1550
      %v1661 = vadd.f32 %v1526, %v1550
      %v1662 = vadd.f32 %v1527, %v1550
      %v1663 = vadd.f32 %v1528, %v1550
      %v1664 = vadd.f32 %v1529, %v1550
      %v1665 = vadd.f32 %v1530, %v1550
      %v1666 = vadd.f32 %v1531, %v1550
      %v1667 = vadd.f32 %v1532, %v1550
      %v1668 = vadd.f32 %v1533, %v1550
      %v1669 = vadd.f32 %v1534, %v1550
      %v1670 = vadd.f32 %v1535, %v1550
      %v1671 = vadd.f32 %v1536, %v1550
      %v1672 = vadd.f32 %v1537, %v1550
      %v1673 = vadd.f32 %v1538, %v1550
      %v1674 = vadd.f32 %v1539, %v1550
      %v1675 = vadd.f32 %v1540, %v1550
      %v1676 = vadd.f32 %v1541, %v1550
      %v1677 = vadd.f32 %v1542, %v1550
      %v1678 = vadd.f32 %v1543, %v1550
      %v1679 = vadd.f32 %v1544, %v1550
      %vm1680 = vcmp.ge.f32.partialorder %v1552, 0.0
      %vm1681 = vcmp.ge.f32.partialorder %v1553, 0.0
      %vm1682 = vcmp.ge.f32.partialorder %v1554, 0.0
      %vm1683 = vcmp.ge.f32.partialorder %v1555, 0.0
      %vm1684 = vcmp.ge.f32.partialorder %v1556, 0.0
      %vm1685 = vcmp.ge.f32.partialorder %v1557, 0.0
      %vm1686 = vcmp.ge.f32.partialorder %v1558, 0.0
      %vm1687 = vcmp.ge.f32.partialorder %v1559, 0.0
      %vm1688 = vcmp.ge.f32.partialorder %v1560, 0.0
      %vm1689 = vcmp.ge.f32.partialorder %v1561, 0.0
      %vm1690 = vcmp.ge.f32.partialorder %v1562, 0.0
      %vm1691 = vcmp.ge.f32.partialorder %v1563, 0.0
      %vm1692 = vcmp.ge.f32.partialorder %v1564, 0.0
      %vm1693 = vcmp.ge.f32.partialorder %v1565, 0.0
      %vm1694 = vcmp.ge.f32.partialorder %v1566, 0.0
      %vm1695 = vcmp.ge.f32.partialorder %v1567, 0.0
      %vm1696 = vcmp.ge.f32.partialorder %v1568, 0.0
      %vm1697 = vcmp.ge.f32.partialorder %v1569, 0.0
      %vm1698 = vcmp.ge.f32.partialorder %v1570, 0.0
      %vm1699 = vcmp.ge.f32.partialorder %v1571, 0.0
      %vm1700 = vcmp.ge.f32.partialorder %v1572, 0.0
      %vm1701 = vcmp.ge.f32.partialorder %v1573, 0.0
      %vm1702 = vcmp.ge.f32.partialorder %v1574, 0.0
      %vm1703 = vcmp.ge.f32.partialorder %v1575, 0.0
      %vm1704 = vcmp.ge.f32.partialorder %v1576, 0.0
      %vm1705 = vcmp.ge.f32.partialorder %v1577, 0.0
      %vm1706 = vcmp.ge.f32.partialorder %v1578, 0.0
      %vm1707 = vcmp.ge.f32.partialorder %v1579, 0.0
      %vm1708 = vcmp.ge.f32.partialorder %v1580, 0.0
      %vm1709 = vcmp.ge.f32.partialorder %v1581, 0.0
      %vm1710 = vcmp.ge.f32.partialorder %v1582, 0.0
      %vm1711 = vcmp.ge.f32.partialorder %v1583, 0.0
      %vm1712 = vcmp.ge.f32.partialorder %v1584, 0.0
      %vm1713 = vcmp.ge.f32.partialorder %v1585, 0.0
      %vm1714 = vcmp.ge.f32.partialorder %v1586, 0.0
      %vm1715 = vcmp.ge.f32.partialorder %v1587, 0.0
      %vm1716 = vcmp.ge.f32.partialorder %v1588, 0.0
      %vm1717 = vcmp.ge.f32.partialorder %v1589, 0.0
      %vm1718 = vcmp.ge.f32.partialorder %v1590, 0.0
      %vm1719 = vcmp.ge.f32.partialorder %v1591, 0.0
      %vm1720 = vcmp.ge.f32.partialorder %v1592, 0.0
      %vm1721 = vcmp.ge.f32.partialorder %v1593, 0.0
      %vm1722 = vcmp.ge.f32.partialorder %v1594, 0.0
      %vm1723 = vcmp.ge.f32.partialorder %v1595, 0.0
      %vm1724 = vcmp.ge.f32.partialorder %v1596, 0.0
      %vm1725 = vcmp.ge.f32.partialorder %v1597, 0.0
      %vm1726 = vcmp.ge.f32.partialorder %v1598, 0.0
      %vm1727 = vcmp.ge.f32.partialorder %v1599, 0.0
      %vm1728 = vcmp.ge.f32.partialorder %v1600, 0.0
      %vm1729 = vcmp.ge.f32.partialorder %v1601, 0.0
      %vm1730 = vcmp.ge.f32.partialorder %v1602, 0.0
      %vm1731 = vcmp.ge.f32.partialorder %v1603, 0.0
      %vm1732 = vcmp.ge.f32.partialorder %v1604, 0.0
      %vm1733 = vcmp.ge.f32.partialorder %v1605, 0.0
      %vm1734 = vcmp.ge.f32.partialorder %v1606, 0.0
      %vm1735 = vcmp.ge.f32.partialorder %v1607, 0.0
      %vm1736 = vcmp.ge.f32.partialorder %v1608, 0.0
      %vm1737 = vcmp.ge.f32.partialorder %v1609, 0.0
      %vm1738 = vcmp.ge.f32.partialorder %v1610, 0.0
      %vm1739 = vcmp.ge.f32.partialorder %v1611, 0.0
      %vm1740 = vcmp.ge.f32.partialorder %v1612, 0.0
      %vm1741 = vcmp.ge.f32.partialorder %v1613, 0.0
      %vm1742 = vcmp.ge.f32.partialorder %v1614, 0.0
      %vm1743 = vcmp.ge.f32.partialorder %v1615, 0.0
      %vm1744 = vcmp.ge.f32.partialorder %v1616, 0.0
      %vm1745 = vcmp.ge.f32.partialorder %v1617, 0.0
      %vm1746 = vcmp.ge.f32.partialorder %v1618, 0.0
      %vm1747 = vcmp.ge.f32.partialorder %v1619, 0.0
      %vm1748 = vcmp.ge.f32.partialorder %v1620, 0.0
      %vm1749 = vcmp.ge.f32.partialorder %v1621, 0.0
      %vm1750 = vcmp.ge.f32.partialorder %v1622, 0.0
      %vm1751 = vcmp.ge.f32.partialorder %v1623, 0.0
      %vm1752 = vcmp.ge.f32.partialorder %v1624, 0.0
      %vm1753 = vcmp.ge.f32.partialorder %v1625, 0.0
      %vm1754 = vcmp.ge.f32.partialorder %v1626, 0.0
      %vm1755 = vcmp.ge.f32.partialorder %v1627, 0.0
      %vm1756 = vcmp.ge.f32.partialorder %v1628, 0.0
      %vm1757 = vcmp.ge.f32.partialorder %v1629, 0.0
      %vm1758 = vcmp.ge.f32.partialorder %v1630, 0.0
      %vm1759 = vcmp.ge.f32.partialorder %v1631, 0.0
      %vm1760 = vcmp.ge.f32.partialorder %v1632, 0.0
      %vm1761 = vcmp.ge.f32.partialorder %v1633, 0.0
      %vm1762 = vcmp.ge.f32.partialorder %v1634, 0.0
      %vm1763 = vcmp.ge.f32.partialorder %v1635, 0.0
      %vm1764 = vcmp.ge.f32.partialorder %v1636, 0.0
      %vm1765 = vcmp.ge.f32.partialorder %v1637, 0.0
      %vm1766 = vcmp.ge.f32.partialorder %v1638, 0.0
      %vm1767 = vcmp.ge.f32.partialorder %v1639, 0.0
      %vm1768 = vcmp.ge.f32.partialorder %v1640, 0.0
      %vm1769 = vcmp.ge.f32.partialorder %v1641, 0.0
      %vm1770 = vcmp.ge.f32.partialorder %v1642, 0.0
      %vm1771 = vcmp.ge.f32.partialorder %v1643, 0.0
      %vm1772 = vcmp.ge.f32.partialorder %v1644, 0.0
      %vm1773 = vcmp.ge.f32.partialorder %v1645, 0.0
      %vm1774 = vcmp.ge.f32.partialorder %v1646, 0.0
      %vm1775 = vcmp.ge.f32.partialorder %v1647, 0.0
      %vm1776 = vcmp.ge.f32.partialorder %v1648, 0.0
      %vm1777 = vcmp.ge.f32.partialorder %v1649, 0.0
      %vm1778 = vcmp.ge.f32.partialorder %v1650, 0.0
      %vm1779 = vcmp.ge.f32.partialorder %v1651, 0.0
      %vm1780 = vcmp.ge.f32.partialorder %v1652, 0.0
      %vm1781 = vcmp.ge.f32.partialorder %v1653, 0.0
      %vm1782 = vcmp.ge.f32.partialorder %v1654, 0.0
      %vm1783 = vcmp.ge.f32.partialorder %v1655, 0.0
      %vm1784 = vcmp.ge.f32.partialorder %v1656, 0.0
      %vm1785 = vcmp.ge.f32.partialorder %v1657, 0.0
      %vm1786 = vcmp.ge.f32.partialorder %v1658, 0.0
      %vm1787 = vcmp.ge.f32.partialorder %v1659, 0.0
      %vm1788 = vcmp.ge.f32.partialorder %v1660, 0.0
      %vm1789 = vcmp.ge.f32.partialorder %v1661, 0.0
      %vm1790 = vcmp.ge.f32.partialorder %v1662, 0.0
      %vm1791 = vcmp.ge.f32.partialorder %v1663, 0.0
      %vm1792 = vcmp.ge.f32.partialorder %v1664, 0.0
      %vm1793 = vcmp.ge.f32.partialorder %v1665, 0.0
      %vm1794 = vcmp.ge.f32.partialorder %v1666, 0.0
      %vm1795 = vcmp.ge.f32.partialorder %v1667, 0.0
      %vm1796 = vcmp.ge.f32.partialorder %v1668, 0.0
      %vm1797 = vcmp.ge.f32.partialorder %v1669, 0.0
      %vm1798 = vcmp.ge.f32.partialorder %v1670, 0.0
      %vm1799 = vcmp.ge.f32.partialorder %v1671, 0.0
      %vm1800 = vcmp.ge.f32.partialorder %v1672, 0.0
      %vm1801 = vcmp.ge.f32.partialorder %v1673, 0.0
      %vm1802 = vcmp.ge.f32.partialorder %v1674, 0.0
      %vm1803 = vcmp.ge.f32.partialorder %v1675, 0.0
      %vm1804 = vcmp.ge.f32.partialorder %v1676, 0.0
      %vm1805 = vcmp.ge.f32.partialorder %v1677, 0.0
      %vm1806 = vcmp.ge.f32.partialorder %v1678, 0.0
      %vm1807 = vcmp.ge.f32.partialorder %v1679, 0.0
      %v1808 = vmul.f32 %v1552, 0.2
      %v1809 = vmul.f32 %v1553, 0.2
      %v1810 = vmul.f32 %v1554, 0.2
      %v1811 = vmul.f32 %v1555, 0.2
      %v1812 = vmul.f32 %v1556, 0.2
      %v1813 = vmul.f32 %v1557, 0.2
      %v1814 = vmul.f32 %v1558, 0.2
      %v1815 = vmul.f32 %v1559, 0.2
      %v1816 = vmul.f32 %v1560, 0.2
      %v1817 = vmul.f32 %v1561, 0.2
      %v1818 = vmul.f32 %v1562, 0.2
      %v1819 = vmul.f32 %v1563, 0.2
      %v1820 = vmul.f32 %v1564, 0.2
      %v1821 = vmul.f32 %v1565, 0.2
      %v1822 = vmul.f32 %v1566, 0.2
      %v1823 = vmul.f32 %v1567, 0.2
      %v1824 = vmul.f32 %v1568, 0.2
      %v1825 = vmul.f32 %v1569, 0.2
      %v1826 = vmul.f32 %v1570, 0.2
      %v1827 = vmul.f32 %v1571, 0.2
      %v1828 = vmul.f32 %v1572, 0.2
      %v1829 = vmul.f32 %v1573, 0.2
      %v1830 = vmul.f32 %v1574, 0.2
      %v1831 = vmul.f32 %v1575, 0.2
      %v1832 = vmul.f32 %v1576, 0.2
      %v1833 = vmul.f32 %v1577, 0.2
      %v1834 = vmul.f32 %v1578, 0.2
      %v1835 = vmul.f32 %v1579, 0.2
      %v1836 = vmul.f32 %v1580, 0.2
      %v1837 = vmul.f32 %v1581, 0.2
      %v1838 = vmul.f32 %v1582, 0.2
      %v1839 = vmul.f32 %v1583, 0.2
      %v1840 = vmul.f32 %v1584, 0.2
      %v1841 = vmul.f32 %v1585, 0.2
      %v1842 = vmul.f32 %v1586, 0.2
      %v1843 = vmul.f32 %v1587, 0.2
      %v1844 = vmul.f32 %v1588, 0.2
      %v1845 = vmul.f32 %v1589, 0.2
      %v1846 = vmul.f32 %v1590, 0.2
      %v1847 = vmul.f32 %v1591, 0.2
      %v1848 = vmul.f32 %v1592, 0.2
      %v1849 = vmul.f32 %v1593, 0.2
      %v1850 = vmul.f32 %v1594, 0.2
      %v1851 = vmul.f32 %v1595, 0.2
      %v1852 = vmul.f32 %v1596, 0.2
      %v1853 = vmul.f32 %v1597, 0.2
      %v1854 = vmul.f32 %v1598, 0.2
      %v1855 = vmul.f32 %v1599, 0.2
      %v1856 = vmul.f32 %v1600, 0.2
      %v1857 = vmul.f32 %v1601, 0.2
      %v1858 = vmul.f32 %v1602, 0.2
      %v1859 = vmul.f32 %v1603, 0.2
      %v1860 = vmul.f32 %v1604, 0.2
      %v1861 = vmul.f32 %v1605, 0.2
      %v1862 = vmul.f32 %v1606, 0.2
      %v1863 = vmul.f32 %v1607, 0.2
      %v1864 = vmul.f32 %v1608, 0.2
      %v1865 = vmul.f32 %v1609, 0.2
      %v1866 = vmul.f32 %v1610, 0.2
      %v1867 = vmul.f32 %v1611, 0.2
      %v1868 = vmul.f32 %v1612, 0.2
      %v1869 = vmul.f32 %v1613, 0.2
      %v1870 = vmul.f32 %v1614, 0.2
      %v1871 = vmul.f32 %v1615, 0.2
      %v1872 = vmul.f32 %v1616, 0.2
      %v1873 = vmul.f32 %v1617, 0.2
      %v1874 = vmul.f32 %v1618, 0.2
      %v1875 = vmul.f32 %v1619, 0.2
      %v1876 = vmul.f32 %v1620, 0.2
      %v1877 = vmul.f32 %v1621, 0.2
      %v1878 = vmul.f32 %v1622, 0.2
      %v1879 = vmul.f32 %v1623, 0.2
      %v1880 = vmul.f32 %v1624, 0.2
      %v1881 = vmul.f32 %v1625, 0.2
      %v1882 = vmul.f32 %v1626, 0.2
      %v1883 = vmul.f32 %v1627, 0.2
      %v1884 = vmul.f32 %v1628, 0.2
      %v1885 = vmul.f32 %v1629, 0.2
      %v1886 = vmul.f32 %v1630, 0.2
      %v1887 = vmul.f32 %v1631, 0.2
      %v1888 = vmul.f32 %v1632, 0.2
      %v1889 = vmul.f32 %v1633, 0.2
      %v1890 = vmul.f32 %v1634, 0.2
      %v1891 = vmul.f32 %v1635, 0.2
      %v1892 = vmul.f32 %v1636, 0.2
      %v1893 = vmul.f32 %v1637, 0.2
      %v1894 = vmul.f32 %v1638, 0.2
      %v1895 = vmul.f32 %v1639, 0.2
      %v1896 = vmul.f32 %v1640, 0.2
      %v1897 = vmul.f32 %v1641, 0.2
      %v1898 = vmul.f32 %v1642, 0.2
      %v1899 = vmul.f32 %v1643, 0.2
      %v1900 = vmul.f32 %v1644, 0.2
      %v1901 = vmul.f32 %v1645, 0.2
      %v1902 = vmul.f32 %v1646, 0.2
      %v1903 = vmul.f32 %v1647, 0.2
      %v1904 = vmul.f32 %v1648, 0.2
      %v1905 = vmul.f32 %v1649, 0.2
      %v1906 = vmul.f32 %v1650, 0.2
      %v1907 = vmul.f32 %v1651, 0.2
      %v1908 = vmul.f32 %v1652, 0.2
      %v1909 = vmul.f32 %v1653, 0.2
      %v1910 = vmul.f32 %v1654, 0.2
      %v1911 = vmul.f32 %v1655, 0.2
      %v1912 = vmul.f32 %v1656, 0.2
      %v1913 = vmul.f32 %v1657, 0.2
      %v1914 = vmul.f32 %v1658, 0.2
      %v1915 = vmul.f32 %v1659, 0.2
      %v1916 = vmul.f32 %v1660, 0.2
      %v1917 = vmul.f32 %v1661, 0.2
      %v1918 = vmul.f32 %v1662, 0.2
      %v1919 = vmul.f32 %v1663, 0.2
      %v1920 = vmul.f32 %v1664, 0.2
      %v1921 = vmul.f32 %v1665, 0.2
      %v1922 = vmul.f32 %v1666, 0.2
      %v1923 = vmul.f32 %v1667, 0.2
      %v1924 = vmul.f32 %v1668, 0.2
      %v1925 = vmul.f32 %v1669, 0.2
      %v1926 = vmul.f32 %v1670, 0.2
      %v1927 = vmul.f32 %v1671, 0.2
      %v1928 = vmul.f32 %v1672, 0.2
      %v1929 = vmul.f32 %v1673, 0.2
      %v1930 = vmul.f32 %v1674, 0.2
      %v1931 = vmul.f32 %v1675, 0.2
      %v1932 = vmul.f32 %v1676, 0.2
      %v1933 = vmul.f32 %v1677, 0.2
      %v1934 = vmul.f32 %v1678, 0.2
      %v1935 = vmul.f32 %v1679, 0.2
      %v1936 = vsel %vm1680, %v1552, %v1808
      %v1937 = vsel %vm1681, %v1553, %v1809
      %v1938 = vsel %vm1682, %v1554, %v1810
      %v1939 = vsel %vm1683, %v1555, %v1811
      %v1940 = vsel %vm1684, %v1556, %v1812
      %v1941 = vsel %vm1685, %v1557, %v1813
      %v1942 = vsel %vm1686, %v1558, %v1814
      %v1943 = vsel %vm1687, %v1559, %v1815
      %v1944 = vsel %vm1688, %v1560, %v1816
      %v1945 = vsel %vm1689, %v1561, %v1817
      %v1946 = vsel %vm1690, %v1562, %v1818
      %v1947 = vsel %vm1691, %v1563, %v1819
      %v1948 = vsel %vm1692, %v1564, %v1820
      %v1949 = vsel %vm1693, %v1565, %v1821
      %v1950 = vsel %vm1694, %v1566, %v1822
      %v1951 = vsel %vm1695, %v1567, %v1823
      %v1952 = vsel %vm1696, %v1568, %v1824
      %v1953 = vsel %vm1697, %v1569, %v1825
      %v1954 = vsel %vm1698, %v1570, %v1826
      %v1955 = vsel %vm1699, %v1571, %v1827
      %v1956 = vsel %vm1700, %v1572, %v1828
      %v1957 = vsel %vm1701, %v1573, %v1829
      %v1958 = vsel %vm1702, %v1574, %v1830
      %v1959 = vsel %vm1703, %v1575, %v1831
      %v1960 = vsel %vm1704, %v1576, %v1832
      %v1961 = vsel %vm1705, %v1577, %v1833
      %v1962 = vsel %vm1706, %v1578, %v1834
      %v1963 = vsel %vm1707, %v1579, %v1835
      %v1964 = vsel %vm1708, %v1580, %v1836
      %v1965 = vsel %vm1709, %v1581, %v1837
      %v1966 = vsel %vm1710, %v1582, %v1838
      %v1967 = vsel %vm1711, %v1583, %v1839
      %v1968 = vsel %vm1712, %v1584, %v1840
      %v1969 = vsel %vm1713, %v1585, %v1841
      %v1970 = vsel %vm1714, %v1586, %v1842
      %v1971 = vsel %vm1715, %v1587, %v1843
      %v1972 = vsel %vm1716, %v1588, %v1844
      %v1973 = vsel %vm1717, %v1589, %v1845
      %v1974 = vsel %vm1718, %v1590, %v1846
      %v1975 = vsel %vm1719, %v1591, %v1847
      %v1976 = vsel %vm1720, %v1592, %v1848
      %v1977 = vsel %vm1721, %v1593, %v1849
      %v1978 = vsel %vm1722, %v1594, %v1850
      %v1979 = vsel %vm1723, %v1595, %v1851
      %v1980 = vsel %vm1724, %v1596, %v1852
      %v1981 = vsel %vm1725, %v1597, %v1853
      %v1982 = vsel %vm1726, %v1598, %v1854
      %v1983 = vsel %vm1727, %v1599, %v1855
      %v1984 = vsel %vm1728, %v1600, %v1856
      %v1985 = vsel %vm1729, %v1601, %v1857
      %v1986 = vsel %vm1730, %v1602, %v1858
      %v1987 = vsel %vm1731, %v1603, %v1859
      %v1988 = vsel %vm1732, %v1604, %v1860
      %v1989 = vsel %vm1733, %v1605, %v1861
      %v1990 = vsel %vm1734, %v1606, %v1862
      %v1991 = vsel %vm1735, %v1607, %v1863
      %v1992 = vsel %vm1736, %v1608, %v1864
      %v1993 = vsel %vm1737, %v1609, %v1865
      %v1994 = vsel %vm1738, %v1610, %v1866
      %v1995 = vsel %vm1739, %v1611, %v1867
      %v1996 = vsel %vm1740, %v1612, %v1868
      %v1997 = vsel %vm1741, %v1613, %v1869
      %v1998 = vsel %vm1742, %v1614, %v1870
      %v1999 = vsel %vm1743, %v1615, %v1871
      %v2000 = vsel %vm1744, %v1616, %v1872
      %v2001 = vsel %vm1745, %v1617, %v1873
      %v2002 = vsel %vm1746, %v1618, %v1874
      %v2003 = vsel %vm1747, %v1619, %v1875
      %v2004 = vsel %vm1748, %v1620, %v1876
      %v2005 = vsel %vm1749, %v1621, %v1877
      %v2006 = vsel %vm1750, %v1622, %v1878
      %v2007 = vsel %vm1751, %v1623, %v1879
      %v2008 = vsel %vm1752, %v1624, %v1880
      %v2009 = vsel %vm1753, %v1625, %v1881
      %v2010 = vsel %vm1754, %v1626, %v1882
      %v2011 = vsel %vm1755, %v1627, %v1883
      %v2012 = vsel %vm1756, %v1628, %v1884
      %v2013 = vsel %vm1757, %v1629, %v1885
      %v2014 = vsel %vm1758, %v1630, %v1886
      %v2015 = vsel %vm1759, %v1631, %v1887
      %v2016 = vsel %vm1760, %v1632, %v1888
      %v2017 = vsel %vm1761, %v1633, %v1889
      %v2018 = vsel %vm1762, %v1634, %v1890
      %v2019 = vsel %vm1763, %v1635, %v1891
      %v2020 = vsel %vm1764, %v1636, %v1892
      %v2021 = vsel %vm1765, %v1637, %v1893
      %v2022 = vsel %vm1766, %v1638, %v1894
      %v2023 = vsel %vm1767, %v1639, %v1895
      %v2024 = vsel %vm1768, %v1640, %v1896
      %v2025 = vsel %vm1769, %v1641, %v1897
      %v2026 = vsel %vm1770, %v1642, %v1898
      %v2027 = vsel %vm1771, %v1643, %v1899
      %v2028 = vsel %vm1772, %v1644, %v1900
      %v2029 = vsel %vm1773, %v1645, %v1901
      %v2030 = vsel %vm1774, %v1646, %v1902
      %v2031 = vsel %vm1775, %v1647, %v1903
      %v2032 = vsel %vm1776, %v1648, %v1904
      %v2033 = vsel %vm1777, %v1649, %v1905
      %v2034 = vsel %vm1778, %v1650, %v1906
      %v2035 = vsel %vm1779, %v1651, %v1907
      %v2036 = vsel %vm1780, %v1652, %v1908
      %v2037 = vsel %vm1781, %v1653, %v1909
      %v2038 = vsel %vm1782, %v1654, %v1910
      %v2039 = vsel %vm1783, %v1655, %v1911
      %v2040 = vsel %vm1784, %v1656, %v1912
      %v2041 = vsel %vm1785, %v1657, %v1913
      %v2042 = vsel %vm1786, %v1658, %v1914
      %v2043 = vsel %vm1787, %v1659, %v1915
      %v2044 = vsel %vm1788, %v1660, %v1916
      %v2045 = vsel %vm1789, %v1661, %v1917
      %v2046 = vsel %vm1790, %v1662, %v1918
      %v2047 = vsel %vm1791, %v1663, %v1919
      %v2048 = vsel %vm1792, %v1664, %v1920
      %v2049 = vsel %vm1793, %v1665, %v1921
      %v2050 = vsel %vm1794, %v1666, %v1922
      %v2051 = vsel %vm1795, %v1667, %v1923
      %v2052 = vsel %vm1796, %v1668, %v1924
      %v2053 = vsel %vm1797, %v1669, %v1925
      %v2054 = vsel %vm1798, %v1670, %v1926
      %v2055 = vsel %vm1799, %v1671, %v1927
      %v2056 = vsel %vm1800, %v1672, %v1928
      %v2057 = vsel %vm1801, %v1673, %v1929
      %v2058 = vsel %vm1802, %v1674, %v1930
      %v2059 = vsel %vm1803, %v1675, %v1931
      %v2060 = vsel %vm1804, %v1676, %v1932
      %v2061 = vsel %vm1805, %v1677, %v1933
      %v2062 = vsel %vm1806, %v1678, %v1934
      %v2063 = vsel %vm1807, %v1679, %v1935
      %v2064 = vpack.c.bf16 %v1937, %v1936
      %v2065 = vpack.c.bf16 %v1939, %v1938
      %v2066 = vpack.c.bf16 %v1941, %v1940
      %v2067 = vpack.c.bf16 %v1943, %v1942
      %v2068 = vpack.c.bf16 %v1945, %v1944
      %v2069 = vpack.c.bf16 %v1947, %v1946
      %v2070 = vpack.c.bf16 %v1949, %v1948
      %v2071 = vpack.c.bf16 %v1951, %v1950
      %v2072 = vpack.c.bf16 %v1953, %v1952
      %v2073 = vpack.c.bf16 %v1955, %v1954
      %v2074 = vpack.c.bf16 %v1957, %v1956
      %v2075 = vpack.c.bf16 %v1959, %v1958
      %v2076 = vpack.c.bf16 %v1961, %v1960
      %v2077 = vpack.c.bf16 %v1963, %v1962
      %v2078 = vpack.c.bf16 %v1965, %v1964
      %v2079 = vpack.c.bf16 %v1967, %v1966
      %v2080 = vpack.c.bf16 %v1969, %v1968
      %v2081 = vpack.c.bf16 %v1971, %v1970
      %v2082 = vpack.c.bf16 %v1973, %v1972
      %v2083 = vpack.c.bf16 %v1975, %v1974
      %v2084 = vpack.c.bf16 %v1977, %v1976
      %v2085 = vpack.c.bf16 %v1979, %v1978
      %v2086 = vpack.c.bf16 %v1981, %v1980
      %v2087 = vpack.c.bf16 %v1983, %v1982
      %v2088 = vpack.c.bf16 %v1985, %v1984
      %v2089 = vpack.c.bf16 %v1987, %v1986
      %v2090 = vpack.c.bf16 %v1989, %v1988
      %v2091 = vpack.c.bf16 %v1991, %v1990
      %v2092 = vpack.c.bf16 %v1993, %v1992
      %v2093 = vpack.c.bf16 %v1995, %v1994
      %v2094 = vpack.c.bf16 %v1997, %v1996
      %v2095 = vpack.c.bf16 %v1999, %v1998
      %v2096 = vpack.c.bf16 %v2001, %v2000
      %v2097 = vpack.c.bf16 %v2003, %v2002
      %v2098 = vpack.c.bf16 %v2005, %v2004
      %v2099 = vpack.c.bf16 %v2007, %v2006
      %v2100 = vpack.c.bf16 %v2009, %v2008
      %v2101 = vpack.c.bf16 %v2011, %v2010
      %v2102 = vpack.c.bf16 %v2013, %v2012
      %v2103 = vpack.c.bf16 %v2015, %v2014
      %v2104 = vpack.c.bf16 %v2017, %v2016
      %v2105 = vpack.c.bf16 %v2019, %v2018
      %v2106 = vpack.c.bf16 %v2021, %v2020
      %v2107 = vpack.c.bf16 %v2023, %v2022
      %v2108 = vpack.c.bf16 %v2025, %v2024
      %v2109 = vpack.c.bf16 %v2027, %v2026
      %v2110 = vpack.c.bf16 %v2029, %v2028
      %v2111 = vpack.c.bf16 %v2031, %v2030
      %v2112 = vpack.c.bf16 %v2033, %v2032
      %v2113 = vpack.c.bf16 %v2035, %v2034
      %v2114 = vpack.c.bf16 %v2037, %v2036
      %v2115 = vpack.c.bf16 %v2039, %v2038
      %v2116 = vpack.c.bf16 %v2041, %v2040
      %v2117 = vpack.c.bf16 %v2043, %v2042
      %v2118 = vpack.c.bf16 %v2045, %v2044
      %v2119 = vpack.c.bf16 %v2047, %v2046
      %v2120 = vpack.c.bf16 %v2049, %v2048
      %v2121 = vpack.c.bf16 %v2051, %v2050
      %v2122 = vpack.c.bf16 %v2053, %v2052
      %v2123 = vpack.c.bf16 %v2055, %v2054
      %v2124 = vpack.c.bf16 %v2057, %v2056
      %v2125 = vpack.c.bf16 %v2059, %v2058
      %v2126 = vpack.c.bf16 %v2061, %v2060
      %v2127 = vpack.c.bf16 %v2063, %v2062
      %v2192 = vunpack.c.l.b16 %v2064
      %v2193 = vunpack.c.h.b16 %v2064
      %v2194 = vunpack.c.l.b16 %v2065
      %v2195 = vunpack.c.h.b16 %v2065
      %v2196 = vunpack.c.l.b16 %v2066
      %v2197 = vunpack.c.h.b16 %v2066
      %v2198 = vunpack.c.l.b16 %v2067
      %v2199 = vunpack.c.h.b16 %v2067
      %v2200 = vunpack.c.l.b16 %v2068
      %v2201 = vunpack.c.h.b16 %v2068
      %v2202 = vunpack.c.l.b16 %v2069
      %v2203 = vunpack.c.h.b16 %v2069
      %v2204 = vunpack.c.l.b16 %v2070
      %v2205 = vunpack.c.h.b16 %v2070
      %v2206 = vunpack.c.l.b16 %v2071
      %v2207 = vunpack.c.h.b16 %v2071
      %v2208 = vunpack.c.l.b16 %v2072
      %v2209 = vunpack.c.h.b16 %v2072
      %v2210 = vunpack.c.l.b16 %v2073
      %v2211 = vunpack.c.h.b16 %v2073
      %v2212 = vunpack.c.l.b16 %v2074
      %v2213 = vunpack.c.h.b16 %v2074
      %v2214 = vunpack.c.l.b16 %v2075
      %v2215 = vunpack.c.h.b16 %v2075
      %v2216 = vunpack.c.l.b16 %v2076
      %v2217 = vunpack.c.h.b16 %v2076
      %v2218 = vunpack.c.l.b16 %v2077
      %v2219 = vunpack.c.h.b16 %v2077
      %v2220 = vunpack.c.l.b16 %v2078
      %v2221 = vunpack.c.h.b16 %v2078
      %v2222 = vunpack.c.l.b16 %v2079
      %v2223 = vunpack.c.h.b16 %v2079
      %v2224 = vunpack.c.l.b16 %v2080
      %v2225 = vunpack.c.h.b16 %v2080
      %v2226 = vunpack.c.l.b16 %v2081
      %v2227 = vunpack.c.h.b16 %v2081
      %v2228 = vunpack.c.l.b16 %v2082
      %v2229 = vunpack.c.h.b16 %v2082
      %v2230 = vunpack.c.l.b16 %v2083
      %v2231 = vunpack.c.h.b16 %v2083
      %v2232 = vunpack.c.l.b16 %v2084
      %v2233 = vunpack.c.h.b16 %v2084
      %v2234 = vunpack.c.l.b16 %v2085
      %v2235 = vunpack.c.h.b16 %v2085
      %v2236 = vunpack.c.l.b16 %v2086
      %v2237 = vunpack.c.h.b16 %v2086
      %v2238 = vunpack.c.l.b16 %v2087
      %v2239 = vunpack.c.h.b16 %v2087
      %v2240 = vunpack.c.l.b16 %v2088
      %v2241 = vunpack.c.h.b16 %v2088
      %v2242 = vunpack.c.l.b16 %v2089
      %v2243 = vunpack.c.h.b16 %v2089
      %v2244 = vunpack.c.l.b16 %v2090
      %v2245 = vunpack.c.h.b16 %v2090
      %v2246 = vunpack.c.l.b16 %v2091
      %v2247 = vunpack.c.h.b16 %v2091
      %v2248 = vunpack.c.l.b16 %v2092
      %v2249 = vunpack.c.h.b16 %v2092
      %v2250 = vunpack.c.l.b16 %v2093
      %v2251 = vunpack.c.h.b16 %v2093
      %v2252 = vunpack.c.l.b16 %v2094
      %v2253 = vunpack.c.h.b16 %v2094
      %v2254 = vunpack.c.l.b16 %v2095
      %v2255 = vunpack.c.h.b16 %v2095
      %v2256 = vunpack.c.l.b16 %v2096
      %v2257 = vunpack.c.h.b16 %v2096
      %v2258 = vunpack.c.l.b16 %v2097
      %v2259 = vunpack.c.h.b16 %v2097
      %v2260 = vunpack.c.l.b16 %v2098
      %v2261 = vunpack.c.h.b16 %v2098
      %v2262 = vunpack.c.l.b16 %v2099
      %v2263 = vunpack.c.h.b16 %v2099
      %v2264 = vunpack.c.l.b16 %v2100
      %v2265 = vunpack.c.h.b16 %v2100
      %v2266 = vunpack.c.l.b16 %v2101
      %v2267 = vunpack.c.h.b16 %v2101
      %v2268 = vunpack.c.l.b16 %v2102
      %v2269 = vunpack.c.h.b16 %v2102
      %v2270 = vunpack.c.l.b16 %v2103
      %v2271 = vunpack.c.h.b16 %v2103
      %v2272 = vunpack.c.l.b16 %v2104
      %v2273 = vunpack.c.h.b16 %v2104
      %v2274 = vunpack.c.l.b16 %v2105
      %v2275 = vunpack.c.h.b16 %v2105
      %v2276 = vunpack.c.l.b16 %v2106
      %v2277 = vunpack.c.h.b16 %v2106
      %v2278 = vunpack.c.l.b16 %v2107
      %v2279 = vunpack.c.h.b16 %v2107
      %v2280 = vunpack.c.l.b16 %v2108
      %v2281 = vunpack.c.h.b16 %v2108
      %v2282 = vunpack.c.l.b16 %v2109
      %v2283 = vunpack.c.h.b16 %v2109
      %v2284 = vunpack.c.l.b16 %v2110
      %v2285 = vunpack.c.h.b16 %v2110
      %v2286 = vunpack.c.l.b16 %v2111
      %v2287 = vunpack.c.h.b16 %v2111
      %v2288 = vunpack.c.l.b16 %v2112
      %v2289 = vunpack.c.h.b16 %v2112
      %v2290 = vunpack.c.l.b16 %v2113
      %v2291 = vunpack.c.h.b16 %v2113
      %v2292 = vunpack.c.l.b16 %v2114
      %v2293 = vunpack.c.h.b16 %v2114
      %v2294 = vunpack.c.l.b16 %v2115
      %v2295 = vunpack.c.h.b16 %v2115
      %v2296 = vunpack.c.l.b16 %v2116
      %v2297 = vunpack.c.h.b16 %v2116
      %v2298 = vunpack.c.l.b16 %v2117
      %v2299 = vunpack.c.h.b16 %v2117
      %v2300 = vunpack.c.l.b16 %v2118
      %v2301 = vunpack.c.h.b16 %v2118
      %v2302 = vunpack.c.l.b16 %v2119
      %v2303 = vunpack.c.h.b16 %v2119
      %v2304 = vunpack.c.l.b16 %v2120
      %v2305 = vunpack.c.h.b16 %v2120
      %v2306 = vunpack.c.l.b16 %v2121
      %v2307 = vunpack.c.h.b16 %v2121
      %v2308 = vunpack.c.l.b16 %v2122
      %v2309 = vunpack.c.h.b16 %v2122
      %v2310 = vunpack.c.l.b16 %v2123
      %v2311 = vunpack.c.h.b16 %v2123
      %v2312 = vunpack.c.l.b16 %v2124
      %v2313 = vunpack.c.h.b16 %v2124
      %v2314 = vunpack.c.l.b16 %v2125
      %v2315 = vunpack.c.h.b16 %v2125
      %v2316 = vunpack.c.l.b16 %v2126
      %v2317 = vunpack.c.h.b16 %v2126
      %v2318 = vunpack.c.l.b16 %v2127
      %v2319 = vunpack.c.h.b16 %v2127
      %v2320 = vpack.c.b16 %v2192, %v2192
      %v2321 = vpack.c.b16 %v2193, %v2193
      %v2322 = vpack.c.b16 %v2194, %v2194
      %v2323 = vpack.c.b16 %v2195, %v2195
      %v2324 = vpack.c.b16 %v2196, %v2196
      %v2325 = vpack.c.b16 %v2197, %v2197
      %v2326 = vpack.c.b16 %v2198, %v2198
      %v2327 = vpack.c.b16 %v2199, %v2199
      %v2328 = vpack.c.b16 %v2200, %v2200
      %v2329 = vpack.c.b16 %v2201, %v2201
      %v2330 = vpack.c.b16 %v2202, %v2202
      %v2331 = vpack.c.b16 %v2203, %v2203
      %v2332 = vpack.c.b16 %v2204, %v2204
      %v2333 = vpack.c.b16 %v2205, %v2205
      %v2334 = vpack.c.b16 %v2206, %v2206
      %v2335 = vpack.c.b16 %v2207, %v2207
      %v2336 = vpack.c.b16 %v2208, %v2208
      %v2337 = vpack.c.b16 %v2209, %v2209
      %v2338 = vpack.c.b16 %v2210, %v2210
      %v2339 = vpack.c.b16 %v2211, %v2211
      %v2340 = vpack.c.b16 %v2212, %v2212
      %v2341 = vpack.c.b16 %v2213, %v2213
      %v2342 = vpack.c.b16 %v2214, %v2214
      %v2343 = vpack.c.b16 %v2215, %v2215
      %v2344 = vpack.c.b16 %v2216, %v2216
      %v2345 = vpack.c.b16 %v2217, %v2217
      %v2346 = vpack.c.b16 %v2218, %v2218
      %v2347 = vpack.c.b16 %v2219, %v2219
      %v2348 = vpack.c.b16 %v2220, %v2220
      %v2349 = vpack.c.b16 %v2221, %v2221
      %v2350 = vpack.c.b16 %v2222, %v2222
      %v2351 = vpack.c.b16 %v2223, %v2223
      %v2352 = vpack.c.b16 %v2224, %v2224
      %v2353 = vpack.c.b16 %v2225, %v2225
      %v2354 = vpack.c.b16 %v2226, %v2226
      %v2355 = vpack.c.b16 %v2227, %v2227
      %v2356 = vpack.c.b16 %v2228, %v2228
      %v2357 = vpack.c.b16 %v2229, %v2229
      %v2358 = vpack.c.b16 %v2230, %v2230
      %v2359 = vpack.c.b16 %v2231, %v2231
      %v2360 = vpack.c.b16 %v2232, %v2232
      %v2361 = vpack.c.b16 %v2233, %v2233
      %v2362 = vpack.c.b16 %v2234, %v2234
      %v2363 = vpack.c.b16 %v2235, %v2235
      %v2364 = vpack.c.b16 %v2236, %v2236
      %v2365 = vpack.c.b16 %v2237, %v2237
      %v2366 = vpack.c.b16 %v2238, %v2238
      %v2367 = vpack.c.b16 %v2239, %v2239
      %v2368 = vpack.c.b16 %v2240, %v2240
      %v2369 = vpack.c.b16 %v2241, %v2241
      %v2370 = vpack.c.b16 %v2242, %v2242
      %v2371 = vpack.c.b16 %v2243, %v2243
      %v2372 = vpack.c.b16 %v2244, %v2244
      %v2373 = vpack.c.b16 %v2245, %v2245
      %v2374 = vpack.c.b16 %v2246, %v2246
      %v2375 = vpack.c.b16 %v2247, %v2247
      %v2376 = vpack.c.b16 %v2248, %v2248
      %v2377 = vpack.c.b16 %v2249, %v2249
      %v2378 = vpack.c.b16 %v2250, %v2250
      %v2379 = vpack.c.b16 %v2251, %v2251
      %v2380 = vpack.c.b16 %v2252, %v2252
      %v2381 = vpack.c.b16 %v2253, %v2253
      %v2382 = vpack.c.b16 %v2254, %v2254
      %v2383 = vpack.c.b16 %v2255, %v2255
      %v2384 = vpack.c.b16 %v2256, %v2256
      %v2385 = vpack.c.b16 %v2257, %v2257
      %v2386 = vpack.c.b16 %v2258, %v2258
      %v2387 = vpack.c.b16 %v2259, %v2259
      %v2388 = vpack.c.b16 %v2260, %v2260
      %v2389 = vpack.c.b16 %v2261, %v2261
      %v2390 = vpack.c.b16 %v2262, %v2262
      %v2391 = vpack.c.b16 %v2263, %v2263
      %v2392 = vpack.c.b16 %v2264, %v2264
      %v2393 = vpack.c.b16 %v2265, %v2265
      %v2394 = vpack.c.b16 %v2266, %v2266
      %v2395 = vpack.c.b16 %v2267, %v2267
      %v2396 = vpack.c.b16 %v2268, %v2268
      %v2397 = vpack.c.b16 %v2269, %v2269
      %v2398 = vpack.c.b16 %v2270, %v2270
      %v2399 = vpack.c.b16 %v2271, %v2271
      %v2400 = vpack.c.b16 %v2272, %v2272
      %v2401 = vpack.c.b16 %v2273, %v2273
      %v2402 = vpack.c.b16 %v2274, %v2274
      %v2403 = vpack.c.b16 %v2275, %v2275
      %v2404 = vpack.c.b16 %v2276, %v2276
      %v2405 = vpack.c.b16 %v2277, %v2277
      %v2406 = vpack.c.b16 %v2278, %v2278
      %v2407 = vpack.c.b16 %v2279, %v2279
      %v2408 = vpack.c.b16 %v2280, %v2280
      %v2409 = vpack.c.b16 %v2281, %v2281
      %v2410 = vpack.c.b16 %v2282, %v2282
      %v2411 = vpack.c.b16 %v2283, %v2283
      %v2412 = vpack.c.b16 %v2284, %v2284
      %v2413 = vpack.c.b16 %v2285, %v2285
      %v2414 = vpack.c.b16 %v2286, %v2286
      %v2415 = vpack.c.b16 %v2287, %v2287
      %v2416 = vpack.c.b16 %v2288, %v2288
      %v2417 = vpack.c.b16 %v2289, %v2289
      %v2418 = vpack.c.b16 %v2290, %v2290
      %v2419 = vpack.c.b16 %v2291, %v2291
      %v2420 = vpack.c.b16 %v2292, %v2292
      %v2421 = vpack.c.b16 %v2293, %v2293
      %v2422 = vpack.c.b16 %v2294, %v2294
      %v2423 = vpack.c.b16 %v2295, %v2295
      %v2424 = vpack.c.b16 %v2296, %v2296
      %v2425 = vpack.c.b16 %v2297, %v2297
      %v2426 = vpack.c.b16 %v2298, %v2298
      %v2427 = vpack.c.b16 %v2299, %v2299
      %v2428 = vpack.c.b16 %v2300, %v2300
      %v2429 = vpack.c.b16 %v2301, %v2301
      %v2430 = vpack.c.b16 %v2302, %v2302
      %v2431 = vpack.c.b16 %v2303, %v2303
      %v2432 = vpack.c.b16 %v2304, %v2304
      %v2433 = vpack.c.b16 %v2305, %v2305
      %v2434 = vpack.c.b16 %v2306, %v2306
      %v2435 = vpack.c.b16 %v2307, %v2307
      %v2436 = vpack.c.b16 %v2308, %v2308
      %v2437 = vpack.c.b16 %v2309, %v2309
      %v2438 = vpack.c.b16 %v2310, %v2310
      %v2439 = vpack.c.b16 %v2311, %v2311
      %v2440 = vpack.c.b16 %v2312, %v2312
      %v2441 = vpack.c.b16 %v2313, %v2313
      %v2442 = vpack.c.b16 %v2314, %v2314
      %v2443 = vpack.c.b16 %v2315, %v2315
      %v2444 = vpack.c.b16 %v2316, %v2316
      %v2445 = vpack.c.b16 %v2317, %v2317
      %v2446 = vpack.c.b16 %v2318, %v2318
      %v2447 = vpack.c.b16 %v2319, %v2319
      %vm2576 = vcmask 814080
      %2577 = vst.msk [vmem:[%s199] sm:$0xf] %vm2576, %v2320
      %2578 = vst.msk [vmem:[%s199 + $0x4] sm:$0xf] %vm2576, %v2321
      %2579 = vst.msk [vmem:[%s199 + $0x8] sm:$0xf] %vm2576, %v2322
      %2580 = vst.msk [vmem:[%s199 + $0xc] sm:$0xf] %vm2576, %v2323
      %2581 = vst.msk [vmem:[%s199 + $0x10] sm:$0xf] %vm2576, %v2324
      %2582 = vst.msk [vmem:[%s199 + $0x14] sm:$0xf] %vm2576, %v2325
      %2583 = vst.msk [vmem:[%s199 + $0x18] sm:$0xf] %vm2576, %v2326
      %2584 = vst.msk [vmem:[%s199 + $0x1c] sm:$0xf] %vm2576, %v2327
      %2585 = vst.msk [vmem:[%s199 + $0x20] sm:$0xf] %vm2576, %v2328
      %2586 = vst.msk [vmem:[%s199 + $0x24] sm:$0xf] %vm2576, %v2329
      %2587 = vst.msk [vmem:[%s199 + $0x28] sm:$0xf] %vm2576, %v2330
      %2588 = vst.msk [vmem:[%s199 + $0x2c] sm:$0xf] %vm2576, %v2331
      %2589 = vst.msk [vmem:[%s199 + $0x30] sm:$0xf] %vm2576, %v2332
      %2590 = vst.msk [vmem:[%s199 + $0x34] sm:$0xf] %vm2576, %v2333
      %2591 = vst.msk [vmem:[%s199 + $0x38] sm:$0xf] %vm2576, %v2334
      %2592 = vst.msk [vmem:[%s199 + $0x3c] sm:$0xf] %vm2576, %v2335
      %2593 = vst.msk [vmem:[%s199 + $0x40] sm:$0xf] %vm2576, %v2336
      %2594 = vst.msk [vmem:[%s199 + $0x44] sm:$0xf] %vm2576, %v2337
      %2595 = vst.msk [vmem:[%s199 + $0x48] sm:$0xf] %vm2576, %v2338
      %2596 = vst.msk [vmem:[%s199 + $0x4c] sm:$0xf] %vm2576, %v2339
      %2597 = vst.msk [vmem:[%s199 + $0x50] sm:$0xf] %vm2576, %v2340
      %2598 = vst.msk [vmem:[%s199 + $0x54] sm:$0xf] %vm2576, %v2341
      %2599 = vst.msk [vmem:[%s199 + $0x58] sm:$0xf] %vm2576, %v2342
      %2600 = vst.msk [vmem:[%s199 + $0x5c] sm:$0xf] %vm2576, %v2343
      %2601 = vst.msk [vmem:[%s199 + $0x60] sm:$0xf] %vm2576, %v2344
      %2602 = vst.msk [vmem:[%s199 + $0x64] sm:$0xf] %vm2576, %v2345
      %2603 = vst.msk [vmem:[%s199 + $0x68] sm:$0xf] %vm2576, %v2346
      %2604 = vst.msk [vmem:[%s199 + $0x6c] sm:$0xf] %vm2576, %v2347
      %2605 = vst.msk [vmem:[%s199 + $0x70] sm:$0xf] %vm2576, %v2348
      %2606 = vst.msk [vmem:[%s199 + $0x74] sm:$0xf] %vm2576, %v2349
      %2607 = vst.msk [vmem:[%s199 + $0x78] sm:$0xf] %vm2576, %v2350
      %2608 = vst.msk [vmem:[%s199 + $0x7c] sm:$0xf] %vm2576, %v2351
      %2609 = vst.msk [vmem:[%s199 + $0x80] sm:$0xf] %vm2576, %v2352
      %2610 = vst.msk [vmem:[%s199 + $0x84] sm:$0xf] %vm2576, %v2353
      %2611 = vst.msk [vmem:[%s199 + $0x88] sm:$0xf] %vm2576, %v2354
      %2612 = vst.msk [vmem:[%s199 + $0x8c] sm:$0xf] %vm2576, %v2355
      %2613 = vst.msk [vmem:[%s199 + $0x90] sm:$0xf] %vm2576, %v2356
      %2614 = vst.msk [vmem:[%s199 + $0x94] sm:$0xf] %vm2576, %v2357
      %2615 = vst.msk [vmem:[%s199 + $0x98] sm:$0xf] %vm2576, %v2358
      %2616 = vst.msk [vmem:[%s199 + $0x9c] sm:$0xf] %vm2576, %v2359
      %2617 = vst.msk [vmem:[%s199 + $0xa0] sm:$0xf] %vm2576, %v2360
      %2618 = vst.msk [vmem:[%s199 + $0xa4] sm:$0xf] %vm2576, %v2361
      %2619 = vst.msk [vmem:[%s199 + $0xa8] sm:$0xf] %vm2576, %v2362
      %2620 = vst.msk [vmem:[%s199 + $0xac] sm:$0xf] %vm2576, %v2363
      %2621 = vst.msk [vmem:[%s199 + $0xb0] sm:$0xf] %vm2576, %v2364
      %2622 = vst.msk [vmem:[%s199 + $0xb4] sm:$0xf] %vm2576, %v2365
      %2623 = vst.msk [vmem:[%s199 + $0xb8] sm:$0xf] %vm2576, %v2366
      %2624 = vst.msk [vmem:[%s199 + $0xbc] sm:$0xf] %vm2576, %v2367
      %2625 = vst.msk [vmem:[%s199 + $0xc0] sm:$0xf] %vm2576, %v2368
      %2626 = vst.msk [vmem:[%s199 + $0xc4] sm:$0xf] %vm2576, %v2369
      %2627 = vst.msk [vmem:[%s199 + $0xc8] sm:$0xf] %vm2576, %v2370
      %2628 = vst.msk [vmem:[%s199 + $0xcc] sm:$0xf] %vm2576, %v2371
      %2629 = vst.msk [vmem:[%s199 + $0xd0] sm:$0xf] %vm2576, %v2372
      %2630 = vst.msk [vmem:[%s199 + $0xd4] sm:$0xf] %vm2576, %v2373
      %2631 = vst.msk [vmem:[%s199 + $0xd8] sm:$0xf] %vm2576, %v2374
      %2632 = vst.msk [vmem:[%s199 + $0xdc] sm:$0xf] %vm2576, %v2375
      %2633 = vst.msk [vmem:[%s199 + $0xe0] sm:$0xf] %vm2576, %v2376
      %2634 = vst.msk [vmem:[%s199 + $0xe4] sm:$0xf] %vm2576, %v2377
      %2635 = vst.msk [vmem:[%s199 + $0xe8] sm:$0xf] %vm2576, %v2378
      %2636 = vst.msk [vmem:[%s199 + $0xec] sm:$0xf] %vm2576, %v2379
      %2637 = vst.msk [vmem:[%s199 + $0xf0] sm:$0xf] %vm2576, %v2380
      %2638 = vst.msk [vmem:[%s199 + $0xf4] sm:$0xf] %vm2576, %v2381
      %2639 = vst.msk [vmem:[%s199 + $0xf8] sm:$0xf] %vm2576, %v2382
      %2640 = vst.msk [vmem:[%s199 + $0xfc] sm:$0xf] %vm2576, %v2383
      %2641 = vst.msk [vmem:[%s199 + $0x100] sm:$0xf] %vm2576, %v2384
      %2642 = vst.msk [vmem:[%s199 + $0x104] sm:$0xf] %vm2576, %v2385
      %2643 = vst.msk [vmem:[%s199 + $0x108] sm:$0xf] %vm2576, %v2386
      %2644 = vst.msk [vmem:[%s199 + $0x10c] sm:$0xf] %vm2576, %v2387
      %2645 = vst.msk [vmem:[%s199 + $0x110] sm:$0xf] %vm2576, %v2388
      %2646 = vst.msk [vmem:[%s199 + $0x114] sm:$0xf] %vm2576, %v2389
      %2647 = vst.msk [vmem:[%s199 + $0x118] sm:$0xf] %vm2576, %v2390
      %2648 = vst.msk [vmem:[%s199 + $0x11c] sm:$0xf] %vm2576, %v2391
      %2649 = vst.msk [vmem:[%s199 + $0x120] sm:$0xf] %vm2576, %v2392
      %2650 = vst.msk [vmem:[%s199 + $0x124] sm:$0xf] %vm2576, %v2393
      %2651 = vst.msk [vmem:[%s199 + $0x128] sm:$0xf] %vm2576, %v2394
      %2652 = vst.msk [vmem:[%s199 + $0x12c] sm:$0xf] %vm2576, %v2395
      %2653 = vst.msk [vmem:[%s199 + $0x130] sm:$0xf] %vm2576, %v2396
      %2654 = vst.msk [vmem:[%s199 + $0x134] sm:$0xf] %vm2576, %v2397
      %2655 = vst.msk [vmem:[%s199 + $0x138] sm:$0xf] %vm2576, %v2398
      %2656 = vst.msk [vmem:[%s199 + $0x13c] sm:$0xf] %vm2576, %v2399
      %2657 = vst.msk [vmem:[%s199 + $0x140] sm:$0xf] %vm2576, %v2400
      %2658 = vst.msk [vmem:[%s199 + $0x144] sm:$0xf] %vm2576, %v2401
      %2659 = vst.msk [vmem:[%s199 + $0x148] sm:$0xf] %vm2576, %v2402
      %2660 = vst.msk [vmem:[%s199 + $0x14c] sm:$0xf] %vm2576, %v2403
      %2661 = vst.msk [vmem:[%s199 + $0x150] sm:$0xf] %vm2576, %v2404
      %2662 = vst.msk [vmem:[%s199 + $0x154] sm:$0xf] %vm2576, %v2405
      %2663 = vst.msk [vmem:[%s199 + $0x158] sm:$0xf] %vm2576, %v2406
      %2664 = vst.msk [vmem:[%s199 + $0x15c] sm:$0xf] %vm2576, %v2407
      %2665 = vst.msk [vmem:[%s199 + $0x160] sm:$0xf] %vm2576, %v2408
      %2666 = vst.msk [vmem:[%s199 + $0x164] sm:$0xf] %vm2576, %v2409
      %2667 = vst.msk [vmem:[%s199 + $0x168] sm:$0xf] %vm2576, %v2410
      %2668 = vst.msk [vmem:[%s199 + $0x16c] sm:$0xf] %vm2576, %v2411
      %2669 = vst.msk [vmem:[%s199 + $0x170] sm:$0xf] %vm2576, %v2412
      %2670 = vst.msk [vmem:[%s199 + $0x174] sm:$0xf] %vm2576, %v2413
      %2671 = vst.msk [vmem:[%s199 + $0x178] sm:$0xf] %vm2576, %v2414
      %2672 = vst.msk [vmem:[%s199 + $0x17c] sm:$0xf] %vm2576, %v2415
      %2673 = vst.msk [vmem:[%s199 + $0x180] sm:$0xf] %vm2576, %v2416
      %2674 = vst.msk [vmem:[%s199 + $0x184] sm:$0xf] %vm2576, %v2417
      %2675 = vst.msk [vmem:[%s199 + $0x188] sm:$0xf] %vm2576, %v2418
      %2676 = vst.msk [vmem:[%s199 + $0x18c] sm:$0xf] %vm2576, %v2419
      %2677 = vst.msk [vmem:[%s199 + $0x190] sm:$0xf] %vm2576, %v2420
      %2678 = vst.msk [vmem:[%s199 + $0x194] sm:$0xf] %vm2576, %v2421
      %2679 = vst.msk [vmem:[%s199 + $0x198] sm:$0xf] %vm2576, %v2422
      %2680 = vst.msk [vmem:[%s199 + $0x19c] sm:$0xf] %vm2576, %v2423
      %2681 = vst.msk [vmem:[%s199 + $0x1a0] sm:$0xf] %vm2576, %v2424
      %2682 = vst.msk [vmem:[%s199 + $0x1a4] sm:$0xf] %vm2576, %v2425
      %2683 = vst.msk [vmem:[%s199 + $0x1a8] sm:$0xf] %vm2576, %v2426
      %2684 = vst.msk [vmem:[%s199 + $0x1ac] sm:$0xf] %vm2576, %v2427
      %2685 = vst.msk [vmem:[%s199 + $0x1b0] sm:$0xf] %vm2576, %v2428
      %2686 = vst.msk [vmem:[%s199 + $0x1b4] sm:$0xf] %vm2576, %v2429
      %2687 = vst.msk [vmem:[%s199 + $0x1b8] sm:$0xf] %vm2576, %v2430
      %2688 = vst.msk [vmem:[%s199 + $0x1bc] sm:$0xf] %vm2576, %v2431
      %2689 = vst.msk [vmem:[%s199 + $0x1c0] sm:$0xf] %vm2576, %v2432
      %2690 = vst.msk [vmem:[%s199 + $0x1c4] sm:$0xf] %vm2576, %v2433
      %2691 = vst.msk [vmem:[%s199 + $0x1c8] sm:$0xf] %vm2576, %v2434
      %2692 = vst.msk [vmem:[%s199 + $0x1cc] sm:$0xf] %vm2576, %v2435
      %2693 = vst.msk [vmem:[%s199 + $0x1d0] sm:$0xf] %vm2576, %v2436
      %2694 = vst.msk [vmem:[%s199 + $0x1d4] sm:$0xf] %vm2576, %v2437
      %2695 = vst.msk [vmem:[%s199 + $0x1d8] sm:$0xf] %vm2576, %v2438
      %2696 = vst.msk [vmem:[%s199 + $0x1dc] sm:$0xf] %vm2576, %v2439
      %2697 = vst.msk [vmem:[%s199 + $0x1e0] sm:$0xf] %vm2576, %v2440
      %2698 = vst.msk [vmem:[%s199 + $0x1e4] sm:$0xf] %vm2576, %v2441
      %2699 = vst.msk [vmem:[%s199 + $0x1e8] sm:$0xf] %vm2576, %v2442
      %2700 = vst.msk [vmem:[%s199 + $0x1ec] sm:$0xf] %vm2576, %v2443
      %2701 = vst.msk [vmem:[%s199 + $0x1f0] sm:$0xf] %vm2576, %v2444
      %2702 = vst.msk [vmem:[%s199 + $0x1f4] sm:$0xf] %vm2576, %v2445
      %2703 = vst.msk [vmem:[%s199 + $0x1f8] sm:$0xf] %vm2576, %v2446
      %2704 = vst.msk [vmem:[%s199 + $0x1fc] sm:$0xf] %vm2576, %v2447
      %s2705 = smul.u32 128, %s15
      %p2706 = scmp.lt.s32.totalorder %s2705, 255
      %s2707 = scalar_select %p2706, %s2705, 255
      %s2708 = smul.addr %s2707, 4
      %s2709 = scalar_lea.vmem %s4, %s2708
      // Predicated region
      $region37: #{subpixel_conv_forward.4} parent=35 // pred_check
        %p2710 = pneg %p122
      $region38: #{subpixel_conv_forward.4} parent=35 // pred_check_branch
        %2712 = sbr.rel (%p2710) target = $region40
      $region39: #{subpixel_conv_forward.4} parent=35 // pred_region
        %s2713 = smul.u32 128, %s15
      $region40: #{subpixel_conv_forward.4} parent=35 // pred_fallthru
        _
    $region36: #{subpixel_conv_forward.4} parent=5 // pred_fallthru
      _
    %p2714 = scmp.le.s32.totalorder 2, %s10
    // Predicated region
    $region41: #{subpixel_conv_forward.4} parent=5 // pred_check
      %p2715 = pneg %p2714
    $region42: #{subpixel_conv_forward.4} parent=5 // pred_check_branch
      %2717 = sbr.rel (%p2715) target = $region44
    $region43: #{subpixel_conv_forward.4} parent=5 // pred_region
      %s2718 = ssub.s32 %s10, 2
      // Predicated region
      $region45: #{subpixel_conv_forward.4} parent=43 // pred_check
        %p2719 = pneg %p128
      $region46: #{subpixel_conv_forward.4} parent=43 // pred_check_branch
        %2721 = sbr.rel (%p2719) target = $region48
      $region47: #{subpixel_conv_forward.4} parent=43 // pred_region
        %s2722 = smul.u32 128, %s16
        %p2723 = scmp.lt.s32.totalorder %s2722, 255
        %s2724 = scalar_select %p2723, %s2722, 255
        %s2725 = smul.addr %s2724, 4
        %s2726 = scalar_lea.vmem %s4, %s2725
      $region48: #{subpixel_conv_forward.4} parent=43 // pred_fallthru
        _
    $region44: #{subpixel_conv_forward.4} parent=5 // pred_fallthru
      _
  $region6: #{subpixel_conv_forward.4} parent=0 // loop_footer
    %s14 = sadd.s32 1, %s10
  $region7: #{subpixel_conv_forward.4} parent=0 // loop_footer_branch
    %9 = sbr.rel target = $region3
  $region8: #{subpixel_conv_forward.4} parent=0 // loop_exit
    _

// kernel: subpixel_conv_forward.5
$region0: #{subpixel_conv_forward.5}
  #allocation0 [shape = 'u32[]', space=smem, size = 0x4, offset = 0x4, fixed_abs, tag = 'smem constant byte address 0x4 - core index']
  #allocation1 [shape = 'u32[144,128]{1,0:T(1,128)}', space=vmem, size = 0x12000, scoped, tag = 'internal scratch']
  %s0 = inlined_call_operand.vmem [shape: bf16[392,900], index: 0, kind: input, shape index: {}]
  %s1 = inlined_call_operand.vmem [shape: bf16[900,200], index: 1, kind: input, shape index: {}]
  %s2 = inlined_call_operand.vmem [shape: f32[1,200], index: 2, kind: input, shape index: {}]
  %s3 = inlined_call_operand.vmem [shape: f32[1,200], index: 3, kind: input, shape index: {}]
  %s4 = inlined_call_operand.vmem [shape: bf16[392,200], index: 4, kind: output, shape index: {}]
  %s5 = sld [smem:[#allocation0]]
  $region26: #{subpixel_conv_forward.5} parent=0
    _
  %s7 = ssub.s32 1, %s5
  %s8 = scalar_select 0, %s7, %s5
  // Predicated region
  $region2: #{subpixel_conv_forward.5} parent=0 // pred_check
    _
  $region3: #{subpixel_conv_forward.5} parent=0 // pred_check_branch
    %10 = sbr.rel (0) target = $region5
  $region4: #{subpixel_conv_forward.5} parent=0 // pred_region
    _
  $region5: #{subpixel_conv_forward.5} parent=0 // pred_fallthru
    _
  // Predicated region
  $region6: #{subpixel_conv_forward.5} parent=0 // pred_check
    _
  $region7: #{subpixel_conv_forward.5} parent=0 // pred_check_branch
    %12 = sbr.rel (0) target = $region9
  $region8: #{subpixel_conv_forward.5} parent=0 // pred_region
    _
  $region9: #{subpixel_conv_forward.5} parent=0 // pred_fallthru
    _
  // Predicated region
  $region10: #{subpixel_conv_forward.5} parent=0 // pred_check
    _
  $region11: #{subpixel_conv_forward.5} parent=0 // pred_check_branch
    %14 = sbr.rel (0) target = $region13
  $region12: #{subpixel_conv_forward.5} parent=0 // pred_region
    _
  $region13: #{subpixel_conv_forward.5} parent=0 // pred_fallthru
    _
  // Predicated region
  $region14: #{subpixel_conv_forward.5} parent=0 // pred_check
    _
  $region15: #{subpixel_conv_forward.5} parent=0 // pred_check_branch
    %16 = sbr.rel (0) target = $region17
  $region16: #{subpixel_conv_forward.5} parent=0 // pred_region
    _
  $region17: #{subpixel_conv_forward.5} parent=0 // pred_fallthru
    _
  %v18 = vld [vmem:[%s0] sm:$0xff]
  %v19 = vld [vmem:[%s0 + $0x8] sm:$0xff]
  %v20 = vld [vmem:[%s0 + $0x10] sm:$0xff]
  %v21 = vld [vmem:[%s0 + $0x18] sm:$0xff]
  %v22 = vld [vmem:[%s0 + $0x20] sm:$0xff]
  %v23 = vld [vmem:[%s0 + $0x28] sm:$0xff]
  %v24 = vld [vmem:[%s0 + $0x30] sm:$0xff]
  %v25 = vld [vmem:[%s0 + $0x38] sm:$0xff]
  %v26 = vld [vmem:[%s0 + $0x40] sm:$0xff]
  %v27 = vld [vmem:[%s0 + $0x48] sm:$0xff]
  %v28 = vld [vmem:[%s0 + $0x50] sm:$0xff]
  %v29 = vld [vmem:[%s0 + $0x58] sm:$0xff]
  %v30 = vld [vmem:[%s0 + $0x60] sm:$0xff]
  %v31 = vld [vmem:[%s0 + $0x68] sm:$0xff]
  %v32 = vld [vmem:[%s0 + $0x70] sm:$0xff]
  %v33 = vld [vmem:[%s0 + $0x78] sm:$0xff]
  %v34 = vld [vmem:[%s0 + $0x80] sm:$0xff]
  %v35 = vld [vmem:[%s0 + $0x88] sm:$0xff]
  %v36 = vld [vmem:[%s0 + $0x90] sm:$0xff]
  %v37 = vld [vmem:[%s0 + $0x98] sm:$0xff]
  %v38 = vld [vmem:[%s0 + $0xa0] sm:$0xff]
  %v39 = vld [vmem:[%s0 + $0xa8] sm:$0xff]
  %v40 = vld [vmem:[%s0 + $0xb0] sm:$0xff]
  %v41 = vld [vmem:[%s0 + $0xb8] sm:$0xff]
  %v42 = vld [vmem:[%s0 + $0xc0] sm:$0xff]
  %v43 = vld [vmem:[%s0 + $0xc8] sm:$0xff]
  %v44 = vld [vmem:[%s0 + $0xd0] sm:$0xff]
  %v45 = vld [vmem:[%s0 + $0xd8] sm:$0xff]
  %v46 = vld [vmem:[%s0 + $0xe0] sm:$0xff]
  %v47 = vld [vmem:[%s0 + $0xe8] sm:$0xff]
  %v48 = vld [vmem:[%s0 + $0xf0] sm:$0xff]
  %v49 = vld [vmem:[%s0 + $0xf8] sm:$0xff]
  %v50 = vld [vmem:[%s0 + $0x100] sm:$0xff]
  %v51 = vld [vmem:[%s0 + $0x108] sm:$0xff]
  %v52 = vld [vmem:[%s0 + $0x110] sm:$0xff]
  %v53 = vld [vmem:[%s0 + $0x118] sm:$0xff]
  %v54 = vld [vmem:[%s0 + $0x120] sm:$0xff]
  %v55 = vld [vmem:[%s0 + $0x128] sm:$0xff]
  %v56 = vld [vmem:[%s0 + $0x130] sm:$0xff]
  %v57 = vld [vmem:[%s0 + $0x138] sm:$0xff]
  %v58 = vld [vmem:[%s0 + $0x140] sm:$0xff]
  %v59 = vld [vmem:[%s0 + $0x148] sm:$0xff]
  %v60 = vld [vmem:[%s0 + $0x150] sm:$0xff]
  %v61 = vld [vmem:[%s0 + $0x158] sm:$0xff]
  %v62 = vld [vmem:[%s0 + $0x160] sm:$0xff]
  %v63 = vld [vmem:[%s0 + $0x168] sm:$0xff]
  %v64 = vld [vmem:[%s0 + $0x170] sm:$0xff]
  %v65 = vld [vmem:[%s0 + $0x178] sm:$0xff]
  %v66 = vld [vmem:[%s0 + $0x180] sm:$0xff]
  %v67 = vld [vmem:[%s0 + $0x188] sm:$0xff]
  %v68 = vld [vmem:[%s0 + $0x190] sm:$0xff]
  %v69 = vld [vmem:[%s0 + $0x198] sm:$0xff]
  %v70 = vld [vmem:[%s0 + $0x1a0] sm:$0xff]
  %v71 = vld [vmem:[%s0 + $0x1a8] sm:$0xff]
  %v72 = vld [vmem:[%s0 + $0x1b0] sm:$0xff]
  %v73 = vld [vmem:[%s0 + $0x1b8] sm:$0xff]
  %v74 = vld [vmem:[%s0 + $0x1c0] sm:$0xff]
  %v75 = vld [vmem:[%s0 + $0x1c8] sm:$0xff]
  %v76 = vld [vmem:[%s0 + $0x1d0] sm:$0xff]
  %v77 = vld [vmem:[%s0 + $0x1d8] sm:$0xff]
  %v78 = vld [vmem:[%s0 + $0x1e0] sm:$0xff]
  %v79 = vld [vmem:[%s0 + $0x1e8] sm:$0xff]
  %v80 = vld [vmem:[%s0 + $0x1f0] sm:$0xff]
  %v81 = vld [vmem:[%s0 + $0x1f8] sm:$0xff]
  %v82 = vld [vmem:[%s0 + $0x200] sm:$0xff]
  %v83 = vld [vmem:[%s0 + $0x208] sm:$0xff]
  %v84 = vld [vmem:[%s0 + $0x210] sm:$0xff]
  %v85 = vld [vmem:[%s0 + $0x218] sm:$0xff]
  %v86 = vld [vmem:[%s0 + $0x220] sm:$0xff]
  %v87 = vld [vmem:[%s0 + $0x228] sm:$0xff]
  %v88 = vld [vmem:[%s0 + $0x230] sm:$0xff]
  %v89 = vld [vmem:[%s0 + $0x238] sm:$0xff]
  %v90 = vld [vmem:[%s0 + $0x240] sm:$0xff]
  %v91 = vld [vmem:[%s0 + $0x248] sm:$0xff]
  %v92 = vld [vmem:[%s0 + $0x250] sm:$0xff]
  %v93 = vld [vmem:[%s0 + $0x258] sm:$0xff]
  %v94 = vld [vmem:[%s0 + $0x260] sm:$0xff]
  %v95 = vld [vmem:[%s0 + $0x268] sm:$0xff]
  %v96 = vld [vmem:[%s0 + $0x270] sm:$0xff]
  %v97 = vld [vmem:[%s0 + $0x278] sm:$0xff]
  %v98 = vld [vmem:[%s0 + $0x280] sm:$0xff]
  %v99 = vld [vmem:[%s0 + $0x288] sm:$0xff]
  %v100 = vld [vmem:[%s0 + $0x290] sm:$0xff]
  %v101 = vld [vmem:[%s0 + $0x298] sm:$0xff]
  %v102 = vld [vmem:[%s0 + $0x2a0] sm:$0xff]
  %v103 = vld [vmem:[%s0 + $0x2a8] sm:$0xff]
  %v104 = vld [vmem:[%s0 + $0x2b0] sm:$0xff]
  %v105 = vld [vmem:[%s0 + $0x2b8] sm:$0xff]
  %v106 = vld [vmem:[%s0 + $0x2c0] sm:$0xff]
  %v107 = vld [vmem:[%s0 + $0x2c8] sm:$0xff]
  %v108 = vld [vmem:[%s0 + $0x2d0] sm:$0xff]
  %v109 = vld [vmem:[%s0 + $0x2d8] sm:$0xff]
  %v110 = vld [vmem:[%s0 + $0x2e0] sm:$0xff]
  %v111 = vld [vmem:[%s0 + $0x2e8] sm:$0xff]
  %v112 = vld [vmem:[%s0 + $0x2f0] sm:$0xff]
  %v113 = vld [vmem:[%s0 + $0x2f8] sm:$0xff]
  %v114 = vld [vmem:[%s0 + $0x300] sm:$0xff]
  %v115 = vld [vmem:[%s0 + $0x308] sm:$0xff]
  %v116 = vld [vmem:[%s0 + $0x310] sm:$0xff]
  %v117 = vld [vmem:[%s0 + $0x318] sm:$0xff]
  %v118 = vld [vmem:[%s0 + $0x320] sm:$0xff]
  %v119 = vld [vmem:[%s0 + $0x328] sm:$0xff]
  %v120 = vld [vmem:[%s0 + $0x330] sm:$0xff]
  %v121 = vld [vmem:[%s0 + $0x338] sm:$0xff]
  %v122 = vld [vmem:[%s0 + $0x340] sm:$0xff]
  %v123 = vld [vmem:[%s0 + $0x348] sm:$0xff]
  %v124 = vld [vmem:[%s0 + $0x350] sm:$0xff]
  %v125 = vld [vmem:[%s0 + $0x358] sm:$0xff]
  %v126 = vld [vmem:[%s0 + $0x360] sm:$0xff]
  %v127 = vld [vmem:[%s0 + $0x368] sm:$0xff]
  %v128 = vld [vmem:[%s0 + $0x370] sm:$0xff]
  %v129 = vld [vmem:[%s0 + $0x378] sm:$0xff]
  %v130 = vld [vmem:[%s0 + $0x380] sm:$0xff]
  %v131 = vld [vmem:[%s0 + $0x388] sm:$0xff]
  %v132 = vld [vmem:[%s0 + $0x390] sm:$0xff]
  %v133 = vld [vmem:[%s0 + $0x398] sm:$0xff]
  %v134 = vld [vmem:[%s0 + $0x3a0] sm:$0xff]
  %v135 = vld [vmem:[%s0 + $0x3a8] sm:$0xff]
  %v136 = vld [vmem:[%s0 + $0x3b0] sm:$0xff]
  %v137 = vld [vmem:[%s0 + $0x3b8] sm:$0xff]
  %v138 = vld [vmem:[%s0 + $0x3c0] sm:$0xff]
  %v139 = vld [vmem:[%s0 + $0x3c8] sm:$0xff]
  %v140 = vld [vmem:[%s0 + $0x3d0] sm:$0xff]
  %v141 = vld [vmem:[%s0 + $0x3d8] sm:$0xff]
  %v142 = vld [vmem:[%s0 + $0x3e0] sm:$0xff]
  %v143 = vld [vmem:[%s0 + $0x3e8] sm:$0xff]
  %v144 = vld [vmem:[%s0 + $0x3f0] sm:$0xff]
  %v145 = vld [vmem:[%s0 + $0x3f8] sm:$0xff]
  %v146 = vld [vmem:[%s0 + $0x400] sm:$0xff]
  %v147 = vld [vmem:[%s0 + $0x408] sm:$0xff]
  %v148 = vld [vmem:[%s0 + $0x410] sm:$0xff]
  %v149 = vld [vmem:[%s0 + $0x418] sm:$0xff]
  %v150 = vld [vmem:[%s0 + $0x420] sm:$0xff]
  %v151 = vld [vmem:[%s0 + $0x428] sm:$0xff]
  %v152 = vld [vmem:[%s0 + $0x430] sm:$0xff]
  %v153 = vld [vmem:[%s0 + $0x438] sm:$0xff]
  %v154 = vld [vmem:[%s0 + $0x440] sm:$0xff]
  %v155 = vld [vmem:[%s0 + $0x448] sm:$0xff]
  %v156 = vld [vmem:[%s0 + $0x450] sm:$0xff]
  %v157 = vld [vmem:[%s0 + $0x458] sm:$0xff]
  %v158 = vld [vmem:[%s0 + $0x460] sm:$0xff]
  %v159 = vld [vmem:[%s0 + $0x468] sm:$0xff]
  %v160 = vld [vmem:[%s0 + $0x470] sm:$0xff]
  %v161 = vld [vmem:[%s0 + $0x478] sm:$0xff]
  %v162 = vld [vmem:[%s0 + $0x480] sm:$0xff]
  %v163 = vld [vmem:[%s0 + $0x488] sm:$0xff]
  %v164 = vld [vmem:[%s0 + $0x490] sm:$0xff]
  %v165 = vld [vmem:[%s0 + $0x498] sm:$0xff]
  %v166 = vld [vmem:[%s0 + $0x4a0] sm:$0xff]
  %v167 = vld [vmem:[%s0 + $0x4a8] sm:$0xff]
  %v168 = vld [vmem:[%s0 + $0x4b0] sm:$0xff]
  %v169 = vld [vmem:[%s0 + $0x4b8] sm:$0xff]
  %v170 = vld [vmem:[%s0 + $0x4c0] sm:$0xff]
  %v171 = vld [vmem:[%s0 + $0x4c8] sm:$0xff]
  %v172 = vld [vmem:[%s0 + $0x4d0] sm:$0xff]
  %v173 = vld [vmem:[%s0 + $0x4d8] sm:$0xff]
  %v174 = vld [vmem:[%s0 + $0x4e0] sm:$0xff]
  %v175 = vld [vmem:[%s0 + $0x4e8] sm:$0xff]
  %v176 = vld [vmem:[%s0 + $0x4f0] sm:$0xff]
  %v177 = vld [vmem:[%s0 + $0x4f8] sm:$0xff]
  %v178 = vld [vmem:[%s0 + $0x500] sm:$0xff]
  %v179 = vld [vmem:[%s0 + $0x508] sm:$0xff]
  %v180 = vld [vmem:[%s0 + $0x510] sm:$0xff]
  %v181 = vld [vmem:[%s0 + $0x518] sm:$0xff]
  %v182 = vld [vmem:[%s0 + $0x520] sm:$0xff]
  %v183 = vld [vmem:[%s0 + $0x528] sm:$0xff]
  %v184 = vld [vmem:[%s0 + $0x530] sm:$0xff]
  %v185 = vld [vmem:[%s0 + $0x538] sm:$0xff]
  %v186 = vld [vmem:[%s0 + $0x540] sm:$0xff]
  %v187 = vld [vmem:[%s0 + $0x548] sm:$0xff]
  %v188 = vld [vmem:[%s0 + $0x550] sm:$0xff]
  %v189 = vld [vmem:[%s0 + $0x558] sm:$0xff]
  %v190 = vld [vmem:[%s0 + $0x560] sm:$0xff]
  %v191 = vld [vmem:[%s0 + $0x568] sm:$0xff]
  %v192 = vld [vmem:[%s0 + $0x570] sm:$0xff]
  %v193 = vld [vmem:[%s0 + $0x578] sm:$0xff]
  %v194 = vld [vmem:[%s0 + $0x580] sm:$0xff]
  %v195 = vld [vmem:[%s0 + $0x588] sm:$0xff]
  %v196 = vld [vmem:[%s0 + $0x590] sm:$0xff]
  %v197 = vld [vmem:[%s0 + $0x598] sm:$0xff]
  %v198 = vld [vmem:[%s0 + $0x5a0] sm:$0xff]
  %v199 = vld [vmem:[%s0 + $0x5a8] sm:$0xff]
  %v200 = vld [vmem:[%s0 + $0x5b0] sm:$0xff]
  %v201 = vld [vmem:[%s0 + $0x5b8] sm:$0xff]
  %v202 = vld [vmem:[%s0 + $0x5c0] sm:$0xff]
  %v203 = vld [vmem:[%s0 + $0x5c8] sm:$0xff]
  %v204 = vld [vmem:[%s0 + $0x5d0] sm:$0xff]
  %v205 = vld [vmem:[%s0 + $0x5d8] sm:$0xff]
  %v206 = vld [vmem:[%s0 + $0x5e0] sm:$0xff]
  %v207 = vld [vmem:[%s0 + $0x5e8] sm:$0xff]
  %v208 = vld [vmem:[%s0 + $0x5f0] sm:$0xff]
  %v209 = vld [vmem:[%s0 + $0x5f8] sm:$0xff]
  %v210 = vld [vmem:[%s0 + $0x600] sm:$0xff]
  %v211 = vld [vmem:[%s0 + $0x608] sm:$0xff]
  %v212 = vld [vmem:[%s0 + $0x610] sm:$0xff]
  %v213 = vld [vmem:[%s0 + $0x618] sm:$0xff]
  %v214 = vld [vmem:[%s1] sm:$0xff]
  %v215 = vld [vmem:[%s1 + $0x8] sm:$0xff]
  %v216 = vld [vmem:[%s1 + $0x10] sm:$0xff]
  %v217 = vld [vmem:[%s1 + $0x18] sm:$0xff]
  %v218 = vld [vmem:[%s1 + $0x20] sm:$0xff]
  %v219 = vld [vmem:[%s1 + $0x28] sm:$0xff]
  %v220 = vld [vmem:[%s1 + $0x30] sm:$0xff]
  %v221 = vld [vmem:[%s1 + $0x38] sm:$0xff]
  %v222 = vld [vmem:[%s1 + $0x40] sm:$0xff]
  %v223 = vld [vmem:[%s1 + $0x48] sm:$0xff]
  %v224 = vld [vmem:[%s1 + $0x50] sm:$0xff]
  %v225 = vld [vmem:[%s1 + $0x58] sm:$0xff]
  %v226 = vld [vmem:[%s1 + $0x60] sm:$0xff]
  %v227 = vld [vmem:[%s1 + $0x68] sm:$0xff]
  %v228 = vld [vmem:[%s1 + $0x70] sm:$0xff]
  %v229 = vld [vmem:[%s1 + $0x78] sm:$0xff]
  %v230 = vld [vmem:[%s1 + $0x80] sm:$0xff]
  %v231 = vld [vmem:[%s1 + $0x88] sm:$0xff]
  %v232 = vld [vmem:[%s1 + $0x90] sm:$0xff]
  %v233 = vld [vmem:[%s1 + $0x98] sm:$0xff]
  %v234 = vld [vmem:[%s1 + $0xa0] sm:$0xff]
  %v235 = vld [vmem:[%s1 + $0xa8] sm:$0xff]
  %v236 = vld [vmem:[%s1 + $0xb0] sm:$0xff]
  %v237 = vld [vmem:[%s1 + $0xb8] sm:$0xff]
  %v238 = vld [vmem:[%s1 + $0xc0] sm:$0xff]
  %v239 = vld [vmem:[%s1 + $0xc8] sm:$0xff]
  %v240 = vld [vmem:[%s1 + $0xd0] sm:$0xff]
  %v241 = vld [vmem:[%s1 + $0xd8] sm:$0xff]
  %v242 = vld [vmem:[%s1 + $0xe0] sm:$0xff]
  %v243 = vld [vmem:[%s1 + $0xe8] sm:$0xff]
  %v244 = vld [vmem:[%s1 + $0xf0] sm:$0xff]
  %v245 = vld [vmem:[%s1 + $0xf8] sm:$0xff]
  %v246 = vld [vmem:[%s1 + $0x100] sm:$0xff]
  %v247 = vld [vmem:[%s1 + $0x108] sm:$0xff]
  %v248 = vld [vmem:[%s1 + $0x110] sm:$0xff]
  %v249 = vld [vmem:[%s1 + $0x118] sm:$0xff]
  %v250 = vld [vmem:[%s1 + $0x120] sm:$0xff]
  %v251 = vld [vmem:[%s1 + $0x128] sm:$0xff]
  %v252 = vld [vmem:[%s1 + $0x130] sm:$0xff]
  %v253 = vld [vmem:[%s1 + $0x138] sm:$0xff]
  %v254 = vld [vmem:[%s1 + $0x140] sm:$0xff]
  %v255 = vld [vmem:[%s1 + $0x148] sm:$0xff]
  %v256 = vld [vmem:[%s1 + $0x150] sm:$0xff]
  %v257 = vld [vmem:[%s1 + $0x158] sm:$0xff]
  %v258 = vld [vmem:[%s1 + $0x160] sm:$0xff]
  %v259 = vld [vmem:[%s1 + $0x168] sm:$0xff]
  %v260 = vld [vmem:[%s1 + $0x170] sm:$0xff]
  %v261 = vld [vmem:[%s1 + $0x178] sm:$0xff]
  %v262 = vld [vmem:[%s1 + $0x180] sm:$0xff]
  %v263 = vld [vmem:[%s1 + $0x188] sm:$0xff]
  %v264 = vld [vmem:[%s1 + $0x190] sm:$0xff]
  %v265 = vld [vmem:[%s1 + $0x198] sm:$0xff]
  %v266 = vld [vmem:[%s1 + $0x1a0] sm:$0xff]
  %v267 = vld [vmem:[%s1 + $0x1a8] sm:$0xff]
  %v268 = vld [vmem:[%s1 + $0x1b0] sm:$0xff]
  %v269 = vld [vmem:[%s1 + $0x1b8] sm:$0xff]
  %v270 = vld [vmem:[%s1 + $0x1c0] sm:$0xff]
  %v271 = vld [vmem:[%s1 + $0x1c8] sm:$0xff]
  %v272 = vld [vmem:[%s1 + $0x1d0] sm:$0xff]
  %v273 = vld [vmem:[%s1 + $0x1d8] sm:$0xff]
  %v274 = vld [vmem:[%s1 + $0x1e0] sm:$0xff]
  %v275 = vld [vmem:[%s1 + $0x1e8] sm:$0xff]
  %v276 = vld [vmem:[%s1 + $0x1f0] sm:$0xff]
  %v277 = vld [vmem:[%s1 + $0x1f8] sm:$0xff]
  %v278 = vld [vmem:[%s1 + $0x200] sm:$0xff]
  %v279 = vld [vmem:[%s1 + $0x208] sm:$0xff]
  %v280 = vld [vmem:[%s1 + $0x210] sm:$0xff]
  %v281 = vld [vmem:[%s1 + $0x218] sm:$0xff]
  %v282 = vld [vmem:[%s1 + $0x220] sm:$0xff]
  %v283 = vld [vmem:[%s1 + $0x228] sm:$0xff]
  %v284 = vld [vmem:[%s1 + $0x230] sm:$0xff]
  %v285 = vld [vmem:[%s1 + $0x238] sm:$0xff]
  %v286 = vld [vmem:[%s1 + $0x240] sm:$0xff]
  %v287 = vld [vmem:[%s1 + $0x248] sm:$0xff]
  %v288 = vld [vmem:[%s1 + $0x250] sm:$0xff]
  %v289 = vld [vmem:[%s1 + $0x258] sm:$0xff]
  %v290 = vld [vmem:[%s1 + $0x260] sm:$0xff]
  %v291 = vld [vmem:[%s1 + $0x268] sm:$0xff]
  %v292 = vld [vmem:[%s1 + $0x270] sm:$0xff]
  %v293 = vld [vmem:[%s1 + $0x278] sm:$0xff]
  %v294 = vld [vmem:[%s1 + $0x280] sm:$0xff]
  %v295 = vld [vmem:[%s1 + $0x288] sm:$0xff]
  %v296 = vld [vmem:[%s1 + $0x290] sm:$0xff]
  %v297 = vld [vmem:[%s1 + $0x298] sm:$0xff]
  %v298 = vld [vmem:[%s1 + $0x2a0] sm:$0xff]
  %v299 = vld [vmem:[%s1 + $0x2a8] sm:$0xff]
  %v300 = vld [vmem:[%s1 + $0x2b0] sm:$0xff]
  %v301 = vld [vmem:[%s1 + $0x2b8] sm:$0xff]
  %v302 = vld [vmem:[%s1 + $0x2c0] sm:$0xff]
  %v303 = vld [vmem:[%s1 + $0x2c8] sm:$0xff]
  %v304 = vld [vmem:[%s1 + $0x2d0] sm:$0xff]
  %v305 = vld [vmem:[%s1 + $0x2d8] sm:$0xff]
  %v306 = vld [vmem:[%s1 + $0x2e0] sm:$0xff]
  %v307 = vld [vmem:[%s1 + $0x2e8] sm:$0xff]
  %v308 = vld [vmem:[%s1 + $0x2f0] sm:$0xff]
  %v309 = vld [vmem:[%s1 + $0x2f8] sm:$0xff]
  %v310 = vld [vmem:[%s1 + $0x300] sm:$0xff]
  %v311 = vld [vmem:[%s1 + $0x308] sm:$0xff]
  %v312 = vld [vmem:[%s1 + $0x310] sm:$0xff]
  %v313 = vld [vmem:[%s1 + $0x318] sm:$0xff]
  %v314 = vld [vmem:[%s1 + $0x320] sm:$0xff]
  %v315 = vld [vmem:[%s1 + $0x328] sm:$0xff]
  %v316 = vld [vmem:[%s1 + $0x330] sm:$0xff]
  %v317 = vld [vmem:[%s1 + $0x338] sm:$0xff]
  %v318 = vld [vmem:[%s1 + $0x340] sm:$0xff]
  %v319 = vld [vmem:[%s1 + $0x348] sm:$0xff]
  %v320 = vld [vmem:[%s1 + $0x350] sm:$0xff]
  %v321 = vld [vmem:[%s1 + $0x358] sm:$0xff]
  %v322 = vld [vmem:[%s1 + $0x360] sm:$0xff]
  %v323 = vld [vmem:[%s1 + $0x368] sm:$0xff]
  %v324 = vld [vmem:[%s1 + $0x370] sm:$0xff]
  %v325 = vld [vmem:[%s1 + $0x378] sm:$0xff]
  %v326 = vld [vmem:[%s1 + $0x380] sm:$0x33]
  %v523 = vunpack.c.l.b16 %v18
  %v524 = vunpack.c.h.b16 %v18
  %v525 = vunpack.c.l.b16 %v19
  %v526 = vunpack.c.h.b16 %v19
  %v527 = vunpack.c.l.b16 %v20
  %v528 = vunpack.c.h.b16 %v20
  %v529 = vunpack.c.l.b16 %v21
  %v530 = vunpack.c.h.b16 %v21
  %v531 = vunpack.c.l.b16 %v22
  %v532 = vunpack.c.h.b16 %v22
  %v533 = vunpack.c.l.b16 %v23
  %v534 = vunpack.c.h.b16 %v23
  %v535 = vunpack.c.l.b16 %v24
  %v536 = vunpack.c.h.b16 %v24
  %v537 = vunpack.c.l.b16 %v25
  %v538 = vunpack.c.h.b16 %v25
  %v539 = vunpack.c.l.b16 %v26
  %v540 = vunpack.c.h.b16 %v26
  %v541 = vunpack.c.l.b16 %v27
  %v542 = vunpack.c.h.b16 %v27
  %v543 = vunpack.c.l.b16 %v28
  %v544 = vunpack.c.h.b16 %v28
  %v545 = vunpack.c.l.b16 %v29
  %v546 = vunpack.c.h.b16 %v29
  %v547 = vunpack.c.l.b16 %v30
  %v548 = vunpack.c.h.b16 %v30
  %v549 = vunpack.c.l.b16 %v31
  %v550 = vunpack.c.h.b16 %v31
  %v551 = vunpack.c.l.b16 %v32
  %v552 = vunpack.c.h.b16 %v32
  %v553 = vunpack.c.l.b16 %v33
  %v554 = vunpack.c.h.b16 %v33
  %v555 = vunpack.c.l.b16 %v34
  %v556 = vunpack.c.h.b16 %v34
  %v557 = vunpack.c.l.b16 %v35
  %v558 = vunpack.c.h.b16 %v35
  %v559 = vunpack.c.l.b16 %v36
  %v560 = vunpack.c.h.b16 %v36
  %v561 = vunpack.c.l.b16 %v37
  %v562 = vunpack.c.h.b16 %v37
  %v563 = vunpack.c.l.b16 %v38
  %v564 = vunpack.c.h.b16 %v38
  %v565 = vunpack.c.l.b16 %v39
  %v566 = vunpack.c.h.b16 %v39
  %v567 = vunpack.c.l.b16 %v40
  %v568 = vunpack.c.h.b16 %v40
  %v569 = vunpack.c.l.b16 %v41
  %v570 = vunpack.c.h.b16 %v41
  %v571 = vunpack.c.l.b16 %v42
  %v572 = vunpack.c.h.b16 %v42
  %v573 = vunpack.c.l.b16 %v43
  %v574 = vunpack.c.h.b16 %v43
  %v575 = vunpack.c.l.b16 %v44
  %v576 = vunpack.c.h.b16 %v44
  %v577 = vunpack.c.l.b16 %v45
  %v578 = vunpack.c.h.b16 %v45
  %v579 = vunpack.c.l.b16 %v46
  %v580 = vunpack.c.h.b16 %v46
  %v581 = vunpack.c.l.b16 %v47
  %v582 = vunpack.c.h.b16 %v47
  %v583 = vunpack.c.l.b16 %v48
  %v584 = vunpack.c.h.b16 %v48
  %v585 = vunpack.c.l.b16 %v49
  %v586 = vunpack.c.h.b16 %v49
  %v587 = vunpack.c.l.b16 %v50
  %v588 = vunpack.c.h.b16 %v50
  %v589 = vunpack.c.l.b16 %v51
  %v590 = vunpack.c.h.b16 %v51
  %v591 = vunpack.c.l.b16 %v52
  %v592 = vunpack.c.h.b16 %v52
  %v593 = vunpack.c.l.b16 %v53
  %v594 = vunpack.c.h.b16 %v53
  %v595 = vunpack.c.l.b16 %v54
  %v596 = vunpack.c.h.b16 %v54
  %v597 = vunpack.c.l.b16 %v55
  %v598 = vunpack.c.h.b16 %v55
  %v599 = vunpack.c.l.b16 %v56
  %v600 = vunpack.c.h.b16 %v56
  %v601 = vunpack.c.l.b16 %v57
  %v602 = vunpack.c.h.b16 %v57
  %v603 = vunpack.c.l.b16 %v58
  %v604 = vunpack.c.h.b16 %v58
  %v605 = vunpack.c.l.b16 %v59
  %v606 = vunpack.c.h.b16 %v59
  %v607 = vunpack.c.l.b16 %v60
  %v608 = vunpack.c.h.b16 %v60
  %v609 = vunpack.c.l.b16 %v61
  %v610 = vunpack.c.h.b16 %v61
  %v611 = vunpack.c.l.b16 %v62
  %v612 = vunpack.c.h.b16 %v62
  %v613 = vunpack.c.l.b16 %v63
  %v614 = vunpack.c.h.b16 %v63
  %v615 = vunpack.c.l.b16 %v64
  %v616 = vunpack.c.h.b16 %v64
  %v617 = vunpack.c.l.b16 %v65
  %v618 = vunpack.c.h.b16 %v65
  %v619 = vunpack.c.l.b16 %v66
  %v620 = vunpack.c.h.b16 %v66
  %v621 = vunpack.c.l.b16 %v67
  %v622 = vunpack.c.h.b16 %v67
  %v623 = vunpack.c.l.b16 %v68
  %v624 = vunpack.c.h.b16 %v68
  %v625 = vunpack.c.l.b16 %v69
  %v626 = vunpack.c.h.b16 %v69
  %v627 = vunpack.c.l.b16 %v70
  %v628 = vunpack.c.h.b16 %v70
  %v629 = vunpack.c.l.b16 %v71
  %v630 = vunpack.c.h.b16 %v71
  %v631 = vunpack.c.l.b16 %v72
  %v632 = vunpack.c.h.b16 %v72
  %v633 = vunpack.c.l.b16 %v73
  %v634 = vunpack.c.h.b16 %v73
  %v635 = vunpack.c.l.b16 %v74
  %v636 = vunpack.c.h.b16 %v74
  %v637 = vunpack.c.l.b16 %v75
  %v638 = vunpack.c.h.b16 %v75
  %v639 = vunpack.c.l.b16 %v76
  %v640 = vunpack.c.h.b16 %v76
  %v641 = vunpack.c.l.b16 %v77
  %v642 = vunpack.c.h.b16 %v77
  %v643 = vunpack.c.l.b16 %v78
  %v644 = vunpack.c.h.b16 %v78
  %v645 = vunpack.c.l.b16 %v79
  %v646 = vunpack.c.h.b16 %v79
  %v647 = vunpack.c.l.b16 %v80
  %v648 = vunpack.c.h.b16 %v80
  %v649 = vunpack.c.l.b16 %v81
  %v650 = vunpack.c.h.b16 %v81
  %v651 = vunpack.c.l.b16 %v82
  %v652 = vunpack.c.h.b16 %v82
  %v653 = vunpack.c.l.b16 %v83
  %v654 = vunpack.c.h.b16 %v83
  %v655 = vunpack.c.l.b16 %v84
  %v656 = vunpack.c.h.b16 %v84
  %v657 = vunpack.c.l.b16 %v85
  %v658 = vunpack.c.h.b16 %v85
  %v659 = vunpack.c.l.b16 %v86
  %v660 = vunpack.c.h.b16 %v86
  %v661 = vunpack.c.l.b16 %v87
  %v662 = vunpack.c.h.b16 %v87
  %v663 = vunpack.c.l.b16 %v88
  %v664 = vunpack.c.h.b16 %v88
  %v665 = vunpack.c.l.b16 %v89
  %v666 = vunpack.c.h.b16 %v89
  %v667 = vunpack.c.l.b16 %v90
  %v668 = vunpack.c.h.b16 %v90
  %v669 = vunpack.c.l.b16 %v91
  %v670 = vunpack.c.h.b16 %v91
  %v671 = vunpack.c.l.b16 %v92
  %v672 = vunpack.c.h.b16 %v92
  %v673 = vunpack.c.l.b16 %v93
  %v674 = vunpack.c.h.b16 %v93
  %v675 = vunpack.c.l.b16 %v94
  %v676 = vunpack.c.h.b16 %v94
  %v677 = vunpack.c.l.b16 %v95
  %v678 = vunpack.c.h.b16 %v95
  %v679 = vunpack.c.l.b16 %v96
  %v680 = vunpack.c.h.b16 %v96
  %v681 = vunpack.c.l.b16 %v97
  %v682 = vunpack.c.h.b16 %v97
  %v683 = vunpack.c.l.b16 %v98
  %v684 = vunpack.c.h.b16 %v98
  %v685 = vunpack.c.l.b16 %v99
  %v686 = vunpack.c.h.b16 %v99
  %v687 = vunpack.c.l.b16 %v100
  %v688 = vunpack.c.h.b16 %v100
  %v689 = vunpack.c.l.b16 %v101
  %v690 = vunpack.c.h.b16 %v101
  %v691 = vunpack.c.l.b16 %v102
  %v692 = vunpack.c.h.b16 %v102
  %v693 = vunpack.c.l.b16 %v103
  %v694 = vunpack.c.h.b16 %v103
  %v695 = vunpack.c.l.b16 %v104
  %v696 = vunpack.c.h.b16 %v104
  %v697 = vunpack.c.l.b16 %v105
  %v698 = vunpack.c.h.b16 %v105
  %v699 = vunpack.c.l.b16 %v106
  %v700 = vunpack.c.h.b16 %v106
  %v701 = vunpack.c.l.b16 %v107
  %v702 = vunpack.c.h.b16 %v107
  %v703 = vunpack.c.l.b16 %v108
  %v704 = vunpack.c.h.b16 %v108
  %v705 = vunpack.c.l.b16 %v109
  %v706 = vunpack.c.h.b16 %v109
  %v707 = vunpack.c.l.b16 %v110
  %v708 = vunpack.c.h.b16 %v110
  %v709 = vunpack.c.l.b16 %v111
  %v710 = vunpack.c.h.b16 %v111
  %v711 = vunpack.c.l.b16 %v112
  %v712 = vunpack.c.h.b16 %v112
  %v713 = vunpack.c.l.b16 %v113
  %v714 = vunpack.c.h.b16 %v113
  %v715 = vunpack.c.l.b16 %v114
  %v716 = vunpack.c.h.b16 %v114
  %v717 = vunpack.c.l.b16 %v115
  %v718 = vunpack.c.h.b16 %v115
  %v719 = vunpack.c.l.b16 %v116
  %v720 = vunpack.c.h.b16 %v116
  %v721 = vunpack.c.l.b16 %v117
  %v722 = vunpack.c.h.b16 %v117
  %v723 = vunpack.c.l.b16 %v118
  %v724 = vunpack.c.h.b16 %v118
  %v725 = vunpack.c.l.b16 %v119
  %v726 = vunpack.c.h.b16 %v119
  %v727 = vunpack.c.l.b16 %v120
  %v728 = vunpack.c.h.b16 %v120
  %v729 = vunpack.c.l.b16 %v121
  %v730 = vunpack.c.h.b16 %v121
  %v731 = vunpack.c.l.b16 %v122
  %v732 = vunpack.c.h.b16 %v122
  %v733 = vunpack.c.l.b16 %v123
  %v734 = vunpack.c.h.b16 %v123
  %v735 = vunpack.c.l.b16 %v124
  %v736 = vunpack.c.h.b16 %v124
  %v737 = vunpack.c.l.b16 %v125
  %v738 = vunpack.c.h.b16 %v125
  %v739 = vunpack.c.l.b16 %v126
  %v740 = vunpack.c.h.b16 %v126
  %v741 = vunpack.c.l.b16 %v127
  %v742 = vunpack.c.h.b16 %v127
  %v743 = vunpack.c.l.b16 %v128
  %v744 = vunpack.c.h.b16 %v128
  %v745 = vunpack.c.l.b16 %v129
  %v746 = vunpack.c.h.b16 %v129
  %v747 = vunpack.c.l.b16 %v130
  %v748 = vunpack.c.h.b16 %v130
  %v749 = vunpack.c.l.b16 %v131
  %v750 = vunpack.c.h.b16 %v131
  %v751 = vunpack.c.l.b16 %v132
  %v752 = vunpack.c.h.b16 %v132
  %v753 = vunpack.c.l.b16 %v133
  %v754 = vunpack.c.h.b16 %v133
  %v755 = vunpack.c.l.b16 %v134
  %v756 = vunpack.c.h.b16 %v134
  %v757 = vunpack.c.l.b16 %v135
  %v758 = vunpack.c.h.b16 %v135
  %v759 = vunpack.c.l.b16 %v136
  %v760 = vunpack.c.h.b16 %v136
  %v761 = vunpack.c.l.b16 %v137
  %v762 = vunpack.c.h.b16 %v137
  %v763 = vunpack.c.l.b16 %v138
  %v764 = vunpack.c.h.b16 %v138
  %v765 = vunpack.c.l.b16 %v139
  %v766 = vunpack.c.h.b16 %v139
  %v767 = vunpack.c.l.b16 %v140
  %v768 = vunpack.c.h.b16 %v140
  %v769 = vunpack.c.l.b16 %v141
  %v770 = vunpack.c.h.b16 %v141
  %v771 = vunpack.c.l.b16 %v142
  %v772 = vunpack.c.h.b16 %v142
  %v773 = vunpack.c.l.b16 %v143
  %v774 = vunpack.c.h.b16 %v143
  %v775 = vunpack.c.l.b16 %v144
  %v776 = vunpack.c.h.b16 %v144
  %v777 = vunpack.c.l.b16 %v145
  %v778 = vunpack.c.h.b16 %v145
  %v779 = vunpack.c.l.b16 %v146
  %v780 = vunpack.c.h.b16 %v146
  %v781 = vunpack.c.l.b16 %v147
  %v782 = vunpack.c.h.b16 %v147
  %v783 = vunpack.c.l.b16 %v148
  %v784 = vunpack.c.h.b16 %v148
  %v785 = vunpack.c.l.b16 %v149
  %v786 = vunpack.c.h.b16 %v149
  %v787 = vunpack.c.l.b16 %v150
  %v788 = vunpack.c.h.b16 %v150
  %v789 = vunpack.c.l.b16 %v151
  %v790 = vunpack.c.h.b16 %v151
  %v791 = vunpack.c.l.b16 %v152
  %v792 = vunpack.c.h.b16 %v152
  %v793 = vunpack.c.l.b16 %v153
  %v794 = vunpack.c.h.b16 %v153
  %v795 = vunpack.c.l.b16 %v154
  %v796 = vunpack.c.h.b16 %v154
  %v797 = vunpack.c.l.b16 %v155
  %v798 = vunpack.c.h.b16 %v155
  %v799 = vunpack.c.l.b16 %v156
  %v800 = vunpack.c.h.b16 %v156
  %v801 = vunpack.c.l.b16 %v157
  %v802 = vunpack.c.h.b16 %v157
  %v803 = vunpack.c.l.b16 %v158
  %v804 = vunpack.c.h.b16 %v158
  %v805 = vunpack.c.l.b16 %v159
  %v806 = vunpack.c.h.b16 %v159
  %v807 = vunpack.c.l.b16 %v160
  %v808 = vunpack.c.h.b16 %v160
  %v809 = vunpack.c.l.b16 %v161
  %v810 = vunpack.c.h.b16 %v161
  %v811 = vunpack.c.l.b16 %v162
  %v812 = vunpack.c.h.b16 %v162
  %v813 = vunpack.c.l.b16 %v163
  %v814 = vunpack.c.h.b16 %v163
  %v815 = vunpack.c.l.b16 %v164
  %v816 = vunpack.c.h.b16 %v164
  %v817 = vunpack.c.l.b16 %v165
  %v818 = vunpack.c.h.b16 %v165
  %v819 = vunpack.c.l.b16 %v166
  %v820 = vunpack.c.h.b16 %v166
  %v821 = vunpack.c.l.b16 %v167
  %v822 = vunpack.c.h.b16 %v167
  %v823 = vunpack.c.l.b16 %v168
  %v824 = vunpack.c.h.b16 %v168
  %v825 = vunpack.c.l.b16 %v169
  %v826 = vunpack.c.h.b16 %v169
  %v827 = vunpack.c.l.b16 %v170
  %v828 = vunpack.c.h.b16 %v170
  %v829 = vunpack.c.l.b16 %v171
  %v830 = vunpack.c.h.b16 %v171
  %v831 = vunpack.c.l.b16 %v172
  %v832 = vunpack.c.h.b16 %v172
  %v833 = vunpack.c.l.b16 %v173
  %v834 = vunpack.c.h.b16 %v173
  %v835 = vunpack.c.l.b16 %v174
  %v836 = vunpack.c.h.b16 %v174
  %v837 = vunpack.c.l.b16 %v175
  %v838 = vunpack.c.h.b16 %v175
  %v839 = vunpack.c.l.b16 %v176
  %v840 = vunpack.c.h.b16 %v176
  %v841 = vunpack.c.l.b16 %v177
  %v842 = vunpack.c.h.b16 %v177
  %v843 = vunpack.c.l.b16 %v178
  %v844 = vunpack.c.h.b16 %v178
  %v845 = vunpack.c.l.b16 %v179
  %v846 = vunpack.c.h.b16 %v179
  %v847 = vunpack.c.l.b16 %v180
  %v848 = vunpack.c.h.b16 %v180
  %v849 = vunpack.c.l.b16 %v181
  %v850 = vunpack.c.h.b16 %v181
  %v851 = vunpack.c.l.b16 %v182
  %v852 = vunpack.c.h.b16 %v182
  %v853 = vunpack.c.l.b16 %v183
  %v854 = vunpack.c.h.b16 %v183
  %v855 = vunpack.c.l.b16 %v184
  %v856 = vunpack.c.h.b16 %v184
  %v857 = vunpack.c.l.b16 %v185
  %v858 = vunpack.c.h.b16 %v185
  %v859 = vunpack.c.l.b16 %v186
  %v860 = vunpack.c.h.b16 %v186
  %v861 = vunpack.c.l.b16 %v187
  %v862 = vunpack.c.h.b16 %v187
  %v863 = vunpack.c.l.b16 %v188
  %v864 = vunpack.c.h.b16 %v188
  %v865 = vunpack.c.l.b16 %v189
  %v866 = vunpack.c.h.b16 %v189
  %v867 = vunpack.c.l.b16 %v190
  %v868 = vunpack.c.h.b16 %v190
  %v869 = vunpack.c.l.b16 %v191
  %v870 = vunpack.c.h.b16 %v191
  %v871 = vunpack.c.l.b16 %v192
  %v872 = vunpack.c.h.b16 %v192
  %v873 = vunpack.c.l.b16 %v193
  %v874 = vunpack.c.h.b16 %v193
  %v875 = vunpack.c.l.b16 %v194
  %v876 = vunpack.c.h.b16 %v194
  %v877 = vunpack.c.l.b16 %v195
  %v878 = vunpack.c.h.b16 %v195
  %v879 = vunpack.c.l.b16 %v196
  %v880 = vunpack.c.h.b16 %v196
  %v881 = vunpack.c.l.b16 %v197
  %v882 = vunpack.c.h.b16 %v197
  %v883 = vunpack.c.l.b16 %v198
  %v884 = vunpack.c.h.b16 %v198
  %v885 = vunpack.c.l.b16 %v199
  %v886 = vunpack.c.h.b16 %v199
  %v887 = vunpack.c.l.b16 %v200
  %v888 = vunpack.c.h.b16 %v200
  %v889 = vunpack.c.l.b16 %v201
  %v890 = vunpack.c.h.b16 %v201
  %v891 = vunpack.c.l.b16 %v202
  %v892 = vunpack.c.h.b16 %v202
  %v893 = vunpack.c.l.b16 %v203
  %v894 = vunpack.c.h.b16 %v203
  %v895 = vunpack.c.l.b16 %v204
  %v896 = vunpack.c.h.b16 %v204
  %v897 = vunpack.c.l.b16 %v205
  %v898 = vunpack.c.h.b16 %v205
  %v899 = vunpack.c.l.b16 %v206
  %v900 = vunpack.c.h.b16 %v206
  %v901 = vunpack.c.l.b16 %v207
  %v902 = vunpack.c.h.b16 %v207
  %v903 = vunpack.c.l.b16 %v208
  %v904 = vunpack.c.h.b16 %v208
  %v905 = vunpack.c.l.b16 %v209
  %v906 = vunpack.c.h.b16 %v209
  %v907 = vunpack.c.l.b16 %v210
  %v908 = vunpack.c.h.b16 %v210
  %v909 = vunpack.c.l.b16 %v211
  %v910 = vunpack.c.h.b16 %v211
  %v911 = vunpack.c.l.b16 %v212
  %v912 = vunpack.c.h.b16 %v212
  %v913 = vunpack.c.l.b16 %v213
  %v914 = vunpack.c.h.b16 %v213
  %v915 = vpack.c.b16 %v531, %v523
  %v916 = vpack.c.b16 %v532, %v524
  %v917 = vpack.c.b16 %v533, %v525
  %v918 = vpack.c.b16 %v534, %v526
  %v919 = vpack.c.b16 %v535, %v527
  %v920 = vpack.c.b16 %v536, %v528
  %v921 = vpack.c.b16 %v537, %v529
  %v922 = vpack.c.b16 %v538, %v530
  %v923 = vpack.c.b16 %v547, %v539
  %v924 = vpack.c.b16 %v548, %v540
  %v925 = vpack.c.b16 %v549, %v541
  %v926 = vpack.c.b16 %v550, %v542
  %v927 = vpack.c.b16 %v551, %v543
  %v928 = vpack.c.b16 %v552, %v544
  %v929 = vpack.c.b16 %v553, %v545
  %v930 = vpack.c.b16 %v554, %v546
  %v931 = vpack.c.b16 %v563, %v555
  %v932 = vpack.c.b16 %v564, %v556
  %v933 = vpack.c.b16 %v565, %v557
  %v934 = vpack.c.b16 %v566, %v558
  %v935 = vpack.c.b16 %v567, %v559
  %v936 = vpack.c.b16 %v568, %v560
  %v937 = vpack.c.b16 %v569, %v561
  %v938 = vpack.c.b16 %v570, %v562
  %v939 = vpack.c.b16 %v579, %v571
  %v940 = vpack.c.b16 %v580, %v572
  %v941 = vpack.c.b16 %v581, %v573
  %v942 = vpack.c.b16 %v582, %v574
  %v943 = vpack.c.b16 %v583, %v575
  %v944 = vpack.c.b16 %v584, %v576
  %v945 = vpack.c.b16 %v585, %v577
  %v946 = vpack.c.b16 %v586, %v578
  %v947 = vpack.c.b16 %v595, %v587
  %v948 = vpack.c.b16 %v596, %v588
  %v949 = vpack.c.b16 %v597, %v589
  %v950 = vpack.c.b16 %v598, %v590
  %v951 = vpack.c.b16 %v599, %v591
  %v952 = vpack.c.b16 %v600, %v592
  %v953 = vpack.c.b16 %v601, %v593
  %v954 = vpack.c.b16 %v602, %v594
  %v955 = vpack.c.b16 %v611, %v603
  %v956 = vpack.c.b16 %v612, %v604
  %v957 = vpack.c.b16 %v613, %v605
  %v958 = vpack.c.b16 %v614, %v606
  %v959 = vpack.c.b16 %v615, %v607
  %v960 = vpack.c.b16 %v616, %v608
  %v961 = vpack.c.b16 %v617, %v609
  %v962 = vpack.c.b16 %v618, %v610
  %v963 = vpack.c.b16 %v627, %v619
  %v964 = vpack.c.b16 %v628, %v620
  %v965 = vpack.c.b16 %v629, %v621
  %v966 = vpack.c.b16 %v630, %v622
  %v967 = vpack.c.b16 %v631, %v623
  %v968 = vpack.c.b16 %v632, %v624
  %v969 = vpack.c.b16 %v633, %v625
  %v970 = vpack.c.b16 %v634, %v626
  %v971 = vpack.c.b16 %v643, %v635
  %v972 = vpack.c.b16 %v644, %v636
  %v973 = vpack.c.b16 %v645, %v637
  %v974 = vpack.c.b16 %v646, %v638
  %v975 = vpack.c.b16 %v647, %v639
  %v976 = vpack.c.b16 %v648, %v640
  %v977 = vpack.c.b16 %v649, %v641
  %v978 = vpack.c.b16 %v650, %v642
  %v979 = vpack.c.b16 %v659, %v651
  %v980 = vpack.c.b16 %v660, %v652
  %v981 = vpack.c.b16 %v661, %v653
  %v982 = vpack.c.b16 %v662, %v654
  %v983 = vpack.c.b16 %v663, %v655
  %v984 = vpack.c.b16 %v664, %v656
  %v985 = vpack.c.b16 %v665, %v657
  %v986 = vpack.c.b16 %v666, %v658
  %v987 = vpack.c.b16 %v675, %v667
  %v988 = vpack.c.b16 %v676, %v668
  %v989 = vpack.c.b16 %v677, %v669
  %v990 = vpack.c.b16 %v678, %v670
  %v991 = vpack.c.b16 %v679, %v671
  %v992 = vpack.c.b16 %v680, %v672
  %v993 = vpack.c.b16 %v681, %v673
  %v994 = vpack.c.b16 %v682, %v674
  %v995 = vpack.c.b16 %v691, %v683
  %v996 = vpack.c.b16 %v692, %v684
  %v997 = vpack.c.b16 %v693, %v685
  %v998 = vpack.c.b16 %v694, %v686
  %v999 = vpack.c.b16 %v695, %v687
  %v1000 = vpack.c.b16 %v696, %v688
  %v1001 = vpack.c.b16 %v697, %v689
  %v1002 = vpack.c.b16 %v698, %v690
  %v1003 = vpack.c.b16 %v707, %v699
  %v1004 = vpack.c.b16 %v708, %v700
  %v1005 = vpack.c.b16 %v709, %v701
  %v1006 = vpack.c.b16 %v710, %v702
  %v1007 = vpack.c.b16 %v711, %v703
  %v1008 = vpack.c.b16 %v712, %v704
  %v1009 = vpack.c.b16 %v713, %v705
  %v1010 = vpack.c.b16 %v714, %v706
  %v1011 = vpack.c.b16 %v723, %v715
  %v1012 = vpack.c.b16 %v724, %v716
  %v1013 = vpack.c.b16 %v725, %v717
  %v1014 = vpack.c.b16 %v726, %v718
  %v1015 = vpack.c.b16 %v727, %v719
  %v1016 = vpack.c.b16 %v728, %v720
  %v1017 = vpack.c.b16 %v729, %v721
  %v1018 = vpack.c.b16 %v730, %v722
  %v1019 = vpack.c.b16 %v739, %v731
  %v1020 = vpack.c.b16 %v740, %v732
  %v1021 = vpack.c.b16 %v741, %v733
  %v1022 = vpack.c.b16 %v742, %v734
  %v1023 = vpack.c.b16 %v743, %v735
  %v1024 = vpack.c.b16 %v744, %v736
  %v1025 = vpack.c.b16 %v745, %v737
  %v1026 = vpack.c.b16 %v746, %v738
  %v1027 = vpack.c.b16 %v755, %v747
  %v1028 = vpack.c.b16 %v756, %v748
  %v1029 = vpack.c.b16 %v757, %v749
  %v1030 = vpack.c.b16 %v758, %v750
  %v1031 = vpack.c.b16 %v759, %v751
  %v1032 = vpack.c.b16 %v760, %v752
  %v1033 = vpack.c.b16 %v761, %v753
  %v1034 = vpack.c.b16 %v762, %v754
  %v1035 = vpack.c.b16 %v771, %v763
  %v1036 = vpack.c.b16 %v772, %v764
  %v1037 = vpack.c.b16 %v773, %v765
  %v1038 = vpack.c.b16 %v774, %v766
  %v1039 = vpack.c.b16 %v775, %v767
  %v1040 = vpack.c.b16 %v776, %v768
  %v1041 = vpack.c.b16 %v777, %v769
  %v1042 = vpack.c.b16 %v778, %v770
  %v1043 = vpack.c.b16 %v787, %v779
  %v1044 = vpack.c.b16 %v788, %v780
  %v1045 = vpack.c.b16 %v789, %v781
  %v1046 = vpack.c.b16 %v790, %v782
  %v1047 = vpack.c.b16 %v791, %v783
  %v1048 = vpack.c.b16 %v792, %v784
  %v1049 = vpack.c.b16 %v793, %v785
  %v1050 = vpack.c.b16 %v794, %v786
  %v1051 = vpack.c.b16 %v803, %v795
  %v1052 = vpack.c.b16 %v804, %v796
  %v1053 = vpack.c.b16 %v805, %v797
  %v1054 = vpack.c.b16 %v806, %v798
  %v1055 = vpack.c.b16 %v807, %v799
  %v1056 = vpack.c.b16 %v808, %v800
  %v1057 = vpack.c.b16 %v809, %v801
  %v1058 = vpack.c.b16 %v810, %v802
  %v1059 = vpack.c.b16 %v819, %v811
  %v1060 = vpack.c.b16 %v820, %v812
  %v1061 = vpack.c.b16 %v821, %v813
  %v1062 = vpack.c.b16 %v822, %v814
  %v1063 = vpack.c.b16 %v823, %v815
  %v1064 = vpack.c.b16 %v824, %v816
  %v1065 = vpack.c.b16 %v825, %v817
  %v1066 = vpack.c.b16 %v826, %v818
  %v1067 = vpack.c.b16 %v835, %v827
  %v1068 = vpack.c.b16 %v836, %v828
  %v1069 = vpack.c.b16 %v837, %v829
  %v1070 = vpack.c.b16 %v838, %v830
  %v1071 = vpack.c.b16 %v839, %v831
  %v1072 = vpack.c.b16 %v840, %v832
  %v1073 = vpack.c.b16 %v841, %v833
  %v1074 = vpack.c.b16 %v842, %v834
  %v1075 = vpack.c.b16 %v851, %v843
  %v1076 = vpack.c.b16 %v852, %v844
  %v1077 = vpack.c.b16 %v853, %v845
  %v1078 = vpack.c.b16 %v854, %v846
  %v1079 = vpack.c.b16 %v855, %v847
  %v1080 = vpack.c.b16 %v856, %v848
  %v1081 = vpack.c.b16 %v857, %v849
  %v1082 = vpack.c.b16 %v858, %v850
  %v1083 = vpack.c.b16 %v867, %v859
  %v1084 = vpack.c.b16 %v868, %v860
  %v1085 = vpack.c.b16 %v869, %v861
  %v1086 = vpack.c.b16 %v870, %v862
  %v1087 = vpack.c.b16 %v871, %v863
  %v1088 = vpack.c.b16 %v872, %v864
  %v1089 = vpack.c.b16 %v873, %v865
  %v1090 = vpack.c.b16 %v874, %v866
  %v1091 = vpack.c.b16 %v883, %v875
  %v1092 = vpack.c.b16 %v884, %v876
  %v1093 = vpack.c.b16 %v885, %v877
  %v1094 = vpack.c.b16 %v886, %v878
  %v1095 = vpack.c.b16 %v887, %v879
  %v1096 = vpack.c.b16 %v888, %v880
  %v1097 = vpack.c.b16 %v889, %v881
  %v1098 = vpack.c.b16 %v890, %v882
  %v1099 = vpack.c.b16 %v899, %v891
  %v1100 = vpack.c.b16 %v900, %v892
  %v1101 = vpack.c.b16 %v901, %v893
  %v1102 = vpack.c.b16 %v902, %v894
  %v1103 = vpack.c.b16 %v903, %v895
  %v1104 = vpack.c.b16 %v904, %v896
  %v1105 = vpack.c.b16 %v905, %v897
  %v1106 = vpack.c.b16 %v906, %v898
  %v1107 = vpack.c.b16 %v907, %v907
  %v1108 = vpack.c.b16 %v908, %v908
  %v1109 = vpack.c.b16 %v909, %v909
  %v1110 = vpack.c.b16 %v910, %v910
  %v1111 = vpack.c.b16 %v911, %v911
  %v1112 = vpack.c.b16 %v912, %v912
  %v1113 = vpack.c.b16 %v913, %v913
  %v1114 = vpack.c.b16 %v914, %v914
  %v1403 = vunpack.c.l.b16 %v214
  %v1404 = vunpack.c.h.b16 %v214
  %v1405 = vunpack.c.l.b16 %v215
  %v1406 = vunpack.c.h.b16 %v215
  %v1407 = vunpack.c.l.b16 %v216
  %v1408 = vunpack.c.h.b16 %v216
  %v1409 = vunpack.c.l.b16 %v217
  %v1410 = vunpack.c.h.b16 %v217
  %v1411 = vunpack.c.l.b16 %v218
  %v1412 = vunpack.c.h.b16 %v218
  %v1413 = vunpack.c.l.b16 %v219
  %v1414 = vunpack.c.h.b16 %v219
  %v1415 = vunpack.c.l.b16 %v220
  %v1416 = vunpack.c.h.b16 %v220
  %v1417 = vunpack.c.l.b16 %v221
  %v1418 = vunpack.c.h.b16 %v221
  %v1419 = vunpack.c.l.b16 %v222
  %v1420 = vunpack.c.h.b16 %v222
  %v1421 = vunpack.c.l.b16 %v223
  %v1422 = vunpack.c.h.b16 %v223
  %v1423 = vunpack.c.l.b16 %v224
  %v1424 = vunpack.c.h.b16 %v224
  %v1425 = vunpack.c.l.b16 %v225
  %v1426 = vunpack.c.h.b16 %v225
  %v1427 = vunpack.c.l.b16 %v226
  %v1428 = vunpack.c.h.b16 %v226
  %v1429 = vunpack.c.l.b16 %v227
  %v1430 = vunpack.c.h.b16 %v227
  %v1431 = vunpack.c.l.b16 %v228
  %v1432 = vunpack.c.h.b16 %v228
  %v1433 = vunpack.c.l.b16 %v229
  %v1434 = vunpack.c.h.b16 %v229
  %v1435 = vunpack.c.l.b16 %v230
  %v1436 = vunpack.c.h.b16 %v230
  %v1437 = vunpack.c.l.b16 %v231
  %v1438 = vunpack.c.h.b16 %v231
  %v1439 = vunpack.c.l.b16 %v232
  %v1440 = vunpack.c.h.b16 %v232
  %v1441 = vunpack.c.l.b16 %v233
  %v1442 = vunpack.c.h.b16 %v233
  %v1443 = vunpack.c.l.b16 %v234
  %v1444 = vunpack.c.h.b16 %v234
  %v1445 = vunpack.c.l.b16 %v235
  %v1446 = vunpack.c.h.b16 %v235
  %v1447 = vunpack.c.l.b16 %v236
  %v1448 = vunpack.c.h.b16 %v236
  %v1449 = vunpack.c.l.b16 %v237
  %v1450 = vunpack.c.h.b16 %v237
  %v1451 = vunpack.c.l.b16 %v238
  %v1452 = vunpack.c.h.b16 %v238
  %v1453 = vunpack.c.l.b16 %v239
  %v1454 = vunpack.c.h.b16 %v239
  %v1455 = vunpack.c.l.b16 %v240
  %v1456 = vunpack.c.h.b16 %v240
  %v1457 = vunpack.c.l.b16 %v241
  %v1458 = vunpack.c.h.b16 %v241
  %v1459 = vunpack.c.l.b16 %v242
  %v1460 = vunpack.c.h.b16 %v242
  %v1461 = vunpack.c.l.b16 %v243
  %v1462 = vunpack.c.h.b16 %v243
  %v1463 = vunpack.c.l.b16 %v244
  %v1464 = vunpack.c.h.b16 %v244
  %v1465 = vunpack.c.l.b16 %v245
  %v1466 = vunpack.c.h.b16 %v245
  %v1467 = vunpack.c.l.b16 %v246
  %v1468 = vunpack.c.h.b16 %v246
  %v1469 = vunpack.c.l.b16 %v247
  %v1470 = vunpack.c.h.b16 %v247
  %v1471 = vunpack.c.l.b16 %v248
  %v1472 = vunpack.c.h.b16 %v248
  %v1473 = vunpack.c.l.b16 %v249
  %v1474 = vunpack.c.h.b16 %v249
  %v1475 = vunpack.c.l.b16 %v250
  %v1476 = vunpack.c.h.b16 %v250
  %v1477 = vunpack.c.l.b16 %v251
  %v1478 = vunpack.c.h.b16 %v251
  %v1479 = vunpack.c.l.b16 %v252
  %v1480 = vunpack.c.h.b16 %v252
  %v1481 = vunpack.c.l.b16 %v253
  %v1482 = vunpack.c.h.b16 %v253
  %v1483 = vunpack.c.l.b16 %v254
  %v1484 = vunpack.c.h.b16 %v254
  %v1485 = vunpack.c.l.b16 %v255
  %v1486 = vunpack.c.h.b16 %v255
  %v1487 = vunpack.c.l.b16 %v256
  %v1488 = vunpack.c.h.b16 %v256
  %v1489 = vunpack.c.l.b16 %v257
  %v1490 = vunpack.c.h.b16 %v257
  %v1491 = vunpack.c.l.b16 %v258
  %v1492 = vunpack.c.h.b16 %v258
  %v1493 = vunpack.c.l.b16 %v259
  %v1494 = vunpack.c.h.b16 %v259
  %v1495 = vunpack.c.l.b16 %v260
  %v1496 = vunpack.c.h.b16 %v260
  %v1497 = vunpack.c.l.b16 %v261
  %v1498 = vunpack.c.h.b16 %v261
  %v1499 = vunpack.c.l.b16 %v262
  %v1500 = vunpack.c.h.b16 %v262
  %v1501 = vunpack.c.l.b16 %v263
  %v1502 = vunpack.c.h.b16 %v263
  %v1503 = vunpack.c.l.b16 %v264
  %v1504 = vunpack.c.h.b16 %v264
  %v1505 = vunpack.c.l.b16 %v265
  %v1506 = vunpack.c.h.b16 %v265
  %v1507 = vunpack.c.l.b16 %v266
  %v1508 = vunpack.c.h.b16 %v266
  %v1509 = vunpack.c.l.b16 %v267
  %v1510 = vunpack.c.h.b16 %v267
  %v1511 = vunpack.c.l.b16 %v268
  %v1512 = vunpack.c.h.b16 %v268
  %v1513 = vunpack.c.l.b16 %v269
  %v1514 = vunpack.c.h.b16 %v269
  %v1515 = vunpack.c.l.b16 %v270
  %v1516 = vunpack.c.h.b16 %v270
  %v1517 = vunpack.c.l.b16 %v271
  %v1518 = vunpack.c.h.b16 %v271
  %v1519 = vunpack.c.l.b16 %v272
  %v1520 = vunpack.c.h.b16 %v272
  %v1521 = vunpack.c.l.b16 %v273
  %v1522 = vunpack.c.h.b16 %v273
  %v1523 = vunpack.c.l.b16 %v274
  %v1524 = vunpack.c.h.b16 %v274
  %v1525 = vunpack.c.l.b16 %v275
  %v1526 = vunpack.c.h.b16 %v275
  %v1527 = vunpack.c.l.b16 %v276
  %v1528 = vunpack.c.h.b16 %v276
  %v1529 = vunpack.c.l.b16 %v277
  %v1530 = vunpack.c.h.b16 %v277
  %v1531 = vunpack.c.l.b16 %v278
  %v1532 = vunpack.c.h.b16 %v278
  %v1533 = vunpack.c.l.b16 %v279
  %v1534 = vunpack.c.h.b16 %v279
  %v1535 = vunpack.c.l.b16 %v280
  %v1536 = vunpack.c.h.b16 %v280
  %v1537 = vunpack.c.l.b16 %v281
  %v1538 = vunpack.c.h.b16 %v281
  %v1539 = vunpack.c.l.b16 %v282
  %v1540 = vunpack.c.h.b16 %v282
  %v1541 = vunpack.c.l.b16 %v283
  %v1542 = vunpack.c.h.b16 %v283
  %v1543 = vunpack.c.l.b16 %v284
  %v1544 = vunpack.c.h.b16 %v284
  %v1545 = vunpack.c.l.b16 %v285
  %v1546 = vunpack.c.h.b16 %v285
  %v1547 = vunpack.c.l.b16 %v286
  %v1548 = vunpack.c.h.b16 %v286
  %v1549 = vunpack.c.l.b16 %v287
  %v1550 = vunpack.c.h.b16 %v287
  %v1551 = vunpack.c.l.b16 %v288
  %v1552 = vunpack.c.h.b16 %v288
  %v1553 = vunpack.c.l.b16 %v289
  %v1554 = vunpack.c.h.b16 %v289
  %v1555 = vunpack.c.l.b16 %v290
  %v1556 = vunpack.c.h.b16 %v290
  %v1557 = vunpack.c.l.b16 %v291
  %v1558 = vunpack.c.h.b16 %v291
  %v1559 = vunpack.c.l.b16 %v292
  %v1560 = vunpack.c.h.b16 %v292
  %v1561 = vunpack.c.l.b16 %v293
  %v1562 = vunpack.c.h.b16 %v293
  %v1563 = vunpack.c.l.b16 %v294
  %v1564 = vunpack.c.h.b16 %v294
  %v1565 = vunpack.c.l.b16 %v295
  %v1566 = vunpack.c.h.b16 %v295
  %v1567 = vunpack.c.l.b16 %v296
  %v1568 = vunpack.c.h.b16 %v296
  %v1569 = vunpack.c.l.b16 %v297
  %v1570 = vunpack.c.h.b16 %v297
  %v1571 = vunpack.c.l.b16 %v298
  %v1572 = vunpack.c.h.b16 %v298
  %v1573 = vunpack.c.l.b16 %v299
  %v1574 = vunpack.c.h.b16 %v299
  %v1575 = vunpack.c.l.b16 %v300
  %v1576 = vunpack.c.h.b16 %v300
  %v1577 = vunpack.c.l.b16 %v301
  %v1578 = vunpack.c.h.b16 %v301
  %v1579 = vunpack.c.l.b16 %v302
  %v1580 = vunpack.c.h.b16 %v302
  %v1581 = vunpack.c.l.b16 %v303
  %v1582 = vunpack.c.h.b16 %v303
  %v1583 = vunpack.c.l.b16 %v304
  %v1584 = vunpack.c.h.b16 %v304
  %v1585 = vunpack.c.l.b16 %v305
  %v1586 = vunpack.c.h.b16 %v305
  %v1587 = vunpack.c.l.b16 %v306
  %v1588 = vunpack.c.h.b16 %v306
  %v1589 = vunpack.c.l.b16 %v307
  %v1590 = vunpack.c.h.b16 %v307
  %v1591 = vunpack.c.l.b16 %v308
  %v1592 = vunpack.c.h.b16 %v308
  %v1593 = vunpack.c.l.b16 %v309
  %v1594 = vunpack.c.h.b16 %v309
  %v1595 = vunpack.c.l.b16 %v310
  %v1596 = vunpack.c.h.b16 %v310
  %v1597 = vunpack.c.l.b16 %v311
  %v1598 = vunpack.c.h.b16 %v311
  %v1599 = vunpack.c.l.b16 %v312
  %v1600 = vunpack.c.h.b16 %v312
  %v1601 = vunpack.c.l.b16 %v313
  %v1602 = vunpack.c.h.b16 %v313
  %v1603 = vunpack.c.l.b16 %v314
  %v1604 = vunpack.c.h.b16 %v314
  %v1605 = vunpack.c.l.b16 %v315
  %v1606 = vunpack.c.h.b16 %v315
  %v1607 = vunpack.c.l.b16 %v316
  %v1608 = vunpack.c.h.b16 %v316
  %v1609 = vunpack.c.l.b16 %v317
  %v1610 = vunpack.c.h.b16 %v317
  %v1611 = vunpack.c.l.b16 %v318
  %v1612 = vunpack.c.h.b16 %v318
  %v1613 = vunpack.c.l.b16 %v319
  %v1614 = vunpack.c.h.b16 %v319
  %v1615 = vunpack.c.l.b16 %v320
  %v1616 = vunpack.c.h.b16 %v320
  %v1617 = vunpack.c.l.b16 %v321
  %v1618 = vunpack.c.h.b16 %v321
  %v1619 = vunpack.c.l.b16 %v322
  %v1620 = vunpack.c.h.b16 %v322
  %v1621 = vunpack.c.l.b16 %v323
  %v1622 = vunpack.c.h.b16 %v323
  %v1623 = vunpack.c.l.b16 %v324
  %v1624 = vunpack.c.h.b16 %v324
  %v1625 = vunpack.c.l.b16 %v325
  %v1626 = vunpack.c.h.b16 %v325
  %v1627 = vunpack.c.l.b16 %v326
  %v1628 = vunpack.c.h.b16 %v326
  %v1629 = vpack.c.b16 %v1405, %v1403
  %v1630 = vpack.c.b16 %v1406, %v1404
  %v1631 = vpack.c.b16 %v1409, %v1407
  %v1632 = vpack.c.b16 %v1410, %v1408
  %v1633 = vpack.c.b16 %v1413, %v1411
  %v1634 = vpack.c.b16 %v1414, %v1412
  %v1635 = vpack.c.b16 %v1417, %v1415
  %v1636 = vpack.c.b16 %v1418, %v1416
  %v1637 = vpack.c.b16 %v1421, %v1419
  %v1638 = vpack.c.b16 %v1422, %v1420
  %v1639 = vpack.c.b16 %v1425, %v1423
  %v1640 = vpack.c.b16 %v1426, %v1424
  %v1641 = vpack.c.b16 %v1429, %v1427
  %v1642 = vpack.c.b16 %v1430, %v1428
  %v1643 = vpack.c.b16 %v1433, %v1431
  %v1644 = vpack.c.b16 %v1434, %v1432
  %v1645 = vpack.c.b16 %v1437, %v1435
  %v1646 = vpack.c.b16 %v1438, %v1436
  %v1647 = vpack.c.b16 %v1441, %v1439
  %v1648 = vpack.c.b16 %v1442, %v1440
  %v1649 = vpack.c.b16 %v1445, %v1443
  %v1650 = vpack.c.b16 %v1446, %v1444
  %v1651 = vpack.c.b16 %v1449, %v1447
  %v1652 = vpack.c.b16 %v1450, %v1448
  %v1653 = vpack.c.b16 %v1453, %v1451
  %v1654 = vpack.c.b16 %v1454, %v1452
  %v1655 = vpack.c.b16 %v1457, %v1455
  %v1656 = vpack.c.b16 %v1458, %v1456
  %v1657 = vpack.c.b16 %v1461, %v1459
  %v1658 = vpack.c.b16 %v1462, %v1460
  %v1659 = vpack.c.b16 %v1465, %v1463
  %v1660 = vpack.c.b16 %v1466, %v1464
  %v1661 = vpack.c.b16 %v1469, %v1467
  %v1662 = vpack.c.b16 %v1470, %v1468
  %v1663 = vpack.c.b16 %v1473, %v1471
  %v1664 = vpack.c.b16 %v1474, %v1472
  %v1665 = vpack.c.b16 %v1477, %v1475
  %v1666 = vpack.c.b16 %v1478, %v1476
  %v1667 = vpack.c.b16 %v1481, %v1479
  %v1668 = vpack.c.b16 %v1482, %v1480
  %v1669 = vpack.c.b16 %v1485, %v1483
  %v1670 = vpack.c.b16 %v1486, %v1484
  %v1671 = vpack.c.b16 %v1489, %v1487
  %v1672 = vpack.c.b16 %v1490, %v1488
  %v1673 = vpack.c.b16 %v1493, %v1491
  %v1674 = vpack.c.b16 %v1494, %v1492
  %v1675 = vpack.c.b16 %v1497, %v1495
  %v1676 = vpack.c.b16 %v1498, %v1496
  %v1677 = vpack.c.b16 %v1501, %v1499
  %v1678 = vpack.c.b16 %v1502, %v1500
  %v1679 = vpack.c.b16 %v1505, %v1503
  %v1680 = vpack.c.b16 %v1506, %v1504
  %v1681 = vpack.c.b16 %v1509, %v1507
  %v1682 = vpack.c.b16 %v1510, %v1508
  %v1683 = vpack.c.b16 %v1513, %v1511
  %v1684 = vpack.c.b16 %v1514, %v1512
  %v1685 = vpack.c.b16 %v1517, %v1515
  %v1686 = vpack.c.b16 %v1518, %v1516
  %v1687 = vpack.c.b16 %v1521, %v1519
  %v1688 = vpack.c.b16 %v1522, %v1520
  %v1689 = vpack.c.b16 %v1525, %v1523
  %v1690 = vpack.c.b16 %v1526, %v1524
  %v1691 = vpack.c.b16 %v1529, %v1527
  %v1692 = vpack.c.b16 %v1530, %v1528
  %v1693 = vpack.c.b16 %v1533, %v1531
  %v1694 = vpack.c.b16 %v1534, %v1532
  %v1695 = vpack.c.b16 %v1537, %v1535
  %v1696 = vpack.c.b16 %v1538, %v1536
  %v1697 = vpack.c.b16 %v1541, %v1539
  %v1698 = vpack.c.b16 %v1542, %v1540
  %v1699 = vpack.c.b16 %v1545, %v1543
  %v1700 = vpack.c.b16 %v1546, %v1544
  %v1701 = vpack.c.b16 %v1549, %v1547
  %v1702 = vpack.c.b16 %v1550, %v1548
  %v1703 = vpack.c.b16 %v1553, %v1551
  %v1704 = vpack.c.b16 %v1554, %v1552
  %v1705 = vpack.c.b16 %v1557, %v1555
  %v1706 = vpack.c.b16 %v1558, %v1556
  %v1707 = vpack.c.b16 %v1561, %v1559
  %v1708 = vpack.c.b16 %v1562, %v1560
  %v1709 = vpack.c.b16 %v1565, %v1563
  %v1710 = vpack.c.b16 %v1566, %v1564
  %v1711 = vpack.c.b16 %v1569, %v1567
  %v1712 = vpack.c.b16 %v1570, %v1568
  %v1713 = vpack.c.b16 %v1573, %v1571
  %v1714 = vpack.c.b16 %v1574, %v1572
  %v1715 = vpack.c.b16 %v1577, %v1575
  %v1716 = vpack.c.b16 %v1578, %v1576
  %v1717 = vpack.c.b16 %v1581, %v1579
  %v1718 = vpack.c.b16 %v1582, %v1580
  %v1719 = vpack.c.b16 %v1585, %v1583
  %v1720 = vpack.c.b16 %v1586, %v1584
  %v1721 = vpack.c.b16 %v1589, %v1587
  %v1722 = vpack.c.b16 %v1590, %v1588
  %v1723 = vpack.c.b16 %v1593, %v1591
  %v1724 = vpack.c.b16 %v1594, %v1592
  %v1725 = vpack.c.b16 %v1597, %v1595
  %v1726 = vpack.c.b16 %v1598, %v1596
  %v1727 = vpack.c.b16 %v1601, %v1599
  %v1728 = vpack.c.b16 %v1602, %v1600
  %v1729 = vpack.c.b16 %v1605, %v1603
  %v1730 = vpack.c.b16 %v1606, %v1604
  %v1731 = vpack.c.b16 %v1609, %v1607
  %v1732 = vpack.c.b16 %v1610, %v1608
  %v1733 = vpack.c.b16 %v1613, %v1611
  %v1734 = vpack.c.b16 %v1614, %v1612
  %v1735 = vpack.c.b16 %v1617, %v1615
  %v1736 = vpack.c.b16 %v1618, %v1616
  %v1737 = vpack.c.b16 %v1621, %v1619
  %v1738 = vpack.c.b16 %v1622, %v1620
  %v1739 = vpack.c.b16 %v1625, %v1623
  %v1740 = vpack.c.b16 %v1626, %v1624
  %v1741 = vpack.c.b16 %v1627, %v1627
  %v1742 = vpack.c.b16 %v1628, %v1628
  %vm1855 = vcmask 31744
  %v1857 = vsel %vm1855, %v922, 0
  %v1860 = vsel %vm1855, %v930, 0
  %v1863 = vsel %vm1855, %v938, 0
  %v1866 = vsel %vm1855, %v946, 0
  %v1869 = vsel %vm1855, %v954, 0
  %v1872 = vsel %vm1855, %v962, 0
  %v1875 = vsel %vm1855, %v970, 0
  %v1878 = vsel %vm1855, %v978, 0
  %v1881 = vsel %vm1855, %v986, 0
  %v1884 = vsel %vm1855, %v994, 0
  %v1887 = vsel %vm1855, %v1002, 0
  %v1890 = vsel %vm1855, %v1010, 0
  %v1893 = vsel %vm1855, %v1018, 0
  %v1896 = vsel %vm1855, %v1026, 0
  %v1899 = vsel %vm1855, %v1034, 0
  %v1902 = vsel %vm1855, %v1042, 0
  %v1905 = vsel %vm1855, %v1050, 0
  %v1908 = vsel %vm1855, %v1058, 0
  %v1911 = vsel %vm1855, %v1066, 0
  %v1914 = vsel %vm1855, %v1074, 0
  %v1917 = vsel %vm1855, %v1082, 0
  %v1920 = vsel %vm1855, %v1090, 0
  %v1923 = vsel %vm1855, %v1098, 0
  %v1926 = vsel %vm1855, %v1106, 0
  %v1929 = vsel %vm1855, %v1114, 0
  %vm1931 = vcmask 1041408
  %v1933 = vsel %vm1931, %v1741, 0
  %v1936 = vsel %vm1931, %v1742, 0
  %1938 = vmatprep.subr.bf16.mxu0 %v1630
  %1939 = vmatpush1.bf16.msra.mxu0 %v1629
  %1940 = vmatprep.subr.bf16.mxu0 %v1632
  %1941 = vmatpush1.bf16.msra.mxu0 %v1631
  %1942 = vmatprep.subr.bf16.mxu0 %v1634
  %1943 = vmatpush1.bf16.msra.mxu0 %v1633
  %1944 = vmatprep.subr.bf16.mxu0 %v1636
  %1945 = vmatpush1.bf16.msra.mxu0 %v1635
  %1946 = vmatprep.subr.bf16.mxu0 %v1638
  %1947 = vmatpush1.bf16.msra.mxu0 %v1637
  %1948 = vmatprep.subr.bf16.mxu0 %v1640
  %1949 = vmatpush1.bf16.msra.mxu0 %v1639
  %1950 = vmatprep.subr.bf16.mxu0 %v1642
  %1951 = vmatpush1.bf16.msra.mxu0 %v1641
  %1952 = vmatprep.subr.bf16.mxu0 %v1644
  %1953 = vmatpush1.bf16.msra.mxu0 %v1643
  %1954 = vmatprep.subr.bf16.mxu0 %v1646
  %1955 = vmatpush1.bf16.msra.mxu0 %v1645
  %1956 = vmatprep.subr.bf16.mxu0 %v1648
  %1957 = vmatpush1.bf16.msra.mxu0 %v1647
  %1958 = vmatprep.subr.bf16.mxu0 %v1650
  %1959 = vmatpush1.bf16.msra.mxu0 %v1649
  %1960 = vmatprep.subr.bf16.mxu0 %v1652
  %1961 = vmatpush1.bf16.msra.mxu0 %v1651
  %1962 = vmatprep.subr.bf16.mxu0 %v1654
  %1963 = vmatpush1.bf16.msra.mxu0 %v1653
  %1964 = vmatprep.subr.bf16.mxu0 %v1656
  %1965 = vmatpush1.bf16.msra.mxu0 %v1655
  %1966 = vmatprep.subr.bf16.mxu0 %v1658
  %1967 = vmatpush1.bf16.msra.mxu0 %v1657
  %1968 = vmatprep.subr.bf16.mxu0 %v1660
  %1969 = vmatpush1.bf16.msra.mxu0 %v1659
  %1970 = vmatprep.mubr.bf16.mxu0 %v916
  %1971 = vmatmul.mubr.bf16.gmra.mrb[0].mxu0 %v915
  %v1972 = vpop.f32.mrb[0].mxu0
  %v1973 = vadd.f32 0.0, %v1972
  %v1974 = vpop.f32.mrb[0].mxu0
  %v1975 = vadd.f32 0.0, %v1974
  %v1976 = vpop.f32.mrb[0].mxu0
  %v1977 = vadd.f32 0.0, %v1976
  %v1978 = vpop.f32.mrb[0].mxu0
  %v1979 = vadd.f32 0.0, %v1978
  %1980 = vmatprep.mubr.bf16.mxu0 %v924
  %1981 = vmatmul.mubr.bf16.gmra.mrb[0].mxu0 %v923
  %v1982 = vpop.f32.mrb[0].mxu0
  %v1983 = vadd.f32 0.0, %v1982
  %v1984 = vpop.f32.mrb[0].mxu0
  %v1985 = vadd.f32 0.0, %v1984
  %v1986 = vpop.f32.mrb[0].mxu0
  %v1987 = vadd.f32 0.0, %v1986
  %v1988 = vpop.f32.mrb[0].mxu0
  %v1989 = vadd.f32 0.0, %v1988
  %1990 = vmatprep.mubr.bf16.mxu0 %v932
  %1991 = vmatmul.mubr.bf16.gmra.mrb[0].mxu0 %v931
  %v1992 = vpop.f32.mrb[0].mxu0
  %v1993 = vadd.f32 0.0, %v1992
  %v1994 = vpop.f32.mrb[0].mxu0
  %v1995 = vadd.f32 0.0, %v1994
  %v1996 = vpop.f32.mrb[0].mxu0
  %v1997 = vadd.f32 0.0, %v1996
  %v1998 = vpop.f32.mrb[0].mxu0
  %v1999 = vadd.f32 0.0, %v1998
  %2000 = vmatprep.mubr.bf16.mxu0 %v940
  %2001 = vmatmul.mubr.bf16.gmra.mrb[0].mxu0 %v939
  %v2002 = vpop.f32.mrb[0].mxu0
  %v2003 = vadd.f32 0.0, %v2002
  %v2004 = vpop.f32.mrb[0].mxu0
  %v2005 = vadd.f32 0.0, %v2004
  %v2006 = vpop.f32.mrb[0].mxu0
  %v2007 = vadd.f32 0.0, %v2006
  %v2008 = vpop.f32.mrb[0].mxu0
  %v2009 = vadd.f32 0.0, %v2008
  %2010 = vmatprep.mubr.bf16.mxu0 %v948
  %2011 = vmatmul.mubr.bf16.gmra.mrb[0].mxu0 %v947
  %v2012 = vpop.f32.mrb[0].mxu0
  %v2013 = vadd.f32 0.0, %v2012
  %v2014 = vpop.f32.mrb[0].mxu0
  %v2015 = vadd.f32 0.0, %v2014
  %v2016 = vpop.f32.mrb[0].mxu0
  %v2017 = vadd.f32 0.0, %v2016
  %v2018 = vpop.f32.mrb[0].mxu0
  %v2019 = vadd.f32 0.0, %v2018
  %2020 = vmatprep.mubr.bf16.mxu0 %v956
  %2021 = vmatmul.mubr.bf16.gmra.mrb[0].mxu0 %v955
  %v2022 = vpop.f32.mrb[0].mxu0
  %v2023 = vadd.f32 0.0, %v2022
  %v2024 = vpop.f32.mrb[0].mxu0
  %v2025 = vadd.f32 0.0, %v2024
  %v2026 = vpop.f32.mrb[0].mxu0
  %v2027 = vadd.f32 0.0, %v2026
  %v2028 = vpop.f32.mrb[0].mxu0
  %v2029 = vadd.f32 0.0, %v2028
  %2030 = vmatprep.mubr.bf16.mxu0 %v964
  %2031 = vmatmul.mubr.bf16.gmra.mrb[0].mxu0 %v963
  %v2032 = vpop.f32.mrb[0].mxu0
  %v2033 = vadd.f32 0.0, %v2032
  %v2034 = vpop.f32.mrb[0].mxu0
  %v2035 = vadd.f32 0.0, %v2034
  %v2036 = vpop.f32.mrb[0].mxu0
  %v2037 = vadd.f32 0.0, %v2036
  %v2038 = vpop.f32.mrb[0].mxu0
  %v2039 = vadd.f32 0.0, %v2038
  %2040 = vmatprep.mubr.bf16.mxu0 %v972
  %2041 = vmatmul.mubr.bf16.gmra.mrb[0].mxu0 %v971
  %v2042 = vpop.f32.mrb[0].mxu0
  %v2043 = vadd.f32 0.0, %v2042
  %v2044 = vpop.f32.mrb[0].mxu0
  %v2045 = vadd.f32 0.0, %v2044
  %v2046 = vpop.f32.mrb[0].mxu0
  %v2047 = vadd.f32 0.0, %v2046
  %v2048 = vpop.f32.mrb[0].mxu0
  %v2049 = vadd.f32 0.0, %v2048
  %2050 = vmatprep.mubr.bf16.mxu0 %v980
  %2051 = vmatmul.mubr.bf16.gmra.mrb[0].mxu0 %v979
  %v2052 = vpop.f32.mrb[0].mxu0
  %v2053 = vadd.f32 0.0, %v2052
  %v2054 = vpop.f32.mrb[0].mxu0
  %v2055 = vadd.f32 0.0, %v2054
  %v2056 = vpop.f32.mrb[0].mxu0
  %v2057 = vadd.f32 0.0, %v2056
  %v2058 = vpop.f32.mrb[0].mxu0
  %v2059 = vadd.f32 0.0, %v2058
  %2060 = vmatprep.mubr.bf16.mxu0 %v988
  %2061 = vmatmul.mubr.bf16.gmra.mrb[0].mxu0 %v987
  %v2062 = vpop.f32.mrb[0].mxu0
  %v2063 = vadd.f32 0.0, %v2062
  %v2064 = vpop.f32.mrb[0].mxu0
  %v2065 = vadd.f32 0.0, %v2064
  %v2066 = vpop.f32.mrb[0].mxu0
  %v2067 = vadd.f32 0.0, %v2066
  %v2068 = vpop.f32.mrb[0].mxu0
  %v2069 = vadd.f32 0.0, %v2068
  %2070 = vmatprep.mubr.bf16.mxu0 %v996
  %2071 = vmatmul.mubr.bf16.gmra.mrb[0].mxu0 %v995
  %v2072 = vpop.f32.mrb[0].mxu0
  %v2073 = vadd.f32 0.0, %v2072
  %v2074 = vpop.f32.mrb[0].mxu0
  %v2075 = vadd.f32 0.0, %v2074
  %v2076 = vpop.f32.mrb[0].mxu0
  %v2077 = vadd.f32 0.0, %v2076
  %v2078 = vpop.f32.mrb[0].mxu0
  %v2079 = vadd.f32 0.0, %v2078
  %2080 = vmatprep.mubr.bf16.mxu0 %v1004
  %2081 = vmatmul.mubr.bf16.gmra.mrb[0].mxu0 %v1003
  %v2082 = vpop.f32.mrb[0].mxu0
  %v2083 = vadd.f32 0.0, %v2082
  %v2084 = vpop.f32.mrb[0].mxu0
  %v2085 = vadd.f32 0.0, %v2084
  %v2086 = vpop.f32.mrb[0].mxu0
  %v2087 = vadd.f32 0.0, %v2086
  %v2088 = vpop.f32.mrb[0].mxu0
  %v2089 = vadd.f32 0.0, %v2088
  %2090 = vmatprep.mubr.bf16.mxu0 %v1012
  %2091 = vmatmul.mubr.bf16.gmra.mrb[0].mxu0 %v1011
  %v2092 = vpop.f32.mrb[0].mxu0
  %v2093 = vadd.f32 0.0, %v2092
  %v2094 = vpop.f32.mrb[0].mxu0
  %v2095 = vadd.f32 0.0, %v2094
  %v2096 = vpop.f32.mrb[0].mxu0
  %v2097 = vadd.f32 0.0, %v2096
  %v2098 = vpop.f32.mrb[0].mxu0
  %v2099 = vadd.f32 0.0, %v2098
  %2100 = vmatprep.mubr.bf16.mxu0 %v1020
  %2101 = vmatmul.mubr.bf16.gmra.mrb[0].mxu0 %v1019
  %v2102 = vpop.f32.mrb[0].mxu0
  %v2103 = vadd.f32 0.0, %v2102
  %v2104 = vpop.f32.mrb[0].mxu0
  %v2105 = vadd.f32 0.0, %v2104
  %v2106 = vpop.f32.mrb[0].mxu0
  %v2107 = vadd.f32 0.0, %v2106
  %v2108 = vpop.f32.mrb[0].mxu0
  %v2109 = vadd.f32 0.0, %v2108
  %2110 = vmatprep.mubr.bf16.mxu0 %v1028
  %2111 = vmatmul.mubr.bf16.gmra.mrb[0].mxu0 %v1027
  %v2112 = vpop.f32.mrb[0].mxu0
  %v2113 = vadd.f32 0.0, %v2112
  %v2114 = vpop.f32.mrb[0].mxu0
  %v2115 = vadd.f32 0.0, %v2114
  %v2116 = vpop.f32.mrb[0].mxu0
  %v2117 = vadd.f32 0.0, %v2116
  %v2118 = vpop.f32.mrb[0].mxu0
  %v2119 = vadd.f32 0.0, %v2118
  %2120 = vmatprep.mubr.bf16.mxu0 %v1036
  %2121 = vmatmul.mubr.bf16.gmra.mrb[0].mxu0 %v1035
  %v2122 = vpop.f32.mrb[0].mxu0
  %v2123 = vadd.f32 0.0, %v2122
  %v2124 = vpop.f32.mrb[0].mxu0
  %v2125 = vadd.f32 0.0, %v2124
  %v2126 = vpop.f32.mrb[0].mxu0
  %v2127 = vadd.f32 0.0, %v2126
  %v2128 = vpop.f32.mrb[0].mxu0
  %v2129 = vadd.f32 0.0, %v2128
  %2130 = vmatprep.mubr.bf16.mxu0 %v1044
  %2131 = vmatmul.mubr.bf16.gmra.mrb[0].mxu0 %v1043
  %v2132 = vpop.f32.mrb[0].mxu0
  %v2133 = vadd.f32 0.0, %v2132
  %v2134 = vpop.f32.mrb[0].mxu0
  %v2135 = vadd.f32 0.0, %v2134
  %v2136 = vpop.f32.mrb[0].mxu0
  %v2137 = vadd.f32 0.0, %v2136
  %v2138 = vpop.f32.mrb[0].mxu0
  %v2139 = vadd.f32 0.0, %v2138
  %2140 = vmatprep.mubr.bf16.mxu0 %v1052
  %2141 = vmatmul.mubr.bf16.gmra.mrb[0].mxu0 %v1051
  %v2142 = vpop.f32.mrb[0].mxu0
  %v2143 = vadd.f32 0.0, %v2142
  %v2144 = vpop.f32.mrb[0].mxu0
  %v2145 = vadd.f32 0.0, %v2144
  %v2146 = vpop.f32.mrb[0].mxu0
  %v2147 = vadd.f32 0.0, %v2146
  %v2148 = vpop.f32.mrb[0].mxu0
  %v2149 = vadd.f32 0.0, %v2148
  %2150 = vmatprep.mubr.bf16.mxu0 %v1060
  %2151 = vmatmul.mubr.bf16.gmra.mrb[0].mxu0 %v1059
  %v2152 = vpop.f32.mrb[0].mxu0
  %v2153 = vadd.f32 0.0, %v2152
  %v2154 = vpop.f32.mrb[0].mxu0
  %v2155 = vadd.f32 0.0, %v2154
  %v2156 = vpop.f32.mrb[0].mxu0
  %v2157 = vadd.f32 0.0, %v2156
  %v2158 = vpop.f32.mrb[0].mxu0
  %v2159 = vadd.f32 0.0, %v2158
  %2160 = vmatprep.mubr.bf16.mxu0 %v1068
  %2161 = vmatmul.mubr.bf16.gmra.mrb[0].mxu0 %v1067
  %v2162 = vpop.f32.mrb[0].mxu0
  %v2163 = vadd.f32 0.0, %v2162
  %v2164 = vpop.f32.mrb[0].mxu0
  %v2165 = vadd.f32 0.0, %v2164
  %v2166 = vpop.f32.mrb[0].mxu0
  %v2167 = vadd.f32 0.0, %v2166
  %v2168 = vpop.f32.mrb[0].mxu0
  %v2169 = vadd.f32 0.0, %v2168
  %2170 = vmatprep.mubr.bf16.mxu0 %v1076
  %2171 = vmatmul.mubr.bf16.gmra.mrb[0].mxu0 %v1075
  %v2172 = vpop.f32.mrb[0].mxu0
  %v2173 = vadd.f32 0.0, %v2172
  %v2174 = vpop.f32.mrb[0].mxu0
  %v2175 = vadd.f32 0.0, %v2174
  %v2176 = vpop.f32.mrb[0].mxu0
  %v2177 = vadd.f32 0.0, %v2176
  %v2178 = vpop.f32.mrb[0].mxu0
  %v2179 = vadd.f32 0.0, %v2178
  %2180 = vmatprep.mubr.bf16.mxu0 %v1084
  %2181 = vmatmul.mubr.bf16.gmra.mrb[0].mxu0 %v1083
  %v2182 = vpop.f32.mrb[0].mxu0
  %v2183 = vadd.f32 0.0, %v2182
  %v2184 = vpop.f32.mrb[0].mxu0
  %v2185 = vadd.f32 0.0, %v2184
  %v2186 = vpop.f32.mrb[0].mxu0
  %v2187 = vadd.f32 0.0, %v2186
  %v2188 = vpop.f32.mrb[0].mxu0
  %v2189 = vadd.f32 0.0, %v2188
  %2190 = vmatprep.mubr.bf16.mxu0 %v1092
  %2191 = vmatmul.mubr.bf16.gmra.mrb[0].mxu0 %v1091
  %v2192 = vpop.f32.mrb[0].mxu0
  %v2193 = vadd.f32 0.0, %v2192
  %v2194 = vpop.f32.mrb[0].mxu0
  %v2195 = vadd.f32 0.0, %v2194
  %v2196 = vpop.f32.mrb[0].mxu0
  %v2197 = vadd.f32 0.0, %v2196
  %v2198 = vpop.f32.mrb[0].mxu0
  %v2199 = vadd.f32 0.0, %v2198
  %2200 = vmatprep.mubr.bf16.mxu0 %v1100
  %2201 = vmatmul.mubr.bf16.gmra.mrb[0].mxu0 %v1099
  %v2202 = vpop.f32.mrb[0].mxu0
  %v2203 = vadd.f32 0.0, %v2202
  %v2204 = vpop.f32.mrb[0].mxu0
  %v2205 = vadd.f32 0.0, %v2204
  %v2206 = vpop.f32.mrb[0].mxu0
  %v2207 = vadd.f32 0.0, %v2206
  %v2208 = vpop.f32.mrb[0].mxu0
  %v2209 = vadd.f32 0.0, %v2208
  %2210 = vmatprep.mubr.bf16.mxu0 %v1108
  %2211 = vmatmul.mubr.bf16.gmra.mrb[0].mxu0 %v1107
  %v2212 = vpop.f32.mrb[0].mxu0
  %v2213 = vadd.f32 0.0, %v2212
  %v2214 = vpop.f32.mrb[0].mxu0
  %v2215 = vadd.f32 0.0, %v2214
  %v2216 = vpop.f32.mrb[0].mxu0
  %v2217 = vpop.f32.mrb[0].mxu0
  %2218 = vdwg.mxu0
  %2219 = vmatprep.subr.bf16.mxu0 %v1662
  %2220 = vmatpush1.bf16.msra.mxu0 %v1661
  %2221 = vmatprep.subr.bf16.mxu0 %v1664
  %2222 = vmatpush1.bf16.msra.mxu0 %v1663
  %2223 = vmatprep.subr.bf16.mxu0 %v1666
  %2224 = vmatpush1.bf16.msra.mxu0 %v1665
  %2225 = vmatprep.subr.bf16.mxu0 %v1668
  %2226 = vmatpush1.bf16.msra.mxu0 %v1667
  %2227 = vmatprep.subr.bf16.mxu0 %v1670
  %2228 = vmatpush1.bf16.msra.mxu0 %v1669
  %2229 = vmatprep.subr.bf16.mxu0 %v1672
  %2230 = vmatpush1.bf16.msra.mxu0 %v1671
  %2231 = vmatprep.subr.bf16.mxu0 %v1674
  %2232 = vmatpush1.bf16.msra.mxu0 %v1673
  %2233 = vmatprep.subr.bf16.mxu0 %v1676
  %2234 = vmatpush1.bf16.msra.mxu0 %v1675
  %2235 = vmatprep.subr.bf16.mxu0 %v1678
  %2236 = vmatpush1.bf16.msra.mxu0 %v1677
  %2237 = vmatprep.subr.bf16.mxu0 %v1680
  %2238 = vmatpush1.bf16.msra.mxu0 %v1679
  %2239 = vmatprep.subr.bf16.mxu0 %v1682
  %2240 = vmatpush1.bf16.msra.mxu0 %v1681
  %2241 = vmatprep.subr.bf16.mxu0 %v1684
  %2242 = vmatpush1.bf16.msra.mxu0 %v1683
  %2243 = vmatprep.subr.bf16.mxu0 %v1686
  %2244 = vmatpush1.bf16.msra.mxu0 %v1685
  %2245 = vmatprep.subr.bf16.mxu0 %v1688
  %2246 = vmatpush1.bf16.msra.mxu0 %v1687
  %2247 = vmatprep.subr.bf16.mxu0 %v1690
  %2248 = vmatpush1.bf16.msra.mxu0 %v1689
  %2249 = vmatprep.subr.bf16.mxu0 %v1692
  %2250 = vmatpush1.bf16.msra.mxu0 %v1691
  %2251 = vmatprep.mubr.bf16.mxu0 %v918
  %2252 = vmatmul.mubr.bf16.gmra.mrb[0].mxu0 %v917
  %v2253 = vpop.f32.mrb[0].mxu0
  %v2254 = vadd.f32 %v1973, %v2253
  %v2255 = vpop.f32.mrb[0].mxu0
  %v2256 = vadd.f32 %v1975, %v2255
  %v2257 = vpop.f32.mrb[0].mxu0
  %v2258 = vadd.f32 %v1977, %v2257
  %v2259 = vpop.f32.mrb[0].mxu0
  %v2260 = vadd.f32 %v1979, %v2259
  %2261 = vmatprep.mubr.bf16.mxu0 %v926
  %2262 = vmatmul.mubr.bf16.gmra.mrb[0].mxu0 %v925
  %v2263 = vpop.f32.mrb[0].mxu0
  %v2264 = vadd.f32 %v1983, %v2263
  %v2265 = vpop.f32.mrb[0].mxu0
  %v2266 = vadd.f32 %v1985, %v2265
  %v2267 = vpop.f32.mrb[0].mxu0
  %v2268 = vadd.f32 %v1987, %v2267
  %v2269 = vpop.f32.mrb[0].mxu0
  %v2270 = vadd.f32 %v1989, %v2269
  %2271 = vmatprep.mubr.bf16.mxu0 %v934
  %2272 = vmatmul.mubr.bf16.gmra.mrb[0].mxu0 %v933
  %v2273 = vpop.f32.mrb[0].mxu0
  %v2274 = vadd.f32 %v1993, %v2273
  %v2275 = vpop.f32.mrb[0].mxu0
  %v2276 = vadd.f32 %v1995, %v2275
  %v2277 = vpop.f32.mrb[0].mxu0
  %v2278 = vadd.f32 %v1997, %v2277
  %v2279 = vpop.f32.mrb[0].mxu0
  %v2280 = vadd.f32 %v1999, %v2279
  %2281 = vmatprep.mubr.bf16.mxu0 %v942
  %2282 = vmatmul.mubr.bf16.gmra.mrb[0].mxu0 %v941
  %v2283 = vpop.f32.mrb[0].mxu0
  %v2284 = vadd.f32 %v2003, %v2283
  %v2285 = vpop.f32.mrb[0].mxu0
  %v2286 = vadd.f32 %v2005, %v2285
  %v2287 = vpop.f32.mrb[0].mxu0
  %v2288 = vadd.f32 %v2007, %v2287
  %v2289 = vpop.f32.mrb[0].mxu0
  %v2290 = vadd.f32 %v2009, %v2289
  %2291 = vmatprep.mubr.bf16.mxu0 %v950
  %2292 = vmatmul.mubr.bf16.gmra.mrb[0].mxu0 %v949
  %v2293 = vpop.f32.mrb[0].mxu0
  %v2294 = vadd.f32 %v2013, %v2293
  %v2295 = vpop.f32.mrb[0].mxu0
  %v2296 = vadd.f32 %v2015, %v2295
  %v2297 = vpop.f32.mrb[0].mxu0
  %v2298 = vadd.f32 %v2017, %v2297
  %v2299 = vpop.f32.mrb[0].mxu0
  %v2300 = vadd.f32 %v2019, %v2299
  %2301 = vmatprep.mubr.bf16.mxu0 %v958
  %2302 = vmatmul.mubr.bf16.gmra.mrb[0].mxu0 %v957
  %v2303 = vpop.f32.mrb[0].mxu0
  %v2304 = vadd.f32 %v2023, %v2303
  %v2305 = vpop.f32.mrb[0].mxu0
  %v2306 = vadd.f32 %v2025, %v2305
  %v2307 = vpop.f32.mrb[0].mxu0
  %v2308 = vadd.f32 %v2027, %v2307
  %v2309 = vpop.f32.mrb[0].mxu0
  %v2310 = vadd.f32 %v2029, %v2309
  %2311 = vmatprep.mubr.bf16.mxu0 %v966
  %2312 = vmatmul.mubr.bf16.gmra.mrb[0].mxu0 %v965
  %v2313 = vpop.f32.mrb[0].mxu0
  %v2314 = vadd.f32 %v2033, %v2313
  %v2315 = vpop.f32.mrb[0].mxu0
  %v2316 = vadd.f32 %v2035, %v2315
  %v2317 = vpop.f32.mrb[0].mxu0
  %v2318 = vadd.f32 %v2037, %v2317
  %v2319 = vpop.f32.mrb[0].mxu0
  %v2320 = vadd.f32 %v2039, %v2319
  %2321 = vmatprep.mubr.bf16.mxu0 %v974
  %2322 = vmatmul.mubr.bf16.gmra.mrb[0].mxu0 %v973
  %v2323 = vpop.f32.mrb[0].mxu0
  %v2324 = vadd.f32 %v2043, %v2323
  %v2325 = vpop.f32.mrb[0].mxu0
  %v2326 = vadd.f32 %v2045, %v2325
  %v2327 = vpop.f32.mrb[0].mxu0
  %v2328 = vadd.f32 %v2047, %v2327
  %v2329 = vpop.f32.mrb[0].mxu0
  %v2330 = vadd.f32 %v2049, %v2329
  %2331 = vmatprep.mubr.bf16.mxu0 %v982
  %2332 = vmatmul.mubr.bf16.gmra.mrb[0].mxu0 %v981
  %v2333 = vpop.f32.mrb[0].mxu0
  %v2334 = vadd.f32 %v2053, %v2333
  %v2335 = vpop.f32.mrb[0].mxu0
  %v2336 = vadd.f32 %v2055, %v2335
  %v2337 = vpop.f32.mrb[0].mxu0
  %v2338 = vadd.f32 %v2057, %v2337
  %v2339 = vpop.f32.mrb[0].mxu0
  %v2340 = vadd.f32 %v2059, %v2339
  %2341 = vmatprep.mubr.bf16.mxu0 %v990
  %2342 = vmatmul.mubr.bf16.gmra.mrb[0].mxu0 %v989
  %v2343 = vpop.f32.mrb[0].mxu0
  %v2344 = vadd.f32 %v2063, %v2343
  %v2345 = vpop.f32.mrb[0].mxu0
  %v2346 = vadd.f32 %v2065, %v2345
  %v2347 = vpop.f32.mrb[0].mxu0
  %v2348 = vadd.f32 %v2067, %v2347
  %v2349 = vpop.f32.mrb[0].mxu0
  %v2350 = vadd.f32 %v2069, %v2349
  %2351 = vmatprep.mubr.bf16.mxu0 %v998
  %2352 = vmatmul.mubr.bf16.gmra.mrb[0].mxu0 %v997
  %v2353 = vpop.f32.mrb[0].mxu0
  %v2354 = vadd.f32 %v2073, %v2353
  %v2355 = vpop.f32.mrb[0].mxu0
  %v2356 = vadd.f32 %v2075, %v2355
  %v2357 = vpop.f32.mrb[0].mxu0
  %v2358 = vadd.f32 %v2077, %v2357
  %v2359 = vpop.f32.mrb[0].mxu0
  %v2360 = vadd.f32 %v2079, %v2359
  %2361 = vmatprep.mubr.bf16.mxu0 %v1006
  %2362 = vmatmul.mubr.bf16.gmra.mrb[0].mxu0 %v1005
  %v2363 = vpop.f32.mrb[0].mxu0
  %v2364 = vadd.f32 %v2083, %v2363
  %v2365 = vpop.f32.mrb[0].mxu0
  %v2366 = vadd.f32 %v2085, %v2365
  %v2367 = vpop.f32.mrb[0].mxu0
  %v2368 = vadd.f32 %v2087, %v2367
  %v2369 = vpop.f32.mrb[0].mxu0
  %v2370 = vadd.f32 %v2089, %v2369
  %2371 = vmatprep.mubr.bf16.mxu0 %v1014
  %2372 = vmatmul.mubr.bf16.gmra.mrb[0].mxu0 %v1013
  %v2373 = vpop.f32.mrb[0].mxu0
  %v2374 = vadd.f32 %v2093, %v2373
  %v2375 = vpop.f32.mrb[0].mxu0
  %v2376 = vadd.f32 %v2095, %v2375
  %v2377 = vpop.f32.mrb[0].mxu0
  %v2378 = vadd.f32 %v2097, %v2377
  %v2379 = vpop.f32.mrb[0].mxu0
  %v2380 = vadd.f32 %v2099, %v2379
  %2381 = vmatprep.mubr.bf16.mxu0 %v1022
  %2382 = vmatmul.mubr.bf16.gmra.mrb[0].mxu0 %v1021
  %v2383 = vpop.f32.mrb[0].mxu0
  %v2384 = vadd.f32 %v2103, %v2383
  %v2385 = vpop.f32.mrb[0].mxu0
  %v2386 = vadd.f32 %v2105, %v2385
  %v2387 = vpop.f32.mrb[0].mxu0
  %v2388 = vadd.f32 %v2107, %v2387
  %v2389 = vpop.f32.mrb[0].mxu0
  %v2390 = vadd.f32 %v2109, %v2389
  %2391 = vmatprep.mubr.bf16.mxu0 %v1030
  %2392 = vmatmul.mubr.bf16.gmra.mrb[0].mxu0 %v1029
  %v2393 = vpop.f32.mrb[0].mxu0
  %v2394 = vadd.f32 %v2113, %v2393
  %v2395 = vpop.f32.mrb[0].mxu0
  %v2396 = vadd.f32 %v2115, %v2395
  %v2397 = vpop.f32.mrb[0].mxu0
  %v2398 = vadd.f32 %v2117, %v2397
  %v2399 = vpop.f32.mrb[0].mxu0
  %v2400 = vadd.f32 %v2119, %v2399
  %2401 = vmatprep.mubr.bf16.mxu0 %v1038
  %2402 = vmatmul.mubr.bf16.gmra.mrb[0].mxu0 %v1037
  %v2403 = vpop.f32.mrb[0].mxu0
  %v2404 = vadd.f32 %v2123, %v2403
  %v2405 = vpop.f32.mrb[0].mxu0
  %v2406 = vadd.f32 %v2125, %v2405
  %v2407 = vpop.f32.mrb[0].mxu0
  %v2408 = vadd.f32 %v2127, %v2407
  %v2409 = vpop.f32.mrb[0].mxu0
  %v2410 = vadd.f32 %v2129, %v2409
  %2411 = vmatprep.mubr.bf16.mxu0 %v1046
  %2412 = vmatmul.mubr.bf16.gmra.mrb[0].mxu0 %v1045
  %v2413 = vpop.f32.mrb[0].mxu0
  %v2414 = vadd.f32 %v2133, %v2413
  %v2415 = vpop.f32.mrb[0].mxu0
  %v2416 = vadd.f32 %v2135, %v2415
  %v2417 = vpop.f32.mrb[0].mxu0
  %v2418 = vadd.f32 %v2137, %v2417
  %v2419 = vpop.f32.mrb[0].mxu0
  %v2420 = vadd.f32 %v2139, %v2419
  %2421 = vmatprep.mubr.bf16.mxu0 %v1054
  %2422 = vmatmul.mubr.bf16.gmra.mrb[0].mxu0 %v1053
  %v2423 = vpop.f32.mrb[0].mxu0
  %v2424 = vadd.f32 %v2143, %v2423
  %v2425 = vpop.f32.mrb[0].mxu0
  %v2426 = vadd.f32 %v2145, %v2425
  %v2427 = vpop.f32.mrb[0].mxu0
  %v2428 = vadd.f32 %v2147, %v2427
  %v2429 = vpop.f32.mrb[0].mxu0
  %v2430 = vadd.f32 %v2149, %v2429
  %2431 = vmatprep.mubr.bf16.mxu0 %v1062
  %2432 = vmatmul.mubr.bf16.gmra.mrb[0].mxu0 %v1061
  %v2433 = vpop.f32.mrb[0].mxu0
  %v2434 = vadd.f32 %v2153, %v2433
  %v2435 = vpop.f32.mrb[0].mxu0
  %v2436 = vadd.f32 %v2155, %v2435
  %v2437 = vpop.f32.mrb[0].mxu0
  %v2438 = vadd.f32 %v2157, %v2437
  %v2439 = vpop.f32.mrb[0].mxu0
  %v2440 = vadd.f32 %v2159, %v2439
  %2441 = vmatprep.mubr.bf16.mxu0 %v1070
  %2442 = vmatmul.mubr.bf16.gmra.mrb[0].mxu0 %v1069
  %v2443 = vpop.f32.mrb[0].mxu0
  %v2444 = vadd.f32 %v2163, %v2443
  %v2445 = vpop.f32.mrb[0].mxu0
  %v2446 = vadd.f32 %v2165, %v2445
  %v2447 = vpop.f32.mrb[0].mxu0
  %v2448 = vadd.f32 %v2167, %v2447
  %v2449 = vpop.f32.mrb[0].mxu0
  %v2450 = vadd.f32 %v2169, %v2449
  %2451 = vmatprep.mubr.bf16.mxu0 %v1078
  %2452 = vmatmul.mubr.bf16.gmra.mrb[0].mxu0 %v1077
  %v2453 = vpop.f32.mrb[0].mxu0
  %v2454 = vadd.f32 %v2173, %v2453
  %v2455 = vpop.f32.mrb[0].mxu0
  %v2456 = vadd.f32 %v2175, %v2455
  %v2457 = vpop.f32.mrb[0].mxu0
  %v2458 = vadd.f32 %v2177, %v2457
  %v2459 = vpop.f32.mrb[0].mxu0
  %v2460 = vadd.f32 %v2179, %v2459
  %2461 = vmatprep.mubr.bf16.mxu0 %v1086
  %2462 = vmatmul.mubr.bf16.gmra.mrb[0].mxu0 %v1085
  %v2463 = vpop.f32.mrb[0].mxu0
  %v2464 = vadd.f32 %v2183, %v2463
  %v2465 = vpop.f32.mrb[0].mxu0
  %v2466 = vadd.f32 %v2185, %v2465
  %v2467 = vpop.f32.mrb[0].mxu0
  %v2468 = vadd.f32 %v2187, %v2467
  %v2469 = vpop.f32.mrb[0].mxu0
  %v2470 = vadd.f32 %v2189, %v2469
  %2471 = vmatprep.mubr.bf16.mxu0 %v1094
  %2472 = vmatmul.mubr.bf16.gmra.mrb[0].mxu0 %v1093
  %v2473 = vpop.f32.mrb[0].mxu0
  %v2474 = vadd.f32 %v2193, %v2473
  %v2475 = vpop.f32.mrb[0].mxu0
  %v2476 = vadd.f32 %v2195, %v2475
  %v2477 = vpop.f32.mrb[0].mxu0
  %v2478 = vadd.f32 %v2197, %v2477
  %v2479 = vpop.f32.mrb[0].mxu0
  %v2480 = vadd.f32 %v2199, %v2479
  %2481 = vmatprep.mubr.bf16.mxu0 %v1102
  %2482 = vmatmul.mubr.bf16.gmra.mrb[0].mxu0 %v1101
  %v2483 = vpop.f32.mrb[0].mxu0
  %v2484 = vadd.f32 %v2203, %v2483
  %v2485 = vpop.f32.mrb[0].mxu0
  %v2486 = vadd.f32 %v2205, %v2485
  %v2487 = vpop.f32.mrb[0].mxu0
  %v2488 = vadd.f32 %v2207, %v2487
  %v2489 = vpop.f32.mrb[0].mxu0
  %v2490 = vadd.f32 %v2209, %v2489
  %2491 = vmatprep.mubr.bf16.mxu0 %v1110
  %2492 = vmatmul.mubr.bf16.gmra.mrb[0].mxu0 %v1109
  %v2493 = vpop.f32.mrb[0].mxu0
  %v2494 = vadd.f32 %v2213, %v2493
  %v2495 = vpop.f32.mrb[0].mxu0
  %v2496 = vadd.f32 %v2215, %v2495
  %v2497 = vpop.f32.mrb[0].mxu0
  %v2498 = vpop.f32.mrb[0].mxu0
  %2499 = vdwg.mxu0
  %2500 = vmatprep.subr.bf16.mxu0 %v1694
  %2501 = vmatpush1.bf16.msra.mxu0 %v1693
  %2502 = vmatprep.subr.bf16.mxu0 %v1696
  %2503 = vmatpush1.bf16.msra.mxu0 %v1695
  %2504 = vmatprep.subr.bf16.mxu0 %v1698
  %2505 = vmatpush1.bf16.msra.mxu0 %v1697
  %2506 = vmatprep.subr.bf16.mxu0 %v1700
  %2507 = vmatpush1.bf16.msra.mxu0 %v1699
  %2508 = vmatprep.subr.bf16.mxu0 %v1702
  %2509 = vmatpush1.bf16.msra.mxu0 %v1701
  %2510 = vmatprep.subr.bf16.mxu0 %v1704
  %2511 = vmatpush1.bf16.msra.mxu0 %v1703
  %2512 = vmatprep.subr.bf16.mxu0 %v1706
  %2513 = vmatpush1.bf16.msra.mxu0 %v1705
  %2514 = vmatprep.subr.bf16.mxu0 %v1708
  %2515 = vmatpush1.bf16.msra.mxu0 %v1707
  %2516 = vmatprep.subr.bf16.mxu0 %v1710
  %2517 = vmatpush1.bf16.msra.mxu0 %v1709
  %2518 = vmatprep.subr.bf16.mxu0 %v1712
  %2519 = vmatpush1.bf16.msra.mxu0 %v1711
  %2520 = vmatprep.subr.bf16.mxu0 %v1714
  %2521 = vmatpush1.bf16.msra.mxu0 %v1713
  %2522 = vmatprep.subr.bf16.mxu0 %v1716
  %2523 = vmatpush1.bf16.msra.mxu0 %v1715
  %2524 = vmatprep.subr.bf16.mxu0 %v1718
  %2525 = vmatpush1.bf16.msra.mxu0 %v1717
  %2526 = vmatprep.subr.bf16.mxu0 %v1720
  %2527 = vmatpush1.bf16.msra.mxu0 %v1719
  %2528 = vmatprep.subr.bf16.mxu0 %v1722
  %2529 = vmatpush1.bf16.msra.mxu0 %v1721
  %2530 = vmatprep.subr.bf16.mxu0 %v1724
  %2531 = vmatpush1.bf16.msra.mxu0 %v1723
  %2532 = vmatprep.mubr.bf16.mxu0 %v920
  %2533 = vmatmul.mubr.bf16.gmra.mrb[0].mxu0 %v919
  %v2534 = vpop.f32.mrb[0].mxu0
  %v2535 = vadd.f32 %v2254, %v2534
  %v2536 = vpop.f32.mrb[0].mxu0
  %v2537 = vadd.f32 %v2256, %v2536
  %v2538 = vpop.f32.mrb[0].mxu0
  %v2539 = vadd.f32 %v2258, %v2538
  %v2540 = vpop.f32.mrb[0].mxu0
  %v2541 = vadd.f32 %v2260, %v2540
  %2542 = vmatprep.mubr.bf16.mxu0 %v928
  %2543 = vmatmul.mubr.bf16.gmra.mrb[0].mxu0 %v927
  %v2544 = vpop.f32.mrb[0].mxu0
  %v2545 = vadd.f32 %v2264, %v2544
  %v2546 = vpop.f32.mrb[0].mxu0
  %v2547 = vadd.f32 %v2266, %v2546
  %v2548 = vpop.f32.mrb[0].mxu0
  %v2549 = vadd.f32 %v2268, %v2548
  %v2550 = vpop.f32.mrb[0].mxu0
  %v2551 = vadd.f32 %v2270, %v2550
  %2552 = vmatprep.mubr.bf16.mxu0 %v936
  %2553 = vmatmul.mubr.bf16.gmra.mrb[0].mxu0 %v935
  %v2554 = vpop.f32.mrb[0].mxu0
  %v2555 = vadd.f32 %v2274, %v2554
  %v2556 = vpop.f32.mrb[0].mxu0
  %v2557 = vadd.f32 %v2276, %v2556
  %v2558 = vpop.f32.mrb[0].mxu0
  %v2559 = vadd.f32 %v2278, %v2558
  %v2560 = vpop.f32.mrb[0].mxu0
  %v2561 = vadd.f32 %v2280, %v2560
  %2562 = vmatprep.mubr.bf16.mxu0 %v944
  %2563 = vmatmul.mubr.bf16.gmra.mrb[0].mxu0 %v943
  %v2564 = vpop.f32.mrb[0].mxu0
  %v2565 = vadd.f32 %v2284, %v2564
  %v2566 = vpop.f32.mrb[0].mxu0
  %v2567 = vadd.f32 %v2286, %v2566
  %v2568 = vpop.f32.mrb[0].mxu0
  %v2569 = vadd.f32 %v2288, %v2568
  %v2570 = vpop.f32.mrb[0].mxu0
  %v2571 = vadd.f32 %v2290, %v2570
  %2572 = vmatprep.mubr.bf16.mxu0 %v952
  %2573 = vmatmul.mubr.bf16.gmra.mrb[0].mxu0 %v951
  %v2574 = vpop.f32.mrb[0].mxu0
  %v2575 = vadd.f32 %v2294, %v2574
  %v2576 = vpop.f32.mrb[0].mxu0
  %v2577 = vadd.f32 %v2296, %v2576
  %v2578 = vpop.f32.mrb[0].mxu0
  %v2579 = vadd.f32 %v2298, %v2578
  %v2580 = vpop.f32.mrb[0].mxu0
  %v2581 = vadd.f32 %v2300, %v2580
  %2582 = vmatprep.mubr.bf16.mxu0 %v960
  %2583 = vmatmul.mubr.bf16.gmra.mrb[0].mxu0 %v959
  %v2584 = vpop.f32.mrb[0].mxu0
  %v2585 = vadd.f32 %v2304, %v2584
  %v2586 = vpop.f32.mrb[0].mxu0
  %v2587 = vadd.f32 %v2306, %v2586
  %v2588 = vpop.f32.mrb[0].mxu0
  %v2589 = vadd.f32 %v2308, %v2588
  %v2590 = vpop.f32.mrb[0].mxu0
  %v2591 = vadd.f32 %v2310, %v2590
  %2592 = vmatprep.mubr.bf16.mxu0 %v968
  %2593 = vmatmul.mubr.bf16.gmra.mrb[0].mxu0 %v967
  %v2594 = vpop.f32.mrb[0].mxu0
  %v2595 = vadd.f32 %v2314, %v2594
  %v2596 = vpop.f32.mrb[0].mxu0
  %v2597 = vadd.f32 %v2316, %v2596
  %v2598 = vpop.f32.mrb[0].mxu0
  %v2599 = vadd.f32 %v2318, %v2598
  %v2600 = vpop.f32.mrb[0].mxu0
  %v2601 = vadd.f32 %v2320, %v2600
  %2602 = vmatprep.mubr.bf16.mxu0 %v976
  %2603 = vmatmul.mubr.bf16.gmra.mrb[0].mxu0 %v975
  %v2604 = vpop.f32.mrb[0].mxu0
  %v2605 = vadd.f32 %v2324, %v2604
  %v2606 = vpop.f32.mrb[0].mxu0
  %v2607 = vadd.f32 %v2326, %v2606
  %v2608 = vpop.f32.mrb[0].mxu0
  %v2609 = vadd.f32 %v2328, %v2608
  %v2610 = vpop.f32.mrb[0].mxu0
  %v2611 = vadd.f32 %v2330, %v2610
  %2612 = vmatprep.mubr.bf16.mxu0 %v984
  %2613 = vmatmul.mubr.bf16.gmra.mrb[0].mxu0 %v983
  %v2614 = vpop.f32.mrb[0].mxu0
  %v2615 = vadd.f32 %v2334, %v2614
  %v2616 = vpop.f32.mrb[0].mxu0
  %v2617 = vadd.f32 %v2336, %v2616
  %v2618 = vpop.f32.mrb[0].mxu0
  %v2619 = vadd.f32 %v2338, %v2618
  %v2620 = vpop.f32.mrb[0].mxu0
  %v2621 = vadd.f32 %v2340, %v2620
  %2622 = vmatprep.mubr.bf16.mxu0 %v992
  %2623 = vmatmul.mubr.bf16.gmra.mrb[0].mxu0 %v991
  %v2624 = vpop.f32.mrb[0].mxu0
  %v2625 = vadd.f32 %v2344, %v2624
  %v2626 = vpop.f32.mrb[0].mxu0
  %v2627 = vadd.f32 %v2346, %v2626
  %v2628 = vpop.f32.mrb[0].mxu0
  %v2629 = vadd.f32 %v2348, %v2628
  %v2630 = vpop.f32.mrb[0].mxu0
  %v2631 = vadd.f32 %v2350, %v2630
  %2632 = vmatprep.mubr.bf16.mxu0 %v1000
  %2633 = vmatmul.mubr.bf16.gmra.mrb[0].mxu0 %v999
  %v2634 = vpop.f32.mrb[0].mxu0
  %v2635 = vadd.f32 %v2354, %v2634
  %v2636 = vpop.f32.mrb[0].mxu0
  %v2637 = vadd.f32 %v2356, %v2636
  %v2638 = vpop.f32.mrb[0].mxu0
  %v2639 = vadd.f32 %v2358, %v2638
  %v2640 = vpop.f32.mrb[0].mxu0
  %v2641 = vadd.f32 %v2360, %v2640
  %2642 = vmatprep.mubr.bf16.mxu0 %v1008
  %2643 = vmatmul.mubr.bf16.gmra.mrb[0].mxu0 %v1007
  %v2644 = vpop.f32.mrb[0].mxu0
  %v2645 = vadd.f32 %v2364, %v2644
  %v2646 = vpop.f32.mrb[0].mxu0
  %v2647 = vadd.f32 %v2366, %v2646
  %v2648 = vpop.f32.mrb[0].mxu0
  %v2649 = vadd.f32 %v2368, %v2648
  %v2650 = vpop.f32.mrb[0].mxu0
  %v2651 = vadd.f32 %v2370, %v2650
  %2652 = vmatprep.mubr.bf16.mxu0 %v1016
  %2653 = vmatmul.mubr.bf16.gmra.mrb[0].mxu0 %v1015
  %v2654 = vpop.f32.mrb[0].mxu0
  %v2655 = vadd.f32 %v2374, %v2654
  %v2656 = vpop.f32.mrb[0].mxu0
  %v2657 = vadd.f32 %v2376, %v2656
  %v2658 = vpop.f32.mrb[0].mxu0
  %v2659 = vadd.f32 %v2378, %v2658
  %v2660 = vpop.f32.mrb[0].mxu0
  %v2661 = vadd.f32 %v2380, %v2660
  %2662 = vmatprep.mubr.bf16.mxu0 %v1024
  %2663 = vmatmul.mubr.bf16.gmra.mrb[0].mxu0 %v1023
  %v2664 = vpop.f32.mrb[0].mxu0
  %v2665 = vadd.f32 %v2384, %v2664
  %v2666 = vpop.f32.mrb[0].mxu0
  %v2667 = vadd.f32 %v2386, %v2666
  %v2668 = vpop.f32.mrb[0].mxu0
  %v2669 = vadd.f32 %v2388, %v2668
  %v2670 = vpop.f32.mrb[0].mxu0
  %v2671 = vadd.f32 %v2390, %v2670
  %2672 = vmatprep.mubr.bf16.mxu0 %v1032
  %2673 = vmatmul.mubr.bf16.gmra.mrb[0].mxu0 %v1031
  %v2674 = vpop.f32.mrb[0].mxu0
  %v2675 = vadd.f32 %v2394, %v2674
  %v2676 = vpop.f32.mrb[0].mxu0
  %v2677 = vadd.f32 %v2396, %v2676
  %v2678 = vpop.f32.mrb[0].mxu0
  %v2679 = vadd.f32 %v2398, %v2678
  %v2680 = vpop.f32.mrb[0].mxu0
  %v2681 = vadd.f32 %v2400, %v2680
  %2682 = vmatprep.mubr.bf16.mxu0 %v1040
  %2683 = vmatmul.mubr.bf16.gmra.mrb[0].mxu0 %v1039
  %v2684 = vpop.f32.mrb[0].mxu0
  %v2685 = vadd.f32 %v2404, %v2684
  %v2686 = vpop.f32.mrb[0].mxu0
  %v2687 = vadd.f32 %v2406, %v2686
  %v2688 = vpop.f32.mrb[0].mxu0
  %v2689 = vadd.f32 %v2408, %v2688
  %v2690 = vpop.f32.mrb[0].mxu0
  %v2691 = vadd.f32 %v2410, %v2690
  %2692 = vmatprep.mubr.bf16.mxu0 %v1048
  %2693 = vmatmul.mubr.bf16.gmra.mrb[0].mxu0 %v1047
  %v2694 = vpop.f32.mrb[0].mxu0
  %v2695 = vadd.f32 %v2414, %v2694
  %v2696 = vpop.f32.mrb[0].mxu0
  %v2697 = vadd.f32 %v2416, %v2696
  %v2698 = vpop.f32.mrb[0].mxu0
  %v2699 = vadd.f32 %v2418, %v2698
  %v2700 = vpop.f32.mrb[0].mxu0
  %v2701 = vadd.f32 %v2420, %v2700
  %2702 = vmatprep.mubr.bf16.mxu0 %v1056
  %2703 = vmatmul.mubr.bf16.gmra.mrb[0].mxu0 %v1055
  %v2704 = vpop.f32.mrb[0].mxu0
  %v2705 = vadd.f32 %v2424, %v2704
  %v2706 = vpop.f32.mrb[0].mxu0
  %v2707 = vadd.f32 %v2426, %v2706
  %v2708 = vpop.f32.mrb[0].mxu0
  %v2709 = vadd.f32 %v2428, %v2708
  %v2710 = vpop.f32.mrb[0].mxu0
  %v2711 = vadd.f32 %v2430, %v2710
  %2712 = vmatprep.mubr.bf16.mxu0 %v1064
  %2713 = vmatmul.mubr.bf16.gmra.mrb[0].mxu0 %v1063
  %v2714 = vpop.f32.mrb[0].mxu0
  %v2715 = vadd.f32 %v2434, %v2714
  %v2716 = vpop.f32.mrb[0].mxu0
  %v2717 = vadd.f32 %v2436, %v2716
  %v2718 = vpop.f32.mrb[0].mxu0
  %v2719 = vadd.f32 %v2438, %v2718
  %v2720 = vpop.f32.mrb[0].mxu0
  %v2721 = vadd.f32 %v2440, %v2720
  %2722 = vmatprep.mubr.bf16.mxu0 %v1072
  %2723 = vmatmul.mubr.bf16.gmra.mrb[0].mxu0 %v1071
  %v2724 = vpop.f32.mrb[0].mxu0
  %v2725 = vadd.f32 %v2444, %v2724
  %v2726 = vpop.f32.mrb[0].mxu0
  %v2727 = vadd.f32 %v2446, %v2726
  %v2728 = vpop.f32.mrb[0].mxu0
  %v2729 = vadd.f32 %v2448, %v2728
  %v2730 = vpop.f32.mrb[0].mxu0
  %v2731 = vadd.f32 %v2450, %v2730
  %2732 = vmatprep.mubr.bf16.mxu0 %v1080
  %2733 = vmatmul.mubr.bf16.gmra.mrb[0].mxu0 %v1079
  %v2734 = vpop.f32.mrb[0].mxu0
  %v2735 = vadd.f32 %v2454, %v2734
  %v2736 = vpop.f32.mrb[0].mxu0
  %v2737 = vadd.f32 %v2456, %v2736
  %v2738 = vpop.f32.mrb[0].mxu0
  %v2739 = vadd.f32 %v2458, %v2738
  %v2740 = vpop.f32.mrb[0].mxu0
  %v2741 = vadd.f32 %v2460, %v2740
  %2742 = vmatprep.mubr.bf16.mxu0 %v1088
  %2743 = vmatmul.mubr.bf16.gmra.mrb[0].mxu0 %v1087
  %v2744 = vpop.f32.mrb[0].mxu0
  %v2745 = vadd.f32 %v2464, %v2744
  %v2746 = vpop.f32.mrb[0].mxu0
  %v2747 = vadd.f32 %v2466, %v2746
  %v2748 = vpop.f32.mrb[0].mxu0
  %v2749 = vadd.f32 %v2468, %v2748
  %v2750 = vpop.f32.mrb[0].mxu0
  %v2751 = vadd.f32 %v2470, %v2750
  %2752 = vmatprep.mubr.bf16.mxu0 %v1096
  %2753 = vmatmul.mubr.bf16.gmra.mrb[0].mxu0 %v1095
  %v2754 = vpop.f32.mrb[0].mxu0
  %v2755 = vadd.f32 %v2474, %v2754
  %v2756 = vpop.f32.mrb[0].mxu0
  %v2757 = vadd.f32 %v2476, %v2756
  %v2758 = vpop.f32.mrb[0].mxu0
  %v2759 = vadd.f32 %v2478, %v2758
  %v2760 = vpop.f32.mrb[0].mxu0
  %v2761 = vadd.f32 %v2480, %v2760
  %2762 = vmatprep.mubr.bf16.mxu0 %v1104
  %2763 = vmatmul.mubr.bf16.gmra.mrb[0].mxu0 %v1103
  %v2764 = vpop.f32.mrb[0].mxu0
  %v2765 = vadd.f32 %v2484, %v2764
  %v2766 = vpop.f32.mrb[0].mxu0
  %v2767 = vadd.f32 %v2486, %v2766
  %v2768 = vpop.f32.mrb[0].mxu0
  %v2769 = vadd.f32 %v2488, %v2768
  %v2770 = vpop.f32.mrb[0].mxu0
  %v2771 = vadd.f32 %v2490, %v2770
  %2772 = vmatprep.mubr.bf16.mxu0 %v1112
  %2773 = vmatmul.mubr.bf16.gmra.mrb[0].mxu0 %v1111
  %v2774 = vpop.f32.mrb[0].mxu0
  %v2775 = vadd.f32 %v2494, %v2774
  %v2776 = vpop.f32.mrb[0].mxu0
  %v2777 = vadd.f32 %v2496, %v2776
  %v2778 = vpop.f32.mrb[0].mxu0
  %v2779 = vpop.f32.mrb[0].mxu0
  %2780 = vdwg.mxu0
  %2781 = vmatprep.subr.bf16.mxu0 %v1726
  %2782 = vmatpush1.bf16.msra.mxu0 %v1725
  %2783 = vmatprep.subr.bf16.mxu0 %v1728
  %2784 = vmatpush1.bf16.msra.mxu0 %v1727
  %2785 = vmatprep.subr.bf16.mxu0 %v1730
  %2786 = vmatpush1.bf16.msra.mxu0 %v1729
  %2787 = vmatprep.subr.bf16.mxu0 %v1732
  %2788 = vmatpush1.bf16.msra.mxu0 %v1731
  %2789 = vmatprep.subr.bf16.mxu0 %v1734
  %2790 = vmatpush1.bf16.msra.mxu0 %v1733
  %2791 = vmatprep.subr.bf16.mxu0 %v1736
  %2792 = vmatpush1.bf16.msra.mxu0 %v1735
  %2793 = vmatprep.subr.bf16.mxu0 %v1738
  %2794 = vmatpush1.bf16.msra.mxu0 %v1737
  %2795 = vmatprep.subr.bf16.mxu0 %v1740
  %2796 = vmatpush1.bf16.msra.mxu0 %v1739
  %2797 = vmatprep.subr.bf16.mxu0 %v1936
  %2798 = vmatpush1.bf16.msra.mxu0 %v1933
  %2799 = vmatprep.subr.bf16.mxu0 0
  %2800 = vmatpush1.bf16.msra.mxu0 0
  %2801 = vmatprep.subr.bf16.mxu0 0
  %2802 = vmatpush1.bf16.msra.mxu0 0
  %2803 = vmatprep.subr.bf16.mxu0 0
  %2804 = vmatpush1.bf16.msra.mxu0 0
  %2805 = vmatprep.subr.bf16.mxu0 0
  %2806 = vmatpush1.bf16.msra.mxu0 0
  %2807 = vmatprep.subr.bf16.mxu0 0
  %2808 = vmatpush1.bf16.msra.mxu0 0
  %2809 = vmatprep.subr.bf16.mxu0 0
  %2810 = vmatpush1.bf16.msra.mxu0 0
  %2811 = vmatprep.subr.bf16.mxu0 0
  %2812 = vmatpush1.bf16.msra.mxu0 0
  %2813 = vmatprep.mubr.bf16.mxu0 %v1857
  %2814 = vmatmul.mubr.bf16.gmra.mrb[0].mxu0 %v921
  %v2815 = vpop.f32.mrb[0].mxu0
  %v2816 = vadd.f32 %v2535, %v2815
  %v2817 = vpop.f32.mrb[0].mxu0
  %v2818 = vadd.f32 %v2537, %v2817
  %v2819 = vpop.f32.mrb[0].mxu0
  %v2820 = vadd.f32 %v2539, %v2819
  %v2821 = vpop.f32.mrb[0].mxu0
  %v2822 = vadd.f32 %v2541, %v2821
  %2823 = vmatprep.mubr.bf16.mxu0 %v1860
  %2824 = vmatmul.mubr.bf16.gmra.mrb[0].mxu0 %v929
  %v2825 = vpop.f32.mrb[0].mxu0
  %v2826 = vadd.f32 %v2545, %v2825
  %v2827 = vpop.f32.mrb[0].mxu0
  %v2828 = vadd.f32 %v2547, %v2827
  %v2829 = vpop.f32.mrb[0].mxu0
  %v2830 = vadd.f32 %v2549, %v2829
  %v2831 = vpop.f32.mrb[0].mxu0
  %v2832 = vadd.f32 %v2551, %v2831
  %2833 = vmatprep.mubr.bf16.mxu0 %v1863
  %2834 = vmatmul.mubr.bf16.gmra.mrb[0].mxu0 %v937
  %v2835 = vpop.f32.mrb[0].mxu0
  %v2836 = vadd.f32 %v2555, %v2835
  %v2837 = vpop.f32.mrb[0].mxu0
  %v2838 = vadd.f32 %v2557, %v2837
  %v2839 = vpop.f32.mrb[0].mxu0
  %v2840 = vadd.f32 %v2559, %v2839
  %v2841 = vpop.f32.mrb[0].mxu0
  %v2842 = vadd.f32 %v2561, %v2841
  %2843 = vmatprep.mubr.bf16.mxu0 %v1866
  %2844 = vmatmul.mubr.bf16.gmra.mrb[0].mxu0 %v945
  %v2845 = vpop.f32.mrb[0].mxu0
  %v2846 = vadd.f32 %v2565, %v2845
  %v2847 = vpop.f32.mrb[0].mxu0
  %v2848 = vadd.f32 %v2567, %v2847
  %v2849 = vpop.f32.mrb[0].mxu0
  %v2850 = vadd.f32 %v2569, %v2849
  %v2851 = vpop.f32.mrb[0].mxu0
  %v2852 = vadd.f32 %v2571, %v2851
  %2853 = vmatprep.mubr.bf16.mxu0 %v1869
  %2854 = vmatmul.mubr.bf16.gmra.mrb[0].mxu0 %v953
  %v2855 = vpop.f32.mrb[0].mxu0
  %v2856 = vadd.f32 %v2575, %v2855
  %v2857 = vpop.f32.mrb[0].mxu0
  %v2858 = vadd.f32 %v2577, %v2857
  %v2859 = vpop.f32.mrb[0].mxu0
  %v2860 = vadd.f32 %v2579, %v2859
  %v2861 = vpop.f32.mrb[0].mxu0
  %v2862 = vadd.f32 %v2581, %v2861
  %2863 = vmatprep.mubr.bf16.mxu0 %v1872
  %2864 = vmatmul.mubr.bf16.gmra.mrb[0].mxu0 %v961
  %v2865 = vpop.f32.mrb[0].mxu0
  %v2866 = vadd.f32 %v2585, %v2865
  %v2867 = vpop.f32.mrb[0].mxu0
  %v2868 = vadd.f32 %v2587, %v2867
  %v2869 = vpop.f32.mrb[0].mxu0
  %v2870 = vadd.f32 %v2589, %v2869
  %v2871 = vpop.f32.mrb[0].mxu0
  %v2872 = vadd.f32 %v2591, %v2871
  %2873 = vmatprep.mubr.bf16.mxu0 %v1875
  %2874 = vmatmul.mubr.bf16.gmra.mrb[0].mxu0 %v969
  %v2875 = vpop.f32.mrb[0].mxu0
  %v2876 = vadd.f32 %v2595, %v2875
  %v2877 = vpop.f32.mrb[0].mxu0
  %v2878 = vadd.f32 %v2597, %v2877
  %v2879 = vpop.f32.mrb[0].mxu0
  %v2880 = vadd.f32 %v2599, %v2879
  %v2881 = vpop.f32.mrb[0].mxu0
  %v2882 = vadd.f32 %v2601, %v2881
  %2883 = vmatprep.mubr.bf16.mxu0 %v1878
  %2884 = vmatmul.mubr.bf16.gmra.mrb[0].mxu0 %v977
  %v2885 = vpop.f32.mrb[0].mxu0
  %v2886 = vadd.f32 %v2605, %v2885
  %v2887 = vpop.f32.mrb[0].mxu0
  %v2888 = vadd.f32 %v2607, %v2887
  %v2889 = vpop.f32.mrb[0].mxu0
  %v2890 = vadd.f32 %v2609, %v2889
  %v2891 = vpop.f32.mrb[0].mxu0
  %v2892 = vadd.f32 %v2611, %v2891
  %2893 = vmatprep.mubr.bf16.mxu0 %v1881
  %2894 = vmatmul.mubr.bf16.gmra.mrb[0].mxu0 %v985
  %v2895 = vpop.f32.mrb[0].mxu0
  %v2896 = vadd.f32 %v2615, %v2895
  %v2897 = vpop.f32.mrb[0].mxu0
  %v2898 = vadd.f32 %v2617, %v2897
  %v2899 = vpop.f32.mrb[0].mxu0
  %v2900 = vadd.f32 %v2619, %v2899
  %v2901 = vpop.f32.mrb[0].mxu0
  %v2902 = vadd.f32 %v2621, %v2901
  %2903 = vmatprep.mubr.bf16.mxu0 %v1884
  %2904 = vmatmul.mubr.bf16.gmra.mrb[0].mxu0 %v993
  %v2905 = vpop.f32.mrb[0].mxu0
  %v2906 = vadd.f32 %v2625, %v2905
  %v2907 = vpop.f32.mrb[0].mxu0
  %v2908 = vadd.f32 %v2627, %v2907
  %v2909 = vpop.f32.mrb[0].mxu0
  %v2910 = vadd.f32 %v2629, %v2909
  %v2911 = vpop.f32.mrb[0].mxu0
  %v2912 = vadd.f32 %v2631, %v2911
  %2913 = vmatprep.mubr.bf16.mxu0 %v1887
  %2914 = vmatmul.mubr.bf16.gmra.mrb[0].mxu0 %v1001
  %v2915 = vpop.f32.mrb[0].mxu0
  %v2916 = vadd.f32 %v2635, %v2915
  %v2917 = vpop.f32.mrb[0].mxu0
  %v2918 = vadd.f32 %v2637, %v2917
  %v2919 = vpop.f32.mrb[0].mxu0
  %v2920 = vadd.f32 %v2639, %v2919
  %v2921 = vpop.f32.mrb[0].mxu0
  %v2922 = vadd.f32 %v2641, %v2921
  %2923 = vmatprep.mubr.bf16.mxu0 %v1890
  %2924 = vmatmul.mubr.bf16.gmra.mrb[0].mxu0 %v1009
  %v2925 = vpop.f32.mrb[0].mxu0
  %v2926 = vadd.f32 %v2645, %v2925
  %v2927 = vpop.f32.mrb[0].mxu0
  %v2928 = vadd.f32 %v2647, %v2927
  %v2929 = vpop.f32.mrb[0].mxu0
  %v2930 = vadd.f32 %v2649, %v2929
  %v2931 = vpop.f32.mrb[0].mxu0
  %v2932 = vadd.f32 %v2651, %v2931
  %2933 = vmatprep.mubr.bf16.mxu0 %v1893
  %2934 = vmatmul.mubr.bf16.gmra.mrb[0].mxu0 %v1017
  %v2935 = vpop.f32.mrb[0].mxu0
  %v2936 = vadd.f32 %v2655, %v2935
  %v2937 = vpop.f32.mrb[0].mxu0
  %v2938 = vadd.f32 %v2657, %v2937
  %v2939 = vpop.f32.mrb[0].mxu0
  %v2940 = vadd.f32 %v2659, %v2939
  %v2941 = vpop.f32.mrb[0].mxu0
  %v2942 = vadd.f32 %v2661, %v2941
  %2943 = vmatprep.mubr.bf16.mxu0 %v1896
  %2944 = vmatmul.mubr.bf16.gmra.mrb[0].mxu0 %v1025
  %v2945 = vpop.f32.mrb[0].mxu0
  %v2946 = vadd.f32 %v2665, %v2945
  %v2947 = vpop.f32.mrb[0].mxu0
  %v2948 = vadd.f32 %v2667, %v2947
  %v2949 = vpop.f32.mrb[0].mxu0
  %v2950 = vadd.f32 %v2669, %v2949
  %v2951 = vpop.f32.mrb[0].mxu0
  %v2952 = vadd.f32 %v2671, %v2951
  %2953 = vmatprep.mubr.bf16.mxu0 %v1899
  %2954 = vmatmul.mubr.bf16.gmra.mrb[0].mxu0 %v1033
  %v2955 = vpop.f32.mrb[0].mxu0
  %v2956 = vadd.f32 %v2675, %v2955
  %v2957 = vpop.f32.mrb[0].mxu0
  %v2958 = vadd.f32 %v2677, %v2957
  %v2959 = vpop.f32.mrb[0].mxu0
  %v2960 = vadd.f32 %v2679, %v2959
  %v2961 = vpop.f32.mrb[0].mxu0
  %v2962 = vadd.f32 %v2681, %v2961
  %2963 = vmatprep.mubr.bf16.mxu0 %v1902
  %2964 = vmatmul.mubr.bf16.gmra.mrb[0].mxu0 %v1041
  %v2965 = vpop.f32.mrb[0].mxu0
  %v2966 = vadd.f32 %v2685, %v2965
  %v2967 = vpop.f32.mrb[0].mxu0
  %v2968 = vadd.f32 %v2687, %v2967
  %v2969 = vpop.f32.mrb[0].mxu0
  %v2970 = vadd.f32 %v2689, %v2969
  %v2971 = vpop.f32.mrb[0].mxu0
  %v2972 = vadd.f32 %v2691, %v2971
  %2973 = vmatprep.mubr.bf16.mxu0 %v1905
  %2974 = vmatmul.mubr.bf16.gmra.mrb[0].mxu0 %v1049
  %v2975 = vpop.f32.mrb[0].mxu0
  %v2976 = vadd.f32 %v2695, %v2975
  %v2977 = vpop.f32.mrb[0].mxu0
  %v2978 = vadd.f32 %v2697, %v2977
  %v2979 = vpop.f32.mrb[0].mxu0
  %v2980 = vadd.f32 %v2699, %v2979
  %v2981 = vpop.f32.mrb[0].mxu0
  %v2982 = vadd.f32 %v2701, %v2981
  %2983 = vmatprep.mubr.bf16.mxu0 %v1908
  %2984 = vmatmul.mubr.bf16.gmra.mrb[0].mxu0 %v1057
  %v2985 = vpop.f32.mrb[0].mxu0
  %v2986 = vadd.f32 %v2705, %v2985
  %v2987 = vpop.f32.mrb[0].mxu0
  %v2988 = vadd.f32 %v2707, %v2987
  %v2989 = vpop.f32.mrb[0].mxu0
  %v2990 = vadd.f32 %v2709, %v2989
  %v2991 = vpop.f32.mrb[0].mxu0
  %v2992 = vadd.f32 %v2711, %v2991
  %2993 = vmatprep.mubr.bf16.mxu0 %v1911
  %2994 = vmatmul.mubr.bf16.gmra.mrb[0].mxu0 %v1065
  %v2995 = vpop.f32.mrb[0].mxu0
  %v2996 = vadd.f32 %v2715, %v2995
  %v2997 = vpop.f32.mrb[0].mxu0
  %v2998 = vadd.f32 %v2717, %v2997
  %v2999 = vpop.f32.mrb[0].mxu0
  %v3000 = vadd.f32 %v2719, %v2999
  %v3001 = vpop.f32.mrb[0].mxu0
  %v3002 = vadd.f32 %v2721, %v3001
  %3003 = vmatprep.mubr.bf16.mxu0 %v1914
  %3004 = vmatmul.mubr.bf16.gmra.mrb[0].mxu0 %v1073
  %v3005 = vpop.f32.mrb[0].mxu0
  %v3006 = vadd.f32 %v2725, %v3005
  %v3007 = vpop.f32.mrb[0].mxu0
  %v3008 = vadd.f32 %v2727, %v3007
  %v3009 = vpop.f32.mrb[0].mxu0
  %v3010 = vadd.f32 %v2729, %v3009
  %v3011 = vpop.f32.mrb[0].mxu0
  %v3012 = vadd.f32 %v2731, %v3011
  %3013 = vmatprep.mubr.bf16.mxu0 %v1917
  %3014 = vmatmul.mubr.bf16.gmra.mrb[0].mxu0 %v1081
  %v3015 = vpop.f32.mrb[0].mxu0
  %v3016 = vadd.f32 %v2735, %v3015
  %v3017 = vpop.f32.mrb[0].mxu0
  %v3018 = vadd.f32 %v2737, %v3017
  %v3019 = vpop.f32.mrb[0].mxu0
  %v3020 = vadd.f32 %v2739, %v3019
  %v3021 = vpop.f32.mrb[0].mxu0
  %v3022 = vadd.f32 %v2741, %v3021
  %3023 = vmatprep.mubr.bf16.mxu0 %v1920
  %3024 = vmatmul.mubr.bf16.gmra.mrb[0].mxu0 %v1089
  %v3025 = vpop.f32.mrb[0].mxu0
  %v3026 = vadd.f32 %v2745, %v3025
  %v3027 = vpop.f32.mrb[0].mxu0
  %v3028 = vadd.f32 %v2747, %v3027
  %v3029 = vpop.f32.mrb[0].mxu0
  %v3030 = vadd.f32 %v2749, %v3029
  %v3031 = vpop.f32.mrb[0].mxu0
  %v3032 = vadd.f32 %v2751, %v3031
  %3033 = vmatprep.mubr.bf16.mxu0 %v1923
  %3034 = vmatmul.mubr.bf16.gmra.mrb[0].mxu0 %v1097
  %v3035 = vpop.f32.mrb[0].mxu0
  %v3036 = vadd.f32 %v2755, %v3035
  %v3037 = vpop.f32.mrb[0].mxu0
  %v3038 = vadd.f32 %v2757, %v3037
  %v3039 = vpop.f32.mrb[0].mxu0
  %v3040 = vadd.f32 %v2759, %v3039
  %v3041 = vpop.f32.mrb[0].mxu0
  %v3042 = vadd.f32 %v2761, %v3041
  %3043 = vmatprep.mubr.bf16.mxu0 %v1926
  %3044 = vmatmul.mubr.bf16.gmra.mrb[0].mxu0 %v1105
  %v3045 = vpop.f32.mrb[0].mxu0
  %v3046 = vadd.f32 %v2765, %v3045
  %v3047 = vpop.f32.mrb[0].mxu0
  %v3048 = vadd.f32 %v2767, %v3047
  %v3049 = vpop.f32.mrb[0].mxu0
  %v3050 = vadd.f32 %v2769, %v3049
  %v3051 = vpop.f32.mrb[0].mxu0
  %v3052 = vadd.f32 %v2771, %v3051
  %3053 = vmatprep.mubr.bf16.mxu0 %v1929
  %3054 = vmatmul.mubr.bf16.gmra.mrb[0].mxu0 %v1113
  %v3055 = vpop.f32.mrb[0].mxu0
  %v3056 = vadd.f32 %v2775, %v3055
  %v3057 = vpop.f32.mrb[0].mxu0
  %v3058 = vadd.f32 %v2777, %v3057
  %v3059 = vpop.f32.mrb[0].mxu0
  %v3060 = vpop.f32.mrb[0].mxu0
  %3061 = vdwg.mxu0
  %v3062 = vld [vmem:[%s2] sm:$0x3]
  %v3064 = vlaneseq
  %v3065 = vshrl.u32 %v3064, 7
  %v3066 = vsub.s32 0, %v3065
  %v3067 = vrot.slane %v3062, %v3066
  %v3068 = vlaneseq
  %v3069 = vshrl.u32 %v3068, 7
  %v3070 = vsub.s32 1, %v3069
  %v3071 = vrot.slane %v3062, %v3070
  %v3074 = vmul.f32 %v2816, %v3067
  %v3075 = vmul.f32 %v2818, %v3071
  %v3076 = vmul.f32 %v2820, %v3067
  %v3077 = vmul.f32 %v2822, %v3071
  %v3078 = vmul.f32 %v2826, %v3067
  %v3079 = vmul.f32 %v2828, %v3071
  %v3080 = vmul.f32 %v2830, %v3067
  %v3081 = vmul.f32 %v2832, %v3071
  %v3082 = vmul.f32 %v2836, %v3067
  %v3083 = vmul.f32 %v2838, %v3071
  %v3084 = vmul.f32 %v2840, %v3067
  %v3085 = vmul.f32 %v2842, %v3071
  %v3086 = vmul.f32 %v2846, %v3067
  %v3087 = vmul.f32 %v2848, %v3071
  %v3088 = vmul.f32 %v2850, %v3067
  %v3089 = vmul.f32 %v2852, %v3071
  %v3090 = vmul.f32 %v2856, %v3067
  %v3091 = vmul.f32 %v2858, %v3071
  %v3092 = vmul.f32 %v2860, %v3067
  %v3093 = vmul.f32 %v2862, %v3071
  %v3094 = vmul.f32 %v2866, %v3067
  %v3095 = vmul.f32 %v2868, %v3071
  %v3096 = vmul.f32 %v2870, %v3067
  %v3097 = vmul.f32 %v2872, %v3071
  %v3098 = vmul.f32 %v2876, %v3067
  %v3099 = vmul.f32 %v2878, %v3071
  %v3100 = vmul.f32 %v2880, %v3067
  %v3101 = vmul.f32 %v2882, %v3071
  %v3102 = vmul.f32 %v2886, %v3067
  %v3103 = vmul.f32 %v2888, %v3071
  %v3104 = vmul.f32 %v2890, %v3067
  %v3105 = vmul.f32 %v2892, %v3071
  %v3106 = vmul.f32 %v2896, %v3067
  %v3107 = vmul.f32 %v2898, %v3071
  %v3108 = vmul.f32 %v2900, %v3067
  %v3109 = vmul.f32 %v2902, %v3071
  %v3110 = vmul.f32 %v2906, %v3067
  %v3111 = vmul.f32 %v2908, %v3071
  %v3112 = vmul.f32 %v2910, %v3067
  %v3113 = vmul.f32 %v2912, %v3071
  %v3114 = vmul.f32 %v2916, %v3067
  %v3115 = vmul.f32 %v2918, %v3071
  %v3116 = vmul.f32 %v2920, %v3067
  %v3117 = vmul.f32 %v2922, %v3071
  %v3118 = vmul.f32 %v2926, %v3067
  %v3119 = vmul.f32 %v2928, %v3071
  %v3120 = vmul.f32 %v2930, %v3067
  %v3121 = vmul.f32 %v2932, %v3071
  %v3122 = vmul.f32 %v2936, %v3067
  %v3123 = vmul.f32 %v2938, %v3071
  %v3124 = vmul.f32 %v2940, %v3067
  %v3125 = vmul.f32 %v2942, %v3071
  %v3126 = vmul.f32 %v2946, %v3067
  %v3127 = vmul.f32 %v2948, %v3071
  %v3128 = vmul.f32 %v2950, %v3067
  %v3129 = vmul.f32 %v2952, %v3071
  %v3130 = vmul.f32 %v2956, %v3067
  %v3131 = vmul.f32 %v2958, %v3071
  %v3132 = vmul.f32 %v2960, %v3067
  %v3133 = vmul.f32 %v2962, %v3071
  %v3134 = vmul.f32 %v2966, %v3067
  %v3135 = vmul.f32 %v2968, %v3071
  %v3136 = vmul.f32 %v2970, %v3067
  %v3137 = vmul.f32 %v2972, %v3071
  %v3138 = vmul.f32 %v2976, %v3067
  %v3139 = vmul.f32 %v2978, %v3071
  %v3140 = vmul.f32 %v2980, %v3067
  %v3141 = vmul.f32 %v2982, %v3071
  %v3142 = vmul.f32 %v2986, %v3067
  %v3143 = vmul.f32 %v2988, %v3071
  %v3144 = vmul.f32 %v2990, %v3067
  %v3145 = vmul.f32 %v2992, %v3071
  %v3146 = vmul.f32 %v2996, %v3067
  %v3147 = vmul.f32 %v2998, %v3071
  %v3148 = vmul.f32 %v3000, %v3067
  %v3149 = vmul.f32 %v3002, %v3071
  %v3150 = vmul.f32 %v3006, %v3067
  %v3151 = vmul.f32 %v3008, %v3071
  %v3152 = vmul.f32 %v3010, %v3067
  %v3153 = vmul.f32 %v3012, %v3071
  %v3154 = vmul.f32 %v3016, %v3067
  %v3155 = vmul.f32 %v3018, %v3071
  %v3156 = vmul.f32 %v3020, %v3067
  %v3157 = vmul.f32 %v3022, %v3071
  %v3158 = vmul.f32 %v3026, %v3067
  %v3159 = vmul.f32 %v3028, %v3071
  %v3160 = vmul.f32 %v3030, %v3067
  %v3161 = vmul.f32 %v3032, %v3071
  %v3162 = vmul.f32 %v3036, %v3067
  %v3163 = vmul.f32 %v3038, %v3071
  %v3164 = vmul.f32 %v3040, %v3067
  %v3165 = vmul.f32 %v3042, %v3071
  %v3166 = vmul.f32 %v3046, %v3067
  %v3167 = vmul.f32 %v3048, %v3071
  %v3168 = vmul.f32 %v3050, %v3067
  %v3169 = vmul.f32 %v3052, %v3071
  %v3170 = vmul.f32 %v3056, %v3067
  %v3171 = vmul.f32 %v3058, %v3071
  %v3172 = vld [vmem:[%s3] sm:$0x3]
  %v3174 = vlaneseq
  %v3175 = vshrl.u32 %v3174, 7
  %v3176 = vsub.s32 0, %v3175
  %v3177 = vrot.slane %v3172, %v3176
  %v3178 = vlaneseq
  %v3179 = vshrl.u32 %v3178, 7
  %v3180 = vsub.s32 1, %v3179
  %v3181 = vrot.slane %v3172, %v3180
  %v3184 = vadd.f32 %v3074, %v3177
  %v3185 = vadd.f32 %v3075, %v3181
  %v3186 = vadd.f32 %v3076, %v3177
  %v3187 = vadd.f32 %v3077, %v3181
  %v3188 = vadd.f32 %v3078, %v3177
  %v3189 = vadd.f32 %v3079, %v3181
  %v3190 = vadd.f32 %v3080, %v3177
  %v3191 = vadd.f32 %v3081, %v3181
  %v3192 = vadd.f32 %v3082, %v3177
  %v3193 = vadd.f32 %v3083, %v3181
  %v3194 = vadd.f32 %v3084, %v3177
  %v3195 = vadd.f32 %v3085, %v3181
  %v3196 = vadd.f32 %v3086, %v3177
  %v3197 = vadd.f32 %v3087, %v3181
  %v3198 = vadd.f32 %v3088, %v3177
  %v3199 = vadd.f32 %v3089, %v3181
  %v3200 = vadd.f32 %v3090, %v3177
  %v3201 = vadd.f32 %v3091, %v3181
  %v3202 = vadd.f32 %v3092, %v3177
  %v3203 = vadd.f32 %v3093, %v3181
  %v3204 = vadd.f32 %v3094, %v3177
  %v3205 = vadd.f32 %v3095, %v3181
  %v3206 = vadd.f32 %v3096, %v3177
  %v3207 = vadd.f32 %v3097, %v3181
  %v3208 = vadd.f32 %v3098, %v3177
  %v3209 = vadd.f32 %v3099, %v3181
  %v3210 = vadd.f32 %v3100, %v3177
  %v3211 = vadd.f32 %v3101, %v3181
  %v3212 = vadd.f32 %v3102, %v3177
  %v3213 = vadd.f32 %v3103, %v3181
  %v3214 = vadd.f32 %v3104, %v3177
  %v3215 = vadd.f32 %v3105, %v3181
  %v3216 = vadd.f32 %v3106, %v3177
  %v3217 = vadd.f32 %v3107, %v3181
  %v3218 = vadd.f32 %v3108, %v3177
  %v3219 = vadd.f32 %v3109, %v3181
  %v3220 = vadd.f32 %v3110, %v3177
  %v3221 = vadd.f32 %v3111, %v3181
  %v3222 = vadd.f32 %v3112, %v3177
  %v3223 = vadd.f32 %v3113, %v3181
  %v3224 = vadd.f32 %v3114, %v3177
  %v3225 = vadd.f32 %v3115, %v3181
  %v3226 = vadd.f32 %v3116, %v3177
  %v3227 = vadd.f32 %v3117, %v3181
  %v3228 = vadd.f32 %v3118, %v3177
  %v3229 = vadd.f32 %v3119, %v3181
  %v3230 = vadd.f32 %v3120, %v3177
  %v3231 = vadd.f32 %v3121, %v3181
  %v3232 = vadd.f32 %v3122, %v3177
  %v3233 = vadd.f32 %v3123, %v3181
  %v3234 = vadd.f32 %v3124, %v3177
  %v3235 = vadd.f32 %v3125, %v3181
  %v3236 = vadd.f32 %v3126, %v3177
  %v3237 = vadd.f32 %v3127, %v3181
  %v3238 = vadd.f32 %v3128, %v3177
  %v3239 = vadd.f32 %v3129, %v3181
  %v3240 = vadd.f32 %v3130, %v3177
  %v3241 = vadd.f32 %v3131, %v3181
  %v3242 = vadd.f32 %v3132, %v3177
  %v3243 = vadd.f32 %v3133, %v3181
  %v3244 = vadd.f32 %v3134, %v3177
  %v3245 = vadd.f32 %v3135, %v3181
  %v3246 = vadd.f32 %v3136, %v3177
  %v3247 = vadd.f32 %v3137, %v3181
  %v3248 = vadd.f32 %v3138, %v3177
  %v3249 = vadd.f32 %v3139, %v3181
  %v3250 = vadd.f32 %v3140, %v3177
  %v3251 = vadd.f32 %v3141, %v3181
  %v3252 = vadd.f32 %v3142, %v3177
  %v3253 = vadd.f32 %v3143, %v3181
  %v3254 = vadd.f32 %v3144, %v3177
  %v3255 = vadd.f32 %v3145, %v3181
  %v3256 = vadd.f32 %v3146, %v3177
  %v3257 = vadd.f32 %v3147, %v3181
  %v3258 = vadd.f32 %v3148, %v3177
  %v3259 = vadd.f32 %v3149, %v3181
  %v3260 = vadd.f32 %v3150, %v3177
  %v3261 = vadd.f32 %v3151, %v3181
  %v3262 = vadd.f32 %v3152, %v3177
  %v3263 = vadd.f32 %v3153, %v3181
  %v3264 = vadd.f32 %v3154, %v3177
  %v3265 = vadd.f32 %v3155, %v3181
  %v3266 = vadd.f32 %v3156, %v3177
  %v3267 = vadd.f32 %v3157, %v3181
  %v3268 = vadd.f32 %v3158, %v3177
  %v3269 = vadd.f32 %v3159, %v3181
  %v3270 = vadd.f32 %v3160, %v3177
  %v3271 = vadd.f32 %v3161, %v3181
  %v3272 = vadd.f32 %v3162, %v3177
  %v3273 = vadd.f32 %v3163, %v3181
  %v3274 = vadd.f32 %v3164, %v3177
  %v3275 = vadd.f32 %v3165, %v3181
  %v3276 = vadd.f32 %v3166, %v3177
  %v3277 = vadd.f32 %v3167, %v3181
  %v3278 = vadd.f32 %v3168, %v3177
  %v3279 = vadd.f32 %v3169, %v3181
  %v3280 = vadd.f32 %v3170, %v3177
  %v3281 = vadd.f32 %v3171, %v3181
  %vm3282 = vcmp.ge.f32.partialorder %v3184, 0.0
  %vm3283 = vcmp.ge.f32.partialorder %v3185, 0.0
  %vm3284 = vcmp.ge.f32.partialorder %v3186, 0.0
  %vm3285 = vcmp.ge.f32.partialorder %v3187, 0.0
  %vm3286 = vcmp.ge.f32.partialorder %v3188, 0.0
  %vm3287 = vcmp.ge.f32.partialorder %v3189, 0.0
  %vm3288 = vcmp.ge.f32.partialorder %v3190, 0.0
  %vm3289 = vcmp.ge.f32.partialorder %v3191, 0.0
  %vm3290 = vcmp.ge.f32.partialorder %v3192, 0.0
  %vm3291 = vcmp.ge.f32.partialorder %v3193, 0.0
  %vm3292 = vcmp.ge.f32.partialorder %v3194, 0.0
  %vm3293 = vcmp.ge.f32.partialorder %v3195, 0.0
  %vm3294 = vcmp.ge.f32.partialorder %v3196, 0.0
  %vm3295 = vcmp.ge.f32.partialorder %v3197, 0.0
  %vm3296 = vcmp.ge.f32.partialorder %v3198, 0.0
  %vm3297 = vcmp.ge.f32.partialorder %v3199, 0.0
  %vm3298 = vcmp.ge.f32.partialorder %v3200, 0.0
  %vm3299 = vcmp.ge.f32.partialorder %v3201, 0.0
  %vm3300 = vcmp.ge.f32.partialorder %v3202, 0.0
  %vm3301 = vcmp.ge.f32.partialorder %v3203, 0.0
  %vm3302 = vcmp.ge.f32.partialorder %v3204, 0.0
  %vm3303 = vcmp.ge.f32.partialorder %v3205, 0.0
  %vm3304 = vcmp.ge.f32.partialorder %v3206, 0.0
  %vm3305 = vcmp.ge.f32.partialorder %v3207, 0.0
  %vm3306 = vcmp.ge.f32.partialorder %v3208, 0.0
  %vm3307 = vcmp.ge.f32.partialorder %v3209, 0.0
  %vm3308 = vcmp.ge.f32.partialorder %v3210, 0.0
  %vm3309 = vcmp.ge.f32.partialorder %v3211, 0.0
  %vm3310 = vcmp.ge.f32.partialorder %v3212, 0.0
  %vm3311 = vcmp.ge.f32.partialorder %v3213, 0.0
  %vm3312 = vcmp.ge.f32.partialorder %v3214, 0.0
  %vm3313 = vcmp.ge.f32.partialorder %v3215, 0.0
  %vm3314 = vcmp.ge.f32.partialorder %v3216, 0.0
  %vm3315 = vcmp.ge.f32.partialorder %v3217, 0.0
  %vm3316 = vcmp.ge.f32.partialorder %v3218, 0.0
  %vm3317 = vcmp.ge.f32.partialorder %v3219, 0.0
  %vm3318 = vcmp.ge.f32.partialorder %v3220, 0.0
  %vm3319 = vcmp.ge.f32.partialorder %v3221, 0.0
  %vm3320 = vcmp.ge.f32.partialorder %v3222, 0.0
  %vm3321 = vcmp.ge.f32.partialorder %v3223, 0.0
  %vm3322 = vcmp.ge.f32.partialorder %v3224, 0.0
  %vm3323 = vcmp.ge.f32.partialorder %v3225, 0.0
  %vm3324 = vcmp.ge.f32.partialorder %v3226, 0.0
  %vm3325 = vcmp.ge.f32.partialorder %v3227, 0.0
  %vm3326 = vcmp.ge.f32.partialorder %v3228, 0.0
  %vm3327 = vcmp.ge.f32.partialorder %v3229, 0.0
  %vm3328 = vcmp.ge.f32.partialorder %v3230, 0.0
  %vm3329 = vcmp.ge.f32.partialorder %v3231, 0.0
  %vm3330 = vcmp.ge.f32.partialorder %v3232, 0.0
  %vm3331 = vcmp.ge.f32.partialorder %v3233, 0.0
  %vm3332 = vcmp.ge.f32.partialorder %v3234, 0.0
  %vm3333 = vcmp.ge.f32.partialorder %v3235, 0.0
  %vm3334 = vcmp.ge.f32.partialorder %v3236, 0.0
  %vm3335 = vcmp.ge.f32.partialorder %v3237, 0.0
  %vm3336 = vcmp.ge.f32.partialorder %v3238, 0.0
  %vm3337 = vcmp.ge.f32.partialorder %v3239, 0.0
  %vm3338 = vcmp.ge.f32.partialorder %v3240, 0.0
  %vm3339 = vcmp.ge.f32.partialorder %v3241, 0.0
  %vm3340 = vcmp.ge.f32.partialorder %v3242, 0.0
  %vm3341 = vcmp.ge.f32.partialorder %v3243, 0.0
  %vm3342 = vcmp.ge.f32.partialorder %v3244, 0.0
  %vm3343 = vcmp.ge.f32.partialorder %v3245, 0.0
  %vm3344 = vcmp.ge.f32.partialorder %v3246, 0.0
  %vm3345 = vcmp.ge.f32.partialorder %v3247, 0.0
  %vm3346 = vcmp.ge.f32.partialorder %v3248, 0.0
  %vm3347 = vcmp.ge.f32.partialorder %v3249, 0.0
  %vm3348 = vcmp.ge.f32.partialorder %v3250, 0.0
  %vm3349 = vcmp.ge.f32.partialorder %v3251, 0.0
  %vm3350 = vcmp.ge.f32.partialorder %v3252, 0.0
  %vm3351 = vcmp.ge.f32.partialorder %v3253, 0.0
  %vm3352 = vcmp.ge.f32.partialorder %v3254, 0.0
  %vm3353 = vcmp.ge.f32.partialorder %v3255, 0.0
  %vm3354 = vcmp.ge.f32.partialorder %v3256, 0.0
  %vm3355 = vcmp.ge.f32.partialorder %v3257, 0.0
  %vm3356 = vcmp.ge.f32.partialorder %v3258, 0.0
  %vm3357 = vcmp.ge.f32.partialorder %v3259, 0.0
  %vm3358 = vcmp.ge.f32.partialorder %v3260, 0.0
  %vm3359 = vcmp.ge.f32.partialorder %v3261, 0.0
  %vm3360 = vcmp.ge.f32.partialorder %v3262, 0.0
  %vm3361 = vcmp.ge.f32.partialorder %v3263, 0.0
  %vm3362 = vcmp.ge.f32.partialorder %v3264, 0.0
  %vm3363 = vcmp.ge.f32.partialorder %v3265, 0.0
  %vm3364 = vcmp.ge.f32.partialorder %v3266, 0.0
  %vm3365 = vcmp.ge.f32.partialorder %v3267, 0.0
  %vm3366 = vcmp.ge.f32.partialorder %v3268, 0.0
  %vm3367 = vcmp.ge.f32.partialorder %v3269, 0.0
  %vm3368 = vcmp.ge.f32.partialorder %v3270, 0.0
  %vm3369 = vcmp.ge.f32.partialorder %v3271, 0.0
  %vm3370 = vcmp.ge.f32.partialorder %v3272, 0.0
  %vm3371 = vcmp.ge.f32.partialorder %v3273, 0.0
  %vm3372 = vcmp.ge.f32.partialorder %v3274, 0.0
  %vm3373 = vcmp.ge.f32.partialorder %v3275, 0.0
  %vm3374 = vcmp.ge.f32.partialorder %v3276, 0.0
  %vm3375 = vcmp.ge.f32.partialorder %v3277, 0.0
  %vm3376 = vcmp.ge.f32.partialorder %v3278, 0.0
  %vm3377 = vcmp.ge.f32.partialorder %v3279, 0.0
  %vm3378 = vcmp.ge.f32.partialorder %v3280, 0.0
  %vm3379 = vcmp.ge.f32.partialorder %v3281, 0.0
  %v3380 = vmul.f32 %v3184, 0.2
  %v3381 = vmul.f32 %v3185, 0.2
  %v3382 = vmul.f32 %v3186, 0.2
  %v3383 = vmul.f32 %v3187, 0.2
  %v3384 = vmul.f32 %v3188, 0.2
  %v3385 = vmul.f32 %v3189, 0.2
  %v3386 = vmul.f32 %v3190, 0.2
  %v3387 = vmul.f32 %v3191, 0.2
  %v3388 = vmul.f32 %v3192, 0.2
  %v3389 = vmul.f32 %v3193, 0.2
  %v3390 = vmul.f32 %v3194, 0.2
  %v3391 = vmul.f32 %v3195, 0.2
  %v3392 = vmul.f32 %v3196, 0.2
  %v3393 = vmul.f32 %v3197, 0.2
  %v3394 = vmul.f32 %v3198, 0.2
  %v3395 = vmul.f32 %v3199, 0.2
  %v3396 = vmul.f32 %v3200, 0.2
  %v3397 = vmul.f32 %v3201, 0.2
  %v3398 = vmul.f32 %v3202, 0.2
  %v3399 = vmul.f32 %v3203, 0.2
  %v3400 = vmul.f32 %v3204, 0.2
  %v3401 = vmul.f32 %v3205, 0.2
  %v3402 = vmul.f32 %v3206, 0.2
  %v3403 = vmul.f32 %v3207, 0.2
  %v3404 = vmul.f32 %v3208, 0.2
  %v3405 = vmul.f32 %v3209, 0.2
  %v3406 = vmul.f32 %v3210, 0.2
  %v3407 = vmul.f32 %v3211, 0.2
  %v3408 = vmul.f32 %v3212, 0.2
  %v3409 = vmul.f32 %v3213, 0.2
  %v3410 = vmul.f32 %v3214, 0.2
  %v3411 = vmul.f32 %v3215, 0.2
  %v3412 = vmul.f32 %v3216, 0.2
  %v3413 = vmul.f32 %v3217, 0.2
  %v3414 = vmul.f32 %v3218, 0.2
  %v3415 = vmul.f32 %v3219, 0.2
  %v3416 = vmul.f32 %v3220, 0.2
  %v3417 = vmul.f32 %v3221, 0.2
  %v3418 = vmul.f32 %v3222, 0.2
  %v3419 = vmul.f32 %v3223, 0.2
  %v3420 = vmul.f32 %v3224, 0.2
  %v3421 = vmul.f32 %v3225, 0.2
  %v3422 = vmul.f32 %v3226, 0.2
  %v3423 = vmul.f32 %v3227, 0.2
  %v3424 = vmul.f32 %v3228, 0.2
  %v3425 = vmul.f32 %v3229, 0.2
  %v3426 = vmul.f32 %v3230, 0.2
  %v3427 = vmul.f32 %v3231, 0.2
  %v3428 = vmul.f32 %v3232, 0.2
  %v3429 = vmul.f32 %v3233, 0.2
  %v3430 = vmul.f32 %v3234, 0.2
  %v3431 = vmul.f32 %v3235, 0.2
  %v3432 = vmul.f32 %v3236, 0.2
  %v3433 = vmul.f32 %v3237, 0.2
  %v3434 = vmul.f32 %v3238, 0.2
  %v3435 = vmul.f32 %v3239, 0.2
  %v3436 = vmul.f32 %v3240, 0.2
  %v3437 = vmul.f32 %v3241, 0.2
  %v3438 = vmul.f32 %v3242, 0.2
  %v3439 = vmul.f32 %v3243, 0.2
  %v3440 = vmul.f32 %v3244, 0.2
  %v3441 = vmul.f32 %v3245, 0.2
  %v3442 = vmul.f32 %v3246, 0.2
  %v3443 = vmul.f32 %v3247, 0.2
  %v3444 = vmul.f32 %v3248, 0.2
  %v3445 = vmul.f32 %v3249, 0.2
  %v3446 = vmul.f32 %v3250, 0.2
  %v3447 = vmul.f32 %v3251, 0.2
  %v3448 = vmul.f32 %v3252, 0.2
  %v3449 = vmul.f32 %v3253, 0.2
  %v3450 = vmul.f32 %v3254, 0.2
  %v3451 = vmul.f32 %v3255, 0.2
  %v3452 = vmul.f32 %v3256, 0.2
  %v3453 = vmul.f32 %v3257, 0.2
  %v3454 = vmul.f32 %v3258, 0.2
  %v3455 = vmul.f32 %v3259, 0.2
  %v3456 = vmul.f32 %v3260, 0.2
  %v3457 = vmul.f32 %v3261, 0.2
  %v3458 = vmul.f32 %v3262, 0.2
  %v3459 = vmul.f32 %v3263, 0.2
  %v3460 = vmul.f32 %v3264, 0.2
  %v3461 = vmul.f32 %v3265, 0.2
  %v3462 = vmul.f32 %v3266, 0.2
  %v3463 = vmul.f32 %v3267, 0.2
  %v3464 = vmul.f32 %v3268, 0.2
  %v3465 = vmul.f32 %v3269, 0.2
  %v3466 = vmul.f32 %v3270, 0.2
  %v3467 = vmul.f32 %v3271, 0.2
  %v3468 = vmul.f32 %v3272, 0.2
  %v3469 = vmul.f32 %v3273, 0.2
  %v3470 = vmul.f32 %v3274, 0.2
  %v3471 = vmul.f32 %v3275, 0.2
  %v3472 = vmul.f32 %v3276, 0.2
  %v3473 = vmul.f32 %v3277, 0.2
  %v3474 = vmul.f32 %v3278, 0.2
  %v3475 = vmul.f32 %v3279, 0.2
  %v3476 = vmul.f32 %v3280, 0.2
  %v3477 = vmul.f32 %v3281, 0.2
  %v3478 = vsel %vm3282, %v3184, %v3380
  %v3479 = vsel %vm3283, %v3185, %v3381
  %v3480 = vsel %vm3284, %v3186, %v3382
  %v3481 = vsel %vm3285, %v3187, %v3383
  %v3482 = vsel %vm3286, %v3188, %v3384
  %v3483 = vsel %vm3287, %v3189, %v3385
  %v3484 = vsel %vm3288, %v3190, %v3386
  %v3485 = vsel %vm3289, %v3191, %v3387
  %v3486 = vsel %vm3290, %v3192, %v3388
  %v3487 = vsel %vm3291, %v3193, %v3389
  %v3488 = vsel %vm3292, %v3194, %v3390
  %v3489 = vsel %vm3293, %v3195, %v3391
  %v3490 = vsel %vm3294, %v3196, %v3392
  %v3491 = vsel %vm3295, %v3197, %v3393
  %v3492 = vsel %vm3296, %v3198, %v3394
  %v3493 = vsel %vm3297, %v3199, %v3395
  %v3494 = vsel %vm3298, %v3200, %v3396
  %v3495 = vsel %vm3299, %v3201, %v3397
  %v3496 = vsel %vm3300, %v3202, %v3398
  %v3497 = vsel %vm3301, %v3203, %v3399
  %v3498 = vsel %vm3302, %v3204, %v3400
  %v3499 = vsel %vm3303, %v3205, %v3401
  %v3500 = vsel %vm3304, %v3206, %v3402
  %v3501 = vsel %vm3305, %v3207, %v3403
  %v3502 = vsel %vm3306, %v3208, %v3404
  %v3503 = vsel %vm3307, %v3209, %v3405
  %v3504 = vsel %vm3308, %v3210, %v3406
  %v3505 = vsel %vm3309, %v3211, %v3407
  %v3506 = vsel %vm3310, %v3212, %v3408
  %v3507 = vsel %vm3311, %v3213, %v3409
  %v3508 = vsel %vm3312, %v3214, %v3410
  %v3509 = vsel %vm3313, %v3215, %v3411
  %v3510 = vsel %vm3314, %v3216, %v3412
  %v3511 = vsel %vm3315, %v3217, %v3413
  %v3512 = vsel %vm3316, %v3218, %v3414
  %v3513 = vsel %vm3317, %v3219, %v3415
  %v3514 = vsel %vm3318, %v3220, %v3416
  %v3515 = vsel %vm3319, %v3221, %v3417
  %v3516 = vsel %vm3320, %v3222, %v3418
  %v3517 = vsel %vm3321, %v3223, %v3419
  %v3518 = vsel %vm3322, %v3224, %v3420
  %v3519 = vsel %vm3323, %v3225, %v3421
  %v3520 = vsel %vm3324, %v3226, %v3422
  %v3521 = vsel %vm3325, %v3227, %v3423
  %v3522 = vsel %vm3326, %v3228, %v3424
  %v3523 = vsel %vm3327, %v3229, %v3425
  %v3524 = vsel %vm3328, %v3230, %v3426
  %v3525 = vsel %vm3329, %v3231, %v3427
  %v3526 = vsel %vm3330, %v3232, %v3428
  %v3527 = vsel %vm3331, %v3233, %v3429
  %v3528 = vsel %vm3332, %v3234, %v3430
  %v3529 = vsel %vm3333, %v3235, %v3431
  %v3530 = vsel %vm3334, %v3236, %v3432
  %v3531 = vsel %vm3335, %v3237, %v3433
  %v3532 = vsel %vm3336, %v3238, %v3434
  %v3533 = vsel %vm3337, %v3239, %v3435
  %v3534 = vsel %vm3338, %v3240, %v3436
  %v3535 = vsel %vm3339, %v3241, %v3437
  %v3536 = vsel %vm3340, %v3242, %v3438
  %v3537 = vsel %vm3341, %v3243, %v3439
  %v3538 = vsel %vm3342, %v3244, %v3440
  %v3539 = vsel %vm3343, %v3245, %v3441
  %v3540 = vsel %vm3344, %v3246, %v3442
  %v3541 = vsel %vm3345, %v3247, %v3443
  %v3542 = vsel %vm3346, %v3248, %v3444
  %v3543 = vsel %vm3347, %v3249, %v3445
  %v3544 = vsel %vm3348, %v3250, %v3446
  %v3545 = vsel %vm3349, %v3251, %v3447
  %v3546 = vsel %vm3350, %v3252, %v3448
  %v3547 = vsel %vm3351, %v3253, %v3449
  %v3548 = vsel %vm3352, %v3254, %v3450
  %v3549 = vsel %vm3353, %v3255, %v3451
  %v3550 = vsel %vm3354, %v3256, %v3452
  %v3551 = vsel %vm3355, %v3257, %v3453
  %v3552 = vsel %vm3356, %v3258, %v3454
  %v3553 = vsel %vm3357, %v3259, %v3455
  %v3554 = vsel %vm3358, %v3260, %v3456
  %v3555 = vsel %vm3359, %v3261, %v3457
  %v3556 = vsel %vm3360, %v3262, %v3458
  %v3557 = vsel %vm3361, %v3263, %v3459
  %v3558 = vsel %vm3362, %v3264, %v3460
  %v3559 = vsel %vm3363, %v3265, %v3461
  %v3560 = vsel %vm3364, %v3266, %v3462
  %v3561 = vsel %vm3365, %v3267, %v3463
  %v3562 = vsel %vm3366, %v3268, %v3464
  %v3563 = vsel %vm3367, %v3269, %v3465
  %v3564 = vsel %vm3368, %v3270, %v3466
  %v3565 = vsel %vm3369, %v3271, %v3467
  %v3566 = vsel %vm3370, %v3272, %v3468
  %v3567 = vsel %vm3371, %v3273, %v3469
  %v3568 = vsel %vm3372, %v3274, %v3470
  %v3569 = vsel %vm3373, %v3275, %v3471
  %v3570 = vsel %vm3374, %v3276, %v3472
  %v3571 = vsel %vm3375, %v3277, %v3473
  %v3572 = vsel %vm3376, %v3278, %v3474
  %v3573 = vsel %vm3377, %v3279, %v3475
  %v3574 = vsel %vm3378, %v3280, %v3476
  %v3575 = vsel %vm3379, %v3281, %v3477
  %v3576 = vpack.c.bf16 %v3480, %v3478
  %v3577 = vpack.c.bf16 %v3481, %v3479
  %v3578 = vpack.c.bf16 %v3484, %v3482
  %v3579 = vpack.c.bf16 %v3485, %v3483
  %v3580 = vpack.c.bf16 %v3488, %v3486
  %v3581 = vpack.c.bf16 %v3489, %v3487
  %v3582 = vpack.c.bf16 %v3492, %v3490
  %v3583 = vpack.c.bf16 %v3493, %v3491
  %v3584 = vpack.c.bf16 %v3496, %v3494
  %v3585 = vpack.c.bf16 %v3497, %v3495
  %v3586 = vpack.c.bf16 %v3500, %v3498
  %v3587 = vpack.c.bf16 %v3501, %v3499
  %v3588 = vpack.c.bf16 %v3504, %v3502
  %v3589 = vpack.c.bf16 %v3505, %v3503
  %v3590 = vpack.c.bf16 %v3508, %v3506
  %v3591 = vpack.c.bf16 %v3509, %v3507
  %v3592 = vpack.c.bf16 %v3512, %v3510
  %v3593 = vpack.c.bf16 %v3513, %v3511
  %v3594 = vpack.c.bf16 %v3516, %v3514
  %v3595 = vpack.c.bf16 %v3517, %v3515
  %v3596 = vpack.c.bf16 %v3520, %v3518
  %v3597 = vpack.c.bf16 %v3521, %v3519
  %v3598 = vpack.c.bf16 %v3524, %v3522
  %v3599 = vpack.c.bf16 %v3525, %v3523
  %v3600 = vpack.c.bf16 %v3528, %v3526
  %v3601 = vpack.c.bf16 %v3529, %v3527
  %v3602 = vpack.c.bf16 %v3532, %v3530
  %v3603 = vpack.c.bf16 %v3533, %v3531
  %v3604 = vpack.c.bf16 %v3536, %v3534
  %v3605 = vpack.c.bf16 %v3537, %v3535
  %v3606 = vpack.c.bf16 %v3540, %v3538
  %v3607 = vpack.c.bf16 %v3541, %v3539
  %v3608 = vpack.c.bf16 %v3544, %v3542
  %v3609 = vpack.c.bf16 %v3545, %v3543
  %v3610 = vpack.c.bf16 %v3548, %v3546
  %v3611 = vpack.c.bf16 %v3549, %v3547
  %v3612 = vpack.c.bf16 %v3552, %v3550
  %v3613 = vpack.c.bf16 %v3553, %v3551
  %v3614 = vpack.c.bf16 %v3556, %v3554
  %v3615 = vpack.c.bf16 %v3557, %v3555
  %v3616 = vpack.c.bf16 %v3560, %v3558
  %v3617 = vpack.c.bf16 %v3561, %v3559
  %v3618 = vpack.c.bf16 %v3564, %v3562
  %v3619 = vpack.c.bf16 %v3565, %v3563
  %v3620 = vpack.c.bf16 %v3568, %v3566
  %v3621 = vpack.c.bf16 %v3569, %v3567
  %v3622 = vpack.c.bf16 %v3572, %v3570
  %v3623 = vpack.c.bf16 %v3573, %v3571
  %v3624 = vpack.c.bf16 %v3574, %v3574
  %v3625 = vpack.c.bf16 %v3575, %v3575
  %v3676 = vunpack.c.l.b16 %v3576
  %v3677 = vunpack.c.l.b16 %v3577
  %v3678 = vunpack.c.h.b16 %v3576
  %v3679 = vunpack.c.h.b16 %v3577
  %v3680 = vunpack.c.l.b16 %v3578
  %v3681 = vunpack.c.l.b16 %v3579
  %v3682 = vunpack.c.h.b16 %v3578
  %v3683 = vunpack.c.h.b16 %v3579
  %v3684 = vunpack.c.l.b16 %v3580
  %v3685 = vunpack.c.l.b16 %v3581
  %v3686 = vunpack.c.h.b16 %v3580
  %v3687 = vunpack.c.h.b16 %v3581
  %v3688 = vunpack.c.l.b16 %v3582
  %v3689 = vunpack.c.l.b16 %v3583
  %v3690 = vunpack.c.h.b16 %v3582
  %v3691 = vunpack.c.h.b16 %v3583
  %v3692 = vunpack.c.l.b16 %v3584
  %v3693 = vunpack.c.l.b16 %v3585
  %v3694 = vunpack.c.h.b16 %v3584
  %v3695 = vunpack.c.h.b16 %v3585
  %v3696 = vunpack.c.l.b16 %v3586
  %v3697 = vunpack.c.l.b16 %v3587
  %v3698 = vunpack.c.h.b16 %v3586
  %v3699 = vunpack.c.h.b16 %v3587
  %v3700 = vunpack.c.l.b16 %v3588
  %v3701 = vunpack.c.l.b16 %v3589
  %v3702 = vunpack.c.h.b16 %v3588
  %v3703 = vunpack.c.h.b16 %v3589
  %v3704 = vunpack.c.l.b16 %v3590
  %v3705 = vunpack.c.l.b16 %v3591
  %v3706 = vunpack.c.h.b16 %v3590
  %v3707 = vunpack.c.h.b16 %v3591
  %v3708 = vunpack.c.l.b16 %v3592
  %v3709 = vunpack.c.l.b16 %v3593
  %v3710 = vunpack.c.h.b16 %v3592
  %v3711 = vunpack.c.h.b16 %v3593
  %v3712 = vunpack.c.l.b16 %v3594
  %v3713 = vunpack.c.l.b16 %v3595
  %v3714 = vunpack.c.h.b16 %v3594
  %v3715 = vunpack.c.h.b16 %v3595
  %v3716 = vunpack.c.l.b16 %v3596
  %v3717 = vunpack.c.l.b16 %v3597
  %v3718 = vunpack.c.h.b16 %v3596
  %v3719 = vunpack.c.h.b16 %v3597
  %v3720 = vunpack.c.l.b16 %v3598
  %v3721 = vunpack.c.l.b16 %v3599
  %v3722 = vunpack.c.h.b16 %v3598
  %v3723 = vunpack.c.h.b16 %v3599
  %v3724 = vunpack.c.l.b16 %v3600
  %v3725 = vunpack.c.l.b16 %v3601
  %v3726 = vunpack.c.h.b16 %v3600
  %v3727 = vunpack.c.h.b16 %v3601
  %v3728 = vunpack.c.l.b16 %v3602
  %v3729 = vunpack.c.l.b16 %v3603
  %v3730 = vunpack.c.h.b16 %v3602
  %v3731 = vunpack.c.h.b16 %v3603
  %v3732 = vunpack.c.l.b16 %v3604
  %v3733 = vunpack.c.l.b16 %v3605
  %v3734 = vunpack.c.h.b16 %v3604
  %v3735 = vunpack.c.h.b16 %v3605
  %v3736 = vunpack.c.l.b16 %v3606
  %v3737 = vunpack.c.l.b16 %v3607
  %v3738 = vunpack.c.h.b16 %v3606
  %v3739 = vunpack.c.h.b16 %v3607
  %v3740 = vunpack.c.l.b16 %v3608
  %v3741 = vunpack.c.l.b16 %v3609
  %v3742 = vunpack.c.h.b16 %v3608
  %v3743 = vunpack.c.h.b16 %v3609
  %v3744 = vunpack.c.l.b16 %v3610
  %v3745 = vunpack.c.l.b16 %v3611
  %v3746 = vunpack.c.h.b16 %v3610
  %v3747 = vunpack.c.h.b16 %v3611
  %v3748 = vunpack.c.l.b16 %v3612
  %v3749 = vunpack.c.l.b16 %v3613
  %v3750 = vunpack.c.h.b16 %v3612
  %v3751 = vunpack.c.h.b16 %v3613
  %v3752 = vunpack.c.l.b16 %v3614
  %v3753 = vunpack.c.l.b16 %v3615
  %v3754 = vunpack.c.h.b16 %v3614
  %v3755 = vunpack.c.h.b16 %v3615
  %v3756 = vunpack.c.l.b16 %v3616
  %v3757 = vunpack.c.l.b16 %v3617
  %v3758 = vunpack.c.h.b16 %v3616
  %v3759 = vunpack.c.h.b16 %v3617
  %v3760 = vunpack.c.l.b16 %v3618
  %v3761 = vunpack.c.l.b16 %v3619
  %v3762 = vunpack.c.h.b16 %v3618
  %v3763 = vunpack.c.h.b16 %v3619
  %v3764 = vunpack.c.l.b16 %v3620
  %v3765 = vunpack.c.l.b16 %v3621
  %v3766 = vunpack.c.h.b16 %v3620
  %v3767 = vunpack.c.h.b16 %v3621
  %v3768 = vunpack.c.l.b16 %v3622
  %v3769 = vunpack.c.l.b16 %v3623
  %v3770 = vunpack.c.h.b16 %v3622
  %v3771 = vunpack.c.h.b16 %v3623
  %v3772 = vunpack.c.l.b16 %v3624
  %v3773 = vunpack.c.l.b16 %v3625
  %v3774 = vpack.c.b16 %v3677, %v3676
  %v3775 = vpack.c.b16 %v3679, %v3678
  %v3776 = vpack.c.b16 %v3681, %v3680
  %v3777 = vpack.c.b16 %v3683, %v3682
  %v3778 = vpack.c.b16 %v3685, %v3684
  %v3779 = vpack.c.b16 %v3687, %v3686
  %v3780 = vpack.c.b16 %v3689, %v3688
  %v3781 = vpack.c.b16 %v3691, %v3690
  %v3782 = vpack.c.b16 %v3693, %v3692
  %v3783 = vpack.c.b16 %v3695, %v3694
  %v3784 = vpack.c.b16 %v3697, %v3696
  %v3785 = vpack.c.b16 %v3699, %v3698
  %v3786 = vpack.c.b16 %v3701, %v3700
  %v3787 = vpack.c.b16 %v3703, %v3702
  %v3788 = vpack.c.b16 %v3705, %v3704
  %v3789 = vpack.c.b16 %v3707, %v3706
  %v3790 = vpack.c.b16 %v3709, %v3708
  %v3791 = vpack.c.b16 %v3711, %v3710
  %v3792 = vpack.c.b16 %v3713, %v3712
  %v3793 = vpack.c.b16 %v3715, %v3714
  %v3794 = vpack.c.b16 %v3717, %v3716
  %v3795 = vpack.c.b16 %v3719, %v3718
  %v3796 = vpack.c.b16 %v3721, %v3720
  %v3797 = vpack.c.b16 %v3723, %v3722
  %v3798 = vpack.c.b16 %v3725, %v3724
  %v3799 = vpack.c.b16 %v3727, %v3726
  %v3800 = vpack.c.b16 %v3729, %v3728
  %v3801 = vpack.c.b16 %v3731, %v3730
  %v3802 = vpack.c.b16 %v3733, %v3732
  %v3803 = vpack.c.b16 %v3735, %v3734
  %v3804 = vpack.c.b16 %v3737, %v3736
  %v3805 = vpack.c.b16 %v3739, %v3738
  %v3806 = vpack.c.b16 %v3741, %v3740
  %v3807 = vpack.c.b16 %v3743, %v3742
  %v3808 = vpack.c.b16 %v3745, %v3744
  %v3809 = vpack.c.b16 %v3747, %v3746
  %v3810 = vpack.c.b16 %v3749, %v3748
  %v3811 = vpack.c.b16 %v3751, %v3750
  %v3812 = vpack.c.b16 %v3753, %v3752
  %v3813 = vpack.c.b16 %v3755, %v3754
  %v3814 = vpack.c.b16 %v3757, %v3756
  %v3815 = vpack.c.b16 %v3759, %v3758
  %v3816 = vpack.c.b16 %v3761, %v3760
  %v3817 = vpack.c.b16 %v3763, %v3762
  %v3818 = vpack.c.b16 %v3765, %v3764
  %v3819 = vpack.c.b16 %v3767, %v3766
  %v3820 = vpack.c.b16 %v3769, %v3768
  %v3821 = vpack.c.b16 %v3771, %v3770
  %v3822 = vpack.c.b16 %v3773, %v3772
  %vm3872 = vcmask 1043456
  %vm3873 = vcmask 588804
  %vm3874 = vmor %vm3873, %vm3872
  %3875 = vst.msk [vmem:[%s4] sm:$0xff] %vm3874, %v3774
  %3876 = vst.msk [vmem:[%s4 + $0x8] sm:$0xff] %vm3874, %v3775
  %3877 = vst.msk [vmem:[%s4 + $0x10] sm:$0xff] %vm3874, %v3776
  %3878 = vst.msk [vmem:[%s4 + $0x18] sm:$0xff] %vm3874, %v3777
  %3879 = vst.msk [vmem:[%s4 + $0x20] sm:$0xff] %vm3874, %v3778
  %3880 = vst.msk [vmem:[%s4 + $0x28] sm:$0xff] %vm3874, %v3779
  %3881 = vst.msk [vmem:[%s4 + $0x30] sm:$0xff] %vm3874, %v3780
  %3882 = vst.msk [vmem:[%s4 + $0x38] sm:$0xff] %vm3874, %v3781
  %3883 = vst.msk [vmem:[%s4 + $0x40] sm:$0xff] %vm3874, %v3782
  %3884 = vst.msk [vmem:[%s4 + $0x48] sm:$0xff] %vm3874, %v3783
  %3885 = vst.msk [vmem:[%s4 + $0x50] sm:$0xff] %vm3874, %v3784
  %3886 = vst.msk [vmem:[%s4 + $0x58] sm:$0xff] %vm3874, %v3785
  %3887 = vst.msk [vmem:[%s4 + $0x60] sm:$0xff] %vm3874, %v3786
  %3888 = vst.msk [vmem:[%s4 + $0x68] sm:$0xff] %vm3874, %v3787
  %3889 = vst.msk [vmem:[%s4 + $0x70] sm:$0xff] %vm3874, %v3788
  %3890 = vst.msk [vmem:[%s4 + $0x78] sm:$0xff] %vm3874, %v3789
  %3891 = vst.msk [vmem:[%s4 + $0x80] sm:$0xff] %vm3874, %v3790
  %3892 = vst.msk [vmem:[%s4 + $0x88] sm:$0xff] %vm3874, %v3791
  %3893 = vst.msk [vmem:[%s4 + $0x90] sm:$0xff] %vm3874, %v3792
  %3894 = vst.msk [vmem:[%s4 + $0x98] sm:$0xff] %vm3874, %v3793
  %3895 = vst.msk [vmem:[%s4 + $0xa0] sm:$0xff] %vm3874, %v3794
  %3896 = vst.msk [vmem:[%s4 + $0xa8] sm:$0xff] %vm3874, %v3795
  %3897 = vst.msk [vmem:[%s4 + $0xb0] sm:$0xff] %vm3874, %v3796
  %3898 = vst.msk [vmem:[%s4 + $0xb8] sm:$0xff] %vm3874, %v3797
  %3899 = vst.msk [vmem:[%s4 + $0xc0] sm:$0xff] %vm3874, %v3798
  %3900 = vst.msk [vmem:[%s4 + $0xc8] sm:$0xff] %vm3874, %v3799
  %3901 = vst.msk [vmem:[%s4 + $0xd0] sm:$0xff] %vm3874, %v3800
  %3902 = vst.msk [vmem:[%s4 + $0xd8] sm:$0xff] %vm3874, %v3801
  %3903 = vst.msk [vmem:[%s4 + $0xe0] sm:$0xff] %vm3874, %v3802
  %3904 = vst.msk [vmem:[%s4 + $0xe8] sm:$0xff] %vm3874, %v3803
  %3905 = vst.msk [vmem:[%s4 + $0xf0] sm:$0xff] %vm3874, %v3804
  %3906 = vst.msk [vmem:[%s4 + $0xf8] sm:$0xff] %vm3874, %v3805
  %3907 = vst.msk [vmem:[%s4 + $0x100] sm:$0xff] %vm3874, %v3806
  %3908 = vst.msk [vmem:[%s4 + $0x108] sm:$0xff] %vm3874, %v3807
  %3909 = vst.msk [vmem:[%s4 + $0x110] sm:$0xff] %vm3874, %v3808
  %3910 = vst.msk [vmem:[%s4 + $0x118] sm:$0xff] %vm3874, %v3809
  %3911 = vst.msk [vmem:[%s4 + $0x120] sm:$0xff] %vm3874, %v3810
  %3912 = vst.msk [vmem:[%s4 + $0x128] sm:$0xff] %vm3874, %v3811
  %3913 = vst.msk [vmem:[%s4 + $0x130] sm:$0xff] %vm3874, %v3812
  %3914 = vst.msk [vmem:[%s4 + $0x138] sm:$0xff] %vm3874, %v3813
  %3915 = vst.msk [vmem:[%s4 + $0x140] sm:$0xff] %vm3874, %v3814
  %3916 = vst.msk [vmem:[%s4 + $0x148] sm:$0xff] %vm3874, %v3815
  %3917 = vst.msk [vmem:[%s4 + $0x150] sm:$0xff] %vm3874, %v3816
  %3918 = vst.msk [vmem:[%s4 + $0x158] sm:$0xff] %vm3874, %v3817
  %3919 = vst.msk [vmem:[%s4 + $0x160] sm:$0xff] %vm3874, %v3818
  %3920 = vst.msk [vmem:[%s4 + $0x168] sm:$0xff] %vm3874, %v3819
  %3921 = vst.msk [vmem:[%s4 + $0x170] sm:$0xff] %vm3874, %v3820
  %3922 = vst.msk [vmem:[%s4 + $0x178] sm:$0xff] %vm3874, %v3821
  %3923 = vst.msk [vmem:[%s4 + $0x180] sm:$0xff] %vm3874, %v3822
  // Predicated region
  $region18: #{subpixel_conv_forward.5} parent=0 // pred_check
    _
  $region19: #{subpixel_conv_forward.5} parent=0 // pred_check_branch
    %3925 = sbr.rel (0) target = $region21
  $region20: #{subpixel_conv_forward.5} parent=0 // pred_region
    _
  $region21: #{subpixel_conv_forward.5} parent=0 // pred_fallthru
    _
  // Predicated region
  $region22: #{subpixel_conv_forward.5} parent=0 // pred_check
    _
  $region23: #{subpixel_conv_forward.5} parent=0 // pred_check_branch
    %3927 = sbr.rel (0) target = $region25
  $region24: #{subpixel_conv_forward.5} parent=0 // pred_region
    _
  $region25: #{subpixel_conv_forward.5} parent=0 // pred_fallthru
    _

// kernel: subpixel_conv_forward.7
$region0: #{subpixel_conv_forward.7}
  #allocation0 [shape = 'u32[]', space=smem, size = 0x4, offset = 0x4, fixed_abs, tag = 'smem constant byte address 0x4 - core index']
  #allocation1 [shape = 'u32[144,128]{1,0:T(1,128)}', space=vmem, size = 0x12000, scoped, tag = 'internal scratch']
  %s0 = inlined_call_operand.vmem [shape: bf16[8,400], index: 0, kind: input, shape index: {}]
  %s1 = inlined_call_operand.vmem [shape: bf16[400,768], index: 1, kind: input, shape index: {}]
  %s2 = inlined_call_operand.vmem [shape: f32[1,768], index: 2, kind: input, shape index: {}]
  %s3 = inlined_call_operand.vmem [shape: f32[1,768], index: 3, kind: input, shape index: {}]
  %s4 = inlined_call_operand.vmem [shape: f32[8,768], index: 4, kind: output, shape index: {}]
  %s5 = sld [smem:[#allocation0]]
  $region26: #{subpixel_conv_forward.7} parent=0
    _
  %s7 = ssub.s32 1, %s5
  %s8 = scalar_select 0, %s7, %s5
  // Predicated region
  $region2: #{subpixel_conv_forward.7} parent=0 // pred_check
    _
  $region3: #{subpixel_conv_forward.7} parent=0 // pred_check_branch
    %10 = sbr.rel (0) target = $region5
  $region4: #{subpixel_conv_forward.7} parent=0 // pred_region
    _
  $region5: #{subpixel_conv_forward.7} parent=0 // pred_fallthru
    _
  // Predicated region
  $region6: #{subpixel_conv_forward.7} parent=0 // pred_check
    _
  $region7: #{subpixel_conv_forward.7} parent=0 // pred_check_branch
    %12 = sbr.rel (0) target = $region9
  $region8: #{subpixel_conv_forward.7} parent=0 // pred_region
    _
  $region9: #{subpixel_conv_forward.7} parent=0 // pred_fallthru
    _
  // Predicated region
  $region10: #{subpixel_conv_forward.7} parent=0 // pred_check
    _
  $region11: #{subpixel_conv_forward.7} parent=0 // pred_check_branch
    %14 = sbr.rel (0) target = $region13
  $region12: #{subpixel_conv_forward.7} parent=0 // pred_region
    _
  $region13: #{subpixel_conv_forward.7} parent=0 // pred_fallthru
    _
  // Predicated region
  $region14: #{subpixel_conv_forward.7} parent=0 // pred_check
    _
  $region15: #{subpixel_conv_forward.7} parent=0 // pred_check_branch
    %16 = sbr.rel (0) target = $region17
  $region16: #{subpixel_conv_forward.7} parent=0 // pred_region
    _
  $region17: #{subpixel_conv_forward.7} parent=0 // pred_fallthru
    _
  %v18 = vld [vmem:[%s0] sm:$0xff]
  %v19 = vld [vmem:[%s0 + $0x8] sm:$0xff]
  %v20 = vld [vmem:[%s1] sm:$0xff]
  %v21 = vld [vmem:[%s1 + $0x8] sm:$0xff]
  %v22 = vld [vmem:[%s1 + $0x10] sm:$0xff]
  %v23 = vld [vmem:[%s1 + $0x18] sm:$0xff]
  %v24 = vld [vmem:[%s1 + $0x20] sm:$0xff]
  %v25 = vld [vmem:[%s1 + $0x28] sm:$0xff]
  %v26 = vld [vmem:[%s1 + $0x30] sm:$0xff]
  %v27 = vld [vmem:[%s1 + $0x38] sm:$0xff]
  %v28 = vld [vmem:[%s1 + $0x40] sm:$0xff]
  %v29 = vld [vmem:[%s1 + $0x48] sm:$0xff]
  %v30 = vld [vmem:[%s1 + $0x50] sm:$0xff]
  %v31 = vld [vmem:[%s1 + $0x58] sm:$0xff]
  %v32 = vld [vmem:[%s1 + $0x60] sm:$0xff]
  %v33 = vld [vmem:[%s1 + $0x68] sm:$0xff]
  %v34 = vld [vmem:[%s1 + $0x70] sm:$0xff]
  %v35 = vld [vmem:[%s1 + $0x78] sm:$0xff]
  %v36 = vld [vmem:[%s1 + $0x80] sm:$0xff]
  %v37 = vld [vmem:[%s1 + $0x88] sm:$0xff]
  %v38 = vld [vmem:[%s1 + $0x90] sm:$0xff]
  %v39 = vld [vmem:[%s1 + $0x98] sm:$0xff]
  %v40 = vld [vmem:[%s1 + $0xa0] sm:$0xff]
  %v41 = vld [vmem:[%s1 + $0xa8] sm:$0xff]
  %v42 = vld [vmem:[%s1 + $0xb0] sm:$0xff]
  %v43 = vld [vmem:[%s1 + $0xb8] sm:$0xff]
  %v44 = vld [vmem:[%s1 + $0xc0] sm:$0xff]
  %v45 = vld [vmem:[%s1 + $0xc8] sm:$0xff]
  %v46 = vld [vmem:[%s1 + $0xd0] sm:$0xff]
  %v47 = vld [vmem:[%s1 + $0xd8] sm:$0xff]
  %v48 = vld [vmem:[%s1 + $0xe0] sm:$0xff]
  %v49 = vld [vmem:[%s1 + $0xe8] sm:$0xff]
  %v50 = vld [vmem:[%s1 + $0xf0] sm:$0xff]
  %v51 = vld [vmem:[%s1 + $0xf8] sm:$0xff]
  %v52 = vld [vmem:[%s1 + $0x100] sm:$0xff]
  %v53 = vld [vmem:[%s1 + $0x108] sm:$0xff]
  %v54 = vld [vmem:[%s1 + $0x110] sm:$0xff]
  %v55 = vld [vmem:[%s1 + $0x118] sm:$0xff]
  %v56 = vld [vmem:[%s1 + $0x120] sm:$0xff]
  %v57 = vld [vmem:[%s1 + $0x128] sm:$0xff]
  %v58 = vld [vmem:[%s1 + $0x130] sm:$0xff]
  %v59 = vld [vmem:[%s1 + $0x138] sm:$0xff]
  %v60 = vld [vmem:[%s1 + $0x140] sm:$0xff]
  %v61 = vld [vmem:[%s1 + $0x148] sm:$0xff]
  %v62 = vld [vmem:[%s1 + $0x150] sm:$0xff]
  %v63 = vld [vmem:[%s1 + $0x158] sm:$0xff]
  %v64 = vld [vmem:[%s1 + $0x160] sm:$0xff]
  %v65 = vld [vmem:[%s1 + $0x168] sm:$0xff]
  %v66 = vld [vmem:[%s1 + $0x170] sm:$0xff]
  %v67 = vld [vmem:[%s1 + $0x178] sm:$0xff]
  %v68 = vld [vmem:[%s1 + $0x180] sm:$0xff]
  %v69 = vld [vmem:[%s1 + $0x188] sm:$0xff]
  %v70 = vld [vmem:[%s1 + $0x190] sm:$0xff]
  %v71 = vld [vmem:[%s1 + $0x198] sm:$0xff]
  %v72 = vld [vmem:[%s1 + $0x1a0] sm:$0xff]
  %v73 = vld [vmem:[%s1 + $0x1a8] sm:$0xff]
  %v74 = vld [vmem:[%s1 + $0x1b0] sm:$0xff]
  %v75 = vld [vmem:[%s1 + $0x1b8] sm:$0xff]
  %v76 = vld [vmem:[%s1 + $0x1c0] sm:$0xff]
  %v77 = vld [vmem:[%s1 + $0x1c8] sm:$0xff]
  %v78 = vld [vmem:[%s1 + $0x1d0] sm:$0xff]
  %v79 = vld [vmem:[%s1 + $0x1d8] sm:$0xff]
  %v80 = vld [vmem:[%s1 + $0x1e0] sm:$0xff]
  %v81 = vld [vmem:[%s1 + $0x1e8] sm:$0xff]
  %v82 = vld [vmem:[%s1 + $0x1f0] sm:$0xff]
  %v83 = vld [vmem:[%s1 + $0x1f8] sm:$0xff]
  %v84 = vld [vmem:[%s1 + $0x200] sm:$0xff]
  %v85 = vld [vmem:[%s1 + $0x208] sm:$0xff]
  %v86 = vld [vmem:[%s1 + $0x210] sm:$0xff]
  %v87 = vld [vmem:[%s1 + $0x218] sm:$0xff]
  %v88 = vld [vmem:[%s1 + $0x220] sm:$0xff]
  %v89 = vld [vmem:[%s1 + $0x228] sm:$0xff]
  %v90 = vld [vmem:[%s1 + $0x230] sm:$0xff]
  %v91 = vld [vmem:[%s1 + $0x238] sm:$0xff]
  %v92 = vld [vmem:[%s1 + $0x240] sm:$0xff]
  %v93 = vld [vmem:[%s1 + $0x248] sm:$0xff]
  %v94 = vld [vmem:[%s1 + $0x250] sm:$0xff]
  %v95 = vld [vmem:[%s1 + $0x258] sm:$0xff]
  %v96 = vld [vmem:[%s1 + $0x260] sm:$0xff]
  %v97 = vld [vmem:[%s1 + $0x268] sm:$0xff]
  %v98 = vld [vmem:[%s1 + $0x270] sm:$0xff]
  %v99 = vld [vmem:[%s1 + $0x278] sm:$0xff]
  %v100 = vld [vmem:[%s1 + $0x280] sm:$0xff]
  %v101 = vld [vmem:[%s1 + $0x288] sm:$0xff]
  %v102 = vld [vmem:[%s1 + $0x290] sm:$0xff]
  %v103 = vld [vmem:[%s1 + $0x298] sm:$0xff]
  %v104 = vld [vmem:[%s1 + $0x2a0] sm:$0xff]
  %v105 = vld [vmem:[%s1 + $0x2a8] sm:$0xff]
  %v106 = vld [vmem:[%s1 + $0x2b0] sm:$0xff]
  %v107 = vld [vmem:[%s1 + $0x2b8] sm:$0xff]
  %v108 = vld [vmem:[%s1 + $0x2c0] sm:$0xff]
  %v109 = vld [vmem:[%s1 + $0x2c8] sm:$0xff]
  %v110 = vld [vmem:[%s1 + $0x2d0] sm:$0xff]
  %v111 = vld [vmem:[%s1 + $0x2d8] sm:$0xff]
  %v112 = vld [vmem:[%s1 + $0x2e0] sm:$0xff]
  %v113 = vld [vmem:[%s1 + $0x2e8] sm:$0xff]
  %v114 = vld [vmem:[%s1 + $0x2f0] sm:$0xff]
  %v115 = vld [vmem:[%s1 + $0x2f8] sm:$0xff]
  %v116 = vld [vmem:[%s1 + $0x300] sm:$0xff]
  %v117 = vld [vmem:[%s1 + $0x308] sm:$0xff]
  %v118 = vld [vmem:[%s1 + $0x310] sm:$0xff]
  %v119 = vld [vmem:[%s1 + $0x318] sm:$0xff]
  %v120 = vld [vmem:[%s1 + $0x320] sm:$0xff]
  %v121 = vld [vmem:[%s1 + $0x328] sm:$0xff]
  %v122 = vld [vmem:[%s1 + $0x330] sm:$0xff]
  %v123 = vld [vmem:[%s1 + $0x338] sm:$0xff]
  %v124 = vld [vmem:[%s1 + $0x340] sm:$0xff]
  %v125 = vld [vmem:[%s1 + $0x348] sm:$0xff]
  %v126 = vld [vmem:[%s1 + $0x350] sm:$0xff]
  %v127 = vld [vmem:[%s1 + $0x358] sm:$0xff]
  %v128 = vld [vmem:[%s1 + $0x360] sm:$0xff]
  %v129 = vld [vmem:[%s1 + $0x368] sm:$0xff]
  %v130 = vld [vmem:[%s1 + $0x370] sm:$0xff]
  %v131 = vld [vmem:[%s1 + $0x378] sm:$0xff]
  %v132 = vld [vmem:[%s1 + $0x380] sm:$0xff]
  %v133 = vld [vmem:[%s1 + $0x388] sm:$0xff]
  %v134 = vld [vmem:[%s1 + $0x390] sm:$0xff]
  %v135 = vld [vmem:[%s1 + $0x398] sm:$0xff]
  %v136 = vld [vmem:[%s1 + $0x3a0] sm:$0xff]
  %v137 = vld [vmem:[%s1 + $0x3a8] sm:$0xff]
  %v138 = vld [vmem:[%s1 + $0x3b0] sm:$0xff]
  %v139 = vld [vmem:[%s1 + $0x3b8] sm:$0xff]
  %v140 = vld [vmem:[%s1 + $0x3c0] sm:$0xff]
  %v141 = vld [vmem:[%s1 + $0x3c8] sm:$0xff]
  %v142 = vld [vmem:[%s1 + $0x3d0] sm:$0xff]
  %v143 = vld [vmem:[%s1 + $0x3d8] sm:$0xff]
  %v144 = vld [vmem:[%s1 + $0x3e0] sm:$0xff]
  %v145 = vld [vmem:[%s1 + $0x3e8] sm:$0xff]
  %v146 = vld [vmem:[%s1 + $0x3f0] sm:$0xff]
  %v147 = vld [vmem:[%s1 + $0x3f8] sm:$0xff]
  %v148 = vld [vmem:[%s1 + $0x400] sm:$0xff]
  %v149 = vld [vmem:[%s1 + $0x408] sm:$0xff]
  %v150 = vld [vmem:[%s1 + $0x410] sm:$0xff]
  %v151 = vld [vmem:[%s1 + $0x418] sm:$0xff]
  %v152 = vld [vmem:[%s1 + $0x420] sm:$0xff]
  %v153 = vld [vmem:[%s1 + $0x428] sm:$0xff]
  %v154 = vld [vmem:[%s1 + $0x430] sm:$0xff]
  %v155 = vld [vmem:[%s1 + $0x438] sm:$0xff]
  %v156 = vld [vmem:[%s1 + $0x440] sm:$0xff]
  %v157 = vld [vmem:[%s1 + $0x448] sm:$0xff]
  %v158 = vld [vmem:[%s1 + $0x450] sm:$0xff]
  %v159 = vld [vmem:[%s1 + $0x458] sm:$0xff]
  %v160 = vld [vmem:[%s1 + $0x460] sm:$0xff]
  %v161 = vld [vmem:[%s1 + $0x468] sm:$0xff]
  %v162 = vld [vmem:[%s1 + $0x470] sm:$0xff]
  %v163 = vld [vmem:[%s1 + $0x478] sm:$0xff]
  %v164 = vld [vmem:[%s1 + $0x480] sm:$0xff]
  %v165 = vld [vmem:[%s1 + $0x488] sm:$0xff]
  %v166 = vld [vmem:[%s1 + $0x490] sm:$0xff]
  %v167 = vld [vmem:[%s1 + $0x498] sm:$0xff]
  %v168 = vld [vmem:[%s1 + $0x4a0] sm:$0xff]
  %v169 = vld [vmem:[%s1 + $0x4a8] sm:$0xff]
  %v172 = vunpack.c.l.b16 %v18
  %v173 = vunpack.c.h.b16 %v18
  %v174 = vunpack.c.l.b16 %v19
  %v175 = vunpack.c.h.b16 %v19
  %v176 = vpack.c.b16 %v172, %v172
  %v177 = vpack.c.b16 %v173, %v173
  %v178 = vpack.c.b16 %v174, %v174
  %v179 = vpack.c.b16 %v175, %v175
  %v333 = vunpack.c.l.b16 %v20
  %v334 = vunpack.c.h.b16 %v20
  %v335 = vunpack.c.l.b16 %v21
  %v336 = vunpack.c.h.b16 %v21
  %v337 = vunpack.c.l.b16 %v22
  %v338 = vunpack.c.h.b16 %v22
  %v339 = vunpack.c.l.b16 %v23
  %v340 = vunpack.c.h.b16 %v23
  %v341 = vunpack.c.l.b16 %v24
  %v342 = vunpack.c.h.b16 %v24
  %v343 = vunpack.c.l.b16 %v25
  %v344 = vunpack.c.h.b16 %v25
  %v345 = vunpack.c.l.b16 %v26
  %v346 = vunpack.c.h.b16 %v26
  %v347 = vunpack.c.l.b16 %v27
  %v348 = vunpack.c.h.b16 %v27
  %v349 = vunpack.c.l.b16 %v28
  %v350 = vunpack.c.h.b16 %v28
  %v351 = vunpack.c.l.b16 %v29
  %v352 = vunpack.c.h.b16 %v29
  %v353 = vunpack.c.l.b16 %v30
  %v354 = vunpack.c.h.b16 %v30
  %v355 = vunpack.c.l.b16 %v31
  %v356 = vunpack.c.h.b16 %v31
  %v357 = vunpack.c.l.b16 %v32
  %v358 = vunpack.c.h.b16 %v32
  %v359 = vunpack.c.l.b16 %v33
  %v360 = vunpack.c.h.b16 %v33
  %v361 = vunpack.c.l.b16 %v34
  %v362 = vunpack.c.h.b16 %v34
  %v363 = vunpack.c.l.b16 %v35
  %v364 = vunpack.c.h.b16 %v35
  %v365 = vunpack.c.l.b16 %v36
  %v366 = vunpack.c.h.b16 %v36
  %v367 = vunpack.c.l.b16 %v37
  %v368 = vunpack.c.h.b16 %v37
  %v369 = vunpack.c.l.b16 %v38
  %v370 = vunpack.c.h.b16 %v38
  %v371 = vunpack.c.l.b16 %v39
  %v372 = vunpack.c.h.b16 %v39
  %v373 = vunpack.c.l.b16 %v40
  %v374 = vunpack.c.h.b16 %v40
  %v375 = vunpack.c.l.b16 %v41
  %v376 = vunpack.c.h.b16 %v41
  %v377 = vunpack.c.l.b16 %v42
  %v378 = vunpack.c.h.b16 %v42
  %v379 = vunpack.c.l.b16 %v43
  %v380 = vunpack.c.h.b16 %v43
  %v381 = vunpack.c.l.b16 %v44
  %v382 = vunpack.c.h.b16 %v44
  %v383 = vunpack.c.l.b16 %v45
  %v384 = vunpack.c.h.b16 %v45
  %v385 = vunpack.c.l.b16 %v46
  %v386 = vunpack.c.h.b16 %v46
  %v387 = vunpack.c.l.b16 %v47
  %v388 = vunpack.c.h.b16 %v47
  %v389 = vunpack.c.l.b16 %v48
  %v390 = vunpack.c.h.b16 %v48
  %v391 = vunpack.c.l.b16 %v49
  %v392 = vunpack.c.h.b16 %v49
  %v393 = vunpack.c.l.b16 %v50
  %v394 = vunpack.c.h.b16 %v50
  %v395 = vunpack.c.l.b16 %v51
  %v396 = vunpack.c.h.b16 %v51
  %v397 = vunpack.c.l.b16 %v52
  %v398 = vunpack.c.h.b16 %v52
  %v399 = vunpack.c.l.b16 %v53
  %v400 = vunpack.c.h.b16 %v53
  %v401 = vunpack.c.l.b16 %v54
  %v402 = vunpack.c.h.b16 %v54
  %v403 = vunpack.c.l.b16 %v55
  %v404 = vunpack.c.h.b16 %v55
  %v405 = vunpack.c.l.b16 %v56
  %v406 = vunpack.c.h.b16 %v56
  %v407 = vunpack.c.l.b16 %v57
  %v408 = vunpack.c.h.b16 %v57
  %v409 = vunpack.c.l.b16 %v58
  %v410 = vunpack.c.h.b16 %v58
  %v411 = vunpack.c.l.b16 %v59
  %v412 = vunpack.c.h.b16 %v59
  %v413 = vunpack.c.l.b16 %v60
  %v414 = vunpack.c.h.b16 %v60
  %v415 = vunpack.c.l.b16 %v61
  %v416 = vunpack.c.h.b16 %v61
  %v417 = vunpack.c.l.b16 %v62
  %v418 = vunpack.c.h.b16 %v62
  %v419 = vunpack.c.l.b16 %v63
  %v420 = vunpack.c.h.b16 %v63
  %v421 = vunpack.c.l.b16 %v64
  %v422 = vunpack.c.h.b16 %v64
  %v423 = vunpack.c.l.b16 %v65
  %v424 = vunpack.c.h.b16 %v65
  %v425 = vunpack.c.l.b16 %v66
  %v426 = vunpack.c.h.b16 %v66
  %v427 = vunpack.c.l.b16 %v67
  %v428 = vunpack.c.h.b16 %v67
  %v429 = vunpack.c.l.b16 %v68
  %v430 = vunpack.c.h.b16 %v68
  %v431 = vunpack.c.l.b16 %v69
  %v432 = vunpack.c.h.b16 %v69
  %v433 = vunpack.c.l.b16 %v70
  %v434 = vunpack.c.h.b16 %v70
  %v435 = vunpack.c.l.b16 %v71
  %v436 = vunpack.c.h.b16 %v71
  %v437 = vunpack.c.l.b16 %v72
  %v438 = vunpack.c.h.b16 %v72
  %v439 = vunpack.c.l.b16 %v73
  %v440 = vunpack.c.h.b16 %v73
  %v441 = vunpack.c.l.b16 %v74
  %v442 = vunpack.c.h.b16 %v74
  %v443 = vunpack.c.l.b16 %v75
  %v444 = vunpack.c.h.b16 %v75
  %v445 = vunpack.c.l.b16 %v76
  %v446 = vunpack.c.h.b16 %v76
  %v447 = vunpack.c.l.b16 %v77
  %v448 = vunpack.c.h.b16 %v77
  %v449 = vunpack.c.l.b16 %v78
  %v450 = vunpack.c.h.b16 %v78
  %v451 = vunpack.c.l.b16 %v79
  %v452 = vunpack.c.h.b16 %v79
  %v453 = vunpack.c.l.b16 %v80
  %v454 = vunpack.c.h.b16 %v80
  %v455 = vunpack.c.l.b16 %v81
  %v456 = vunpack.c.h.b16 %v81
  %v457 = vunpack.c.l.b16 %v82
  %v458 = vunpack.c.h.b16 %v82
  %v459 = vunpack.c.l.b16 %v83
  %v460 = vunpack.c.h.b16 %v83
  %v461 = vunpack.c.l.b16 %v84
  %v462 = vunpack.c.h.b16 %v84
  %v463 = vunpack.c.l.b16 %v85
  %v464 = vunpack.c.h.b16 %v85
  %v465 = vunpack.c.l.b16 %v86
  %v466 = vunpack.c.h.b16 %v86
  %v467 = vunpack.c.l.b16 %v87
  %v468 = vunpack.c.h.b16 %v87
  %v469 = vunpack.c.l.b16 %v88
  %v470 = vunpack.c.h.b16 %v88
  %v471 = vunpack.c.l.b16 %v89
  %v472 = vunpack.c.h.b16 %v89
  %v473 = vunpack.c.l.b16 %v90
  %v474 = vunpack.c.h.b16 %v90
  %v475 = vunpack.c.l.b16 %v91
  %v476 = vunpack.c.h.b16 %v91
  %v477 = vunpack.c.l.b16 %v92
  %v478 = vunpack.c.h.b16 %v92
  %v479 = vunpack.c.l.b16 %v93
  %v480 = vunpack.c.h.b16 %v93
  %v481 = vunpack.c.l.b16 %v94
  %v482 = vunpack.c.h.b16 %v94
  %v483 = vunpack.c.l.b16 %v95
  %v484 = vunpack.c.h.b16 %v95
  %v485 = vunpack.c.l.b16 %v96
  %v486 = vunpack.c.h.b16 %v96
  %v487 = vunpack.c.l.b16 %v97
  %v488 = vunpack.c.h.b16 %v97
  %v489 = vunpack.c.l.b16 %v98
  %v490 = vunpack.c.h.b16 %v98
  %v491 = vunpack.c.l.b16 %v99
  %v492 = vunpack.c.h.b16 %v99
  %v493 = vunpack.c.l.b16 %v100
  %v494 = vunpack.c.h.b16 %v100
  %v495 = vunpack.c.l.b16 %v101
  %v496 = vunpack.c.h.b16 %v101
  %v497 = vunpack.c.l.b16 %v102
  %v498 = vunpack.c.h.b16 %v102
  %v499 = vunpack.c.l.b16 %v103
  %v500 = vunpack.c.h.b16 %v103
  %v501 = vunpack.c.l.b16 %v104
  %v502 = vunpack.c.h.b16 %v104
  %v503 = vunpack.c.l.b16 %v105
  %v504 = vunpack.c.h.b16 %v105
  %v505 = vunpack.c.l.b16 %v106
  %v506 = vunpack.c.h.b16 %v106
  %v507 = vunpack.c.l.b16 %v107
  %v508 = vunpack.c.h.b16 %v107
  %v509 = vunpack.c.l.b16 %v108
  %v510 = vunpack.c.h.b16 %v108
  %v511 = vunpack.c.l.b16 %v109
  %v512 = vunpack.c.h.b16 %v109
  %v513 = vunpack.c.l.b16 %v110
  %v514 = vunpack.c.h.b16 %v110
  %v515 = vunpack.c.l.b16 %v111
  %v516 = vunpack.c.h.b16 %v111
  %v517 = vunpack.c.l.b16 %v112
  %v518 = vunpack.c.h.b16 %v112
  %v519 = vunpack.c.l.b16 %v113
  %v520 = vunpack.c.h.b16 %v113
  %v521 = vunpack.c.l.b16 %v114
  %v522 = vunpack.c.h.b16 %v114
  %v523 = vunpack.c.l.b16 %v115
  %v524 = vunpack.c.h.b16 %v115
  %v525 = vunpack.c.l.b16 %v116
  %v526 = vunpack.c.h.b16 %v116
  %v527 = vunpack.c.l.b16 %v117
  %v528 = vunpack.c.h.b16 %v117
  %v529 = vunpack.c.l.b16 %v118
  %v530 = vunpack.c.h.b16 %v118
  %v531 = vunpack.c.l.b16 %v119
  %v532 = vunpack.c.h.b16 %v119
  %v533 = vunpack.c.l.b16 %v120
  %v534 = vunpack.c.h.b16 %v120
  %v535 = vunpack.c.l.b16 %v121
  %v536 = vunpack.c.h.b16 %v121
  %v537 = vunpack.c.l.b16 %v122
  %v538 = vunpack.c.h.b16 %v122
  %v539 = vunpack.c.l.b16 %v123
  %v540 = vunpack.c.h.b16 %v123
  %v541 = vunpack.c.l.b16 %v124
  %v542 = vunpack.c.h.b16 %v124
  %v543 = vunpack.c.l.b16 %v125
  %v544 = vunpack.c.h.b16 %v125
  %v545 = vunpack.c.l.b16 %v126
  %v546 = vunpack.c.h.b16 %v126
  %v547 = vunpack.c.l.b16 %v127
  %v548 = vunpack.c.h.b16 %v127
  %v549 = vunpack.c.l.b16 %v128
  %v550 = vunpack.c.h.b16 %v128
  %v551 = vunpack.c.l.b16 %v129
  %v552 = vunpack.c.h.b16 %v129
  %v553 = vunpack.c.l.b16 %v130
  %v554 = vunpack.c.h.b16 %v130
  %v555 = vunpack.c.l.b16 %v131
  %v556 = vunpack.c.h.b16 %v131
  %v557 = vunpack.c.l.b16 %v132
  %v558 = vunpack.c.h.b16 %v132
  %v559 = vunpack.c.l.b16 %v133
  %v560 = vunpack.c.h.b16 %v133
  %v561 = vunpack.c.l.b16 %v134
  %v562 = vunpack.c.h.b16 %v134
  %v563 = vunpack.c.l.b16 %v135
  %v564 = vunpack.c.h.b16 %v135
  %v565 = vunpack.c.l.b16 %v136
  %v566 = vunpack.c.h.b16 %v136
  %v567 = vunpack.c.l.b16 %v137
  %v568 = vunpack.c.h.b16 %v137
  %v569 = vunpack.c.l.b16 %v138
  %v570 = vunpack.c.h.b16 %v138
  %v571 = vunpack.c.l.b16 %v139
  %v572 = vunpack.c.h.b16 %v139
  %v573 = vunpack.c.l.b16 %v140
  %v574 = vunpack.c.h.b16 %v140
  %v575 = vunpack.c.l.b16 %v141
  %v576 = vunpack.c.h.b16 %v141
  %v577 = vunpack.c.l.b16 %v142
  %v578 = vunpack.c.h.b16 %v142
  %v579 = vunpack.c.l.b16 %v143
  %v580 = vunpack.c.h.b16 %v143
  %v581 = vunpack.c.l.b16 %v144
  %v582 = vunpack.c.h.b16 %v144
  %v583 = vunpack.c.l.b16 %v145
  %v584 = vunpack.c.h.b16 %v145
  %v585 = vunpack.c.l.b16 %v146
  %v586 = vunpack.c.h.b16 %v146
  %v587 = vunpack.c.l.b16 %v147
  %v588 = vunpack.c.h.b16 %v147
  %v589 = vunpack.c.l.b16 %v148
  %v590 = vunpack.c.h.b16 %v148
  %v591 = vunpack.c.l.b16 %v149
  %v592 = vunpack.c.h.b16 %v149
  %v593 = vunpack.c.l.b16 %v150
  %v594 = vunpack.c.h.b16 %v150
  %v595 = vunpack.c.l.b16 %v151
  %v596 = vunpack.c.h.b16 %v151
  %v597 = vunpack.c.l.b16 %v152
  %v598 = vunpack.c.h.b16 %v152
  %v599 = vunpack.c.l.b16 %v153
  %v600 = vunpack.c.h.b16 %v153
  %v601 = vunpack.c.l.b16 %v154
  %v602 = vunpack.c.h.b16 %v154
  %v603 = vunpack.c.l.b16 %v155
  %v604 = vunpack.c.h.b16 %v155
  %v605 = vunpack.c.l.b16 %v156
  %v606 = vunpack.c.h.b16 %v156
  %v607 = vunpack.c.l.b16 %v157
  %v608 = vunpack.c.h.b16 %v157
  %v609 = vunpack.c.l.b16 %v158
  %v610 = vunpack.c.h.b16 %v158
  %v611 = vunpack.c.l.b16 %v159
  %v612 = vunpack.c.h.b16 %v159
  %v613 = vunpack.c.l.b16 %v160
  %v614 = vunpack.c.h.b16 %v160
  %v615 = vunpack.c.l.b16 %v161
  %v616 = vunpack.c.h.b16 %v161
  %v617 = vunpack.c.l.b16 %v162
  %v618 = vunpack.c.h.b16 %v162
  %v619 = vunpack.c.l.b16 %v163
  %v620 = vunpack.c.h.b16 %v163
  %v621 = vunpack.c.l.b16 %v164
  %v622 = vunpack.c.h.b16 %v164
  %v623 = vunpack.c.l.b16 %v165
  %v624 = vunpack.c.h.b16 %v165
  %v625 = vunpack.c.l.b16 %v166
  %v626 = vunpack.c.h.b16 %v166
  %v627 = vunpack.c.l.b16 %v167
  %v628 = vunpack.c.h.b16 %v167
  %v629 = vunpack.c.l.b16 %v168
  %v630 = vunpack.c.h.b16 %v168
  %v631 = vunpack.c.l.b16 %v169
  %v632 = vunpack.c.h.b16 %v169
  %v633 = vpack.c.b16 %v339, %v333
  %v634 = vpack.c.b16 %v340, %v334
  %v635 = vpack.c.b16 %v341, %v335
  %v636 = vpack.c.b16 %v342, %v336
  %v637 = vpack.c.b16 %v343, %v337
  %v638 = vpack.c.b16 %v344, %v338
  %v639 = vpack.c.b16 %v351, %v345
  %v640 = vpack.c.b16 %v352, %v346
  %v641 = vpack.c.b16 %v353, %v347
  %v642 = vpack.c.b16 %v354, %v348
  %v643 = vpack.c.b16 %v355, %v349
  %v644 = vpack.c.b16 %v356, %v350
  %v645 = vpack.c.b16 %v363, %v357
  %v646 = vpack.c.b16 %v364, %v358
  %v647 = vpack.c.b16 %v365, %v359
  %v648 = vpack.c.b16 %v366, %v360
  %v649 = vpack.c.b16 %v367, %v361
  %v650 = vpack.c.b16 %v368, %v362
  %v651 = vpack.c.b16 %v375, %v369
  %v652 = vpack.c.b16 %v376, %v370
  %v653 = vpack.c.b16 %v377, %v371
  %v654 = vpack.c.b16 %v378, %v372
  %v655 = vpack.c.b16 %v379, %v373
  %v656 = vpack.c.b16 %v380, %v374
  %v657 = vpack.c.b16 %v387, %v381
  %v658 = vpack.c.b16 %v388, %v382
  %v659 = vpack.c.b16 %v389, %v383
  %v660 = vpack.c.b16 %v390, %v384
  %v661 = vpack.c.b16 %v391, %v385
  %v662 = vpack.c.b16 %v392, %v386
  %v663 = vpack.c.b16 %v399, %v393
  %v664 = vpack.c.b16 %v400, %v394
  %v665 = vpack.c.b16 %v401, %v395
  %v666 = vpack.c.b16 %v402, %v396
  %v667 = vpack.c.b16 %v403, %v397
  %v668 = vpack.c.b16 %v404, %v398
  %v669 = vpack.c.b16 %v411, %v405
  %v670 = vpack.c.b16 %v412, %v406
  %v671 = vpack.c.b16 %v413, %v407
  %v672 = vpack.c.b16 %v414, %v408
  %v673 = vpack.c.b16 %v415, %v409
  %v674 = vpack.c.b16 %v416, %v410
  %v675 = vpack.c.b16 %v423, %v417
  %v676 = vpack.c.b16 %v424, %v418
  %v677 = vpack.c.b16 %v425, %v419
  %v678 = vpack.c.b16 %v426, %v420
  %v679 = vpack.c.b16 %v427, %v421
  %v680 = vpack.c.b16 %v428, %v422
  %v681 = vpack.c.b16 %v435, %v429
  %v682 = vpack.c.b16 %v436, %v430
  %v683 = vpack.c.b16 %v437, %v431
  %v684 = vpack.c.b16 %v438, %v432
  %v685 = vpack.c.b16 %v439, %v433
  %v686 = vpack.c.b16 %v440, %v434
  %v687 = vpack.c.b16 %v447, %v441
  %v688 = vpack.c.b16 %v448, %v442
  %v689 = vpack.c.b16 %v449, %v443
  %v690 = vpack.c.b16 %v450, %v444
  %v691 = vpack.c.b16 %v451, %v445
  %v692 = vpack.c.b16 %v452, %v446
  %v693 = vpack.c.b16 %v459, %v453
  %v694 = vpack.c.b16 %v460, %v454
  %v695 = vpack.c.b16 %v461, %v455
  %v696 = vpack.c.b16 %v462, %v456
  %v697 = vpack.c.b16 %v463, %v457
  %v698 = vpack.c.b16 %v464, %v458
  %v699 = vpack.c.b16 %v471, %v465
  %v700 = vpack.c.b16 %v472, %v466
  %v701 = vpack.c.b16 %v473, %v467
  %v702 = vpack.c.b16 %v474, %v468
  %v703 = vpack.c.b16 %v475, %v469
  %v704 = vpack.c.b16 %v476, %v470
  %v705 = vpack.c.b16 %v483, %v477
  %v706 = vpack.c.b16 %v484, %v478
  %v707 = vpack.c.b16 %v485, %v479
  %v708 = vpack.c.b16 %v486, %v480
  %v709 = vpack.c.b16 %v487, %v481
  %v710 = vpack.c.b16 %v488, %v482
  %v711 = vpack.c.b16 %v495, %v489
  %v712 = vpack.c.b16 %v496, %v490
  %v713 = vpack.c.b16 %v497, %v491
  %v714 = vpack.c.b16 %v498, %v492
  %v715 = vpack.c.b16 %v499, %v493
  %v716 = vpack.c.b16 %v500, %v494
  %v717 = vpack.c.b16 %v507, %v501
  %v718 = vpack.c.b16 %v508, %v502
  %v719 = vpack.c.b16 %v509, %v503
  %v720 = vpack.c.b16 %v510, %v504
  %v721 = vpack.c.b16 %v511, %v505
  %v722 = vpack.c.b16 %v512, %v506
  %v723 = vpack.c.b16 %v519, %v513
  %v724 = vpack.c.b16 %v520, %v514
  %v725 = vpack.c.b16 %v521, %v515
  %v726 = vpack.c.b16 %v522, %v516
  %v727 = vpack.c.b16 %v523, %v517
  %v728 = vpack.c.b16 %v524, %v518
  %v729 = vpack.c.b16 %v531, %v525
  %v730 = vpack.c.b16 %v532, %v526
  %v731 = vpack.c.b16 %v533, %v527
  %v732 = vpack.c.b16 %v534, %v528
  %v733 = vpack.c.b16 %v535, %v529
  %v734 = vpack.c.b16 %v536, %v530
  %v735 = vpack.c.b16 %v543, %v537
  %v736 = vpack.c.b16 %v544, %v538
  %v737 = vpack.c.b16 %v545, %v539
  %v738 = vpack.c.b16 %v546, %v540
  %v739 = vpack.c.b16 %v547, %v541
  %v740 = vpack.c.b16 %v548, %v542
  %v741 = vpack.c.b16 %v555, %v549
  %v742 = vpack.c.b16 %v556, %v550
  %v743 = vpack.c.b16 %v557, %v551
  %v744 = vpack.c.b16 %v558, %v552
  %v745 = vpack.c.b16 %v559, %v553
  %v746 = vpack.c.b16 %v560, %v554
  %v747 = vpack.c.b16 %v567, %v561
  %v748 = vpack.c.b16 %v568, %v562
  %v749 = vpack.c.b16 %v569, %v563
  %v750 = vpack.c.b16 %v570, %v564
  %v751 = vpack.c.b16 %v571, %v565
  %v752 = vpack.c.b16 %v572, %v566
  %v753 = vpack.c.b16 %v579, %v573
  %v754 = vpack.c.b16 %v580, %v574
  %v755 = vpack.c.b16 %v581, %v575
  %v756 = vpack.c.b16 %v582, %v576
  %v757 = vpack.c.b16 %v583, %v577
  %v758 = vpack.c.b16 %v584, %v578
  %v759 = vpack.c.b16 %v591, %v585
  %v760 = vpack.c.b16 %v592, %v586
  %v761 = vpack.c.b16 %v593, %v587
  %v762 = vpack.c.b16 %v594, %v588
  %v763 = vpack.c.b16 %v595, %v589
  %v764 = vpack.c.b16 %v596, %v590
  %v765 = vpack.c.b16 %v603, %v597
  %v766 = vpack.c.b16 %v604, %v598
  %v767 = vpack.c.b16 %v605, %v599
  %v768 = vpack.c.b16 %v606, %v600
  %v769 = vpack.c.b16 %v607, %v601
  %v770 = vpack.c.b16 %v608, %v602
  %v771 = vpack.c.b16 %v615, %v609
  %v772 = vpack.c.b16 %v616, %v610
  %v773 = vpack.c.b16 %v617, %v611
  %v774 = vpack.c.b16 %v618, %v612
  %v775 = vpack.c.b16 %v619, %v613
  %v776 = vpack.c.b16 %v620, %v614
  %v777 = vpack.c.b16 %v627, %v621
  %v778 = vpack.c.b16 %v628, %v622
  %v779 = vpack.c.b16 %v629, %v623
  %v780 = vpack.c.b16 %v630, %v624
  %v781 = vpack.c.b16 %v631, %v625
  %v782 = vpack.c.b16 %v632, %v626
  %vm933 = vcmask 130048
  %v935 = vsel %vm933, %v179, 0
  %937 = vmatprep.subr.bf16.mxu0 %v634
  %938 = vmatpush1.bf16.msra.mxu0 %v633
  %939 = vmatprep.subr.bf16.mxu0 %v640
  %940 = vmatpush1.bf16.msra.mxu0 %v639
  %941 = vmatprep.subr.bf16.mxu0 %v646
  %942 = vmatpush1.bf16.msra.mxu0 %v645
  %943 = vmatprep.subr.bf16.mxu0 %v652
  %944 = vmatpush1.bf16.msra.mxu0 %v651
  %945 = vmatprep.subr.bf16.mxu0 %v658
  %946 = vmatpush1.bf16.msra.mxu0 %v657
  %947 = vmatprep.subr.bf16.mxu0 %v664
  %948 = vmatpush1.bf16.msra.mxu0 %v663
  %949 = vmatprep.subr.bf16.mxu0 %v670
  %950 = vmatpush1.bf16.msra.mxu0 %v669
  %951 = vmatprep.subr.bf16.mxu0 %v676
  %952 = vmatpush1.bf16.msra.mxu0 %v675
  %953 = vmatprep.subr.bf16.mxu0 %v682
  %954 = vmatpush1.bf16.msra.mxu0 %v681
  %955 = vmatprep.subr.bf16.mxu0 %v688
  %956 = vmatpush1.bf16.msra.mxu0 %v687
  %957 = vmatprep.subr.bf16.mxu0 %v694
  %958 = vmatpush1.bf16.msra.mxu0 %v693
  %959 = vmatprep.subr.bf16.mxu0 %v700
  %960 = vmatpush1.bf16.msra.mxu0 %v699
  %961 = vmatprep.subr.bf16.mxu0 %v706
  %962 = vmatpush1.bf16.msra.mxu0 %v705
  %963 = vmatprep.subr.bf16.mxu0 %v712
  %964 = vmatpush1.bf16.msra.mxu0 %v711
  %965 = vmatprep.subr.bf16.mxu0 %v718
  %966 = vmatpush1.bf16.msra.mxu0 %v717
  %967 = vmatprep.subr.bf16.mxu0 %v724
  %968 = vmatpush1.bf16.msra.mxu0 %v723
  %969 = vmatprep.mubr.bf16.mxu0 %v177
  %970 = vmatmul.mubr.bf16.gmra.mrb[0].mxu0 %v176
  %v971 = vpop.f32.mrb[0].mxu0
  %v972 = vadd.f32 0.0, %v971
  %v973 = vpop.f32.mrb[0].mxu0
  %v974 = vadd.f32 0.0, %v973
  %v975 = vpop.f32.mrb[0].mxu0
  %v976 = vpop.f32.mrb[0].mxu0
  %977 = vdwg.mxu0
  %978 = vmatprep.subr.bf16.mxu0 %v730
  %979 = vmatpush1.bf16.msra.mxu0 %v729
  %980 = vmatprep.subr.bf16.mxu0 %v736
  %981 = vmatpush1.bf16.msra.mxu0 %v735
  %982 = vmatprep.subr.bf16.mxu0 %v742
  %983 = vmatpush1.bf16.msra.mxu0 %v741
  %984 = vmatprep.subr.bf16.mxu0 %v748
  %985 = vmatpush1.bf16.msra.mxu0 %v747
  %986 = vmatprep.subr.bf16.mxu0 %v754
  %987 = vmatpush1.bf16.msra.mxu0 %v753
  %988 = vmatprep.subr.bf16.mxu0 %v760
  %989 = vmatpush1.bf16.msra.mxu0 %v759
  %990 = vmatprep.subr.bf16.mxu0 %v766
  %991 = vmatpush1.bf16.msra.mxu0 %v765
  %992 = vmatprep.subr.bf16.mxu0 %v772
  %993 = vmatpush1.bf16.msra.mxu0 %v771
  %994 = vmatprep.subr.bf16.mxu0 %v778
  %995 = vmatpush1.bf16.msra.mxu0 %v777
  %996 = vmatprep.subr.bf16.mxu0 0
  %997 = vmatpush1.bf16.msra.mxu0 0
  %998 = vmatprep.subr.bf16.mxu0 0
  %999 = vmatpush1.bf16.msra.mxu0 0
  %1000 = vmatprep.subr.bf16.mxu0 0
  %1001 = vmatpush1.bf16.msra.mxu0 0
  %1002 = vmatprep.subr.bf16.mxu0 0
  %1003 = vmatpush1.bf16.msra.mxu0 0
  %1004 = vmatprep.subr.bf16.mxu0 0
  %1005 = vmatpush1.bf16.msra.mxu0 0
  %1006 = vmatprep.subr.bf16.mxu0 0
  %1007 = vmatpush1.bf16.msra.mxu0 0
  %1008 = vmatprep.subr.bf16.mxu0 0
  %1009 = vmatpush1.bf16.msra.mxu0 0
  %1010 = vmatprep.mubr.bf16.mxu0 %v935
  %1011 = vmatmul.mubr.bf16.gmra.mrb[0].mxu0 %v178
  %v1012 = vpop.f32.mrb[0].mxu0
  %v1013 = vadd.f32 %v972, %v1012
  %v1014 = vpop.f32.mrb[0].mxu0
  %v1015 = vadd.f32 %v974, %v1014
  %v1016 = vpop.f32.mrb[0].mxu0
  %v1017 = vpop.f32.mrb[0].mxu0
  %1018 = vdwg.mxu0
  %1019 = vmatprep.subr.bf16.mxu0 %v636
  %1020 = vmatpush1.bf16.msra.mxu0 %v635
  %1021 = vmatprep.subr.bf16.mxu0 %v642
  %1022 = vmatpush1.bf16.msra.mxu0 %v641
  %1023 = vmatprep.subr.bf16.mxu0 %v648
  %1024 = vmatpush1.bf16.msra.mxu0 %v647
  %1025 = vmatprep.subr.bf16.mxu0 %v654
  %1026 = vmatpush1.bf16.msra.mxu0 %v653
  %1027 = vmatprep.subr.bf16.mxu0 %v660
  %1028 = vmatpush1.bf16.msra.mxu0 %v659
  %1029 = vmatprep.subr.bf16.mxu0 %v666
  %1030 = vmatpush1.bf16.msra.mxu0 %v665
  %1031 = vmatprep.subr.bf16.mxu0 %v672
  %1032 = vmatpush1.bf16.msra.mxu0 %v671
  %1033 = vmatprep.subr.bf16.mxu0 %v678
  %1034 = vmatpush1.bf16.msra.mxu0 %v677
  %1035 = vmatprep.subr.bf16.mxu0 %v684
  %1036 = vmatpush1.bf16.msra.mxu0 %v683
  %1037 = vmatprep.subr.bf16.mxu0 %v690
  %1038 = vmatpush1.bf16.msra.mxu0 %v689
  %1039 = vmatprep.subr.bf16.mxu0 %v696
  %1040 = vmatpush1.bf16.msra.mxu0 %v695
  %1041 = vmatprep.subr.bf16.mxu0 %v702
  %1042 = vmatpush1.bf16.msra.mxu0 %v701
  %1043 = vmatprep.subr.bf16.mxu0 %v708
  %1044 = vmatpush1.bf16.msra.mxu0 %v707
  %1045 = vmatprep.subr.bf16.mxu0 %v714
  %1046 = vmatpush1.bf16.msra.mxu0 %v713
  %1047 = vmatprep.subr.bf16.mxu0 %v720
  %1048 = vmatpush1.bf16.msra.mxu0 %v719
  %1049 = vmatprep.subr.bf16.mxu0 %v726
  %1050 = vmatpush1.bf16.msra.mxu0 %v725
  %1051 = vmatprep.mubr.bf16.mxu0 %v177
  %1052 = vmatmul.mubr.bf16.gmra.mrb[0].mxu0 %v176
  %v1053 = vpop.f32.mrb[0].mxu0
  %v1054 = vadd.f32 0.0, %v1053
  %v1055 = vpop.f32.mrb[0].mxu0
  %v1056 = vadd.f32 0.0, %v1055
  %v1057 = vpop.f32.mrb[0].mxu0
  %v1058 = vpop.f32.mrb[0].mxu0
  %1059 = vdwg.mxu0
  %1060 = vmatprep.subr.bf16.mxu0 %v732
  %1061 = vmatpush1.bf16.msra.mxu0 %v731
  %1062 = vmatprep.subr.bf16.mxu0 %v738
  %1063 = vmatpush1.bf16.msra.mxu0 %v737
  %1064 = vmatprep.subr.bf16.mxu0 %v744
  %1065 = vmatpush1.bf16.msra.mxu0 %v743
  %1066 = vmatprep.subr.bf16.mxu0 %v750
  %1067 = vmatpush1.bf16.msra.mxu0 %v749
  %1068 = vmatprep.subr.bf16.mxu0 %v756
  %1069 = vmatpush1.bf16.msra.mxu0 %v755
  %1070 = vmatprep.subr.bf16.mxu0 %v762
  %1071 = vmatpush1.bf16.msra.mxu0 %v761
  %1072 = vmatprep.subr.bf16.mxu0 %v768
  %1073 = vmatpush1.bf16.msra.mxu0 %v767
  %1074 = vmatprep.subr.bf16.mxu0 %v774
  %1075 = vmatpush1.bf16.msra.mxu0 %v773
  %1076 = vmatprep.subr.bf16.mxu0 %v780
  %1077 = vmatpush1.bf16.msra.mxu0 %v779
  %1078 = vmatprep.subr.bf16.mxu0 0
  %1079 = vmatpush1.bf16.msra.mxu0 0
  %1080 = vmatprep.subr.bf16.mxu0 0
  %1081 = vmatpush1.bf16.msra.mxu0 0
  %1082 = vmatprep.subr.bf16.mxu0 0
  %1083 = vmatpush1.bf16.msra.mxu0 0
  %1084 = vmatprep.subr.bf16.mxu0 0
  %1085 = vmatpush1.bf16.msra.mxu0 0
  %1086 = vmatprep.subr.bf16.mxu0 0
  %1087 = vmatpush1.bf16.msra.mxu0 0
  %1088 = vmatprep.subr.bf16.mxu0 0
  %1089 = vmatpush1.bf16.msra.mxu0 0
  %1090 = vmatprep.subr.bf16.mxu0 0
  %1091 = vmatpush1.bf16.msra.mxu0 0
  %1092 = vmatprep.mubr.bf16.mxu0 %v935
  %1093 = vmatmul.mubr.bf16.gmra.mrb[0].mxu0 %v178
  %v1094 = vpop.f32.mrb[0].mxu0
  %v1095 = vadd.f32 %v1054, %v1094
  %v1096 = vpop.f32.mrb[0].mxu0
  %v1097 = vadd.f32 %v1056, %v1096
  %v1098 = vpop.f32.mrb[0].mxu0
  %v1099 = vpop.f32.mrb[0].mxu0
  %1100 = vdwg.mxu0
  %1101 = vmatprep.subr.bf16.mxu0 %v638
  %1102 = vmatpush1.bf16.msra.mxu0 %v637
  %1103 = vmatprep.subr.bf16.mxu0 %v644
  %1104 = vmatpush1.bf16.msra.mxu0 %v643
  %1105 = vmatprep.subr.bf16.mxu0 %v650
  %1106 = vmatpush1.bf16.msra.mxu0 %v649
  %1107 = vmatprep.subr.bf16.mxu0 %v656
  %1108 = vmatpush1.bf16.msra.mxu0 %v655
  %1109 = vmatprep.subr.bf16.mxu0 %v662
  %1110 = vmatpush1.bf16.msra.mxu0 %v661
  %1111 = vmatprep.subr.bf16.mxu0 %v668
  %1112 = vmatpush1.bf16.msra.mxu0 %v667
  %1113 = vmatprep.subr.bf16.mxu0 %v674
  %1114 = vmatpush1.bf16.msra.mxu0 %v673
  %1115 = vmatprep.subr.bf16.mxu0 %v680
  %1116 = vmatpush1.bf16.msra.mxu0 %v679
  %1117 = vmatprep.subr.bf16.mxu0 %v686
  %1118 = vmatpush1.bf16.msra.mxu0 %v685
  %1119 = vmatprep.subr.bf16.mxu0 %v692
  %1120 = vmatpush1.bf16.msra.mxu0 %v691
  %1121 = vmatprep.subr.bf16.mxu0 %v698
  %1122 = vmatpush1.bf16.msra.mxu0 %v697
  %1123 = vmatprep.subr.bf16.mxu0 %v704
  %1124 = vmatpush1.bf16.msra.mxu0 %v703
  %1125 = vmatprep.subr.bf16.mxu0 %v710
  %1126 = vmatpush1.bf16.msra.mxu0 %v709
  %1127 = vmatprep.subr.bf16.mxu0 %v716
  %1128 = vmatpush1.bf16.msra.mxu0 %v715
  %1129 = vmatprep.subr.bf16.mxu0 %v722
  %1130 = vmatpush1.bf16.msra.mxu0 %v721
  %1131 = vmatprep.subr.bf16.mxu0 %v728
  %1132 = vmatpush1.bf16.msra.mxu0 %v727
  %1133 = vmatprep.mubr.bf16.mxu0 %v177
  %1134 = vmatmul.mubr.bf16.gmra.mrb[0].mxu0 %v176
  %v1135 = vpop.f32.mrb[0].mxu0
  %v1136 = vadd.f32 0.0, %v1135
  %v1137 = vpop.f32.mrb[0].mxu0
  %v1138 = vadd.f32 0.0, %v1137
  %v1139 = vpop.f32.mrb[0].mxu0
  %v1140 = vpop.f32.mrb[0].mxu0
  %1141 = vdwg.mxu0
  %1142 = vmatprep.subr.bf16.mxu0 %v734
  %1143 = vmatpush1.bf16.msra.mxu0 %v733
  %1144 = vmatprep.subr.bf16.mxu0 %v740
  %1145 = vmatpush1.bf16.msra.mxu0 %v739
  %1146 = vmatprep.subr.bf16.mxu0 %v746
  %1147 = vmatpush1.bf16.msra.mxu0 %v745
  %1148 = vmatprep.subr.bf16.mxu0 %v752
  %1149 = vmatpush1.bf16.msra.mxu0 %v751
  %1150 = vmatprep.subr.bf16.mxu0 %v758
  %1151 = vmatpush1.bf16.msra.mxu0 %v757
  %1152 = vmatprep.subr.bf16.mxu0 %v764
  %1153 = vmatpush1.bf16.msra.mxu0 %v763
  %1154 = vmatprep.subr.bf16.mxu0 %v770
  %1155 = vmatpush1.bf16.msra.mxu0 %v769
  %1156 = vmatprep.subr.bf16.mxu0 %v776
  %1157 = vmatpush1.bf16.msra.mxu0 %v775
  %1158 = vmatprep.subr.bf16.mxu0 %v782
  %1159 = vmatpush1.bf16.msra.mxu0 %v781
  %1160 = vmatprep.subr.bf16.mxu0 0
  %1161 = vmatpush1.bf16.msra.mxu0 0
  %1162 = vmatprep.subr.bf16.mxu0 0
  %1163 = vmatpush1.bf16.msra.mxu0 0
  %1164 = vmatprep.subr.bf16.mxu0 0
  %1165 = vmatpush1.bf16.msra.mxu0 0
  %1166 = vmatprep.subr.bf16.mxu0 0
  %1167 = vmatpush1.bf16.msra.mxu0 0
  %1168 = vmatprep.subr.bf16.mxu0 0
  %1169 = vmatpush1.bf16.msra.mxu0 0
  %1170 = vmatprep.subr.bf16.mxu0 0
  %1171 = vmatpush1.bf16.msra.mxu0 0
  %1172 = vmatprep.subr.bf16.mxu0 0
  %1173 = vmatpush1.bf16.msra.mxu0 0
  %1174 = vmatprep.mubr.bf16.mxu0 %v935
  %1175 = vmatmul.mubr.bf16.gmra.mrb[0].mxu0 %v178
  %v1176 = vpop.f32.mrb[0].mxu0
  %v1177 = vadd.f32 %v1136, %v1176
  %v1178 = vpop.f32.mrb[0].mxu0
  %v1179 = vadd.f32 %v1138, %v1178
  %v1180 = vpop.f32.mrb[0].mxu0
  %v1181 = vpop.f32.mrb[0].mxu0
  %1182 = vdwg.mxu0
  %v1183 = vld [vmem:[%s2] sm:$0x3f]
  %v1185 = vlaneseq
  %v1186 = vshrl.u32 %v1185, 7
  %v1187 = vsub.s32 0, %v1186
  %v1188 = vrot.slane %v1183, %v1187
  %v1189 = vlaneseq
  %v1190 = vshrl.u32 %v1189, 7
  %v1191 = vsub.s32 1, %v1190
  %v1192 = vrot.slane %v1183, %v1191
  %v1193 = vlaneseq
  %v1194 = vshrl.u32 %v1193, 7
  %v1195 = vsub.s32 2, %v1194
  %v1196 = vrot.slane %v1183, %v1195
  %v1197 = vlaneseq
  %v1198 = vshrl.u32 %v1197, 7
  %v1199 = vsub.s32 3, %v1198
  %v1200 = vrot.slane %v1183, %v1199
  %v1201 = vlaneseq
  %v1202 = vshrl.u32 %v1201, 7
  %v1203 = vsub.s32 4, %v1202
  %v1204 = vrot.slane %v1183, %v1203
  %v1205 = vlaneseq
  %v1206 = vshrl.u32 %v1205, 7
  %v1207 = vsub.s32 5, %v1206
  %v1208 = vrot.slane %v1183, %v1207
  %v1215 = vmul.f32 %v1013, %v1188
  %v1216 = vmul.f32 %v1015, %v1192
  %v1217 = vmul.f32 %v1095, %v1196
  %v1218 = vmul.f32 %v1097, %v1200
  %v1219 = vmul.f32 %v1177, %v1204
  %v1220 = vmul.f32 %v1179, %v1208
  %v1221 = vld [vmem:[%s3] sm:$0x3f]
  %v1223 = vlaneseq
  %v1224 = vshrl.u32 %v1223, 7
  %v1225 = vsub.s32 0, %v1224
  %v1226 = vrot.slane %v1221, %v1225
  %v1227 = vlaneseq
  %v1228 = vshrl.u32 %v1227, 7
  %v1229 = vsub.s32 1, %v1228
  %v1230 = vrot.slane %v1221, %v1229
  %v1231 = vlaneseq
  %v1232 = vshrl.u32 %v1231, 7
  %v1233 = vsub.s32 2, %v1232
  %v1234 = vrot.slane %v1221, %v1233
  %v1235 = vlaneseq
  %v1236 = vshrl.u32 %v1235, 7
  %v1237 = vsub.s32 3, %v1236
  %v1238 = vrot.slane %v1221, %v1237
  %v1239 = vlaneseq
  %v1240 = vshrl.u32 %v1239, 7
  %v1241 = vsub.s32 4, %v1240
  %v1242 = vrot.slane %v1221, %v1241
  %v1243 = vlaneseq
  %v1244 = vshrl.u32 %v1243, 7
  %v1245 = vsub.s32 5, %v1244
  %v1246 = vrot.slane %v1221, %v1245
  %v1253 = vadd.f32 %v1215, %v1226
  %v1254 = vadd.f32 %v1216, %v1230
  %v1255 = vadd.f32 %v1217, %v1234
  %v1256 = vadd.f32 %v1218, %v1238
  %v1257 = vadd.f32 %v1219, %v1242
  %v1258 = vadd.f32 %v1220, %v1246
  %vm1259 = vcmp.ge.f32.partialorder %v1253, 0.0
  %vm1260 = vcmp.ge.f32.partialorder %v1254, 0.0
  %vm1261 = vcmp.ge.f32.partialorder %v1255, 0.0
  %vm1262 = vcmp.ge.f32.partialorder %v1256, 0.0
  %vm1263 = vcmp.ge.f32.partialorder %v1257, 0.0
  %vm1264 = vcmp.ge.f32.partialorder %v1258, 0.0
  %v1265 = vmul.f32 %v1253, 0.2
  %v1266 = vmul.f32 %v1254, 0.2
  %v1267 = vmul.f32 %v1255, 0.2
  %v1268 = vmul.f32 %v1256, 0.2
  %v1269 = vmul.f32 %v1257, 0.2
  %v1270 = vmul.f32 %v1258, 0.2
  %v1271 = vsel %vm1259, %v1253, %v1265
  %v1272 = vsel %vm1260, %v1254, %v1266
  %v1273 = vsel %vm1261, %v1255, %v1267
  %v1274 = vsel %vm1262, %v1256, %v1268
  %v1275 = vsel %vm1263, %v1257, %v1269
  %v1276 = vsel %vm1264, %v1258, %v1270
  %v1277 = vxor.u32 %v1271, 2147483648
  %v1278 = vxor.u32 %v1272, 2147483648
  %v1279 = vxor.u32 %v1273, 2147483648
  %v1280 = vxor.u32 %v1274, 2147483648
  %v1281 = vxor.u32 %v1275, 2147483648
  %v1282 = vxor.u32 %v1276, 2147483648
  %v1283 = vmul.f32 %v1277, 1.442695
  %v1284 = vpow.pop %v1283
  %v1285 = vmul.f32 %v1278, 1.442695
  %v1286 = vpow.pop %v1285
  %v1287 = vmul.f32 %v1279, 1.442695
  %v1288 = vpow.pop %v1287
  %v1289 = vmul.f32 %v1280, 1.442695
  %v1290 = vpow.pop %v1289
  %v1291 = vmul.f32 %v1281, 1.442695
  %v1292 = vpow.pop %v1291
  %v1293 = vmul.f32 %v1282, 1.442695
  %v1294 = vpow.pop %v1293
  %v1295 = vadd.f32 %v1284, 1.0
  %v1296 = vadd.f32 %v1286, 1.0
  %v1297 = vadd.f32 %v1288, 1.0
  %v1298 = vadd.f32 %v1290, 1.0
  %v1299 = vadd.f32 %v1292, 1.0
  %v1300 = vadd.f32 %v1294, 1.0
  %v1301 = vrcp.pop %v1295
  %v1302 = vmul.f32 1.0, %v1301
  %v1303 = vrcp.pop %v1296
  %v1304 = vmul.f32 1.0, %v1303
  %v1305 = vrcp.pop %v1297
  %v1306 = vmul.f32 1.0, %v1305
  %v1307 = vrcp.pop %v1298
  %v1308 = vmul.f32 1.0, %v1307
  %v1309 = vrcp.pop %v1299
  %v1310 = vmul.f32 1.0, %v1309
  %v1311 = vrcp.pop %v1300
  %v1312 = vmul.f32 1.0, %v1311
  %1313 = vst [vmem:[%s4] sm:$0xff] %v1302
  %1314 = vst [vmem:[%s4 + $0x8] sm:$0xff] %v1304
  %1315 = vst [vmem:[%s4 + $0x10] sm:$0xff] %v1306
  %1316 = vst [vmem:[%s4 + $0x18] sm:$0xff] %v1308
  %1317 = vst [vmem:[%s4 + $0x20] sm:$0xff] %v1310
  %1318 = vst [vmem:[%s4 + $0x28] sm:$0xff] %v1312
  // Predicated region
  $region18: #{subpixel_conv_forward.7} parent=0 // pred_check
    _
  $region19: #{subpixel_conv_forward.7} parent=0 // pred_check_branch
    %1320 = sbr.rel (0) target = $region21
  $region20: #{subpixel_conv_forward.7} parent=0 // pred_region
    _
  $region21: #{subpixel_conv_forward.7} parent=0 // pred_fallthru
    _
  // Predicated region
  $region22: #{subpixel_conv_forward.7} parent=0 // pred_check
    _
  $region23: #{subpixel_conv_forward.7} parent=0 // pred_check_branch
    %1322 = sbr.rel (0) target = $region25
  $region24: #{subpixel_conv_forward.7} parent=0 // pred_region
    _
  $region25: #{subpixel_conv_forward.7} parent=0 // pred_fallthru
    _

// kernel: subpixel_conv_forward.6
$region0: #{subpixel_conv_forward.6}
  #allocation0 [shape = 'u32[]', space=smem, size = 0x4, offset = 0x4, fixed_abs, tag = 'smem constant byte address 0x4 - core index']
  #allocation1 [shape = 'u32[144,128]{1,0:T(1,128)}', space=vmem, size = 0x12000, scoped, tag = 'internal scratch']
  %s0 = inlined_call_operand.vmem [shape: bf16[50,1800], index: 0, kind: input, shape index: {}]
  %s1 = inlined_call_operand.vmem [shape: bf16[1800,400], index: 1, kind: input, shape index: {}]
  %s2 = inlined_call_operand.vmem [shape: f32[1,400], index: 2, kind: input, shape index: {}]
  %s3 = inlined_call_operand.vmem [shape: f32[1,400], index: 3, kind: input, shape index: {}]
  %s4 = inlined_call_operand.vmem [shape: bf16[50,400], index: 4, kind: output, shape index: {}]
  %s5 = sld [smem:[#allocation0]]
  $region26: #{subpixel_conv_forward.6} parent=0
    _
  %s7 = ssub.s32 1, %s5
  %s8 = scalar_select 0, %s7, %s5
  // Predicated region
  $region2: #{subpixel_conv_forward.6} parent=0 // pred_check
    _
  $region3: #{subpixel_conv_forward.6} parent=0 // pred_check_branch
    %10 = sbr.rel (0) target = $region5
  $region4: #{subpixel_conv_forward.6} parent=0 // pred_region
    _
  $region5: #{subpixel_conv_forward.6} parent=0 // pred_fallthru
    _
  // Predicated region
  $region6: #{subpixel_conv_forward.6} parent=0 // pred_check
    _
  $region7: #{subpixel_conv_forward.6} parent=0 // pred_check_branch
    %12 = sbr.rel (0) target = $region9
  $region8: #{subpixel_conv_forward.6} parent=0 // pred_region
    _
  $region9: #{subpixel_conv_forward.6} parent=0 // pred_fallthru
    _
  // Predicated region
  $region10: #{subpixel_conv_forward.6} parent=0 // pred_check
    _
  $region11: #{subpixel_conv_forward.6} parent=0 // pred_check_branch
    %14 = sbr.rel (0) target = $region13
  $region12: #{subpixel_conv_forward.6} parent=0 // pred_region
    _
  $region13: #{subpixel_conv_forward.6} parent=0 // pred_fallthru
    _
  // Predicated region
  $region14: #{subpixel_conv_forward.6} parent=0 // pred_check
    _
  $region15: #{subpixel_conv_forward.6} parent=0 // pred_check_branch
    %16 = sbr.rel (0) target = $region17
  $region16: #{subpixel_conv_forward.6} parent=0 // pred_region
    _
  $region17: #{subpixel_conv_forward.6} parent=0 // pred_fallthru
    _
  %v18 = vld [vmem:[%s0] sm:$0xff]
  %v19 = vld [vmem:[%s0 + $0x8] sm:$0xff]
  %v20 = vld [vmem:[%s0 + $0x10] sm:$0xff]
  %v21 = vld [vmem:[%s0 + $0x18] sm:$0xff]
  %v22 = vld [vmem:[%s0 + $0x20] sm:$0xff]
  %v23 = vld [vmem:[%s0 + $0x28] sm:$0xff]
  %v24 = vld [vmem:[%s0 + $0x30] sm:$0xff]
  %v25 = vld [vmem:[%s0 + $0x38] sm:$0xf]
  %v26 = vld [vmem:[%s0 + $0x3c] sm:$0xff]
  %v27 = vld [vmem:[%s0 + $0x44] sm:$0xff]
  %v28 = vld [vmem:[%s0 + $0x4c] sm:$0xff]
  %v29 = vld [vmem:[%s0 + $0x54] sm:$0xff]
  %v30 = vld [vmem:[%s0 + $0x5c] sm:$0xff]
  %v31 = vld [vmem:[%s0 + $0x64] sm:$0xff]
  %v32 = vld [vmem:[%s0 + $0x6c] sm:$0xff]
  %v33 = vld [vmem:[%s0 + $0x74] sm:$0xf]
  %v34 = vld [vmem:[%s0 + $0x78] sm:$0xff]
  %v35 = vld [vmem:[%s0 + $0x80] sm:$0xff]
  %v36 = vld [vmem:[%s0 + $0x88] sm:$0xff]
  %v37 = vld [vmem:[%s0 + $0x90] sm:$0xff]
  %v38 = vld [vmem:[%s0 + $0x98] sm:$0xff]
  %v39 = vld [vmem:[%s0 + $0xa0] sm:$0xff]
  %v40 = vld [vmem:[%s0 + $0xa8] sm:$0xff]
  %v41 = vld [vmem:[%s0 + $0xb0] sm:$0xf]
  %v42 = vld [vmem:[%s0 + $0xb4] sm:$0xff]
  %v43 = vld [vmem:[%s0 + $0xbc] sm:$0xff]
  %v44 = vld [vmem:[%s0 + $0xc4] sm:$0xff]
  %v45 = vld [vmem:[%s0 + $0xcc] sm:$0xff]
  %v46 = vld [vmem:[%s0 + $0xd4] sm:$0xff]
  %v47 = vld [vmem:[%s0 + $0xdc] sm:$0xff]
  %v48 = vld [vmem:[%s0 + $0xe4] sm:$0xff]
  %v49 = vld [vmem:[%s0 + $0xec] sm:$0xf]
  %v50 = vld [vmem:[%s0 + $0xf0] sm:$0xff]
  %v51 = vld [vmem:[%s0 + $0xf8] sm:$0xff]
  %v52 = vld [vmem:[%s0 + $0x100] sm:$0xff]
  %v53 = vld [vmem:[%s0 + $0x108] sm:$0xff]
  %v54 = vld [vmem:[%s0 + $0x110] sm:$0xff]
  %v55 = vld [vmem:[%s0 + $0x118] sm:$0xff]
  %v56 = vld [vmem:[%s0 + $0x120] sm:$0xff]
  %v57 = vld [vmem:[%s0 + $0x128] sm:$0xf]
  %v58 = vld [vmem:[%s0 + $0x12c] sm:$0xff]
  %v59 = vld [vmem:[%s0 + $0x134] sm:$0xff]
  %v60 = vld [vmem:[%s0 + $0x13c] sm:$0xff]
  %v61 = vld [vmem:[%s0 + $0x144] sm:$0xff]
  %v62 = vld [vmem:[%s0 + $0x14c] sm:$0xff]
  %v63 = vld [vmem:[%s0 + $0x154] sm:$0xff]
  %v64 = vld [vmem:[%s0 + $0x15c] sm:$0xff]
  %v65 = vld [vmem:[%s0 + $0x164] sm:$0xf]
  %v66 = vld [vmem:[%s0 + $0x168] sm:$0x11]
  %v67 = vld [vmem:[%s0 + $0x170] sm:$0x11]
  %v68 = vld [vmem:[%s0 + $0x178] sm:$0x11]
  %v69 = vld [vmem:[%s0 + $0x180] sm:$0x11]
  %v70 = vld [vmem:[%s0 + $0x188] sm:$0x11]
  %v71 = vld [vmem:[%s0 + $0x190] sm:$0x11]
  %v72 = vld [vmem:[%s0 + $0x198] sm:$0x11]
  %v73 = vld [vmem:[%s0 + $0x1a0] sm:$0x1]
  %v74 = vld [vmem:[%s1] sm:$0xff]
  %v75 = vld [vmem:[%s1 + $0x8] sm:$0xff]
  %v76 = vld [vmem:[%s1 + $0x10] sm:$0xff]
  %v77 = vld [vmem:[%s1 + $0x18] sm:$0xff]
  %v78 = vld [vmem:[%s1 + $0x20] sm:$0xff]
  %v79 = vld [vmem:[%s1 + $0x28] sm:$0xff]
  %v80 = vld [vmem:[%s1 + $0x30] sm:$0xff]
  %v81 = vld [vmem:[%s1 + $0x38] sm:$0xff]
  %v82 = vld [vmem:[%s1 + $0x40] sm:$0xff]
  %v83 = vld [vmem:[%s1 + $0x48] sm:$0xff]
  %v84 = vld [vmem:[%s1 + $0x50] sm:$0xff]
  %v85 = vld [vmem:[%s1 + $0x58] sm:$0xff]
  %v86 = vld [vmem:[%s1 + $0x60] sm:$0xff]
  %v87 = vld [vmem:[%s1 + $0x68] sm:$0xff]
  %v88 = vld [vmem:[%s1 + $0x70] sm:$0xff]
  %v89 = vld [vmem:[%s1 + $0x78] sm:$0xff]
  %v90 = vld [vmem:[%s1 + $0x80] sm:$0xff]
  %v91 = vld [vmem:[%s1 + $0x88] sm:$0xff]
  %v92 = vld [vmem:[%s1 + $0x90] sm:$0xff]
  %v93 = vld [vmem:[%s1 + $0x98] sm:$0xff]
  %v94 = vld [vmem:[%s1 + $0xa0] sm:$0xff]
  %v95 = vld [vmem:[%s1 + $0xa8] sm:$0xff]
  %v96 = vld [vmem:[%s1 + $0xb0] sm:$0xff]
  %v97 = vld [vmem:[%s1 + $0xb8] sm:$0xff]
  %v98 = vld [vmem:[%s1 + $0xc0] sm:$0xff]
  %v99 = vld [vmem:[%s1 + $0xc8] sm:$0xff]
  %v100 = vld [vmem:[%s1 + $0xd0] sm:$0xff]
  %v101 = vld [vmem:[%s1 + $0xd8] sm:$0xff]
  %v102 = vld [vmem:[%s1 + $0xe0] sm:$0xff]
  %v103 = vld [vmem:[%s1 + $0xe8] sm:$0xff]
  %v104 = vld [vmem:[%s1 + $0xf0] sm:$0xff]
  %v105 = vld [vmem:[%s1 + $0xf8] sm:$0xff]
  %v106 = vld [vmem:[%s1 + $0x100] sm:$0xff]
  %v107 = vld [vmem:[%s1 + $0x108] sm:$0xff]
  %v108 = vld [vmem:[%s1 + $0x110] sm:$0xff]
  %v109 = vld [vmem:[%s1 + $0x118] sm:$0xff]
  %v110 = vld [vmem:[%s1 + $0x120] sm:$0xff]
  %v111 = vld [vmem:[%s1 + $0x128] sm:$0xff]
  %v112 = vld [vmem:[%s1 + $0x130] sm:$0xff]
  %v113 = vld [vmem:[%s1 + $0x138] sm:$0xff]
  %v114 = vld [vmem:[%s1 + $0x140] sm:$0xff]
  %v115 = vld [vmem:[%s1 + $0x148] sm:$0xff]
  %v116 = vld [vmem:[%s1 + $0x150] sm:$0xff]
  %v117 = vld [vmem:[%s1 + $0x158] sm:$0xff]
  %v118 = vld [vmem:[%s1 + $0x160] sm:$0xff]
  %v119 = vld [vmem:[%s1 + $0x168] sm:$0xff]
  %v120 = vld [vmem:[%s1 + $0x170] sm:$0xff]
  %v121 = vld [vmem:[%s1 + $0x178] sm:$0xff]
  %v122 = vld [vmem:[%s1 + $0x180] sm:$0xff]
  %v123 = vld [vmem:[%s1 + $0x188] sm:$0xff]
  %v124 = vld [vmem:[%s1 + $0x190] sm:$0xff]
  %v125 = vld [vmem:[%s1 + $0x198] sm:$0xff]
  %v126 = vld [vmem:[%s1 + $0x1a0] sm:$0xff]
  %v127 = vld [vmem:[%s1 + $0x1a8] sm:$0xff]
  %v128 = vld [vmem:[%s1 + $0x1b0] sm:$0xff]
  %v129 = vld [vmem:[%s1 + $0x1b8] sm:$0xff]
  %v130 = vld [vmem:[%s1 + $0x1c0] sm:$0xff]
  %v131 = vld [vmem:[%s1 + $0x1c8] sm:$0xff]
  %v132 = vld [vmem:[%s1 + $0x1d0] sm:$0xff]
  %v133 = vld [vmem:[%s1 + $0x1d8] sm:$0xff]
  %v134 = vld [vmem:[%s1 + $0x1e0] sm:$0xff]
  %v135 = vld [vmem:[%s1 + $0x1e8] sm:$0xff]
  %v136 = vld [vmem:[%s1 + $0x1f0] sm:$0xff]
  %v137 = vld [vmem:[%s1 + $0x1f8] sm:$0xff]
  %v138 = vld [vmem:[%s1 + $0x200] sm:$0xff]
  %v139 = vld [vmem:[%s1 + $0x208] sm:$0xff]
  %v140 = vld [vmem:[%s1 + $0x210] sm:$0xff]
  %v141 = vld [vmem:[%s1 + $0x218] sm:$0xff]
  %v142 = vld [vmem:[%s1 + $0x220] sm:$0xff]
  %v143 = vld [vmem:[%s1 + $0x228] sm:$0xff]
  %v144 = vld [vmem:[%s1 + $0x230] sm:$0xff]
  %v145 = vld [vmem:[%s1 + $0x238] sm:$0xff]
  %v146 = vld [vmem:[%s1 + $0x240] sm:$0xff]
  %v147 = vld [vmem:[%s1 + $0x248] sm:$0xff]
  %v148 = vld [vmem:[%s1 + $0x250] sm:$0xff]
  %v149 = vld [vmem:[%s1 + $0x258] sm:$0xff]
  %v150 = vld [vmem:[%s1 + $0x260] sm:$0xff]
  %v151 = vld [vmem:[%s1 + $0x268] sm:$0xff]
  %v152 = vld [vmem:[%s1 + $0x270] sm:$0xff]
  %v153 = vld [vmem:[%s1 + $0x278] sm:$0xff]
  %v154 = vld [vmem:[%s1 + $0x280] sm:$0xff]
  %v155 = vld [vmem:[%s1 + $0x288] sm:$0xff]
  %v156 = vld [vmem:[%s1 + $0x290] sm:$0xff]
  %v157 = vld [vmem:[%s1 + $0x298] sm:$0xff]
  %v158 = vld [vmem:[%s1 + $0x2a0] sm:$0xff]
  %v159 = vld [vmem:[%s1 + $0x2a8] sm:$0xff]
  %v160 = vld [vmem:[%s1 + $0x2b0] sm:$0xff]
  %v161 = vld [vmem:[%s1 + $0x2b8] sm:$0xff]
  %v162 = vld [vmem:[%s1 + $0x2c0] sm:$0xff]
  %v163 = vld [vmem:[%s1 + $0x2c8] sm:$0xff]
  %v164 = vld [vmem:[%s1 + $0x2d0] sm:$0xff]
  %v165 = vld [vmem:[%s1 + $0x2d8] sm:$0xff]
  %v166 = vld [vmem:[%s1 + $0x2e0] sm:$0xff]
  %v167 = vld [vmem:[%s1 + $0x2e8] sm:$0xff]
  %v168 = vld [vmem:[%s1 + $0x2f0] sm:$0xff]
  %v169 = vld [vmem:[%s1 + $0x2f8] sm:$0xff]
  %v170 = vld [vmem:[%s1 + $0x300] sm:$0xff]
  %v171 = vld [vmem:[%s1 + $0x308] sm:$0xff]
  %v172 = vld [vmem:[%s1 + $0x310] sm:$0xff]
  %v173 = vld [vmem:[%s1 + $0x318] sm:$0xff]
  %v174 = vld [vmem:[%s1 + $0x320] sm:$0xff]
  %v175 = vld [vmem:[%s1 + $0x328] sm:$0xff]
  %v176 = vld [vmem:[%s1 + $0x330] sm:$0xff]
  %v177 = vld [vmem:[%s1 + $0x338] sm:$0xff]
  %v178 = vld [vmem:[%s1 + $0x340] sm:$0xff]
  %v179 = vld [vmem:[%s1 + $0x348] sm:$0xff]
  %v180 = vld [vmem:[%s1 + $0x350] sm:$0xff]
  %v181 = vld [vmem:[%s1 + $0x358] sm:$0xff]
  %v182 = vld [vmem:[%s1 + $0x360] sm:$0xff]
  %v183 = vld [vmem:[%s1 + $0x368] sm:$0xff]
  %v184 = vld [vmem:[%s1 + $0x370] sm:$0xff]
  %v185 = vld [vmem:[%s1 + $0x378] sm:$0xff]
  %v186 = vld [vmem:[%s1 + $0x380] sm:$0xff]
  %v187 = vld [vmem:[%s1 + $0x388] sm:$0xff]
  %v188 = vld [vmem:[%s1 + $0x390] sm:$0xff]
  %v189 = vld [vmem:[%s1 + $0x398] sm:$0xff]
  %v190 = vld [vmem:[%s1 + $0x3a0] sm:$0xff]
  %v191 = vld [vmem:[%s1 + $0x3a8] sm:$0xff]
  %v192 = vld [vmem:[%s1 + $0x3b0] sm:$0xff]
  %v193 = vld [vmem:[%s1 + $0x3b8] sm:$0xff]
  %v194 = vld [vmem:[%s1 + $0x3c0] sm:$0xff]
  %v195 = vld [vmem:[%s1 + $0x3c8] sm:$0xff]
  %v196 = vld [vmem:[%s1 + $0x3d0] sm:$0xff]
  %v197 = vld [vmem:[%s1 + $0x3d8] sm:$0xff]
  %v198 = vld [vmem:[%s1 + $0x3e0] sm:$0xff]
  %v199 = vld [vmem:[%s1 + $0x3e8] sm:$0xff]
  %v200 = vld [vmem:[%s1 + $0x3f0] sm:$0xff]
  %v201 = vld [vmem:[%s1 + $0x3f8] sm:$0xff]
  %v202 = vld [vmem:[%s1 + $0x400] sm:$0xff]
  %v203 = vld [vmem:[%s1 + $0x408] sm:$0xff]
  %v204 = vld [vmem:[%s1 + $0x410] sm:$0xff]
  %v205 = vld [vmem:[%s1 + $0x418] sm:$0xff]
  %v206 = vld [vmem:[%s1 + $0x420] sm:$0xff]
  %v207 = vld [vmem:[%s1 + $0x428] sm:$0xff]
  %v208 = vld [vmem:[%s1 + $0x430] sm:$0xff]
  %v209 = vld [vmem:[%s1 + $0x438] sm:$0xff]
  %v210 = vld [vmem:[%s1 + $0x440] sm:$0xff]
  %v211 = vld [vmem:[%s1 + $0x448] sm:$0xff]
  %v212 = vld [vmem:[%s1 + $0x450] sm:$0xff]
  %v213 = vld [vmem:[%s1 + $0x458] sm:$0xff]
  %v214 = vld [vmem:[%s1 + $0x460] sm:$0xff]
  %v215 = vld [vmem:[%s1 + $0x468] sm:$0xff]
  %v216 = vld [vmem:[%s1 + $0x470] sm:$0xff]
  %v217 = vld [vmem:[%s1 + $0x478] sm:$0xff]
  %v218 = vld [vmem:[%s1 + $0x480] sm:$0xff]
  %v219 = vld [vmem:[%s1 + $0x488] sm:$0xff]
  %v220 = vld [vmem:[%s1 + $0x490] sm:$0xff]
  %v221 = vld [vmem:[%s1 + $0x498] sm:$0xff]
  %v222 = vld [vmem:[%s1 + $0x4a0] sm:$0xff]
  %v223 = vld [vmem:[%s1 + $0x4a8] sm:$0xff]
  %v224 = vld [vmem:[%s1 + $0x4b0] sm:$0xff]
  %v225 = vld [vmem:[%s1 + $0x4b8] sm:$0xff]
  %v226 = vld [vmem:[%s1 + $0x4c0] sm:$0xff]
  %v227 = vld [vmem:[%s1 + $0x4c8] sm:$0xff]
  %v228 = vld [vmem:[%s1 + $0x4d0] sm:$0xff]
  %v229 = vld [vmem:[%s1 + $0x4d8] sm:$0xff]
  %v230 = vld [vmem:[%s1 + $0x4e0] sm:$0xff]
  %v231 = vld [vmem:[%s1 + $0x4e8] sm:$0xff]
  %v232 = vld [vmem:[%s1 + $0x4f0] sm:$0xff]
  %v233 = vld [vmem:[%s1 + $0x4f8] sm:$0xff]
  %v234 = vld [vmem:[%s1 + $0x500] sm:$0xff]
  %v235 = vld [vmem:[%s1 + $0x508] sm:$0xff]
  %v236 = vld [vmem:[%s1 + $0x510] sm:$0xff]
  %v237 = vld [vmem:[%s1 + $0x518] sm:$0xff]
  %v238 = vld [vmem:[%s1 + $0x520] sm:$0xff]
  %v239 = vld [vmem:[%s1 + $0x528] sm:$0xff]
  %v240 = vld [vmem:[%s1 + $0x530] sm:$0xff]
  %v241 = vld [vmem:[%s1 + $0x538] sm:$0xff]
  %v242 = vld [vmem:[%s1 + $0x540] sm:$0xff]
  %v243 = vld [vmem:[%s1 + $0x548] sm:$0xff]
  %v244 = vld [vmem:[%s1 + $0x550] sm:$0xff]
  %v245 = vld [vmem:[%s1 + $0x558] sm:$0xff]
  %v246 = vld [vmem:[%s1 + $0x560] sm:$0xff]
  %v247 = vld [vmem:[%s1 + $0x568] sm:$0xff]
  %v248 = vld [vmem:[%s1 + $0x570] sm:$0xff]
  %v249 = vld [vmem:[%s1 + $0x578] sm:$0xff]
  %v250 = vld [vmem:[%s1 + $0x580] sm:$0xff]
  %v251 = vld [vmem:[%s1 + $0x588] sm:$0xff]
  %v252 = vld [vmem:[%s1 + $0x590] sm:$0xff]
  %v253 = vld [vmem:[%s1 + $0x598] sm:$0xff]
  %v254 = vld [vmem:[%s1 + $0x5a0] sm:$0xff]
  %v255 = vld [vmem:[%s1 + $0x5a8] sm:$0xff]
  %v256 = vld [vmem:[%s1 + $0x5b0] sm:$0xff]
  %v257 = vld [vmem:[%s1 + $0x5b8] sm:$0xff]
  %v258 = vld [vmem:[%s1 + $0x5c0] sm:$0xff]
  %v259 = vld [vmem:[%s1 + $0x5c8] sm:$0xff]
  %v260 = vld [vmem:[%s1 + $0x5d0] sm:$0xff]
  %v261 = vld [vmem:[%s1 + $0x5d8] sm:$0xff]
  %v262 = vld [vmem:[%s1 + $0x5e0] sm:$0xff]
  %v263 = vld [vmem:[%s1 + $0x5e8] sm:$0xff]
  %v264 = vld [vmem:[%s1 + $0x5f0] sm:$0xff]
  %v265 = vld [vmem:[%s1 + $0x5f8] sm:$0xff]
  %v266 = vld [vmem:[%s1 + $0x600] sm:$0xff]
  %v267 = vld [vmem:[%s1 + $0x608] sm:$0xff]
  %v268 = vld [vmem:[%s1 + $0x610] sm:$0xff]
  %v269 = vld [vmem:[%s1 + $0x618] sm:$0xff]
  %v270 = vld [vmem:[%s1 + $0x620] sm:$0xff]
  %v271 = vld [vmem:[%s1 + $0x628] sm:$0xff]
  %v272 = vld [vmem:[%s1 + $0x630] sm:$0xff]
  %v273 = vld [vmem:[%s1 + $0x638] sm:$0xff]
  %v274 = vld [vmem:[%s1 + $0x640] sm:$0xff]
  %v275 = vld [vmem:[%s1 + $0x648] sm:$0xff]
  %v276 = vld [vmem:[%s1 + $0x650] sm:$0xff]
  %v277 = vld [vmem:[%s1 + $0x658] sm:$0xff]
  %v278 = vld [vmem:[%s1 + $0x660] sm:$0xff]
  %v279 = vld [vmem:[%s1 + $0x668] sm:$0xff]
  %v280 = vld [vmem:[%s1 + $0x670] sm:$0xff]
  %v281 = vld [vmem:[%s1 + $0x678] sm:$0xff]
  %v282 = vld [vmem:[%s1 + $0x680] sm:$0xff]
  %v283 = vld [vmem:[%s1 + $0x688] sm:$0xff]
  %v284 = vld [vmem:[%s1 + $0x690] sm:$0xff]
  %v285 = vld [vmem:[%s1 + $0x698] sm:$0xff]
  %v286 = vld [vmem:[%s1 + $0x6a0] sm:$0xff]
  %v287 = vld [vmem:[%s1 + $0x6a8] sm:$0xff]
  %v288 = vld [vmem:[%s1 + $0x6b0] sm:$0xff]
  %v289 = vld [vmem:[%s1 + $0x6b8] sm:$0xff]
  %v290 = vld [vmem:[%s1 + $0x6c0] sm:$0xff]
  %v291 = vld [vmem:[%s1 + $0x6c8] sm:$0xff]
  %v292 = vld [vmem:[%s1 + $0x6d0] sm:$0xff]
  %v293 = vld [vmem:[%s1 + $0x6d8] sm:$0xff]
  %v294 = vld [vmem:[%s1 + $0x6e0] sm:$0xff]
  %v295 = vld [vmem:[%s1 + $0x6e8] sm:$0xff]
  %v296 = vld [vmem:[%s1 + $0x6f0] sm:$0xff]
  %v297 = vld [vmem:[%s1 + $0x6f8] sm:$0xff]
  %v298 = vld [vmem:[%s1 + $0x700] sm:$0xff]
  %v299 = vld [vmem:[%s1 + $0x708] sm:$0xff]
  %v300 = vld [vmem:[%s1 + $0x710] sm:$0xff]
  %v301 = vld [vmem:[%s1 + $0x718] sm:$0xff]
  %v302 = vld [vmem:[%s1 + $0x720] sm:$0xff]
  %v303 = vld [vmem:[%s1 + $0x728] sm:$0xff]
  %v304 = vld [vmem:[%s1 + $0x730] sm:$0xff]
  %v305 = vld [vmem:[%s1 + $0x738] sm:$0xff]
  %v306 = vld [vmem:[%s1 + $0x740] sm:$0xff]
  %v307 = vld [vmem:[%s1 + $0x748] sm:$0xff]
  %v308 = vld [vmem:[%s1 + $0x750] sm:$0xff]
  %v309 = vld [vmem:[%s1 + $0x758] sm:$0xff]
  %v310 = vld [vmem:[%s1 + $0x760] sm:$0xff]
  %v311 = vld [vmem:[%s1 + $0x768] sm:$0xff]
  %v312 = vld [vmem:[%s1 + $0x770] sm:$0xff]
  %v313 = vld [vmem:[%s1 + $0x778] sm:$0xff]
  %v314 = vld [vmem:[%s1 + $0x780] sm:$0xff]
  %v315 = vld [vmem:[%s1 + $0x788] sm:$0xff]
  %v316 = vld [vmem:[%s1 + $0x790] sm:$0xff]
  %v317 = vld [vmem:[%s1 + $0x798] sm:$0xff]
  %v318 = vld [vmem:[%s1 + $0x7a0] sm:$0xff]
  %v319 = vld [vmem:[%s1 + $0x7a8] sm:$0xff]
  %v320 = vld [vmem:[%s1 + $0x7b0] sm:$0xff]
  %v321 = vld [vmem:[%s1 + $0x7b8] sm:$0xff]
  %v322 = vld [vmem:[%s1 + $0x7c0] sm:$0xff]
  %v323 = vld [vmem:[%s1 + $0x7c8] sm:$0xff]
  %v324 = vld [vmem:[%s1 + $0x7d0] sm:$0xff]
  %v325 = vld [vmem:[%s1 + $0x7d8] sm:$0xff]
  %v326 = vld [vmem:[%s1 + $0x7e0] sm:$0xff]
  %v327 = vld [vmem:[%s1 + $0x7e8] sm:$0xff]
  %v328 = vld [vmem:[%s1 + $0x7f0] sm:$0xff]
  %v329 = vld [vmem:[%s1 + $0x7f8] sm:$0xff]
  %v330 = vld [vmem:[%s1 + $0x800] sm:$0xff]
  %v331 = vld [vmem:[%s1 + $0x808] sm:$0xff]
  %v332 = vld [vmem:[%s1 + $0x810] sm:$0xff]
  %v333 = vld [vmem:[%s1 + $0x818] sm:$0xff]
  %v334 = vld [vmem:[%s1 + $0x820] sm:$0xff]
  %v335 = vld [vmem:[%s1 + $0x828] sm:$0xff]
  %v336 = vld [vmem:[%s1 + $0x830] sm:$0xff]
  %v337 = vld [vmem:[%s1 + $0x838] sm:$0xff]
  %v338 = vld [vmem:[%s1 + $0x840] sm:$0xff]
  %v339 = vld [vmem:[%s1 + $0x848] sm:$0xff]
  %v340 = vld [vmem:[%s1 + $0x850] sm:$0xff]
  %v341 = vld [vmem:[%s1 + $0x858] sm:$0xff]
  %v342 = vld [vmem:[%s1 + $0x860] sm:$0xff]
  %v343 = vld [vmem:[%s1 + $0x868] sm:$0xff]
  %v344 = vld [vmem:[%s1 + $0x870] sm:$0xff]
  %v345 = vld [vmem:[%s1 + $0x878] sm:$0xff]
  %v346 = vld [vmem:[%s1 + $0x880] sm:$0xff]
  %v347 = vld [vmem:[%s1 + $0x888] sm:$0xff]
  %v348 = vld [vmem:[%s1 + $0x890] sm:$0xff]
  %v349 = vld [vmem:[%s1 + $0x898] sm:$0xff]
  %v350 = vld [vmem:[%s1 + $0x8a0] sm:$0xff]
  %v351 = vld [vmem:[%s1 + $0x8a8] sm:$0xff]
  %v352 = vld [vmem:[%s1 + $0x8b0] sm:$0xff]
  %v353 = vld [vmem:[%s1 + $0x8b8] sm:$0xff]
  %v354 = vld [vmem:[%s1 + $0x8c0] sm:$0xff]
  %v355 = vld [vmem:[%s1 + $0x8c8] sm:$0xff]
  %v356 = vld [vmem:[%s1 + $0x8d0] sm:$0xff]
  %v357 = vld [vmem:[%s1 + $0x8d8] sm:$0xff]
  %v358 = vld [vmem:[%s1 + $0x8e0] sm:$0xff]
  %v359 = vld [vmem:[%s1 + $0x8e8] sm:$0xff]
  %v360 = vld [vmem:[%s1 + $0x8f0] sm:$0xff]
  %v361 = vld [vmem:[%s1 + $0x8f8] sm:$0xff]
  %v362 = vld [vmem:[%s1 + $0x900] sm:$0xff]
  %v363 = vld [vmem:[%s1 + $0x908] sm:$0xff]
  %v364 = vld [vmem:[%s1 + $0x910] sm:$0xff]
  %v365 = vld [vmem:[%s1 + $0x918] sm:$0xff]
  %v366 = vld [vmem:[%s1 + $0x920] sm:$0xff]
  %v367 = vld [vmem:[%s1 + $0x928] sm:$0xff]
  %v368 = vld [vmem:[%s1 + $0x930] sm:$0xff]
  %v369 = vld [vmem:[%s1 + $0x938] sm:$0xff]
  %v370 = vld [vmem:[%s1 + $0x940] sm:$0xff]
  %v371 = vld [vmem:[%s1 + $0x948] sm:$0xff]
  %v372 = vld [vmem:[%s1 + $0x950] sm:$0xff]
  %v373 = vld [vmem:[%s1 + $0x958] sm:$0xff]
  %v374 = vld [vmem:[%s1 + $0x960] sm:$0xff]
  %v375 = vld [vmem:[%s1 + $0x968] sm:$0xff]
  %v376 = vld [vmem:[%s1 + $0x970] sm:$0xff]
  %v377 = vld [vmem:[%s1 + $0x978] sm:$0xff]
  %v378 = vld [vmem:[%s1 + $0x980] sm:$0xff]
  %v379 = vld [vmem:[%s1 + $0x988] sm:$0xff]
  %v380 = vld [vmem:[%s1 + $0x990] sm:$0xff]
  %v381 = vld [vmem:[%s1 + $0x998] sm:$0xff]
  %v382 = vld [vmem:[%s1 + $0x9a0] sm:$0xff]
  %v383 = vld [vmem:[%s1 + $0x9a8] sm:$0xff]
  %v384 = vld [vmem:[%s1 + $0x9b0] sm:$0xff]
  %v385 = vld [vmem:[%s1 + $0x9b8] sm:$0xff]
  %v386 = vld [vmem:[%s1 + $0x9c0] sm:$0xff]
  %v387 = vld [vmem:[%s1 + $0x9c8] sm:$0xff]
  %v388 = vld [vmem:[%s1 + $0x9d0] sm:$0xff]
  %v389 = vld [vmem:[%s1 + $0x9d8] sm:$0xff]
  %v390 = vld [vmem:[%s1 + $0x9e0] sm:$0xff]
  %v391 = vld [vmem:[%s1 + $0x9e8] sm:$0xff]
  %v392 = vld [vmem:[%s1 + $0x9f0] sm:$0xff]
  %v393 = vld [vmem:[%s1 + $0x9f8] sm:$0xff]
  %v394 = vld [vmem:[%s1 + $0xa00] sm:$0xff]
  %v395 = vld [vmem:[%s1 + $0xa08] sm:$0xff]
  %v396 = vld [vmem:[%s1 + $0xa10] sm:$0xff]
  %v397 = vld [vmem:[%s1 + $0xa18] sm:$0xff]
  %v398 = vld [vmem:[%s1 + $0xa20] sm:$0xff]
  %v399 = vld [vmem:[%s1 + $0xa28] sm:$0xff]
  %v400 = vld [vmem:[%s1 + $0xa30] sm:$0xff]
  %v401 = vld [vmem:[%s1 + $0xa38] sm:$0xff]
  %v402 = vld [vmem:[%s1 + $0xa40] sm:$0xff]
  %v403 = vld [vmem:[%s1 + $0xa48] sm:$0xff]
  %v404 = vld [vmem:[%s1 + $0xa50] sm:$0xff]
  %v405 = vld [vmem:[%s1 + $0xa58] sm:$0xff]
  %v406 = vld [vmem:[%s1 + $0xa60] sm:$0xff]
  %v407 = vld [vmem:[%s1 + $0xa68] sm:$0xff]
  %v408 = vld [vmem:[%s1 + $0xa70] sm:$0xff]
  %v409 = vld [vmem:[%s1 + $0xa78] sm:$0xff]
  %v410 = vld [vmem:[%s1 + $0xa80] sm:$0xff]
  %v411 = vld [vmem:[%s1 + $0xa88] sm:$0xff]
  %v412 = vld [vmem:[%s1 + $0xa90] sm:$0xff]
  %v413 = vld [vmem:[%s1 + $0xa98] sm:$0xff]
  %v414 = vld [vmem:[%s1 + $0xaa0] sm:$0xff]
  %v415 = vld [vmem:[%s1 + $0xaa8] sm:$0xff]
  %v416 = vld [vmem:[%s1 + $0xab0] sm:$0xff]
  %v417 = vld [vmem:[%s1 + $0xab8] sm:$0xff]
  %v418 = vld [vmem:[%s1 + $0xac0] sm:$0xff]
  %v419 = vld [vmem:[%s1 + $0xac8] sm:$0xff]
  %v420 = vld [vmem:[%s1 + $0xad0] sm:$0xff]
  %v421 = vld [vmem:[%s1 + $0xad8] sm:$0xff]
  %v422 = vld [vmem:[%s1 + $0xae0] sm:$0xff]
  %v423 = vld [vmem:[%s1 + $0xae8] sm:$0xff]
  %v424 = vld [vmem:[%s1 + $0xaf0] sm:$0xff]
  %v425 = vld [vmem:[%s1 + $0xaf8] sm:$0xff]
  %v426 = vld [vmem:[%s1 + $0xb00] sm:$0xff]
  %v427 = vld [vmem:[%s1 + $0xb08] sm:$0xff]
  %v428 = vld [vmem:[%s1 + $0xb10] sm:$0xff]
  %v429 = vld [vmem:[%s1 + $0xb18] sm:$0xff]
  %v430 = vld [vmem:[%s1 + $0xb20] sm:$0xff]
  %v431 = vld [vmem:[%s1 + $0xb28] sm:$0xff]
  %v432 = vld [vmem:[%s1 + $0xb30] sm:$0xff]
  %v433 = vld [vmem:[%s1 + $0xb38] sm:$0xff]
  %v434 = vld [vmem:[%s1 + $0xb40] sm:$0xff]
  %v435 = vld [vmem:[%s1 + $0xb48] sm:$0xff]
  %v436 = vld [vmem:[%s1 + $0xb50] sm:$0xff]
  %v437 = vld [vmem:[%s1 + $0xb58] sm:$0xff]
  %v438 = vld [vmem:[%s1 + $0xb60] sm:$0xff]
  %v439 = vld [vmem:[%s1 + $0xb68] sm:$0xff]
  %v440 = vld [vmem:[%s1 + $0xb70] sm:$0xff]
  %v441 = vld [vmem:[%s1 + $0xb78] sm:$0xff]
  %v442 = vld [vmem:[%s1 + $0xb80] sm:$0xff]
  %v443 = vld [vmem:[%s1 + $0xb88] sm:$0xff]
  %v444 = vld [vmem:[%s1 + $0xb90] sm:$0xff]
  %v445 = vld [vmem:[%s1 + $0xb98] sm:$0xff]
  %v446 = vld [vmem:[%s1 + $0xba0] sm:$0xff]
  %v447 = vld [vmem:[%s1 + $0xba8] sm:$0xff]
  %v448 = vld [vmem:[%s1 + $0xbb0] sm:$0xff]
  %v449 = vld [vmem:[%s1 + $0xbb8] sm:$0xff]
  %v450 = vld [vmem:[%s1 + $0xbc0] sm:$0xff]
  %v451 = vld [vmem:[%s1 + $0xbc8] sm:$0xff]
  %v452 = vld [vmem:[%s1 + $0xbd0] sm:$0xff]
  %v453 = vld [vmem:[%s1 + $0xbd8] sm:$0xff]
  %v454 = vld [vmem:[%s1 + $0xbe0] sm:$0xff]
  %v455 = vld [vmem:[%s1 + $0xbe8] sm:$0xff]
  %v456 = vld [vmem:[%s1 + $0xbf0] sm:$0xff]
  %v457 = vld [vmem:[%s1 + $0xbf8] sm:$0xff]
  %v458 = vld [vmem:[%s1 + $0xc00] sm:$0xff]
  %v459 = vld [vmem:[%s1 + $0xc08] sm:$0xff]
  %v460 = vld [vmem:[%s1 + $0xc10] sm:$0xff]
  %v461 = vld [vmem:[%s1 + $0xc18] sm:$0xff]
  %v462 = vld [vmem:[%s1 + $0xc20] sm:$0xff]
  %v463 = vld [vmem:[%s1 + $0xc28] sm:$0xff]
  %v464 = vld [vmem:[%s1 + $0xc30] sm:$0xff]
  %v465 = vld [vmem:[%s1 + $0xc38] sm:$0xff]
  %v466 = vld [vmem:[%s1 + $0xc40] sm:$0xff]
  %v467 = vld [vmem:[%s1 + $0xc48] sm:$0xff]
  %v468 = vld [vmem:[%s1 + $0xc50] sm:$0xff]
  %v469 = vld [vmem:[%s1 + $0xc58] sm:$0xff]
  %v470 = vld [vmem:[%s1 + $0xc60] sm:$0xff]
  %v471 = vld [vmem:[%s1 + $0xc68] sm:$0xff]
  %v472 = vld [vmem:[%s1 + $0xc70] sm:$0xff]
  %v473 = vld [vmem:[%s1 + $0xc78] sm:$0xff]
  %v474 = vld [vmem:[%s1 + $0xc80] sm:$0xff]
  %v475 = vld [vmem:[%s1 + $0xc88] sm:$0xff]
  %v476 = vld [vmem:[%s1 + $0xc90] sm:$0xff]
  %v477 = vld [vmem:[%s1 + $0xc98] sm:$0xff]
  %v478 = vld [vmem:[%s1 + $0xca0] sm:$0xff]
  %v479 = vld [vmem:[%s1 + $0xca8] sm:$0xff]
  %v480 = vld [vmem:[%s1 + $0xcb0] sm:$0xff]
  %v481 = vld [vmem:[%s1 + $0xcb8] sm:$0xff]
  %v482 = vld [vmem:[%s1 + $0xcc0] sm:$0xff]
  %v483 = vld [vmem:[%s1 + $0xcc8] sm:$0xff]
  %v484 = vld [vmem:[%s1 + $0xcd0] sm:$0xff]
  %v485 = vld [vmem:[%s1 + $0xcd8] sm:$0xff]
  %v486 = vld [vmem:[%s1 + $0xce0] sm:$0xff]
  %v487 = vld [vmem:[%s1 + $0xce8] sm:$0xff]
  %v488 = vld [vmem:[%s1 + $0xcf0] sm:$0xff]
  %v489 = vld [vmem:[%s1 + $0xcf8] sm:$0xff]
  %v490 = vld [vmem:[%s1 + $0xd00] sm:$0xff]
  %v491 = vld [vmem:[%s1 + $0xd08] sm:$0xff]
  %v492 = vld [vmem:[%s1 + $0xd10] sm:$0xff]
  %v493 = vld [vmem:[%s1 + $0xd18] sm:$0xff]
  %v494 = vld [vmem:[%s1 + $0xd20] sm:$0xff]
  %v495 = vld [vmem:[%s1 + $0xd28] sm:$0xff]
  %v496 = vld [vmem:[%s1 + $0xd30] sm:$0xff]
  %v497 = vld [vmem:[%s1 + $0xd38] sm:$0xff]
  %v498 = vld [vmem:[%s1 + $0xd40] sm:$0xff]
  %v499 = vld [vmem:[%s1 + $0xd48] sm:$0xff]
  %v500 = vld [vmem:[%s1 + $0xd50] sm:$0xff]
  %v501 = vld [vmem:[%s1 + $0xd58] sm:$0xff]
  %v502 = vld [vmem:[%s1 + $0xd60] sm:$0xff]
  %v503 = vld [vmem:[%s1 + $0xd68] sm:$0xff]
  %v504 = vld [vmem:[%s1 + $0xd70] sm:$0xff]
  %v505 = vld [vmem:[%s1 + $0xd78] sm:$0xff]
  %v506 = vld [vmem:[%s1 + $0xd80] sm:$0xff]
  %v507 = vld [vmem:[%s1 + $0xd88] sm:$0xff]
  %v508 = vld [vmem:[%s1 + $0xd90] sm:$0xff]
  %v509 = vld [vmem:[%s1 + $0xd98] sm:$0xff]
  %v510 = vld [vmem:[%s1 + $0xda0] sm:$0xff]
  %v511 = vld [vmem:[%s1 + $0xda8] sm:$0xff]
  %v512 = vld [vmem:[%s1 + $0xdb0] sm:$0xff]
  %v513 = vld [vmem:[%s1 + $0xdb8] sm:$0xff]
  %v514 = vld [vmem:[%s1 + $0xdc0] sm:$0xff]
  %v515 = vld [vmem:[%s1 + $0xdc8] sm:$0xff]
  %v516 = vld [vmem:[%s1 + $0xdd0] sm:$0xff]
  %v517 = vld [vmem:[%s1 + $0xdd8] sm:$0xff]
  %v518 = vld [vmem:[%s1 + $0xde0] sm:$0xff]
  %v519 = vld [vmem:[%s1 + $0xde8] sm:$0xff]
  %v520 = vld [vmem:[%s1 + $0xdf0] sm:$0xff]
  %v521 = vld [vmem:[%s1 + $0xdf8] sm:$0xff]
  %v522 = vld [vmem:[%s1 + $0xe00] sm:$0xff]
  %v523 = vld [vmem:[%s1 + $0xe08] sm:$0xff]
  %v580 = vunpack.c.l.b16 %v18
  %v581 = vunpack.c.h.b16 %v18
  %v582 = vunpack.c.l.b16 %v19
  %v583 = vunpack.c.h.b16 %v19
  %v584 = vunpack.c.l.b16 %v20
  %v585 = vunpack.c.h.b16 %v20
  %v586 = vunpack.c.l.b16 %v21
  %v587 = vunpack.c.h.b16 %v21
  %v588 = vunpack.c.l.b16 %v22
  %v589 = vunpack.c.h.b16 %v22
  %v590 = vunpack.c.l.b16 %v23
  %v591 = vunpack.c.h.b16 %v23
  %v592 = vunpack.c.l.b16 %v24
  %v593 = vunpack.c.h.b16 %v24
  %v594 = vunpack.c.l.b16 %v25
  %v595 = vunpack.c.l.b16 %v26
  %v596 = vunpack.c.h.b16 %v26
  %v597 = vunpack.c.l.b16 %v27
  %v598 = vunpack.c.h.b16 %v27
  %v599 = vunpack.c.l.b16 %v28
  %v600 = vunpack.c.h.b16 %v28
  %v601 = vunpack.c.l.b16 %v29
  %v602 = vunpack.c.h.b16 %v29
  %v603 = vunpack.c.l.b16 %v30
  %v604 = vunpack.c.h.b16 %v30
  %v605 = vunpack.c.l.b16 %v31
  %v606 = vunpack.c.h.b16 %v31
  %v607 = vunpack.c.l.b16 %v32
  %v608 = vunpack.c.h.b16 %v32
  %v609 = vunpack.c.l.b16 %v33
  %v610 = vunpack.c.l.b16 %v34
  %v611 = vunpack.c.h.b16 %v34
  %v612 = vunpack.c.l.b16 %v35
  %v613 = vunpack.c.h.b16 %v35
  %v614 = vunpack.c.l.b16 %v36
  %v615 = vunpack.c.h.b16 %v36
  %v616 = vunpack.c.l.b16 %v37
  %v617 = vunpack.c.h.b16 %v37
  %v618 = vunpack.c.l.b16 %v38
  %v619 = vunpack.c.h.b16 %v38
  %v620 = vunpack.c.l.b16 %v39
  %v621 = vunpack.c.h.b16 %v39
  %v622 = vunpack.c.l.b16 %v40
  %v623 = vunpack.c.h.b16 %v40
  %v624 = vunpack.c.l.b16 %v41
  %v625 = vunpack.c.l.b16 %v42
  %v626 = vunpack.c.h.b16 %v42
  %v627 = vunpack.c.l.b16 %v43
  %v628 = vunpack.c.h.b16 %v43
  %v629 = vunpack.c.l.b16 %v44
  %v630 = vunpack.c.h.b16 %v44
  %v631 = vunpack.c.l.b16 %v45
  %v632 = vunpack.c.h.b16 %v45
  %v633 = vunpack.c.l.b16 %v46
  %v634 = vunpack.c.h.b16 %v46
  %v635 = vunpack.c.l.b16 %v47
  %v636 = vunpack.c.h.b16 %v47
  %v637 = vunpack.c.l.b16 %v48
  %v638 = vunpack.c.h.b16 %v48
  %v639 = vunpack.c.l.b16 %v49
  %v640 = vunpack.c.l.b16 %v50
  %v641 = vunpack.c.h.b16 %v50
  %v642 = vunpack.c.l.b16 %v51
  %v643 = vunpack.c.h.b16 %v51
  %v644 = vunpack.c.l.b16 %v52
  %v645 = vunpack.c.h.b16 %v52
  %v646 = vunpack.c.l.b16 %v53
  %v647 = vunpack.c.h.b16 %v53
  %v648 = vunpack.c.l.b16 %v54
  %v649 = vunpack.c.h.b16 %v54
  %v650 = vunpack.c.l.b16 %v55
  %v651 = vunpack.c.h.b16 %v55
  %v652 = vunpack.c.l.b16 %v56
  %v653 = vunpack.c.h.b16 %v56
  %v654 = vunpack.c.l.b16 %v57
  %v655 = vunpack.c.l.b16 %v58
  %v656 = vunpack.c.h.b16 %v58
  %v657 = vunpack.c.l.b16 %v59
  %v658 = vunpack.c.h.b16 %v59
  %v659 = vunpack.c.l.b16 %v60
  %v660 = vunpack.c.h.b16 %v60
  %v661 = vunpack.c.l.b16 %v61
  %v662 = vunpack.c.h.b16 %v61
  %v663 = vunpack.c.l.b16 %v62
  %v664 = vunpack.c.h.b16 %v62
  %v665 = vunpack.c.l.b16 %v63
  %v666 = vunpack.c.h.b16 %v63
  %v667 = vunpack.c.l.b16 %v64
  %v668 = vunpack.c.h.b16 %v64
  %v669 = vunpack.c.l.b16 %v65
  %v670 = vunpack.c.l.b16 %v66
  %v671 = vunpack.c.h.b16 %v66
  %v672 = vunpack.c.l.b16 %v67
  %v673 = vunpack.c.h.b16 %v67
  %v674 = vunpack.c.l.b16 %v68
  %v675 = vunpack.c.h.b16 %v68
  %v676 = vunpack.c.l.b16 %v69
  %v677 = vunpack.c.h.b16 %v69
  %v678 = vunpack.c.l.b16 %v70
  %v679 = vunpack.c.h.b16 %v70
  %v680 = vunpack.c.l.b16 %v71
  %v681 = vunpack.c.h.b16 %v71
  %v682 = vunpack.c.l.b16 %v72
  %v683 = vunpack.c.h.b16 %v72
  %v684 = vunpack.c.l.b16 %v73
  %v685 = vpack.c.b16 %v595, %v580
  %v686 = vpack.c.b16 %v596, %v581
  %v687 = vpack.c.b16 %v597, %v582
  %v688 = vpack.c.b16 %v598, %v583
  %v689 = vpack.c.b16 %v599, %v584
  %v690 = vpack.c.b16 %v600, %v585
  %v691 = vpack.c.b16 %v601, %v586
  %v692 = vpack.c.b16 %v602, %v587
  %v693 = vpack.c.b16 %v603, %v588
  %v694 = vpack.c.b16 %v604, %v589
  %v695 = vpack.c.b16 %v605, %v590
  %v696 = vpack.c.b16 %v606, %v591
  %v697 = vpack.c.b16 %v607, %v592
  %v698 = vpack.c.b16 %v608, %v593
  %v699 = vpack.c.b16 %v609, %v594
  %v700 = vpack.c.b16 %v625, %v610
  %v701 = vpack.c.b16 %v626, %v611
  %v702 = vpack.c.b16 %v627, %v612
  %v703 = vpack.c.b16 %v628, %v613
  %v704 = vpack.c.b16 %v629, %v614
  %v705 = vpack.c.b16 %v630, %v615
  %v706 = vpack.c.b16 %v631, %v616
  %v707 = vpack.c.b16 %v632, %v617
  %v708 = vpack.c.b16 %v633, %v618
  %v709 = vpack.c.b16 %v634, %v619
  %v710 = vpack.c.b16 %v635, %v620
  %v711 = vpack.c.b16 %v636, %v621
  %v712 = vpack.c.b16 %v637, %v622
  %v713 = vpack.c.b16 %v638, %v623
  %v714 = vpack.c.b16 %v639, %v624
  %v715 = vpack.c.b16 %v655, %v640
  %v716 = vpack.c.b16 %v656, %v641
  %v717 = vpack.c.b16 %v657, %v642
  %v718 = vpack.c.b16 %v658, %v643
  %v719 = vpack.c.b16 %v659, %v644
  %v720 = vpack.c.b16 %v660, %v645
  %v721 = vpack.c.b16 %v661, %v646
  %v722 = vpack.c.b16 %v662, %v647
  %v723 = vpack.c.b16 %v663, %v648
  %v724 = vpack.c.b16 %v664, %v649
  %v725 = vpack.c.b16 %v665, %v650
  %v726 = vpack.c.b16 %v666, %v651
  %v727 = vpack.c.b16 %v667, %v652
  %v728 = vpack.c.b16 %v668, %v653
  %v729 = vpack.c.b16 %v669, %v654
  %v730 = vpack.c.b16 %v670, %v670
  %v731 = vpack.c.b16 %v671, %v671
  %v732 = vpack.c.b16 %v672, %v672
  %v733 = vpack.c.b16 %v673, %v673
  %v734 = vpack.c.b16 %v674, %v674
  %v735 = vpack.c.b16 %v675, %v675
  %v736 = vpack.c.b16 %v676, %v676
  %v737 = vpack.c.b16 %v677, %v677
  %v738 = vpack.c.b16 %v678, %v678
  %v739 = vpack.c.b16 %v679, %v679
  %v740 = vpack.c.b16 %v680, %v680
  %v741 = vpack.c.b16 %v681, %v681
  %v742 = vpack.c.b16 %v682, %v682
  %v743 = vpack.c.b16 %v683, %v683
  %v744 = vpack.c.b16 %v684, %v684
  %v1251 = vunpack.c.l.b16 %v74
  %v1252 = vunpack.c.h.b16 %v74
  %v1253 = vunpack.c.l.b16 %v75
  %v1254 = vunpack.c.h.b16 %v75
  %v1255 = vunpack.c.l.b16 %v76
  %v1256 = vunpack.c.h.b16 %v76
  %v1257 = vunpack.c.l.b16 %v77
  %v1258 = vunpack.c.h.b16 %v77
  %v1259 = vunpack.c.l.b16 %v78
  %v1260 = vunpack.c.h.b16 %v78
  %v1261 = vunpack.c.l.b16 %v79
  %v1262 = vunpack.c.h.b16 %v79
  %v1263 = vunpack.c.l.b16 %v80
  %v1264 = vunpack.c.h.b16 %v80
  %v1265 = vunpack.c.l.b16 %v81
  %v1266 = vunpack.c.h.b16 %v81
  %v1267 = vunpack.c.l.b16 %v82
  %v1268 = vunpack.c.h.b16 %v82
  %v1269 = vunpack.c.l.b16 %v83
  %v1270 = vunpack.c.h.b16 %v83
  %v1271 = vunpack.c.l.b16 %v84
  %v1272 = vunpack.c.h.b16 %v84
  %v1273 = vunpack.c.l.b16 %v85
  %v1274 = vunpack.c.h.b16 %v85
  %v1275 = vunpack.c.l.b16 %v86
  %v1276 = vunpack.c.h.b16 %v86
  %v1277 = vunpack.c.l.b16 %v87
  %v1278 = vunpack.c.h.b16 %v87
  %v1279 = vunpack.c.l.b16 %v88
  %v1280 = vunpack.c.h.b16 %v88
  %v1281 = vunpack.c.l.b16 %v89
  %v1282 = vunpack.c.h.b16 %v89
  %v1283 = vunpack.c.l.b16 %v90
  %v1284 = vunpack.c.h.b16 %v90
  %v1285 = vunpack.c.l.b16 %v91
  %v1286 = vunpack.c.h.b16 %v91
  %v1287 = vunpack.c.l.b16 %v92
  %v1288 = vunpack.c.h.b16 %v92
  %v1289 = vunpack.c.l.b16 %v93
  %v1290 = vunpack.c.h.b16 %v93
  %v1291 = vunpack.c.l.b16 %v94
  %v1292 = vunpack.c.h.b16 %v94
  %v1293 = vunpack.c.l.b16 %v95
  %v1294 = vunpack.c.h.b16 %v95
  %v1295 = vunpack.c.l.b16 %v96
  %v1296 = vunpack.c.h.b16 %v96
  %v1297 = vunpack.c.l.b16 %v97
  %v1298 = vunpack.c.h.b16 %v97
  %v1299 = vunpack.c.l.b16 %v98
  %v1300 = vunpack.c.h.b16 %v98
  %v1301 = vunpack.c.l.b16 %v99
  %v1302 = vunpack.c.h.b16 %v99
  %v1303 = vunpack.c.l.b16 %v100
  %v1304 = vunpack.c.h.b16 %v100
  %v1305 = vunpack.c.l.b16 %v101
  %v1306 = vunpack.c.h.b16 %v101
  %v1307 = vunpack.c.l.b16 %v102
  %v1308 = vunpack.c.h.b16 %v102
  %v1309 = vunpack.c.l.b16 %v103
  %v1310 = vunpack.c.h.b16 %v103
  %v1311 = vunpack.c.l.b16 %v104
  %v1312 = vunpack.c.h.b16 %v104
  %v1313 = vunpack.c.l.b16 %v105
  %v1314 = vunpack.c.h.b16 %v105
  %v1315 = vunpack.c.l.b16 %v106
  %v1316 = vunpack.c.h.b16 %v106
  %v1317 = vunpack.c.l.b16 %v107
  %v1318 = vunpack.c.h.b16 %v107
  %v1319 = vunpack.c.l.b16 %v108
  %v1320 = vunpack.c.h.b16 %v108
  %v1321 = vunpack.c.l.b16 %v109
  %v1322 = vunpack.c.h.b16 %v109
  %v1323 = vunpack.c.l.b16 %v110
  %v1324 = vunpack.c.h.b16 %v110
  %v1325 = vunpack.c.l.b16 %v111
  %v1326 = vunpack.c.h.b16 %v111
  %v1327 = vunpack.c.l.b16 %v112
  %v1328 = vunpack.c.h.b16 %v112
  %v1329 = vunpack.c.l.b16 %v113
  %v1330 = vunpack.c.h.b16 %v113
  %v1331 = vunpack.c.l.b16 %v114
  %v1332 = vunpack.c.h.b16 %v114
  %v1333 = vunpack.c.l.b16 %v115
  %v1334 = vunpack.c.h.b16 %v115
  %v1335 = vunpack.c.l.b16 %v116
  %v1336 = vunpack.c.h.b16 %v116
  %v1337 = vunpack.c.l.b16 %v117
  %v1338 = vunpack.c.h.b16 %v117
  %v1339 = vunpack.c.l.b16 %v118
  %v1340 = vunpack.c.h.b16 %v118
  %v1341 = vunpack.c.l.b16 %v119
  %v1342 = vunpack.c.h.b16 %v119
  %v1343 = vunpack.c.l.b16 %v120
  %v1344 = vunpack.c.h.b16 %v120
  %v1345 = vunpack.c.l.b16 %v121
  %v1346 = vunpack.c.h.b16 %v121
  %v1347 = vunpack.c.l.b16 %v122
  %v1348 = vunpack.c.h.b16 %v122
  %v1349 = vunpack.c.l.b16 %v123
  %v1350 = vunpack.c.h.b16 %v123
  %v1351 = vunpack.c.l.b16 %v124
  %v1352 = vunpack.c.h.b16 %v124
  %v1353 = vunpack.c.l.b16 %v125
  %v1354 = vunpack.c.h.b16 %v125
  %v1355 = vunpack.c.l.b16 %v126
  %v1356 = vunpack.c.h.b16 %v126
  %v1357 = vunpack.c.l.b16 %v127
  %v1358 = vunpack.c.h.b16 %v127
  %v1359 = vunpack.c.l.b16 %v128
  %v1360 = vunpack.c.h.b16 %v128
  %v1361 = vunpack.c.l.b16 %v129
  %v1362 = vunpack.c.h.b16 %v129
  %v1363 = vunpack.c.l.b16 %v130
  %v1364 = vunpack.c.h.b16 %v130
  %v1365 = vunpack.c.l.b16 %v131
  %v1366 = vunpack.c.h.b16 %v131
  %v1367 = vunpack.c.l.b16 %v132
  %v1368 = vunpack.c.h.b16 %v132
  %v1369 = vunpack.c.l.b16 %v133
  %v1370 = vunpack.c.h.b16 %v133
  %v1371 = vunpack.c.l.b16 %v134
  %v1372 = vunpack.c.h.b16 %v134
  %v1373 = vunpack.c.l.b16 %v135
  %v1374 = vunpack.c.h.b16 %v135
  %v1375 = vunpack.c.l.b16 %v136
  %v1376 = vunpack.c.h.b16 %v136
  %v1377 = vunpack.c.l.b16 %v137
  %v1378 = vunpack.c.h.b16 %v137
  %v1379 = vunpack.c.l.b16 %v138
  %v1380 = vunpack.c.h.b16 %v138
  %v1381 = vunpack.c.l.b16 %v139
  %v1382 = vunpack.c.h.b16 %v139
  %v1383 = vunpack.c.l.b16 %v140
  %v1384 = vunpack.c.h.b16 %v140
  %v1385 = vunpack.c.l.b16 %v141
  %v1386 = vunpack.c.h.b16 %v141
  %v1387 = vunpack.c.l.b16 %v142
  %v1388 = vunpack.c.h.b16 %v142
  %v1389 = vunpack.c.l.b16 %v143
  %v1390 = vunpack.c.h.b16 %v143
  %v1391 = vunpack.c.l.b16 %v144
  %v1392 = vunpack.c.h.b16 %v144
  %v1393 = vunpack.c.l.b16 %v145
  %v1394 = vunpack.c.h.b16 %v145
  %v1395 = vunpack.c.l.b16 %v146
  %v1396 = vunpack.c.h.b16 %v146
  %v1397 = vunpack.c.l.b16 %v147
  %v1398 = vunpack.c.h.b16 %v147
  %v1399 = vunpack.c.l.b16 %v148
  %v1400 = vunpack.c.h.b16 %v148
  %v1401 = vunpack.c.l.b16 %v149
  %v1402 = vunpack.c.h.b16 %v149
  %v1403 = vunpack.c.l.b16 %v150
  %v1404 = vunpack.c.h.b16 %v150
  %v1405 = vunpack.c.l.b16 %v151
  %v1406 = vunpack.c.h.b16 %v151
  %v1407 = vunpack.c.l.b16 %v152
  %v1408 = vunpack.c.h.b16 %v152
  %v1409 = vunpack.c.l.b16 %v153
  %v1410 = vunpack.c.h.b16 %v153
  %v1411 = vunpack.c.l.b16 %v154
  %v1412 = vunpack.c.h.b16 %v154
  %v1413 = vunpack.c.l.b16 %v155
  %v1414 = vunpack.c.h.b16 %v155
  %v1415 = vunpack.c.l.b16 %v156
  %v1416 = vunpack.c.h.b16 %v156
  %v1417 = vunpack.c.l.b16 %v157
  %v1418 = vunpack.c.h.b16 %v157
  %v1419 = vunpack.c.l.b16 %v158
  %v1420 = vunpack.c.h.b16 %v158
  %v1421 = vunpack.c.l.b16 %v159
  %v1422 = vunpack.c.h.b16 %v159
  %v1423 = vunpack.c.l.b16 %v160
  %v1424 = vunpack.c.h.b16 %v160
  %v1425 = vunpack.c.l.b16 %v161
  %v1426 = vunpack.c.h.b16 %v161
  %v1427 = vunpack.c.l.b16 %v162
  %v1428 = vunpack.c.h.b16 %v162
  %v1429 = vunpack.c.l.b16 %v163
  %v1430 = vunpack.c.h.b16 %v163
  %v1431 = vunpack.c.l.b16 %v164
  %v1432 = vunpack.c.h.b16 %v164
  %v1433 = vunpack.c.l.b16 %v165
  %v1434 = vunpack.c.h.b16 %v165
  %v1435 = vunpack.c.l.b16 %v166
  %v1436 = vunpack.c.h.b16 %v166
  %v1437 = vunpack.c.l.b16 %v167
  %v1438 = vunpack.c.h.b16 %v167
  %v1439 = vunpack.c.l.b16 %v168
  %v1440 = vunpack.c.h.b16 %v168
  %v1441 = vunpack.c.l.b16 %v169
  %v1442 = vunpack.c.h.b16 %v169
  %v1443 = vunpack.c.l.b16 %v170
  %v1444 = vunpack.c.h.b16 %v170
  %v1445 = vunpack.c.l.b16 %v171
  %v1446 = vunpack.c.h.b16 %v171
  %v1447 = vunpack.c.l.b16 %v172
  %v1448 = vunpack.c.h.b16 %v172
  %v1449 = vunpack.c.l.b16 %v173
  %v1450 = vunpack.c.h.b16 %v173
  %v1451 = vunpack.c.l.b16 %v174
  %v1452 = vunpack.c.h.b16 %v174
  %v1453 = vunpack.c.l.b16 %v175
  %v1454 = vunpack.c.h.b16 %v175
  %v1455 = vunpack.c.l.b16 %v176
  %v1456 = vunpack.c.h.b16 %v176
  %v1457 = vunpack.c.l.b16 %v177
  %v1458 = vunpack.c.h.b16 %v177
  %v1459 = vunpack.c.l.b16 %v178
  %v1460 = vunpack.c.h.b16 %v178
  %v1461 = vunpack.c.l.b16 %v179
  %v1462 = vunpack.c.h.b16 %v179
  %v1463 = vunpack.c.l.b16 %v180
  %v1464 = vunpack.c.h.b16 %v180
  %v1465 = vunpack.c.l.b16 %v181
  %v1466 = vunpack.c.h.b16 %v181
  %v1467 = vunpack.c.l.b16 %v182
  %v1468 = vunpack.c.h.b16 %v182
  %v1469 = vunpack.c.l.b16 %v183
  %v1470 = vunpack.c.h.b16 %v183
  %v1471 = vunpack.c.l.b16 %v184
  %v1472 = vunpack.c.h.b16 %v184
  %v1473 = vunpack.c.l.b16 %v185
  %v1474 = vunpack.c.h.b16 %v185
  %v1475 = vunpack.c.l.b16 %v186
  %v1476 = vunpack.c.h.b16 %v186
  %v1477 = vunpack.c.l.b16 %v187
  %v1478 = vunpack.c.h.b16 %v187
  %v1479 = vunpack.c.l.b16 %v188
  %v1480 = vunpack.c.h.b16 %v188
  %v1481 = vunpack.c.l.b16 %v189
  %v1482 = vunpack.c.h.b16 %v189
  %v1483 = vunpack.c.l.b16 %v190
  %v1484 = vunpack.c.h.b16 %v190
  %v1485 = vunpack.c.l.b16 %v191
  %v1486 = vunpack.c.h.b16 %v191
  %v1487 = vunpack.c.l.b16 %v192
  %v1488 = vunpack.c.h.b16 %v192
  %v1489 = vunpack.c.l.b16 %v193
  %v1490 = vunpack.c.h.b16 %v193
  %v1491 = vunpack.c.l.b16 %v194
  %v1492 = vunpack.c.h.b16 %v194
  %v1493 = vunpack.c.l.b16 %v195
  %v1494 = vunpack.c.h.b16 %v195
  %v1495 = vunpack.c.l.b16 %v196
  %v1496 = vunpack.c.h.b16 %v196
  %v1497 = vunpack.c.l.b16 %v197
  %v1498 = vunpack.c.h.b16 %v197
  %v1499 = vunpack.c.l.b16 %v198
  %v1500 = vunpack.c.h.b16 %v198
  %v1501 = vunpack.c.l.b16 %v199
  %v1502 = vunpack.c.h.b16 %v199
  %v1503 = vunpack.c.l.b16 %v200
  %v1504 = vunpack.c.h.b16 %v200
  %v1505 = vunpack.c.l.b16 %v201
  %v1506 = vunpack.c.h.b16 %v201
  %v1507 = vunpack.c.l.b16 %v202
  %v1508 = vunpack.c.h.b16 %v202
  %v1509 = vunpack.c.l.b16 %v203
  %v1510 = vunpack.c.h.b16 %v203
  %v1511 = vunpack.c.l.b16 %v204
  %v1512 = vunpack.c.h.b16 %v204
  %v1513 = vunpack.c.l.b16 %v205
  %v1514 = vunpack.c.h.b16 %v205
  %v1515 = vunpack.c.l.b16 %v206
  %v1516 = vunpack.c.h.b16 %v206
  %v1517 = vunpack.c.l.b16 %v207
  %v1518 = vunpack.c.h.b16 %v207
  %v1519 = vunpack.c.l.b16 %v208
  %v1520 = vunpack.c.h.b16 %v208
  %v1521 = vunpack.c.l.b16 %v209
  %v1522 = vunpack.c.h.b16 %v209
  %v1523 = vunpack.c.l.b16 %v210
  %v1524 = vunpack.c.h.b16 %v210
  %v1525 = vunpack.c.l.b16 %v211
  %v1526 = vunpack.c.h.b16 %v211
  %v1527 = vunpack.c.l.b16 %v212
  %v1528 = vunpack.c.h.b16 %v212
  %v1529 = vunpack.c.l.b16 %v213
  %v1530 = vunpack.c.h.b16 %v213
  %v1531 = vunpack.c.l.b16 %v214
  %v1532 = vunpack.c.h.b16 %v214
  %v1533 = vunpack.c.l.b16 %v215
  %v1534 = vunpack.c.h.b16 %v215
  %v1535 = vunpack.c.l.b16 %v216
  %v1536 = vunpack.c.h.b16 %v216
  %v1537 = vunpack.c.l.b16 %v217
  %v1538 = vunpack.c.h.b16 %v217
  %v1539 = vunpack.c.l.b16 %v218
  %v1540 = vunpack.c.h.b16 %v218
  %v1541 = vunpack.c.l.b16 %v219
  %v1542 = vunpack.c.h.b16 %v219
  %v1543 = vunpack.c.l.b16 %v220
  %v1544 = vunpack.c.h.b16 %v220
  %v1545 = vunpack.c.l.b16 %v221
  %v1546 = vunpack.c.h.b16 %v221
  %v1547 = vunpack.c.l.b16 %v222
  %v1548 = vunpack.c.h.b16 %v222
  %v1549 = vunpack.c.l.b16 %v223
  %v1550 = vunpack.c.h.b16 %v223
  %v1551 = vunpack.c.l.b16 %v224
  %v1552 = vunpack.c.h.b16 %v224
  %v1553 = vunpack.c.l.b16 %v225
  %v1554 = vunpack.c.h.b16 %v225
  %v1555 = vunpack.c.l.b16 %v226
  %v1556 = vunpack.c.h.b16 %v226
  %v1557 = vunpack.c.l.b16 %v227
  %v1558 = vunpack.c.h.b16 %v227
  %v1559 = vunpack.c.l.b16 %v228
  %v1560 = vunpack.c.h.b16 %v228
  %v1561 = vunpack.c.l.b16 %v229
  %v1562 = vunpack.c.h.b16 %v229
  %v1563 = vunpack.c.l.b16 %v230
  %v1564 = vunpack.c.h.b16 %v230
  %v1565 = vunpack.c.l.b16 %v231
  %v1566 = vunpack.c.h.b16 %v231
  %v1567 = vunpack.c.l.b16 %v232
  %v1568 = vunpack.c.h.b16 %v232
  %v1569 = vunpack.c.l.b16 %v233
  %v1570 = vunpack.c.h.b16 %v233
  %v1571 = vunpack.c.l.b16 %v234
  %v1572 = vunpack.c.h.b16 %v234
  %v1573 = vunpack.c.l.b16 %v235
  %v1574 = vunpack.c.h.b16 %v235
  %v1575 = vunpack.c.l.b16 %v236
  %v1576 = vunpack.c.h.b16 %v236
  %v1577 = vunpack.c.l.b16 %v237
  %v1578 = vunpack.c.h.b16 %v237
  %v1579 = vunpack.c.l.b16 %v238
  %v1580 = vunpack.c.h.b16 %v238
  %v1581 = vunpack.c.l.b16 %v239
  %v1582 = vunpack.c.h.b16 %v239
  %v1583 = vunpack.c.l.b16 %v240
  %v1584 = vunpack.c.h.b16 %v240
  %v1585 = vunpack.c.l.b16 %v241
  %v1586 = vunpack.c.h.b16 %v241
  %v1587 = vunpack.c.l.b16 %v242
  %v1588 = vunpack.c.h.b16 %v242
  %v1589 = vunpack.c.l.b16 %v243
  %v1590 = vunpack.c.h.b16 %v243
  %v1591 = vunpack.c.l.b16 %v244
  %v1592 = vunpack.c.h.b16 %v244
  %v1593 = vunpack.c.l.b16 %v245
  %v1594 = vunpack.c.h.b16 %v245
  %v1595 = vunpack.c.l.b16 %v246
  %v1596 = vunpack.c.h.b16 %v246
  %v1597 = vunpack.c.l.b16 %v247
  %v1598 = vunpack.c.h.b16 %v247
  %v1599 = vunpack.c.l.b16 %v248
  %v1600 = vunpack.c.h.b16 %v248
  %v1601 = vunpack.c.l.b16 %v249
  %v1602 = vunpack.c.h.b16 %v249
  %v1603 = vunpack.c.l.b16 %v250
  %v1604 = vunpack.c.h.b16 %v250
  %v1605 = vunpack.c.l.b16 %v251
  %v1606 = vunpack.c.h.b16 %v251
  %v1607 = vunpack.c.l.b16 %v252
  %v1608 = vunpack.c.h.b16 %v252
  %v1609 = vunpack.c.l.b16 %v253
  %v1610 = vunpack.c.h.b16 %v253
  %v1611 = vunpack.c.l.b16 %v254
  %v1612 = vunpack.c.h.b16 %v254
  %v1613 = vunpack.c.l.b16 %v255
  %v1614 = vunpack.c.h.b16 %v255
  %v1615 = vunpack.c.l.b16 %v256
  %v1616 = vunpack.c.h.b16 %v256
  %v1617 = vunpack.c.l.b16 %v257
  %v1618 = vunpack.c.h.b16 %v257
  %v1619 = vunpack.c.l.b16 %v258
  %v1620 = vunpack.c.h.b16 %v258
  %v1621 = vunpack.c.l.b16 %v259
  %v1622 = vunpack.c.h.b16 %v259
  %v1623 = vunpack.c.l.b16 %v260
  %v1624 = vunpack.c.h.b16 %v260
  %v1625 = vunpack.c.l.b16 %v261
  %v1626 = vunpack.c.h.b16 %v261
  %v1627 = vunpack.c.l.b16 %v262
  %v1628 = vunpack.c.h.b16 %v262
  %v1629 = vunpack.c.l.b16 %v263
  %v1630 = vunpack.c.h.b16 %v263
  %v1631 = vunpack.c.l.b16 %v264
  %v1632 = vunpack.c.h.b16 %v264
  %v1633 = vunpack.c.l.b16 %v265
  %v1634 = vunpack.c.h.b16 %v265
  %v1635 = vunpack.c.l.b16 %v266
  %v1636 = vunpack.c.h.b16 %v266
  %v1637 = vunpack.c.l.b16 %v267
  %v1638 = vunpack.c.h.b16 %v267
  %v1639 = vunpack.c.l.b16 %v268
  %v1640 = vunpack.c.h.b16 %v268
  %v1641 = vunpack.c.l.b16 %v269
  %v1642 = vunpack.c.h.b16 %v269
  %v1643 = vunpack.c.l.b16 %v270
  %v1644 = vunpack.c.h.b16 %v270
  %v1645 = vunpack.c.l.b16 %v271
  %v1646 = vunpack.c.h.b16 %v271
  %v1647 = vunpack.c.l.b16 %v272
  %v1648 = vunpack.c.h.b16 %v272
  %v1649 = vunpack.c.l.b16 %v273
  %v1650 = vunpack.c.h.b16 %v273
  %v1651 = vunpack.c.l.b16 %v274
  %v1652 = vunpack.c.h.b16 %v274
  %v1653 = vunpack.c.l.b16 %v275
  %v1654 = vunpack.c.h.b16 %v275
  %v1655 = vunpack.c.l.b16 %v276
  %v1656 = vunpack.c.h.b16 %v276
  %v1657 = vunpack.c.l.b16 %v277
  %v1658 = vunpack.c.h.b16 %v277
  %v1659 = vunpack.c.l.b16 %v278
  %v1660 = vunpack.c.h.b16 %v278
  %v1661 = vunpack.c.l.b16 %v279
  %v1662 = vunpack.c.h.b16 %v279
  %v1663 = vunpack.c.l.b16 %v280
  %v1664 = vunpack.c.h.b16 %v280
  %v1665 = vunpack.c.l.b16 %v281
  %v1666 = vunpack.c.h.b16 %v281
  %v1667 = vunpack.c.l.b16 %v282
  %v1668 = vunpack.c.h.b16 %v282
  %v1669 = vunpack.c.l.b16 %v283
  %v1670 = vunpack.c.h.b16 %v283
  %v1671 = vunpack.c.l.b16 %v284
  %v1672 = vunpack.c.h.b16 %v284
  %v1673 = vunpack.c.l.b16 %v285
  %v1674 = vunpack.c.h.b16 %v285
  %v1675 = vunpack.c.l.b16 %v286
  %v1676 = vunpack.c.h.b16 %v286
  %v1677 = vunpack.c.l.b16 %v287
  %v1678 = vunpack.c.h.b16 %v287
  %v1679 = vunpack.c.l.b16 %v288
  %v1680 = vunpack.c.h.b16 %v288
  %v1681 = vunpack.c.l.b16 %v289
  %v1682 = vunpack.c.h.b16 %v289
  %v1683 = vunpack.c.l.b16 %v290
  %v1684 = vunpack.c.h.b16 %v290
  %v1685 = vunpack.c.l.b16 %v291
  %v1686 = vunpack.c.h.b16 %v291
  %v1687 = vunpack.c.l.b16 %v292
  %v1688 = vunpack.c.h.b16 %v292
  %v1689 = vunpack.c.l.b16 %v293
  %v1690 = vunpack.c.h.b16 %v293
  %v1691 = vunpack.c.l.b16 %v294
  %v1692 = vunpack.c.h.b16 %v294
  %v1693 = vunpack.c.l.b16 %v295
  %v1694 = vunpack.c.h.b16 %v295
  %v1695 = vunpack.c.l.b16 %v296
  %v1696 = vunpack.c.h.b16 %v296
  %v1697 = vunpack.c.l.b16 %v297
  %v1698 = vunpack.c.h.b16 %v297
  %v1699 = vunpack.c.l.b16 %v298
  %v1700 = vunpack.c.h.b16 %v298
  %v1701 = vunpack.c.l.b16 %v299
  %v1702 = vunpack.c.h.b16 %v299
  %v1703 = vunpack.c.l.b16 %v300
  %v1704 = vunpack.c.h.b16 %v300
  %v1705 = vunpack.c.l.b16 %v301
  %v1706 = vunpack.c.h.b16 %v301
  %v1707 = vunpack.c.l.b16 %v302
  %v1708 = vunpack.c.h.b16 %v302
  %v1709 = vunpack.c.l.b16 %v303
  %v1710 = vunpack.c.h.b16 %v303
  %v1711 = vunpack.c.l.b16 %v304
  %v1712 = vunpack.c.h.b16 %v304
  %v1713 = vunpack.c.l.b16 %v305
  %v1714 = vunpack.c.h.b16 %v305
  %v1715 = vunpack.c.l.b16 %v306
  %v1716 = vunpack.c.h.b16 %v306
  %v1717 = vunpack.c.l.b16 %v307
  %v1718 = vunpack.c.h.b16 %v307
  %v1719 = vunpack.c.l.b16 %v308
  %v1720 = vunpack.c.h.b16 %v308
  %v1721 = vunpack.c.l.b16 %v309
  %v1722 = vunpack.c.h.b16 %v309
  %v1723 = vunpack.c.l.b16 %v310
  %v1724 = vunpack.c.h.b16 %v310
  %v1725 = vunpack.c.l.b16 %v311
  %v1726 = vunpack.c.h.b16 %v311
  %v1727 = vunpack.c.l.b16 %v312
  %v1728 = vunpack.c.h.b16 %v312
  %v1729 = vunpack.c.l.b16 %v313
  %v1730 = vunpack.c.h.b16 %v313
  %v1731 = vunpack.c.l.b16 %v314
  %v1732 = vunpack.c.h.b16 %v314
  %v1733 = vunpack.c.l.b16 %v315
  %v1734 = vunpack.c.h.b16 %v315
  %v1735 = vunpack.c.l.b16 %v316
  %v1736 = vunpack.c.h.b16 %v316
  %v1737 = vunpack.c.l.b16 %v317
  %v1738 = vunpack.c.h.b16 %v317
  %v1739 = vunpack.c.l.b16 %v318
  %v1740 = vunpack.c.h.b16 %v318
  %v1741 = vunpack.c.l.b16 %v319
  %v1742 = vunpack.c.h.b16 %v319
  %v1743 = vunpack.c.l.b16 %v320
  %v1744 = vunpack.c.h.b16 %v320
  %v1745 = vunpack.c.l.b16 %v321
  %v1746 = vunpack.c.h.b16 %v321
  %v1747 = vunpack.c.l.b16 %v322
  %v1748 = vunpack.c.h.b16 %v322
  %v1749 = vunpack.c.l.b16 %v323
  %v1750 = vunpack.c.h.b16 %v323
  %v1751 = vunpack.c.l.b16 %v324
  %v1752 = vunpack.c.h.b16 %v324
  %v1753 = vunpack.c.l.b16 %v325
  %v1754 = vunpack.c.h.b16 %v325
  %v1755 = vunpack.c.l.b16 %v326
  %v1756 = vunpack.c.h.b16 %v326
  %v1757 = vunpack.c.l.b16 %v327
  %v1758 = vunpack.c.h.b16 %v327
  %v1759 = vunpack.c.l.b16 %v328
  %v1760 = vunpack.c.h.b16 %v328
  %v1761 = vunpack.c.l.b16 %v329
  %v1762 = vunpack.c.h.b16 %v329
  %v1763 = vunpack.c.l.b16 %v330
  %v1764 = vunpack.c.h.b16 %v330
  %v1765 = vunpack.c.l.b16 %v331
  %v1766 = vunpack.c.h.b16 %v331
  %v1767 = vunpack.c.l.b16 %v332
  %v1768 = vunpack.c.h.b16 %v332
  %v1769 = vunpack.c.l.b16 %v333
  %v1770 = vunpack.c.h.b16 %v333
  %v1771 = vunpack.c.l.b16 %v334
  %v1772 = vunpack.c.h.b16 %v334
  %v1773 = vunpack.c.l.b16 %v335
  %v1774 = vunpack.c.h.b16 %v335
  %v1775 = vunpack.c.l.b16 %v336
  %v1776 = vunpack.c.h.b16 %v336
  %v1777 = vunpack.c.l.b16 %v337
  %v1778 = vunpack.c.h.b16 %v337
  %v1779 = vunpack.c.l.b16 %v338
  %v1780 = vunpack.c.h.b16 %v338
  %v1781 = vunpack.c.l.b16 %v339
  %v1782 = vunpack.c.h.b16 %v339
  %v1783 = vunpack.c.l.b16 %v340
  %v1784 = vunpack.c.h.b16 %v340
  %v1785 = vunpack.c.l.b16 %v341
  %v1786 = vunpack.c.h.b16 %v341
  %v1787 = vunpack.c.l.b16 %v342
  %v1788 = vunpack.c.h.b16 %v342
  %v1789 = vunpack.c.l.b16 %v343
  %v1790 = vunpack.c.h.b16 %v343
  %v1791 = vunpack.c.l.b16 %v344
  %v1792 = vunpack.c.h.b16 %v344
  %v1793 = vunpack.c.l.b16 %v345
  %v1794 = vunpack.c.h.b16 %v345
  %v1795 = vunpack.c.l.b16 %v346
  %v1796 = vunpack.c.h.b16 %v346
  %v1797 = vunpack.c.l.b16 %v347
  %v1798 = vunpack.c.h.b16 %v347
  %v1799 = vunpack.c.l.b16 %v348
  %v1800 = vunpack.c.h.b16 %v348
  %v1801 = vunpack.c.l.b16 %v349
  %v1802 = vunpack.c.h.b16 %v349
  %v1803 = vunpack.c.l.b16 %v350
  %v1804 = vunpack.c.h.b16 %v350
  %v1805 = vunpack.c.l.b16 %v351
  %v1806 = vunpack.c.h.b16 %v351
  %v1807 = vunpack.c.l.b16 %v352
  %v1808 = vunpack.c.h.b16 %v352
  %v1809 = vunpack.c.l.b16 %v353
  %v1810 = vunpack.c.h.b16 %v353
  %v1811 = vunpack.c.l.b16 %v354
  %v1812 = vunpack.c.h.b16 %v354
  %v1813 = vunpack.c.l.b16 %v355
  %v1814 = vunpack.c.h.b16 %v355
  %v1815 = vunpack.c.l.b16 %v356
  %v1816 = vunpack.c.h.b16 %v356
  %v1817 = vunpack.c.l.b16 %v357
  %v1818 = vunpack.c.h.b16 %v357
  %v1819 = vunpack.c.l.b16 %v358
  %v1820 = vunpack.c.h.b16 %v358
  %v1821 = vunpack.c.l.b16 %v359
  %v1822 = vunpack.c.h.b16 %v359
  %v1823 = vunpack.c.l.b16 %v360
  %v1824 = vunpack.c.h.b16 %v360
  %v1825 = vunpack.c.l.b16 %v361
  %v1826 = vunpack.c.h.b16 %v361
  %v1827 = vunpack.c.l.b16 %v362
  %v1828 = vunpack.c.h.b16 %v362
  %v1829 = vunpack.c.l.b16 %v363
  %v1830 = vunpack.c.h.b16 %v363
  %v1831 = vunpack.c.l.b16 %v364
  %v1832 = vunpack.c.h.b16 %v364
  %v1833 = vunpack.c.l.b16 %v365
  %v1834 = vunpack.c.h.b16 %v365
  %v1835 = vunpack.c.l.b16 %v366
  %v1836 = vunpack.c.h.b16 %v366
  %v1837 = vunpack.c.l.b16 %v367
  %v1838 = vunpack.c.h.b16 %v367
  %v1839 = vunpack.c.l.b16 %v368
  %v1840 = vunpack.c.h.b16 %v368
  %v1841 = vunpack.c.l.b16 %v369
  %v1842 = vunpack.c.h.b16 %v369
  %v1843 = vunpack.c.l.b16 %v370
  %v1844 = vunpack.c.h.b16 %v370
  %v1845 = vunpack.c.l.b16 %v371
  %v1846 = vunpack.c.h.b16 %v371
  %v1847 = vunpack.c.l.b16 %v372
  %v1848 = vunpack.c.h.b16 %v372
  %v1849 = vunpack.c.l.b16 %v373
  %v1850 = vunpack.c.h.b16 %v373
  %v1851 = vunpack.c.l.b16 %v374
  %v1852 = vunpack.c.h.b16 %v374
  %v1853 = vunpack.c.l.b16 %v375
  %v1854 = vunpack.c.h.b16 %v375
  %v1855 = vunpack.c.l.b16 %v376
  %v1856 = vunpack.c.h.b16 %v376
  %v1857 = vunpack.c.l.b16 %v377
  %v1858 = vunpack.c.h.b16 %v377
  %v1859 = vunpack.c.l.b16 %v378
  %v1860 = vunpack.c.h.b16 %v378
  %v1861 = vunpack.c.l.b16 %v379
  %v1862 = vunpack.c.h.b16 %v379
  %v1863 = vunpack.c.l.b16 %v380
  %v1864 = vunpack.c.h.b16 %v380
  %v1865 = vunpack.c.l.b16 %v381
  %v1866 = vunpack.c.h.b16 %v381
  %v1867 = vunpack.c.l.b16 %v382
  %v1868 = vunpack.c.h.b16 %v382
  %v1869 = vunpack.c.l.b16 %v383
  %v1870 = vunpack.c.h.b16 %v383
  %v1871 = vunpack.c.l.b16 %v384
  %v1872 = vunpack.c.h.b16 %v384
  %v1873 = vunpack.c.l.b16 %v385
  %v1874 = vunpack.c.h.b16 %v385
  %v1875 = vunpack.c.l.b16 %v386
  %v1876 = vunpack.c.h.b16 %v386
  %v1877 = vunpack.c.l.b16 %v387
  %v1878 = vunpack.c.h.b16 %v387
  %v1879 = vunpack.c.l.b16 %v388
  %v1880 = vunpack.c.h.b16 %v388
  %v1881 = vunpack.c.l.b16 %v389
  %v1882 = vunpack.c.h.b16 %v389
  %v1883 = vunpack.c.l.b16 %v390
  %v1884 = vunpack.c.h.b16 %v390
  %v1885 = vunpack.c.l.b16 %v391
  %v1886 = vunpack.c.h.b16 %v391
  %v1887 = vunpack.c.l.b16 %v392
  %v1888 = vunpack.c.h.b16 %v392
  %v1889 = vunpack.c.l.b16 %v393
  %v1890 = vunpack.c.h.b16 %v393
  %v1891 = vunpack.c.l.b16 %v394
  %v1892 = vunpack.c.h.b16 %v394
  %v1893 = vunpack.c.l.b16 %v395
  %v1894 = vunpack.c.h.b16 %v395
  %v1895 = vunpack.c.l.b16 %v396
  %v1896 = vunpack.c.h.b16 %v396
  %v1897 = vunpack.c.l.b16 %v397
  %v1898 = vunpack.c.h.b16 %v397
  %v1899 = vunpack.c.l.b16 %v398
  %v1900 = vunpack.c.h.b16 %v398
  %v1901 = vunpack.c.l.b16 %v399
  %v1902 = vunpack.c.h.b16 %v399
  %v1903 = vunpack.c.l.b16 %v400
  %v1904 = vunpack.c.h.b16 %v400
  %v1905 = vunpack.c.l.b16 %v401
  %v1906 = vunpack.c.h.b16 %v401
  %v1907 = vunpack.c.l.b16 %v402
  %v1908 = vunpack.c.h.b16 %v402
  %v1909 = vunpack.c.l.b16 %v403
  %v1910 = vunpack.c.h.b16 %v403
  %v1911 = vunpack.c.l.b16 %v404
  %v1912 = vunpack.c.h.b16 %v404
  %v1913 = vunpack.c.l.b16 %v405
  %v1914 = vunpack.c.h.b16 %v405
  %v1915 = vunpack.c.l.b16 %v406
  %v1916 = vunpack.c.h.b16 %v406
  %v1917 = vunpack.c.l.b16 %v407
  %v1918 = vunpack.c.h.b16 %v407
  %v1919 = vunpack.c.l.b16 %v408
  %v1920 = vunpack.c.h.b16 %v408
  %v1921 = vunpack.c.l.b16 %v409
  %v1922 = vunpack.c.h.b16 %v409
  %v1923 = vunpack.c.l.b16 %v410
  %v1924 = vunpack.c.h.b16 %v410
  %v1925 = vunpack.c.l.b16 %v411
  %v1926 = vunpack.c.h.b16 %v411
  %v1927 = vunpack.c.l.b16 %v412
  %v1928 = vunpack.c.h.b16 %v412
  %v1929 = vunpack.c.l.b16 %v413
  %v1930 = vunpack.c.h.b16 %v413
  %v1931 = vunpack.c.l.b16 %v414
  %v1932 = vunpack.c.h.b16 %v414
  %v1933 = vunpack.c.l.b16 %v415
  %v1934 = vunpack.c.h.b16 %v415
  %v1935 = vunpack.c.l.b16 %v416
  %v1936 = vunpack.c.h.b16 %v416
  %v1937 = vunpack.c.l.b16 %v417
  %v1938 = vunpack.c.h.b16 %v417
  %v1939 = vunpack.c.l.b16 %v418
  %v1940 = vunpack.c.h.b16 %v418
  %v1941 = vunpack.c.l.b16 %v419
  %v1942 = vunpack.c.h.b16 %v419
  %v1943 = vunpack.c.l.b16 %v420
  %v1944 = vunpack.c.h.b16 %v420
  %v1945 = vunpack.c.l.b16 %v421
  %v1946 = vunpack.c.h.b16 %v421
  %v1947 = vunpack.c.l.b16 %v422
  %v1948 = vunpack.c.h.b16 %v422
  %v1949 = vunpack.c.l.b16 %v423
  %v1950 = vunpack.c.h.b16 %v423
  %v1951 = vunpack.c.l.b16 %v424
  %v1952 = vunpack.c.h.b16 %v424
  %v1953 = vunpack.c.l.b16 %v425
  %v1954 = vunpack.c.h.b16 %v425
  %v1955 = vunpack.c.l.b16 %v426
  %v1956 = vunpack.c.h.b16 %v426
  %v1957 = vunpack.c.l.b16 %v427
  %v1958 = vunpack.c.h.b16 %v427
  %v1959 = vunpack.c.l.b16 %v428
  %v1960 = vunpack.c.h.b16 %v428
  %v1961 = vunpack.c.l.b16 %v429
  %v1962 = vunpack.c.h.b16 %v429
  %v1963 = vunpack.c.l.b16 %v430
  %v1964 = vunpack.c.h.b16 %v430
  %v1965 = vunpack.c.l.b16 %v431
  %v1966 = vunpack.c.h.b16 %v431
  %v1967 = vunpack.c.l.b16 %v432
  %v1968 = vunpack.c.h.b16 %v432
  %v1969 = vunpack.c.l.b16 %v433
  %v1970 = vunpack.c.h.b16 %v433
  %v1971 = vunpack.c.l.b16 %v434
  %v1972 = vunpack.c.h.b16 %v434
  %v1973 = vunpack.c.l.b16 %v435
  %v1974 = vunpack.c.h.b16 %v435
  %v1975 = vunpack.c.l.b16 %v436
  %v1976 = vunpack.c.h.b16 %v436
  %v1977 = vunpack.c.l.b16 %v437
  %v1978 = vunpack.c.h.b16 %v437
  %v1979 = vunpack.c.l.b16 %v438
  %v1980 = vunpack.c.h.b16 %v438
  %v1981 = vunpack.c.l.b16 %v439
  %v1982 = vunpack.c.h.b16 %v439
  %v1983 = vunpack.c.l.b16 %v440
  %v1984 = vunpack.c.h.b16 %v440
  %v1985 = vunpack.c.l.b16 %v441
  %v1986 = vunpack.c.h.b16 %v441
  %v1987 = vunpack.c.l.b16 %v442
  %v1988 = vunpack.c.h.b16 %v442
  %v1989 = vunpack.c.l.b16 %v443
  %v1990 = vunpack.c.h.b16 %v443
  %v1991 = vunpack.c.l.b16 %v444
  %v1992 = vunpack.c.h.b16 %v444
  %v1993 = vunpack.c.l.b16 %v445
  %v1994 = vunpack.c.h.b16 %v445
  %v1995 = vunpack.c.l.b16 %v446
  %v1996 = vunpack.c.h.b16 %v446
  %v1997 = vunpack.c.l.b16 %v447
  %v1998 = vunpack.c.h.b16 %v447
  %v1999 = vunpack.c.l.b16 %v448
  %v2000 = vunpack.c.h.b16 %v448
  %v2001 = vunpack.c.l.b16 %v449
  %v2002 = vunpack.c.h.b16 %v449
  %v2003 = vunpack.c.l.b16 %v450
  %v2004 = vunpack.c.h.b16 %v450
  %v2005 = vunpack.c.l.b16 %v451
  %v2006 = vunpack.c.h.b16 %v451
  %v2007 = vunpack.c.l.b16 %v452
  %v2008 = vunpack.c.h.b16 %v452
  %v2009 = vunpack.c.l.b16 %v453
  %v2010 = vunpack.c.h.b16 %v453
  %v2011 = vunpack.c.l.b16 %v454
  %v2012 = vunpack.c.h.b16 %v454
  %v2013 = vunpack.c.l.b16 %v455
  %v2014 = vunpack.c.h.b16 %v455
  %v2015 = vunpack.c.l.b16 %v456
  %v2016 = vunpack.c.h.b16 %v456
  %v2017 = vunpack.c.l.b16 %v457
  %v2018 = vunpack.c.h.b16 %v457
  %v2019 = vunpack.c.l.b16 %v458
  %v2020 = vunpack.c.h.b16 %v458
  %v2021 = vunpack.c.l.b16 %v459
  %v2022 = vunpack.c.h.b16 %v459
  %v2023 = vunpack.c.l.b16 %v460
  %v2024 = vunpack.c.h.b16 %v460
  %v2025 = vunpack.c.l.b16 %v461
  %v2026 = vunpack.c.h.b16 %v461
  %v2027 = vunpack.c.l.b16 %v462
  %v2028 = vunpack.c.h.b16 %v462
  %v2029 = vunpack.c.l.b16 %v463
  %v2030 = vunpack.c.h.b16 %v463
  %v2031 = vunpack.c.l.b16 %v464
  %v2032 = vunpack.c.h.b16 %v464
  %v2033 = vunpack.c.l.b16 %v465
  %v2034 = vunpack.c.h.b16 %v465
  %v2035 = vunpack.c.l.b16 %v466
  %v2036 = vunpack.c.h.b16 %v466
  %v2037 = vunpack.c.l.b16 %v467
  %v2038 = vunpack.c.h.b16 %v467
  %v2039 = vunpack.c.l.b16 %v468
  %v2040 = vunpack.c.h.b16 %v468
  %v2041 = vunpack.c.l.b16 %v469
  %v2042 = vunpack.c.h.b16 %v469
  %v2043 = vunpack.c.l.b16 %v470
  %v2044 = vunpack.c.h.b16 %v470
  %v2045 = vunpack.c.l.b16 %v471
  %v2046 = vunpack.c.h.b16 %v471
  %v2047 = vunpack.c.l.b16 %v472
  %v2048 = vunpack.c.h.b16 %v472
  %v2049 = vunpack.c.l.b16 %v473
  %v2050 = vunpack.c.h.b16 %v473
  %v2051 = vunpack.c.l.b16 %v474
  %v2052 = vunpack.c.h.b16 %v474
  %v2053 = vunpack.c.l.b16 %v475
  %v2054 = vunpack.c.h.b16 %v475
  %v2055 = vunpack.c.l.b16 %v476
  %v2056 = vunpack.c.h.b16 %v476
  %v2057 = vunpack.c.l.b16 %v477
  %v2058 = vunpack.c.h.b16 %v477
  %v2059 = vunpack.c.l.b16 %v478
  %v2060 = vunpack.c.h.b16 %v478
  %v2061 = vunpack.c.l.b16 %v479
  %v2062 = vunpack.c.h.b16 %v479
  %v2063 = vunpack.c.l.b16 %v480
  %v2064 = vunpack.c.h.b16 %v480
  %v2065 = vunpack.c.l.b16 %v481
  %v2066 = vunpack.c.h.b16 %v481
  %v2067 = vunpack.c.l.b16 %v482
  %v2068 = vunpack.c.h.b16 %v482
  %v2069 = vunpack.c.l.b16 %v483
  %v2070 = vunpack.c.h.b16 %v483
  %v2071 = vunpack.c.l.b16 %v484
  %v2072 = vunpack.c.h.b16 %v484
  %v2073 = vunpack.c.l.b16 %v485
  %v2074 = vunpack.c.h.b16 %v485
  %v2075 = vunpack.c.l.b16 %v486
  %v2076 = vunpack.c.h.b16 %v486
  %v2077 = vunpack.c.l.b16 %v487
  %v2078 = vunpack.c.h.b16 %v487
  %v2079 = vunpack.c.l.b16 %v488
  %v2080 = vunpack.c.h.b16 %v488
  %v2081 = vunpack.c.l.b16 %v489
  %v2082 = vunpack.c.h.b16 %v489
  %v2083 = vunpack.c.l.b16 %v490
  %v2084 = vunpack.c.h.b16 %v490
  %v2085 = vunpack.c.l.b16 %v491
  %v2086 = vunpack.c.h.b16 %v491
  %v2087 = vunpack.c.l.b16 %v492
  %v2088 = vunpack.c.h.b16 %v492
  %v2089 = vunpack.c.l.b16 %v493
  %v2090 = vunpack.c.h.b16 %v493
  %v2091 = vunpack.c.l.b16 %v494
  %v2092 = vunpack.c.h.b16 %v494
  %v2093 = vunpack.c.l.b16 %v495
  %v2094 = vunpack.c.h.b16 %v495
  %v2095 = vunpack.c.l.b16 %v496
  %v2096 = vunpack.c.h.b16 %v496
  %v2097 = vunpack.c.l.b16 %v497
  %v2098 = vunpack.c.h.b16 %v497
  %v2099 = vunpack.c.l.b16 %v498
  %v2100 = vunpack.c.h.b16 %v498
  %v2101 = vunpack.c.l.b16 %v499
  %v2102 = vunpack.c.h.b16 %v499
  %v2103 = vunpack.c.l.b16 %v500
  %v2104 = vunpack.c.h.b16 %v500
  %v2105 = vunpack.c.l.b16 %v501
  %v2106 = vunpack.c.h.b16 %v501
  %v2107 = vunpack.c.l.b16 %v502
  %v2108 = vunpack.c.h.b16 %v502
  %v2109 = vunpack.c.l.b16 %v503
  %v2110 = vunpack.c.h.b16 %v503
  %v2111 = vunpack.c.l.b16 %v504
  %v2112 = vunpack.c.h.b16 %v504
  %v2113 = vunpack.c.l.b16 %v505
  %v2114 = vunpack.c.h.b16 %v505
  %v2115 = vunpack.c.l.b16 %v506
  %v2116 = vunpack.c.h.b16 %v506
  %v2117 = vunpack.c.l.b16 %v507
  %v2118 = vunpack.c.h.b16 %v507
  %v2119 = vunpack.c.l.b16 %v508
  %v2120 = vunpack.c.h.b16 %v508
  %v2121 = vunpack.c.l.b16 %v509
  %v2122 = vunpack.c.h.b16 %v509
  %v2123 = vunpack.c.l.b16 %v510
  %v2124 = vunpack.c.h.b16 %v510
  %v2125 = vunpack.c.l.b16 %v511
  %v2126 = vunpack.c.h.b16 %v511
  %v2127 = vunpack.c.l.b16 %v512
  %v2128 = vunpack.c.h.b16 %v512
  %v2129 = vunpack.c.l.b16 %v513
  %v2130 = vunpack.c.h.b16 %v513
  %v2131 = vunpack.c.l.b16 %v514
  %v2132 = vunpack.c.h.b16 %v514
  %v2133 = vunpack.c.l.b16 %v515
  %v2134 = vunpack.c.h.b16 %v515
  %v2135 = vunpack.c.l.b16 %v516
  %v2136 = vunpack.c.h.b16 %v516
  %v2137 = vunpack.c.l.b16 %v517
  %v2138 = vunpack.c.h.b16 %v517
  %v2139 = vunpack.c.l.b16 %v518
  %v2140 = vunpack.c.h.b16 %v518
  %v2141 = vunpack.c.l.b16 %v519
  %v2142 = vunpack.c.h.b16 %v519
  %v2143 = vunpack.c.l.b16 %v520
  %v2144 = vunpack.c.h.b16 %v520
  %v2145 = vunpack.c.l.b16 %v521
  %v2146 = vunpack.c.h.b16 %v521
  %v2147 = vunpack.c.l.b16 %v522
  %v2148 = vunpack.c.h.b16 %v522
  %v2149 = vunpack.c.l.b16 %v523
  %v2150 = vunpack.c.h.b16 %v523
  %v2151 = vpack.c.b16 %v1255, %v1251
  %v2152 = vpack.c.b16 %v1256, %v1252
  %v2153 = vpack.c.b16 %v1257, %v1253
  %v2154 = vpack.c.b16 %v1258, %v1254
  %v2155 = vpack.c.b16 %v1263, %v1259
  %v2156 = vpack.c.b16 %v1264, %v1260
  %v2157 = vpack.c.b16 %v1265, %v1261
  %v2158 = vpack.c.b16 %v1266, %v1262
  %v2159 = vpack.c.b16 %v1271, %v1267
  %v2160 = vpack.c.b16 %v1272, %v1268
  %v2161 = vpack.c.b16 %v1273, %v1269
  %v2162 = vpack.c.b16 %v1274, %v1270
  %v2163 = vpack.c.b16 %v1279, %v1275
  %v2164 = vpack.c.b16 %v1280, %v1276
  %v2165 = vpack.c.b16 %v1281, %v1277
  %v2166 = vpack.c.b16 %v1282, %v1278
  %v2167 = vpack.c.b16 %v1287, %v1283
  %v2168 = vpack.c.b16 %v1288, %v1284
  %v2169 = vpack.c.b16 %v1289, %v1285
  %v2170 = vpack.c.b16 %v1290, %v1286
  %v2171 = vpack.c.b16 %v1295, %v1291
  %v2172 = vpack.c.b16 %v1296, %v1292
  %v2173 = vpack.c.b16 %v1297, %v1293
  %v2174 = vpack.c.b16 %v1298, %v1294
  %v2175 = vpack.c.b16 %v1303, %v1299
  %v2176 = vpack.c.b16 %v1304, %v1300
  %v2177 = vpack.c.b16 %v1305, %v1301
  %v2178 = vpack.c.b16 %v1306, %v1302
  %v2179 = vpack.c.b16 %v1311, %v1307
  %v2180 = vpack.c.b16 %v1312, %v1308
  %v2181 = vpack.c.b16 %v1313, %v1309
  %v2182 = vpack.c.b16 %v1314, %v1310
  %v2183 = vpack.c.b16 %v1319, %v1315
  %v2184 = vpack.c.b16 %v1320, %v1316
  %v2185 = vpack.c.b16 %v1321, %v1317
  %v2186 = vpack.c.b16 %v1322, %v1318
  %v2187 = vpack.c.b16 %v1327, %v1323
  %v2188 = vpack.c.b16 %v1328, %v1324
  %v2189 = vpack.c.b16 %v1329, %v1325
  %v2190 = vpack.c.b16 %v1330, %v1326
  %v2191 = vpack.c.b16 %v1335, %v1331
  %v2192 = vpack.c.b16 %v1336, %v1332
  %v2193 = vpack.c.b16 %v1337, %v1333
  %v2194 = vpack.c.b16 %v1338, %v1334
  %v2195 = vpack.c.b16 %v1343, %v1339
  %v2196 = vpack.c.b16 %v1344, %v1340
  %v2197 = vpack.c.b16 %v1345, %v1341
  %v2198 = vpack.c.b16 %v1346, %v1342
  %v2199 = vpack.c.b16 %v1351, %v1347
  %v2200 = vpack.c.b16 %v1352, %v1348
  %v2201 = vpack.c.b16 %v1353, %v1349
  %v2202 = vpack.c.b16 %v1354, %v1350
  %v2203 = vpack.c.b16 %v1359, %v1355
  %v2204 = vpack.c.b16 %v1360, %v1356
  %v2205 = vpack.c.b16 %v1361, %v1357
  %v2206 = vpack.c.b16 %v1362, %v1358
  %v2207 = vpack.c.b16 %v1367, %v1363
  %v2208 = vpack.c.b16 %v1368, %v1364
  %v2209 = vpack.c.b16 %v1369, %v1365
  %v2210 = vpack.c.b16 %v1370, %v1366
  %v2211 = vpack.c.b16 %v1375, %v1371
  %v2212 = vpack.c.b16 %v1376, %v1372
  %v2213 = vpack.c.b16 %v1377, %v1373
  %v2214 = vpack.c.b16 %v1378, %v1374
  %v2215 = vpack.c.b16 %v1383, %v1379
  %v2216 = vpack.c.b16 %v1384, %v1380
  %v2217 = vpack.c.b16 %v1385, %v1381
  %v2218 = vpack.c.b16 %v1386, %v1382
  %v2219 = vpack.c.b16 %v1391, %v1387
  %v2220 = vpack.c.b16 %v1392, %v1388
  %v2221 = vpack.c.b16 %v1393, %v1389
  %v2222 = vpack.c.b16 %v1394, %v1390
  %v2223 = vpack.c.b16 %v1399, %v1395
  %v2224 = vpack.c.b16 %v1400, %v1396
  %v2225 = vpack.c.b16 %v1401, %v1397
  %v2226 = vpack.c.b16 %v1402, %v1398
  %v2227 = vpack.c.b16 %v1407, %v1403
  %v2228 = vpack.c.b16 %v1408, %v1404
  %v2229 = vpack.c.b16 %v1409, %v1405
  %v2230 = vpack.c.b16 %v1410, %v1406
  %v2231 = vpack.c.b16 %v1415, %v1411
  %v2232 = vpack.c.b16 %v1416, %v1412
  %v2233 = vpack.c.b16 %v1417, %v1413
  %v2234 = vpack.c.b16 %v1418, %v1414
  %v2235 = vpack.c.b16 %v1423, %v1419
  %v2236 = vpack.c.b16 %v1424, %v1420
  %v2237 = vpack.c.b16 %v1425, %v1421
  %v2238 = vpack.c.b16 %v1426, %v1422
  %v2239 = vpack.c.b16 %v1431, %v1427
  %v2240 = vpack.c.b16 %v1432, %v1428
  %v2241 = vpack.c.b16 %v1433, %v1429
  %v2242 = vpack.c.b16 %v1434, %v1430
  %v2243 = vpack.c.b16 %v1439, %v1435
  %v2244 = vpack.c.b16 %v1440, %v1436
  %v2245 = vpack.c.b16 %v1441, %v1437
  %v2246 = vpack.c.b16 %v1442, %v1438
  %v2247 = vpack.c.b16 %v1447, %v1443
  %v2248 = vpack.c.b16 %v1448, %v1444
  %v2249 = vpack.c.b16 %v1449, %v1445
  %v2250 = vpack.c.b16 %v1450, %v1446
  %v2251 = vpack.c.b16 %v1455, %v1451
  %v2252 = vpack.c.b16 %v1456, %v1452
  %v2253 = vpack.c.b16 %v1457, %v1453
  %v2254 = vpack.c.b16 %v1458, %v1454
  %v2255 = vpack.c.b16 %v1463, %v1459
  %v2256 = vpack.c.b16 %v1464, %v1460
  %v2257 = vpack.c.b16 %v1465, %v1461
  %v2258 = vpack.c.b16 %v1466, %v1462
  %v2259 = vpack.c.b16 %v1471, %v1467
  %v2260 = vpack.c.b16 %v1472, %v1468
  %v2261 = vpack.c.b16 %v1473, %v1469
  %v2262 = vpack.c.b16 %v1474, %v1470
  %v2263 = vpack.c.b16 %v1479, %v1475
  %v2264 = vpack.c.b16 %v1480, %v1476
  %v2265 = vpack.c.b16 %v1481, %v1477
  %v2266 = vpack.c.b16 %v1482, %v1478
  %v2267 = vpack.c.b16 %v1487, %v1483
  %v2268 = vpack.c.b16 %v1488, %v1484
  %v2269 = vpack.c.b16 %v1489, %v1485
  %v2270 = vpack.c.b16 %v1490, %v1486
  %v2271 = vpack.c.b16 %v1495, %v1491
  %v2272 = vpack.c.b16 %v1496, %v1492
  %v2273 = vpack.c.b16 %v1497, %v1493
  %v2274 = vpack.c.b16 %v1498, %v1494
  %v2275 = vpack.c.b16 %v1503, %v1499
  %v2276 = vpack.c.b16 %v1504, %v1500
  %v2277 = vpack.c.b16 %v1505, %v1501
  %v2278 = vpack.c.b16 %v1506, %v1502
  %v2279 = vpack.c.b16 %v1511, %v1507
  %v2280 = vpack.c.b16 %v1512, %v1508
  %v2281 = vpack.c.b16 %v1513, %v1509
  %v2282 = vpack.c.b16 %v1514, %v1510
  %v2283 = vpack.c.b16 %v1519, %v1515
  %v2284 = vpack.c.b16 %v1520, %v1516
  %v2285 = vpack.c.b16 %v1521, %v1517
  %v2286 = vpack.c.b16 %v1522, %v1518
  %v2287 = vpack.c.b16 %v1527, %v1523
  %v2288 = vpack.c.b16 %v1528, %v1524
  %v2289 = vpack.c.b16 %v1529, %v1525
  %v2290 = vpack.c.b16 %v1530, %v1526
  %v2291 = vpack.c.b16 %v1535, %v1531
  %v2292 = vpack.c.b16 %v1536, %v1532
  %v2293 = vpack.c.b16 %v1537, %v1533
  %v2294 = vpack.c.b16 %v1538, %v1534
  %v2295 = vpack.c.b16 %v1543, %v1539
  %v2296 = vpack.c.b16 %v1544, %v1540
  %v2297 = vpack.c.b16 %v1545, %v1541
  %v2298 = vpack.c.b16 %v1546, %v1542
  %v2299 = vpack.c.b16 %v1551, %v1547
  %v2300 = vpack.c.b16 %v1552, %v1548
  %v2301 = vpack.c.b16 %v1553, %v1549
  %v2302 = vpack.c.b16 %v1554, %v1550
  %v2303 = vpack.c.b16 %v1559, %v1555
  %v2304 = vpack.c.b16 %v1560, %v1556
  %v2305 = vpack.c.b16 %v1561, %v1557
  %v2306 = vpack.c.b16 %v1562, %v1558
  %v2307 = vpack.c.b16 %v1567, %v1563
  %v2308 = vpack.c.b16 %v1568, %v1564
  %v2309 = vpack.c.b16 %v1569, %v1565
  %v2310 = vpack.c.b16 %v1570, %v1566
  %v2311 = vpack.c.b16 %v1575, %v1571
  %v2312 = vpack.c.b16 %v1576, %v1572
  %v2313 = vpack.c.b16 %v1577, %v1573
  %v2314 = vpack.c.b16 %v1578, %v1574
  %v2315 = vpack.c.b16 %v1583, %v1579
  %v2316 = vpack.c.b16 %v1584, %v1580
  %v2317 = vpack.c.b16 %v1585, %v1581
  %v2318 = vpack.c.b16 %v1586, %v1582
  %v2319 = vpack.c.b16 %v1591, %v1587
  %v2320 = vpack.c.b16 %v1592, %v1588
  %v2321 = vpack.c.b16 %v1593, %v1589
  %v2322 = vpack.c.b16 %v1594, %v1590
  %v2323 = vpack.c.b16 %v1599, %v1595
  %v2324 = vpack.c.b16 %v1600, %v1596
  %v2325 = vpack.c.b16 %v1601, %v1597
  %v2326 = vpack.c.b16 %v1602, %v1598
  %v2327 = vpack.c.b16 %v1607, %v1603
  %v2328 = vpack.c.b16 %v1608, %v1604
  %v2329 = vpack.c.b16 %v1609, %v1605
  %v2330 = vpack.c.b16 %v1610, %v1606
  %v2331 = vpack.c.b16 %v1615, %v1611
  %v2332 = vpack.c.b16 %v1616, %v1612
  %v2333 = vpack.c.b16 %v1617, %v1613
  %v2334 = vpack.c.b16 %v1618, %v1614
  %v2335 = vpack.c.b16 %v1623, %v1619
  %v2336 = vpack.c.b16 %v1624, %v1620
  %v2337 = vpack.c.b16 %v1625, %v1621
  %v2338 = vpack.c.b16 %v1626, %v1622
  %v2339 = vpack.c.b16 %v1631, %v1627
  %v2340 = vpack.c.b16 %v1632, %v1628
  %v2341 = vpack.c.b16 %v1633, %v1629
  %v2342 = vpack.c.b16 %v1634, %v1630
  %v2343 = vpack.c.b16 %v1639, %v1635
  %v2344 = vpack.c.b16 %v1640, %v1636
  %v2345 = vpack.c.b16 %v1641, %v1637
  %v2346 = vpack.c.b16 %v1642, %v1638
  %v2347 = vpack.c.b16 %v1647, %v1643
  %v2348 = vpack.c.b16 %v1648, %v1644
  %v2349 = vpack.c.b16 %v1649, %v1645
  %v2350 = vpack.c.b16 %v1650, %v1646
  %v2351 = vpack.c.b16 %v1655, %v1651
  %v2352 = vpack.c.b16 %v1656, %v1652
  %v2353 = vpack.c.b16 %v1657, %v1653
  %v2354 = vpack.c.b16 %v1658, %v1654
  %v2355 = vpack.c.b16 %v1663, %v1659
  %v2356 = vpack.c.b16 %v1664, %v1660
  %v2357 = vpack.c.b16 %v1665, %v1661
  %v2358 = vpack.c.b16 %v1666, %v1662
  %v2359 = vpack.c.b16 %v1671, %v1667
  %v2360 = vpack.c.b16 %v1672, %v1668
  %v2361 = vpack.c.b16 %v1673, %v1669
  %v2362 = vpack.c.b16 %v1674, %v1670
  %v2363 = vpack.c.b16 %v1679, %v1675
  %v2364 = vpack.c.b16 %v1680, %v1676
  %v2365 = vpack.c.b16 %v1681, %v1677
  %v2366 = vpack.c.b16 %v1682, %v1678
  %v2367 = vpack.c.b16 %v1687, %v1683
  %v2368 = vpack.c.b16 %v1688, %v1684
  %v2369 = vpack.c.b16 %v1689, %v1685
  %v2370 = vpack.c.b16 %v1690, %v1686
  %v2371 = vpack.c.b16 %v1695, %v1691
  %v2372 = vpack.c.b16 %v1696, %v1692
  %v2373 = vpack.c.b16 %v1697, %v1693
  %v2374 = vpack.c.b16 %v1698, %v1694
  %v2375 = vpack.c.b16 %v1703, %v1699
  %v2376 = vpack.c.b16 %v1704, %v1700
  %v2377 = vpack.c.b16 %v1705, %v1701
  %v2378 = vpack.c.b16 %v1706, %v1702
  %v2379 = vpack.c.b16 %v1711, %v1707
  %v2380 = vpack.c.b16 %v1712, %v1708
  %v2381 = vpack.c.b16 %v1713, %v1709
  %v2382 = vpack.c.b16 %v1714, %v1710
  %v2383 = vpack.c.b16 %v1719, %v1715
  %v2384 = vpack.c.b16 %v1720, %v1716
  %v2385 = vpack.c.b16 %v1721, %v1717
  %v2386 = vpack.c.b16 %v1722, %v1718
  %v2387 = vpack.c.b16 %v1727, %v1723
  %v2388 = vpack.c.b16 %v1728, %v1724
  %v2389 = vpack.c.b16 %v1729, %v1725
  %v2390 = vpack.c.b16 %v1730, %v1726
  %v2391 = vpack.c.b16 %v1735, %v1731
  %v2392 = vpack.c.b16 %v1736, %v1732
  %v2393 = vpack.c.b16 %v1737, %v1733
  %v2394 = vpack.c.b16 %v1738, %v1734
  %v2395 = vpack.c.b16 %v1743, %v1739
  %v2396 = vpack.c.b16 %v1744, %v1740
  %v2397 = vpack.c.b16 %v1745, %v1741
  %v2398 = vpack.c.b16 %v1746, %v1742
  %v2399 = vpack.c.b16 %v1751, %v1747
  %v2400 = vpack.c.b16 %v1752, %v1748
  %v2401 = vpack.c.b16 %v1753, %v1749
  %v2402 = vpack.c.b16 %v1754, %v1750
  %v2403 = vpack.c.b16 %v1759, %v1755
  %v2404 = vpack.c.b16 %v1760, %v1756
  %v2405 = vpack.c.b16 %v1761, %v1757
  %v2406 = vpack.c.b16 %v1762, %v1758
  %v2407 = vpack.c.b16 %v1767, %v1763
  %v2408 = vpack.c.b16 %v1768, %v1764
  %v2409 = vpack.c.b16 %v1769, %v1765
  %v2410 = vpack.c.b16 %v1770, %v1766
  %v2411 = vpack.c.b16 %v1775, %v1771
  %v2412 = vpack.c.b16 %v1776, %v1772
  %v2413 = vpack.c.b16 %v1777, %v1773
  %v2414 = vpack.c.b16 %v1778, %v1774
  %v2415 = vpack.c.b16 %v1783, %v1779
  %v2416 = vpack.c.b16 %v1784, %v1780
  %v2417 = vpack.c.b16 %v1785, %v1781
  %v2418 = vpack.c.b16 %v1786, %v1782
  %v2419 = vpack.c.b16 %v1791, %v1787
  %v2420 = vpack.c.b16 %v1792, %v1788
  %v2421 = vpack.c.b16 %v1793, %v1789
  %v2422 = vpack.c.b16 %v1794, %v1790
  %v2423 = vpack.c.b16 %v1799, %v1795
  %v2424 = vpack.c.b16 %v1800, %v1796
  %v2425 = vpack.c.b16 %v1801, %v1797
  %v2426 = vpack.c.b16 %v1802, %v1798
  %v2427 = vpack.c.b16 %v1807, %v1803
  %v2428 = vpack.c.b16 %v1808, %v1804
  %v2429 = vpack.c.b16 %v1809, %v1805
  %v2430 = vpack.c.b16 %v1810, %v1806
  %v2431 = vpack.c.b16 %v1815, %v1811
  %v2432 = vpack.c.b16 %v1816, %v1812
  %v2433 = vpack.c.b16 %v1817, %v1813
  %v2434 = vpack.c.b16 %v1818, %v1814
  %v2435 = vpack.c.b16 %v1823, %v1819
  %v2436 = vpack.c.b16 %v1824, %v1820
  %v2437 = vpack.c.b16 %v1825, %v1821
  %v2438 = vpack.c.b16 %v1826, %v1822
  %v2439 = vpack.c.b16 %v1831, %v1827
  %v2440 = vpack.c.b16 %v1832, %v1828
  %v2441 = vpack.c.b16 %v1833, %v1829
  %v2442 = vpack.c.b16 %v1834, %v1830
  %v2443 = vpack.c.b16 %v1839, %v1835
  %v2444 = vpack.c.b16 %v1840, %v1836
  %v2445 = vpack.c.b16 %v1841, %v1837
  %v2446 = vpack.c.b16 %v1842, %v1838
  %v2447 = vpack.c.b16 %v1847, %v1843
  %v2448 = vpack.c.b16 %v1848, %v1844
  %v2449 = vpack.c.b16 %v1849, %v1845
  %v2450 = vpack.c.b16 %v1850, %v1846
  %v2451 = vpack.c.b16 %v1855, %v1851
  %v2452 = vpack.c.b16 %v1856, %v1852
  %v2453 = vpack.c.b16 %v1857, %v1853
  %v2454 = vpack.c.b16 %v1858, %v1854
  %v2455 = vpack.c.b16 %v1863, %v1859
  %v2456 = vpack.c.b16 %v1864, %v1860
  %v2457 = vpack.c.b16 %v1865, %v1861
  %v2458 = vpack.c.b16 %v1866, %v1862
  %v2459 = vpack.c.b16 %v1871, %v1867
  %v2460 = vpack.c.b16 %v1872, %v1868
  %v2461 = vpack.c.b16 %v1873, %v1869
  %v2462 = vpack.c.b16 %v1874, %v1870
  %v2463 = vpack.c.b16 %v1879, %v1875
  %v2464 = vpack.c.b16 %v1880, %v1876
  %v2465 = vpack.c.b16 %v1881, %v1877
  %v2466 = vpack.c.b16 %v1882, %v1878
  %v2467 = vpack.c.b16 %v1887, %v1883
  %v2468 = vpack.c.b16 %v1888, %v1884
  %v2469 = vpack.c.b16 %v1889, %v1885
  %v2470 = vpack.c.b16 %v1890, %v1886
  %v2471 = vpack.c.b16 %v1895, %v1891
  %v2472 = vpack.c.b16 %v1896, %v1892
  %v2473 = vpack.c.b16 %v1897, %v1893
  %v2474 = vpack.c.b16 %v1898, %v1894
  %v2475 = vpack.c.b16 %v1903, %v1899
  %v2476 = vpack.c.b16 %v1904, %v1900
  %v2477 = vpack.c.b16 %v1905, %v1901
  %v2478 = vpack.c.b16 %v1906, %v1902
  %v2479 = vpack.c.b16 %v1911, %v1907
  %v2480 = vpack.c.b16 %v1912, %v1908
  %v2481 = vpack.c.b16 %v1913, %v1909
  %v2482 = vpack.c.b16 %v1914, %v1910
  %v2483 = vpack.c.b16 %v1919, %v1915
  %v2484 = vpack.c.b16 %v1920, %v1916
  %v2485 = vpack.c.b16 %v1921, %v1917
  %v2486 = vpack.c.b16 %v1922, %v1918
  %v2487 = vpack.c.b16 %v1927, %v1923
  %v2488 = vpack.c.b16 %v1928, %v1924
  %v2489 = vpack.c.b16 %v1929, %v1925
  %v2490 = vpack.c.b16 %v1930, %v1926
  %v2491 = vpack.c.b16 %v1935, %v1931
  %v2492 = vpack.c.b16 %v1936, %v1932
  %v2493 = vpack.c.b16 %v1937, %v1933
  %v2494 = vpack.c.b16 %v1938, %v1934
  %v2495 = vpack.c.b16 %v1943, %v1939
  %v2496 = vpack.c.b16 %v1944, %v1940
  %v2497 = vpack.c.b16 %v1945, %v1941
  %v2498 = vpack.c.b16 %v1946, %v1942
  %v2499 = vpack.c.b16 %v1951, %v1947
  %v2500 = vpack.c.b16 %v1952, %v1948
  %v2501 = vpack.c.b16 %v1953, %v1949
  %v2502 = vpack.c.b16 %v1954, %v1950
  %v2503 = vpack.c.b16 %v1959, %v1955
  %v2504 = vpack.c.b16 %v1960, %v1956
  %v2505 = vpack.c.b16 %v1961, %v1957
  %v2506 = vpack.c.b16 %v1962, %v1958
  %v2507 = vpack.c.b16 %v1967, %v1963
  %v2508 = vpack.c.b16 %v1968, %v1964
  %v2509 = vpack.c.b16 %v1969, %v1965
  %v2510 = vpack.c.b16 %v1970, %v1966
  %v2511 = vpack.c.b16 %v1975, %v1971
  %v2512 = vpack.c.b16 %v1976, %v1972
  %v2513 = vpack.c.b16 %v1977, %v1973
  %v2514 = vpack.c.b16 %v1978, %v1974
  %v2515 = vpack.c.b16 %v1983, %v1979
  %v2516 = vpack.c.b16 %v1984, %v1980
  %v2517 = vpack.c.b16 %v1985, %v1981
  %v2518 = vpack.c.b16 %v1986, %v1982
  %v2519 = vpack.c.b16 %v1991, %v1987
  %v2520 = vpack.c.b16 %v1992, %v1988
  %v2521 = vpack.c.b16 %v1993, %v1989
  %v2522 = vpack.c.b16 %v1994, %v1990
  %v2523 = vpack.c.b16 %v1999, %v1995
  %v2524 = vpack.c.b16 %v2000, %v1996
  %v2525 = vpack.c.b16 %v2001, %v1997
  %v2526 = vpack.c.b16 %v2002, %v1998
  %v2527 = vpack.c.b16 %v2007, %v2003
  %v2528 = vpack.c.b16 %v2008, %v2004
  %v2529 = vpack.c.b16 %v2009, %v2005
  %v2530 = vpack.c.b16 %v2010, %v2006
  %v2531 = vpack.c.b16 %v2015, %v2011
  %v2532 = vpack.c.b16 %v2016, %v2012
  %v2533 = vpack.c.b16 %v2017, %v2013
  %v2534 = vpack.c.b16 %v2018, %v2014
  %v2535 = vpack.c.b16 %v2023, %v2019
  %v2536 = vpack.c.b16 %v2024, %v2020
  %v2537 = vpack.c.b16 %v2025, %v2021
  %v2538 = vpack.c.b16 %v2026, %v2022
  %v2539 = vpack.c.b16 %v2031, %v2027
  %v2540 = vpack.c.b16 %v2032, %v2028
  %v2541 = vpack.c.b16 %v2033, %v2029
  %v2542 = vpack.c.b16 %v2034, %v2030
  %v2543 = vpack.c.b16 %v2039, %v2035
  %v2544 = vpack.c.b16 %v2040, %v2036
  %v2545 = vpack.c.b16 %v2041, %v2037
  %v2546 = vpack.c.b16 %v2042, %v2038
  %v2547 = vpack.c.b16 %v2047, %v2043
  %v2548 = vpack.c.b16 %v2048, %v2044
  %v2549 = vpack.c.b16 %v2049, %v2045
  %v2550 = vpack.c.b16 %v2050, %v2046
  %v2551 = vpack.c.b16 %v2055, %v2051
  %v2552 = vpack.c.b16 %v2056, %v2052
  %v2553 = vpack.c.b16 %v2057, %v2053
  %v2554 = vpack.c.b16 %v2058, %v2054
  %v2555 = vpack.c.b16 %v2063, %v2059
  %v2556 = vpack.c.b16 %v2064, %v2060
  %v2557 = vpack.c.b16 %v2065, %v2061
  %v2558 = vpack.c.b16 %v2066, %v2062
  %v2559 = vpack.c.b16 %v2071, %v2067
  %v2560 = vpack.c.b16 %v2072, %v2068
  %v2561 = vpack.c.b16 %v2073, %v2069
  %v2562 = vpack.c.b16 %v2074, %v2070
  %v2563 = vpack.c.b16 %v2079, %v2075
  %v2564 = vpack.c.b16 %v2080, %v2076
  %v2565 = vpack.c.b16 %v2081, %v2077
  %v2566 = vpack.c.b16 %v2082, %v2078
  %v2567 = vpack.c.b16 %v2087, %v2083
  %v2568 = vpack.c.b16 %v2088, %v2084
  %v2569 = vpack.c.b16 %v2089, %v2085
  %v2570 = vpack.c.b16 %v2090, %v2086
  %v2571 = vpack.c.b16 %v2095, %v2091
  %v2572 = vpack.c.b16 %v2096, %v2092
  %v2573 = vpack.c.b16 %v2097, %v2093
  %v2574 = vpack.c.b16 %v2098, %v2094
  %v2575 = vpack.c.b16 %v2103, %v2099
  %v2576 = vpack.c.b16 %v2104, %v2100
  %v2577 = vpack.c.b16 %v2105, %v2101
  %v2578 = vpack.c.b16 %v2106, %v2102
  %v2579 = vpack.c.b16 %v2111, %v2107
  %v2580 = vpack.c.b16 %v2112, %v2108
  %v2581 = vpack.c.b16 %v2113, %v2109
  %v2582 = vpack.c.b16 %v2114, %v2110
  %v2583 = vpack.c.b16 %v2119, %v2115
  %v2584 = vpack.c.b16 %v2120, %v2116
  %v2585 = vpack.c.b16 %v2121, %v2117
  %v2586 = vpack.c.b16 %v2122, %v2118
  %v2587 = vpack.c.b16 %v2127, %v2123
  %v2588 = vpack.c.b16 %v2128, %v2124
  %v2589 = vpack.c.b16 %v2129, %v2125
  %v2590 = vpack.c.b16 %v2130, %v2126
  %v2591 = vpack.c.b16 %v2135, %v2131
  %v2592 = vpack.c.b16 %v2136, %v2132
  %v2593 = vpack.c.b16 %v2137, %v2133
  %v2594 = vpack.c.b16 %v2138, %v2134
  %v2595 = vpack.c.b16 %v2143, %v2139
  %v2596 = vpack.c.b16 %v2144, %v2140
  %v2597 = vpack.c.b16 %v2145, %v2141
  %v2598 = vpack.c.b16 %v2146, %v2142
  %v2599 = vpack.c.b16 %v2147, %v2147
  %v2600 = vpack.c.b16 %v2148, %v2148
  %v2601 = vpack.c.b16 %v2149, %v2149
  %v2602 = vpack.c.b16 %v2150, %v2150
  %vm3051 = vcmask 64512
  %v3053 = vsel %vm3051, %v699, 0
  %v3056 = vsel %vm3051, %v714, 0
  %v3059 = vsel %vm3051, %v729, 0
  %v3062 = vsel %vm3051, %v744, 0
  %vm3064 = vcmask 1043456
  %v3066 = vsel %vm3064, %v2599, 0
  %v3069 = vsel %vm3064, %v2600, 0
  %v3072 = vsel %vm3064, %v2601, 0
  %v3075 = vsel %vm3064, %v2602, 0
  %3077 = vmatprep.subr.bf16.mxu0 %v2152
  %3078 = vmatpush1.bf16.msra.mxu0 %v2151
  %3079 = vmatprep.subr.bf16.mxu0 %v2156
  %3080 = vmatpush1.bf16.msra.mxu0 %v2155
  %3081 = vmatprep.subr.bf16.mxu0 %v2160
  %3082 = vmatpush1.bf16.msra.mxu0 %v2159
  %3083 = vmatprep.subr.bf16.mxu0 %v2164
  %3084 = vmatpush1.bf16.msra.mxu0 %v2163
  %3085 = vmatprep.subr.bf16.mxu0 %v2168
  %3086 = vmatpush1.bf16.msra.mxu0 %v2167
  %3087 = vmatprep.subr.bf16.mxu0 %v2172
  %3088 = vmatpush1.bf16.msra.mxu0 %v2171
  %3089 = vmatprep.subr.bf16.mxu0 %v2176
  %3090 = vmatpush1.bf16.msra.mxu0 %v2175
  %3091 = vmatprep.subr.bf16.mxu0 %v2180
  %3092 = vmatpush1.bf16.msra.mxu0 %v2179
  %3093 = vmatprep.subr.bf16.mxu0 %v2184
  %3094 = vmatpush1.bf16.msra.mxu0 %v2183
  %3095 = vmatprep.subr.bf16.mxu0 %v2188
  %3096 = vmatpush1.bf16.msra.mxu0 %v2187
  %3097 = vmatprep.subr.bf16.mxu0 %v2192
  %3098 = vmatpush1.bf16.msra.mxu0 %v2191
  %3099 = vmatprep.subr.bf16.mxu0 %v2196
  %3100 = vmatpush1.bf16.msra.mxu0 %v2195
  %3101 = vmatprep.subr.bf16.mxu0 %v2200
  %3102 = vmatpush1.bf16.msra.mxu0 %v2199
  %3103 = vmatprep.subr.bf16.mxu0 %v2204
  %3104 = vmatpush1.bf16.msra.mxu0 %v2203
  %3105 = vmatprep.subr.bf16.mxu0 %v2208
  %3106 = vmatpush1.bf16.msra.mxu0 %v2207
  %3107 = vmatprep.subr.bf16.mxu0 %v2212
  %3108 = vmatpush1.bf16.msra.mxu0 %v2211
  %3109 = vmatprep.mubr.bf16.mxu0 %v686
  %3110 = vmatmul.mubr.bf16.gmra.mrb[0].mxu0 %v685
  %v3111 = vpop.f32.mrb[0].mxu0
  %v3112 = vadd.f32 0.0, %v3111
  %v3113 = vpop.f32.mrb[0].mxu0
  %v3114 = vadd.f32 0.0, %v3113
  %v3115 = vpop.f32.mrb[0].mxu0
  %v3116 = vadd.f32 0.0, %v3115
  %v3117 = vpop.f32.mrb[0].mxu0
  %v3118 = vadd.f32 0.0, %v3117
  %3119 = vmatprep.mubr.bf16.mxu0 %v701
  %3120 = vmatmul.mubr.bf16.gmra.mrb[0].mxu0 %v700
  %v3121 = vpop.f32.mrb[0].mxu0
  %v3122 = vadd.f32 0.0, %v3121
  %v3123 = vpop.f32.mrb[0].mxu0
  %v3124 = vadd.f32 0.0, %v3123
  %v3125 = vpop.f32.mrb[0].mxu0
  %v3126 = vadd.f32 0.0, %v3125
  %v3127 = vpop.f32.mrb[0].mxu0
  %v3128 = vadd.f32 0.0, %v3127
  %3129 = vmatprep.mubr.bf16.mxu0 %v716
  %3130 = vmatmul.mubr.bf16.gmra.mrb[0].mxu0 %v715
  %v3131 = vpop.f32.mrb[0].mxu0
  %v3132 = vadd.f32 0.0, %v3131
  %v3133 = vpop.f32.mrb[0].mxu0
  %v3134 = vadd.f32 0.0, %v3133
  %v3135 = vpop.f32.mrb[0].mxu0
  %v3136 = vadd.f32 0.0, %v3135
  %v3137 = vpop.f32.mrb[0].mxu0
  %v3138 = vadd.f32 0.0, %v3137
  %3139 = vmatprep.mubr.bf16.mxu0 %v731
  %3140 = vmatmul.mubr.bf16.gmra.mrb[0].mxu0 %v730
  %v3141 = vpop.f32.mrb[0].mxu0
  %v3142 = vadd.f32 0.0, %v3141
  %v3143 = vpop.f32.mrb[0].mxu0
  %v3144 = vadd.f32 0.0, %v3143
  %v3145 = vpop.f32.mrb[0].mxu0
  %v3146 = vpop.f32.mrb[0].mxu0
  %3147 = vdwg.mxu0
  %3148 = vmatprep.subr.bf16.mxu0 %v2216
  %3149 = vmatpush1.bf16.msra.mxu0 %v2215
  %3150 = vmatprep.subr.bf16.mxu0 %v2220
  %3151 = vmatpush1.bf16.msra.mxu0 %v2219
  %3152 = vmatprep.subr.bf16.mxu0 %v2224
  %3153 = vmatpush1.bf16.msra.mxu0 %v2223
  %3154 = vmatprep.subr.bf16.mxu0 %v2228
  %3155 = vmatpush1.bf16.msra.mxu0 %v2227
  %3156 = vmatprep.subr.bf16.mxu0 %v2232
  %3157 = vmatpush1.bf16.msra.mxu0 %v2231
  %3158 = vmatprep.subr.bf16.mxu0 %v2236
  %3159 = vmatpush1.bf16.msra.mxu0 %v2235
  %3160 = vmatprep.subr.bf16.mxu0 %v2240
  %3161 = vmatpush1.bf16.msra.mxu0 %v2239
  %3162 = vmatprep.subr.bf16.mxu0 %v2244
  %3163 = vmatpush1.bf16.msra.mxu0 %v2243
  %3164 = vmatprep.subr.bf16.mxu0 %v2248
  %3165 = vmatpush1.bf16.msra.mxu0 %v2247
  %3166 = vmatprep.subr.bf16.mxu0 %v2252
  %3167 = vmatpush1.bf16.msra.mxu0 %v2251
  %3168 = vmatprep.subr.bf16.mxu0 %v2256
  %3169 = vmatpush1.bf16.msra.mxu0 %v2255
  %3170 = vmatprep.subr.bf16.mxu0 %v2260
  %3171 = vmatpush1.bf16.msra.mxu0 %v2259
  %3172 = vmatprep.subr.bf16.mxu0 %v2264
  %3173 = vmatpush1.bf16.msra.mxu0 %v2263
  %3174 = vmatprep.subr.bf16.mxu0 %v2268
  %3175 = vmatpush1.bf16.msra.mxu0 %v2267
  %3176 = vmatprep.subr.bf16.mxu0 %v2272
  %3177 = vmatpush1.bf16.msra.mxu0 %v2271
  %3178 = vmatprep.subr.bf16.mxu0 %v2276
  %3179 = vmatpush1.bf16.msra.mxu0 %v2275
  %3180 = vmatprep.mubr.bf16.mxu0 %v688
  %3181 = vmatmul.mubr.bf16.gmra.mrb[0].mxu0 %v687
  %v3182 = vpop.f32.mrb[0].mxu0
  %v3183 = vadd.f32 %v3112, %v3182
  %v3184 = vpop.f32.mrb[0].mxu0
  %v3185 = vadd.f32 %v3114, %v3184
  %v3186 = vpop.f32.mrb[0].mxu0
  %v3187 = vadd.f32 %v3116, %v3186
  %v3188 = vpop.f32.mrb[0].mxu0
  %v3189 = vadd.f32 %v3118, %v3188
  %3190 = vmatprep.mubr.bf16.mxu0 %v703
  %3191 = vmatmul.mubr.bf16.gmra.mrb[0].mxu0 %v702
  %v3192 = vpop.f32.mrb[0].mxu0
  %v3193 = vadd.f32 %v3122, %v3192
  %v3194 = vpop.f32.mrb[0].mxu0
  %v3195 = vadd.f32 %v3124, %v3194
  %v3196 = vpop.f32.mrb[0].mxu0
  %v3197 = vadd.f32 %v3126, %v3196
  %v3198 = vpop.f32.mrb[0].mxu0
  %v3199 = vadd.f32 %v3128, %v3198
  %3200 = vmatprep.mubr.bf16.mxu0 %v718
  %3201 = vmatmul.mubr.bf16.gmra.mrb[0].mxu0 %v717
  %v3202 = vpop.f32.mrb[0].mxu0
  %v3203 = vadd.f32 %v3132, %v3202
  %v3204 = vpop.f32.mrb[0].mxu0
  %v3205 = vadd.f32 %v3134, %v3204
  %v3206 = vpop.f32.mrb[0].mxu0
  %v3207 = vadd.f32 %v3136, %v3206
  %v3208 = vpop.f32.mrb[0].mxu0
  %v3209 = vadd.f32 %v3138, %v3208
  %3210 = vmatprep.mubr.bf16.mxu0 %v733
  %3211 = vmatmul.mubr.bf16.gmra.mrb[0].mxu0 %v732
  %v3212 = vpop.f32.mrb[0].mxu0
  %v3213 = vadd.f32 %v3142, %v3212
  %v3214 = vpop.f32.mrb[0].mxu0
  %v3215 = vadd.f32 %v3144, %v3214
  %v3216 = vpop.f32.mrb[0].mxu0
  %v3217 = vpop.f32.mrb[0].mxu0
  %3218 = vdwg.mxu0
  %3219 = vmatprep.subr.bf16.mxu0 %v2280
  %3220 = vmatpush1.bf16.msra.mxu0 %v2279
  %3221 = vmatprep.subr.bf16.mxu0 %v2284
  %3222 = vmatpush1.bf16.msra.mxu0 %v2283
  %3223 = vmatprep.subr.bf16.mxu0 %v2288
  %3224 = vmatpush1.bf16.msra.mxu0 %v2287
  %3225 = vmatprep.subr.bf16.mxu0 %v2292
  %3226 = vmatpush1.bf16.msra.mxu0 %v2291
  %3227 = vmatprep.subr.bf16.mxu0 %v2296
  %3228 = vmatpush1.bf16.msra.mxu0 %v2295
  %3229 = vmatprep.subr.bf16.mxu0 %v2300
  %3230 = vmatpush1.bf16.msra.mxu0 %v2299
  %3231 = vmatprep.subr.bf16.mxu0 %v2304
  %3232 = vmatpush1.bf16.msra.mxu0 %v2303
  %3233 = vmatprep.subr.bf16.mxu0 %v2308
  %3234 = vmatpush1.bf16.msra.mxu0 %v2307
  %3235 = vmatprep.subr.bf16.mxu0 %v2312
  %3236 = vmatpush1.bf16.msra.mxu0 %v2311
  %3237 = vmatprep.subr.bf16.mxu0 %v2316
  %3238 = vmatpush1.bf16.msra.mxu0 %v2315
  %3239 = vmatprep.subr.bf16.mxu0 %v2320
  %3240 = vmatpush1.bf16.msra.mxu0 %v2319
  %3241 = vmatprep.subr.bf16.mxu0 %v2324
  %3242 = vmatpush1.bf16.msra.mxu0 %v2323
  %3243 = vmatprep.subr.bf16.mxu0 %v2328
  %3244 = vmatpush1.bf16.msra.mxu0 %v2327
  %3245 = vmatprep.subr.bf16.mxu0 %v2332
  %3246 = vmatpush1.bf16.msra.mxu0 %v2331
  %3247 = vmatprep.subr.bf16.mxu0 %v2336
  %3248 = vmatpush1.bf16.msra.mxu0 %v2335
  %3249 = vmatprep.subr.bf16.mxu0 %v2340
  %3250 = vmatpush1.bf16.msra.mxu0 %v2339
  %3251 = vmatprep.mubr.bf16.mxu0 %v690
  %3252 = vmatmul.mubr.bf16.gmra.mrb[0].mxu0 %v689
  %v3253 = vpop.f32.mrb[0].mxu0
  %v3254 = vadd.f32 %v3183, %v3253
  %v3255 = vpop.f32.mrb[0].mxu0
  %v3256 = vadd.f32 %v3185, %v3255
  %v3257 = vpop.f32.mrb[0].mxu0
  %v3258 = vadd.f32 %v3187, %v3257
  %v3259 = vpop.f32.mrb[0].mxu0
  %v3260 = vadd.f32 %v3189, %v3259
  %3261 = vmatprep.mubr.bf16.mxu0 %v705
  %3262 = vmatmul.mubr.bf16.gmra.mrb[0].mxu0 %v704
  %v3263 = vpop.f32.mrb[0].mxu0
  %v3264 = vadd.f32 %v3193, %v3263
  %v3265 = vpop.f32.mrb[0].mxu0
  %v3266 = vadd.f32 %v3195, %v3265
  %v3267 = vpop.f32.mrb[0].mxu0
  %v3268 = vadd.f32 %v3197, %v3267
  %v3269 = vpop.f32.mrb[0].mxu0
  %v3270 = vadd.f32 %v3199, %v3269
  %3271 = vmatprep.mubr.bf16.mxu0 %v720
  %3272 = vmatmul.mubr.bf16.gmra.mrb[0].mxu0 %v719
  %v3273 = vpop.f32.mrb[0].mxu0
  %v3274 = vadd.f32 %v3203, %v3273
  %v3275 = vpop.f32.mrb[0].mxu0
  %v3276 = vadd.f32 %v3205, %v3275
  %v3277 = vpop.f32.mrb[0].mxu0
  %v3278 = vadd.f32 %v3207, %v3277
  %v3279 = vpop.f32.mrb[0].mxu0
  %v3280 = vadd.f32 %v3209, %v3279
  %3281 = vmatprep.mubr.bf16.mxu0 %v735
  %3282 = vmatmul.mubr.bf16.gmra.mrb[0].mxu0 %v734
  %v3283 = vpop.f32.mrb[0].mxu0
  %v3284 = vadd.f32 %v3213, %v3283
  %v3285 = vpop.f32.mrb[0].mxu0
  %v3286 = vadd.f32 %v3215, %v3285
  %v3287 = vpop.f32.mrb[0].mxu0
  %v3288 = vpop.f32.mrb[0].mxu0
  %3289 = vdwg.mxu0
  %3290 = vmatprep.subr.bf16.mxu0 %v2344
  %3291 = vmatpush1.bf16.msra.mxu0 %v2343
  %3292 = vmatprep.subr.bf16.mxu0 %v2348
  %3293 = vmatpush1.bf16.msra.mxu0 %v2347
  %3294 = vmatprep.subr.bf16.mxu0 %v2352
  %3295 = vmatpush1.bf16.msra.mxu0 %v2351
  %3296 = vmatprep.subr.bf16.mxu0 %v2356
  %3297 = vmatpush1.bf16.msra.mxu0 %v2355
  %3298 = vmatprep.subr.bf16.mxu0 %v2360
  %3299 = vmatpush1.bf16.msra.mxu0 %v2359
  %3300 = vmatprep.subr.bf16.mxu0 %v2364
  %3301 = vmatpush1.bf16.msra.mxu0 %v2363
  %3302 = vmatprep.subr.bf16.mxu0 %v2368
  %3303 = vmatpush1.bf16.msra.mxu0 %v2367
  %3304 = vmatprep.subr.bf16.mxu0 %v2372
  %3305 = vmatpush1.bf16.msra.mxu0 %v2371
  %3306 = vmatprep.subr.bf16.mxu0 %v2376
  %3307 = vmatpush1.bf16.msra.mxu0 %v2375
  %3308 = vmatprep.subr.bf16.mxu0 %v2380
  %3309 = vmatpush1.bf16.msra.mxu0 %v2379
  %3310 = vmatprep.subr.bf16.mxu0 %v2384
  %3311 = vmatpush1.bf16.msra.mxu0 %v2383
  %3312 = vmatprep.subr.bf16.mxu0 %v2388
  %3313 = vmatpush1.bf16.msra.mxu0 %v2387
  %3314 = vmatprep.subr.bf16.mxu0 %v2392
  %3315 = vmatpush1.bf16.msra.mxu0 %v2391
  %3316 = vmatprep.subr.bf16.mxu0 %v2396
  %3317 = vmatpush1.bf16.msra.mxu0 %v2395
  %3318 = vmatprep.subr.bf16.mxu0 %v2400
  %3319 = vmatpush1.bf16.msra.mxu0 %v2399
  %3320 = vmatprep.subr.bf16.mxu0 %v2404
  %3321 = vmatpush1.bf16.msra.mxu0 %v2403
  %3322 = vmatprep.mubr.bf16.mxu0 %v692
  %3323 = vmatmul.mubr.bf16.gmra.mrb[0].mxu0 %v691
  %v3324 = vpop.f32.mrb[0].mxu0
  %v3325 = vadd.f32 %v3254, %v3324
  %v3326 = vpop.f32.mrb[0].mxu0
  %v3327 = vadd.f32 %v3256, %v3326
  %v3328 = vpop.f32.mrb[0].mxu0
  %v3329 = vadd.f32 %v3258, %v3328
  %v3330 = vpop.f32.mrb[0].mxu0
  %v3331 = vadd.f32 %v3260, %v3330
  %3332 = vmatprep.mubr.bf16.mxu0 %v707
  %3333 = vmatmul.mubr.bf16.gmra.mrb[0].mxu0 %v706
  %v3334 = vpop.f32.mrb[0].mxu0
  %v3335 = vadd.f32 %v3264, %v3334
  %v3336 = vpop.f32.mrb[0].mxu0
  %v3337 = vadd.f32 %v3266, %v3336
  %v3338 = vpop.f32.mrb[0].mxu0
  %v3339 = vadd.f32 %v3268, %v3338
  %v3340 = vpop.f32.mrb[0].mxu0
  %v3341 = vadd.f32 %v3270, %v3340
  %3342 = vmatprep.mubr.bf16.mxu0 %v722
  %3343 = vmatmul.mubr.bf16.gmra.mrb[0].mxu0 %v721
  %v3344 = vpop.f32.mrb[0].mxu0
  %v3345 = vadd.f32 %v3274, %v3344
  %v3346 = vpop.f32.mrb[0].mxu0
  %v3347 = vadd.f32 %v3276, %v3346
  %v3348 = vpop.f32.mrb[0].mxu0
  %v3349 = vadd.f32 %v3278, %v3348
  %v3350 = vpop.f32.mrb[0].mxu0
  %v3351 = vadd.f32 %v3280, %v3350
  %3352 = vmatprep.mubr.bf16.mxu0 %v737
  %3353 = vmatmul.mubr.bf16.gmra.mrb[0].mxu0 %v736
  %v3354 = vpop.f32.mrb[0].mxu0
  %v3355 = vadd.f32 %v3284, %v3354
  %v3356 = vpop.f32.mrb[0].mxu0
  %v3357 = vadd.f32 %v3286, %v3356
  %v3358 = vpop.f32.mrb[0].mxu0
  %v3359 = vpop.f32.mrb[0].mxu0
  %3360 = vdwg.mxu0
  %3361 = vmatprep.subr.bf16.mxu0 %v2408
  %3362 = vmatpush1.bf16.msra.mxu0 %v2407
  %3363 = vmatprep.subr.bf16.mxu0 %v2412
  %3364 = vmatpush1.bf16.msra.mxu0 %v2411
  %3365 = vmatprep.subr.bf16.mxu0 %v2416
  %3366 = vmatpush1.bf16.msra.mxu0 %v2415
  %3367 = vmatprep.subr.bf16.mxu0 %v2420
  %3368 = vmatpush1.bf16.msra.mxu0 %v2419
  %3369 = vmatprep.subr.bf16.mxu0 %v2424
  %3370 = vmatpush1.bf16.msra.mxu0 %v2423
  %3371 = vmatprep.subr.bf16.mxu0 %v2428
  %3372 = vmatpush1.bf16.msra.mxu0 %v2427
  %3373 = vmatprep.subr.bf16.mxu0 %v2432
  %3374 = vmatpush1.bf16.msra.mxu0 %v2431
  %3375 = vmatprep.subr.bf16.mxu0 %v2436
  %3376 = vmatpush1.bf16.msra.mxu0 %v2435
  %3377 = vmatprep.subr.bf16.mxu0 %v2440
  %3378 = vmatpush1.bf16.msra.mxu0 %v2439
  %3379 = vmatprep.subr.bf16.mxu0 %v2444
  %3380 = vmatpush1.bf16.msra.mxu0 %v2443
  %3381 = vmatprep.subr.bf16.mxu0 %v2448
  %3382 = vmatpush1.bf16.msra.mxu0 %v2447
  %3383 = vmatprep.subr.bf16.mxu0 %v2452
  %3384 = vmatpush1.bf16.msra.mxu0 %v2451
  %3385 = vmatprep.subr.bf16.mxu0 %v2456
  %3386 = vmatpush1.bf16.msra.mxu0 %v2455
  %3387 = vmatprep.subr.bf16.mxu0 %v2460
  %3388 = vmatpush1.bf16.msra.mxu0 %v2459
  %3389 = vmatprep.subr.bf16.mxu0 %v2464
  %3390 = vmatpush1.bf16.msra.mxu0 %v2463
  %3391 = vmatprep.subr.bf16.mxu0 %v2468
  %3392 = vmatpush1.bf16.msra.mxu0 %v2467
  %3393 = vmatprep.mubr.bf16.mxu0 %v694
  %3394 = vmatmul.mubr.bf16.gmra.mrb[0].mxu0 %v693
  %v3395 = vpop.f32.mrb[0].mxu0
  %v3396 = vadd.f32 %v3325, %v3395
  %v3397 = vpop.f32.mrb[0].mxu0
  %v3398 = vadd.f32 %v3327, %v3397
  %v3399 = vpop.f32.mrb[0].mxu0
  %v3400 = vadd.f32 %v3329, %v3399
  %v3401 = vpop.f32.mrb[0].mxu0
  %v3402 = vadd.f32 %v3331, %v3401
  %3403 = vmatprep.mubr.bf16.mxu0 %v709
  %3404 = vmatmul.mubr.bf16.gmra.mrb[0].mxu0 %v708
  %v3405 = vpop.f32.mrb[0].mxu0
  %v3406 = vadd.f32 %v3335, %v3405
  %v3407 = vpop.f32.mrb[0].mxu0
  %v3408 = vadd.f32 %v3337, %v3407
  %v3409 = vpop.f32.mrb[0].mxu0
  %v3410 = vadd.f32 %v3339, %v3409
  %v3411 = vpop.f32.mrb[0].mxu0
  %v3412 = vadd.f32 %v3341, %v3411
  %3413 = vmatprep.mubr.bf16.mxu0 %v724
  %3414 = vmatmul.mubr.bf16.gmra.mrb[0].mxu0 %v723
  %v3415 = vpop.f32.mrb[0].mxu0
  %v3416 = vadd.f32 %v3345, %v3415
  %v3417 = vpop.f32.mrb[0].mxu0
  %v3418 = vadd.f32 %v3347, %v3417
  %v3419 = vpop.f32.mrb[0].mxu0
  %v3420 = vadd.f32 %v3349, %v3419
  %v3421 = vpop.f32.mrb[0].mxu0
  %v3422 = vadd.f32 %v3351, %v3421
  %3423 = vmatprep.mubr.bf16.mxu0 %v739
  %3424 = vmatmul.mubr.bf16.gmra.mrb[0].mxu0 %v738
  %v3425 = vpop.f32.mrb[0].mxu0
  %v3426 = vadd.f32 %v3355, %v3425
  %v3427 = vpop.f32.mrb[0].mxu0
  %v3428 = vadd.f32 %v3357, %v3427
  %v3429 = vpop.f32.mrb[0].mxu0
  %v3430 = vpop.f32.mrb[0].mxu0
  %3431 = vdwg.mxu0
  %3432 = vmatprep.subr.bf16.mxu0 %v2472
  %3433 = vmatpush1.bf16.msra.mxu0 %v2471
  %3434 = vmatprep.subr.bf16.mxu0 %v2476
  %3435 = vmatpush1.bf16.msra.mxu0 %v2475
  %3436 = vmatprep.subr.bf16.mxu0 %v2480
  %3437 = vmatpush1.bf16.msra.mxu0 %v2479
  %3438 = vmatprep.subr.bf16.mxu0 %v2484
  %3439 = vmatpush1.bf16.msra.mxu0 %v2483
  %3440 = vmatprep.subr.bf16.mxu0 %v2488
  %3441 = vmatpush1.bf16.msra.mxu0 %v2487
  %3442 = vmatprep.subr.bf16.mxu0 %v2492
  %3443 = vmatpush1.bf16.msra.mxu0 %v2491
  %3444 = vmatprep.subr.bf16.mxu0 %v2496
  %3445 = vmatpush1.bf16.msra.mxu0 %v2495
  %3446 = vmatprep.subr.bf16.mxu0 %v2500
  %3447 = vmatpush1.bf16.msra.mxu0 %v2499
  %3448 = vmatprep.subr.bf16.mxu0 %v2504
  %3449 = vmatpush1.bf16.msra.mxu0 %v2503
  %3450 = vmatprep.subr.bf16.mxu0 %v2508
  %3451 = vmatpush1.bf16.msra.mxu0 %v2507
  %3452 = vmatprep.subr.bf16.mxu0 %v2512
  %3453 = vmatpush1.bf16.msra.mxu0 %v2511
  %3454 = vmatprep.subr.bf16.mxu0 %v2516
  %3455 = vmatpush1.bf16.msra.mxu0 %v2515
  %3456 = vmatprep.subr.bf16.mxu0 %v2520
  %3457 = vmatpush1.bf16.msra.mxu0 %v2519
  %3458 = vmatprep.subr.bf16.mxu0 %v2524
  %3459 = vmatpush1.bf16.msra.mxu0 %v2523
  %3460 = vmatprep.subr.bf16.mxu0 %v2528
  %3461 = vmatpush1.bf16.msra.mxu0 %v2527
  %3462 = vmatprep.subr.bf16.mxu0 %v2532
  %3463 = vmatpush1.bf16.msra.mxu0 %v2531
  %3464 = vmatprep.mubr.bf16.mxu0 %v696
  %3465 = vmatmul.mubr.bf16.gmra.mrb[0].mxu0 %v695
  %v3466 = vpop.f32.mrb[0].mxu0
  %v3467 = vadd.f32 %v3396, %v3466
  %v3468 = vpop.f32.mrb[0].mxu0
  %v3469 = vadd.f32 %v3398, %v3468
  %v3470 = vpop.f32.mrb[0].mxu0
  %v3471 = vadd.f32 %v3400, %v3470
  %v3472 = vpop.f32.mrb[0].mxu0
  %v3473 = vadd.f32 %v3402, %v3472
  %3474 = vmatprep.mubr.bf16.mxu0 %v711
  %3475 = vmatmul.mubr.bf16.gmra.mrb[0].mxu0 %v710
  %v3476 = vpop.f32.mrb[0].mxu0
  %v3477 = vadd.f32 %v3406, %v3476
  %v3478 = vpop.f32.mrb[0].mxu0
  %v3479 = vadd.f32 %v3408, %v3478
  %v3480 = vpop.f32.mrb[0].mxu0
  %v3481 = vadd.f32 %v3410, %v3480
  %v3482 = vpop.f32.mrb[0].mxu0
  %v3483 = vadd.f32 %v3412, %v3482
  %3484 = vmatprep.mubr.bf16.mxu0 %v726
  %3485 = vmatmul.mubr.bf16.gmra.mrb[0].mxu0 %v725
  %v3486 = vpop.f32.mrb[0].mxu0
  %v3487 = vadd.f32 %v3416, %v3486
  %v3488 = vpop.f32.mrb[0].mxu0
  %v3489 = vadd.f32 %v3418, %v3488
  %v3490 = vpop.f32.mrb[0].mxu0
  %v3491 = vadd.f32 %v3420, %v3490
  %v3492 = vpop.f32.mrb[0].mxu0
  %v3493 = vadd.f32 %v3422, %v3492
  %3494 = vmatprep.mubr.bf16.mxu0 %v741
  %3495 = vmatmul.mubr.bf16.gmra.mrb[0].mxu0 %v740
  %v3496 = vpop.f32.mrb[0].mxu0
  %v3497 = vadd.f32 %v3426, %v3496
  %v3498 = vpop.f32.mrb[0].mxu0
  %v3499 = vadd.f32 %v3428, %v3498
  %v3500 = vpop.f32.mrb[0].mxu0
  %v3501 = vpop.f32.mrb[0].mxu0
  %3502 = vdwg.mxu0
  %3503 = vmatprep.subr.bf16.mxu0 %v2536
  %3504 = vmatpush1.bf16.msra.mxu0 %v2535
  %3505 = vmatprep.subr.bf16.mxu0 %v2540
  %3506 = vmatpush1.bf16.msra.mxu0 %v2539
  %3507 = vmatprep.subr.bf16.mxu0 %v2544
  %3508 = vmatpush1.bf16.msra.mxu0 %v2543
  %3509 = vmatprep.subr.bf16.mxu0 %v2548
  %3510 = vmatpush1.bf16.msra.mxu0 %v2547
  %3511 = vmatprep.subr.bf16.mxu0 %v2552
  %3512 = vmatpush1.bf16.msra.mxu0 %v2551
  %3513 = vmatprep.subr.bf16.mxu0 %v2556
  %3514 = vmatpush1.bf16.msra.mxu0 %v2555
  %3515 = vmatprep.subr.bf16.mxu0 %v2560
  %3516 = vmatpush1.bf16.msra.mxu0 %v2559
  %3517 = vmatprep.subr.bf16.mxu0 %v2564
  %3518 = vmatpush1.bf16.msra.mxu0 %v2563
  %3519 = vmatprep.subr.bf16.mxu0 %v2568
  %3520 = vmatpush1.bf16.msra.mxu0 %v2567
  %3521 = vmatprep.subr.bf16.mxu0 %v2572
  %3522 = vmatpush1.bf16.msra.mxu0 %v2571
  %3523 = vmatprep.subr.bf16.mxu0 %v2576
  %3524 = vmatpush1.bf16.msra.mxu0 %v2575
  %3525 = vmatprep.subr.bf16.mxu0 %v2580
  %3526 = vmatpush1.bf16.msra.mxu0 %v2579
  %3527 = vmatprep.subr.bf16.mxu0 %v2584
  %3528 = vmatpush1.bf16.msra.mxu0 %v2583
  %3529 = vmatprep.subr.bf16.mxu0 %v2588
  %3530 = vmatpush1.bf16.msra.mxu0 %v2587
  %3531 = vmatprep.subr.bf16.mxu0 %v2592
  %3532 = vmatpush1.bf16.msra.mxu0 %v2591
  %3533 = vmatprep.subr.bf16.mxu0 %v2596
  %3534 = vmatpush1.bf16.msra.mxu0 %v2595
  %3535 = vmatprep.mubr.bf16.mxu0 %v698
  %3536 = vmatmul.mubr.bf16.gmra.mrb[0].mxu0 %v697
  %v3537 = vpop.f32.mrb[0].mxu0
  %v3538 = vadd.f32 %v3467, %v3537
  %v3539 = vpop.f32.mrb[0].mxu0
  %v3540 = vadd.f32 %v3469, %v3539
  %v3541 = vpop.f32.mrb[0].mxu0
  %v3542 = vadd.f32 %v3471, %v3541
  %v3543 = vpop.f32.mrb[0].mxu0
  %v3544 = vadd.f32 %v3473, %v3543
  %3545 = vmatprep.mubr.bf16.mxu0 %v713
  %3546 = vmatmul.mubr.bf16.gmra.mrb[0].mxu0 %v712
  %v3547 = vpop.f32.mrb[0].mxu0
  %v3548 = vadd.f32 %v3477, %v3547
  %v3549 = vpop.f32.mrb[0].mxu0
  %v3550 = vadd.f32 %v3479, %v3549
  %v3551 = vpop.f32.mrb[0].mxu0
  %v3552 = vadd.f32 %v3481, %v3551
  %v3553 = vpop.f32.mrb[0].mxu0
  %v3554 = vadd.f32 %v3483, %v3553
  %3555 = vmatprep.mubr.bf16.mxu0 %v728
  %3556 = vmatmul.mubr.bf16.gmra.mrb[0].mxu0 %v727
  %v3557 = vpop.f32.mrb[0].mxu0
  %v3558 = vadd.f32 %v3487, %v3557
  %v3559 = vpop.f32.mrb[0].mxu0
  %v3560 = vadd.f32 %v3489, %v3559
  %v3561 = vpop.f32.mrb[0].mxu0
  %v3562 = vadd.f32 %v3491, %v3561
  %v3563 = vpop.f32.mrb[0].mxu0
  %v3564 = vadd.f32 %v3493, %v3563
  %3565 = vmatprep.mubr.bf16.mxu0 %v743
  %3566 = vmatmul.mubr.bf16.gmra.mrb[0].mxu0 %v742
  %v3567 = vpop.f32.mrb[0].mxu0
  %v3568 = vadd.f32 %v3497, %v3567
  %v3569 = vpop.f32.mrb[0].mxu0
  %v3570 = vadd.f32 %v3499, %v3569
  %v3571 = vpop.f32.mrb[0].mxu0
  %v3572 = vpop.f32.mrb[0].mxu0
  %3573 = vdwg.mxu0
  %3574 = vmatprep.subr.bf16.mxu0 %v3069
  %3575 = vmatpush1.bf16.msra.mxu0 %v3066
  %3576 = vmatprep.subr.bf16.mxu0 0
  %3577 = vmatpush1.bf16.msra.mxu0 0
  %3578 = vmatprep.subr.bf16.mxu0 0
  %3579 = vmatpush1.bf16.msra.mxu0 0
  %3580 = vmatprep.subr.bf16.mxu0 0
  %3581 = vmatpush1.bf16.msra.mxu0 0
  %3582 = vmatprep.subr.bf16.mxu0 0
  %3583 = vmatpush1.bf16.msra.mxu0 0
  %3584 = vmatprep.subr.bf16.mxu0 0
  %3585 = vmatpush1.bf16.msra.mxu0 0
  %3586 = vmatprep.subr.bf16.mxu0 0
  %3587 = vmatpush1.bf16.msra.mxu0 0
  %3588 = vmatprep.subr.bf16.mxu0 0
  %3589 = vmatpush1.bf16.msra.mxu0 0
  %3590 = vmatprep.subr.bf16.mxu0 0
  %3591 = vmatpush1.bf16.msra.mxu0 0
  %3592 = vmatprep.subr.bf16.mxu0 0
  %3593 = vmatpush1.bf16.msra.mxu0 0
  %3594 = vmatprep.subr.bf16.mxu0 0
  %3595 = vmatpush1.bf16.msra.mxu0 0
  %3596 = vmatprep.subr.bf16.mxu0 0
  %3597 = vmatpush1.bf16.msra.mxu0 0
  %3598 = vmatprep.subr.bf16.mxu0 0
  %3599 = vmatpush1.bf16.msra.mxu0 0
  %3600 = vmatprep.subr.bf16.mxu0 0
  %3601 = vmatpush1.bf16.msra.mxu0 0
  %3602 = vmatprep.subr.bf16.mxu0 0
  %3603 = vmatpush1.bf16.msra.mxu0 0
  %3604 = vmatprep.subr.bf16.mxu0 0
  %3605 = vmatpush1.bf16.msra.mxu0 0
  %3606 = vmatprep.mubr.bf16.mxu0 0
  %3607 = vmatmul.mubr.bf16.gmra.mrb[0].mxu0 %v3053
  %v3608 = vpop.f32.mrb[0].mxu0
  %v3609 = vadd.f32 %v3538, %v3608
  %v3610 = vpop.f32.mrb[0].mxu0
  %v3611 = vadd.f32 %v3540, %v3610
  %v3612 = vpop.f32.mrb[0].mxu0
  %v3613 = vadd.f32 %v3542, %v3612
  %v3614 = vpop.f32.mrb[0].mxu0
  %v3615 = vadd.f32 %v3544, %v3614
  %3616 = vmatprep.mubr.bf16.mxu0 0
  %3617 = vmatmul.mubr.bf16.gmra.mrb[0].mxu0 %v3056
  %v3618 = vpop.f32.mrb[0].mxu0
  %v3619 = vadd.f32 %v3548, %v3618
  %v3620 = vpop.f32.mrb[0].mxu0
  %v3621 = vadd.f32 %v3550, %v3620
  %v3622 = vpop.f32.mrb[0].mxu0
  %v3623 = vadd.f32 %v3552, %v3622
  %v3624 = vpop.f32.mrb[0].mxu0
  %v3625 = vadd.f32 %v3554, %v3624
  %3626 = vmatprep.mubr.bf16.mxu0 0
  %3627 = vmatmul.mubr.bf16.gmra.mrb[0].mxu0 %v3059
  %v3628 = vpop.f32.mrb[0].mxu0
  %v3629 = vadd.f32 %v3558, %v3628
  %v3630 = vpop.f32.mrb[0].mxu0
  %v3631 = vadd.f32 %v3560, %v3630
  %v3632 = vpop.f32.mrb[0].mxu0
  %v3633 = vadd.f32 %v3562, %v3632
  %v3634 = vpop.f32.mrb[0].mxu0
  %v3635 = vadd.f32 %v3564, %v3634
  %3636 = vmatprep.mubr.bf16.mxu0 0
  %3637 = vmatmul.mubr.bf16.gmra.mrb[0].mxu0 %v3062
  %v3638 = vpop.f32.mrb[0].mxu0
  %v3639 = vadd.f32 %v3568, %v3638
  %v3640 = vpop.f32.mrb[0].mxu0
  %v3641 = vadd.f32 %v3570, %v3640
  %v3642 = vpop.f32.mrb[0].mxu0
  %v3643 = vpop.f32.mrb[0].mxu0
  %3644 = vdwg.mxu0
  %3645 = vmatprep.subr.bf16.mxu0 %v2154
  %3646 = vmatpush1.bf16.msra.mxu0 %v2153
  %3647 = vmatprep.subr.bf16.mxu0 %v2158
  %3648 = vmatpush1.bf16.msra.mxu0 %v2157
  %3649 = vmatprep.subr.bf16.mxu0 %v2162
  %3650 = vmatpush1.bf16.msra.mxu0 %v2161
  %3651 = vmatprep.subr.bf16.mxu0 %v2166
  %3652 = vmatpush1.bf16.msra.mxu0 %v2165
  %3653 = vmatprep.subr.bf16.mxu0 %v2170
  %3654 = vmatpush1.bf16.msra.mxu0 %v2169
  %3655 = vmatprep.subr.bf16.mxu0 %v2174
  %3656 = vmatpush1.bf16.msra.mxu0 %v2173
  %3657 = vmatprep.subr.bf16.mxu0 %v2178
  %3658 = vmatpush1.bf16.msra.mxu0 %v2177
  %3659 = vmatprep.subr.bf16.mxu0 %v2182
  %3660 = vmatpush1.bf16.msra.mxu0 %v2181
  %3661 = vmatprep.subr.bf16.mxu0 %v2186
  %3662 = vmatpush1.bf16.msra.mxu0 %v2185
  %3663 = vmatprep.subr.bf16.mxu0 %v2190
  %3664 = vmatpush1.bf16.msra.mxu0 %v2189
  %3665 = vmatprep.subr.bf16.mxu0 %v2194
  %3666 = vmatpush1.bf16.msra.mxu0 %v2193
  %3667 = vmatprep.subr.bf16.mxu0 %v2198
  %3668 = vmatpush1.bf16.msra.mxu0 %v2197
  %3669 = vmatprep.subr.bf16.mxu0 %v2202
  %3670 = vmatpush1.bf16.msra.mxu0 %v2201
  %3671 = vmatprep.subr.bf16.mxu0 %v2206
  %3672 = vmatpush1.bf16.msra.mxu0 %v2205
  %3673 = vmatprep.subr.bf16.mxu0 %v2210
  %3674 = vmatpush1.bf16.msra.mxu0 %v2209
  %3675 = vmatprep.subr.bf16.mxu0 %v2214
  %3676 = vmatpush1.bf16.msra.mxu0 %v2213
  %3677 = vmatprep.mubr.bf16.mxu0 %v686
  %3678 = vmatmul.mubr.bf16.gmra.mrb[0].mxu0 %v685
  %v3679 = vpop.f32.mrb[0].mxu0
  %v3680 = vadd.f32 0.0, %v3679
  %v3681 = vpop.f32.mrb[0].mxu0
  %v3682 = vadd.f32 0.0, %v3681
  %v3683 = vpop.f32.mrb[0].mxu0
  %v3684 = vadd.f32 0.0, %v3683
  %v3685 = vpop.f32.mrb[0].mxu0
  %v3686 = vadd.f32 0.0, %v3685
  %3687 = vmatprep.mubr.bf16.mxu0 %v701
  %3688 = vmatmul.mubr.bf16.gmra.mrb[0].mxu0 %v700
  %v3689 = vpop.f32.mrb[0].mxu0
  %v3690 = vadd.f32 0.0, %v3689
  %v3691 = vpop.f32.mrb[0].mxu0
  %v3692 = vadd.f32 0.0, %v3691
  %v3693 = vpop.f32.mrb[0].mxu0
  %v3694 = vadd.f32 0.0, %v3693
  %v3695 = vpop.f32.mrb[0].mxu0
  %v3696 = vadd.f32 0.0, %v3695
  %3697 = vmatprep.mubr.bf16.mxu0 %v716
  %3698 = vmatmul.mubr.bf16.gmra.mrb[0].mxu0 %v715
  %v3699 = vpop.f32.mrb[0].mxu0
  %v3700 = vadd.f32 0.0, %v3699
  %v3701 = vpop.f32.mrb[0].mxu0
  %v3702 = vadd.f32 0.0, %v3701
  %v3703 = vpop.f32.mrb[0].mxu0
  %v3704 = vadd.f32 0.0, %v3703
  %v3705 = vpop.f32.mrb[0].mxu0
  %v3706 = vadd.f32 0.0, %v3705
  %3707 = vmatprep.mubr.bf16.mxu0 %v731
  %3708 = vmatmul.mubr.bf16.gmra.mrb[0].mxu0 %v730
  %v3709 = vpop.f32.mrb[0].mxu0
  %v3710 = vadd.f32 0.0, %v3709
  %v3711 = vpop.f32.mrb[0].mxu0
  %v3712 = vadd.f32 0.0, %v3711
  %v3713 = vpop.f32.mrb[0].mxu0
  %v3714 = vpop.f32.mrb[0].mxu0
  %3715 = vdwg.mxu0
  %3716 = vmatprep.subr.bf16.mxu0 %v2218
  %3717 = vmatpush1.bf16.msra.mxu0 %v2217
  %3718 = vmatprep.subr.bf16.mxu0 %v2222
  %3719 = vmatpush1.bf16.msra.mxu0 %v2221
  %3720 = vmatprep.subr.bf16.mxu0 %v2226
  %3721 = vmatpush1.bf16.msra.mxu0 %v2225
  %3722 = vmatprep.subr.bf16.mxu0 %v2230
  %3723 = vmatpush1.bf16.msra.mxu0 %v2229
  %3724 = vmatprep.subr.bf16.mxu0 %v2234
  %3725 = vmatpush1.bf16.msra.mxu0 %v2233
  %3726 = vmatprep.subr.bf16.mxu0 %v2238
  %3727 = vmatpush1.bf16.msra.mxu0 %v2237
  %3728 = vmatprep.subr.bf16.mxu0 %v2242
  %3729 = vmatpush1.bf16.msra.mxu0 %v2241
  %3730 = vmatprep.subr.bf16.mxu0 %v2246
  %3731 = vmatpush1.bf16.msra.mxu0 %v2245
  %3732 = vmatprep.subr.bf16.mxu0 %v2250
  %3733 = vmatpush1.bf16.msra.mxu0 %v2249
  %3734 = vmatprep.subr.bf16.mxu0 %v2254
  %3735 = vmatpush1.bf16.msra.mxu0 %v2253
  %3736 = vmatprep.subr.bf16.mxu0 %v2258
  %3737 = vmatpush1.bf16.msra.mxu0 %v2257
  %3738 = vmatprep.subr.bf16.mxu0 %v2262
  %3739 = vmatpush1.bf16.msra.mxu0 %v2261
  %3740 = vmatprep.subr.bf16.mxu0 %v2266
  %3741 = vmatpush1.bf16.msra.mxu0 %v2265
  %3742 = vmatprep.subr.bf16.mxu0 %v2270
  %3743 = vmatpush1.bf16.msra.mxu0 %v2269
  %3744 = vmatprep.subr.bf16.mxu0 %v2274
  %3745 = vmatpush1.bf16.msra.mxu0 %v2273
  %3746 = vmatprep.subr.bf16.mxu0 %v2278
  %3747 = vmatpush1.bf16.msra.mxu0 %v2277
  %3748 = vmatprep.mubr.bf16.mxu0 %v688
  %3749 = vmatmul.mubr.bf16.gmra.mrb[0].mxu0 %v687
  %v3750 = vpop.f32.mrb[0].mxu0
  %v3751 = vadd.f32 %v3680, %v3750
  %v3752 = vpop.f32.mrb[0].mxu0
  %v3753 = vadd.f32 %v3682, %v3752
  %v3754 = vpop.f32.mrb[0].mxu0
  %v3755 = vadd.f32 %v3684, %v3754
  %v3756 = vpop.f32.mrb[0].mxu0
  %v3757 = vadd.f32 %v3686, %v3756
  %3758 = vmatprep.mubr.bf16.mxu0 %v703
  %3759 = vmatmul.mubr.bf16.gmra.mrb[0].mxu0 %v702
  %v3760 = vpop.f32.mrb[0].mxu0
  %v3761 = vadd.f32 %v3690, %v3760
  %v3762 = vpop.f32.mrb[0].mxu0
  %v3763 = vadd.f32 %v3692, %v3762
  %v3764 = vpop.f32.mrb[0].mxu0
  %v3765 = vadd.f32 %v3694, %v3764
  %v3766 = vpop.f32.mrb[0].mxu0
  %v3767 = vadd.f32 %v3696, %v3766
  %3768 = vmatprep.mubr.bf16.mxu0 %v718
  %3769 = vmatmul.mubr.bf16.gmra.mrb[0].mxu0 %v717
  %v3770 = vpop.f32.mrb[0].mxu0
  %v3771 = vadd.f32 %v3700, %v3770
  %v3772 = vpop.f32.mrb[0].mxu0
  %v3773 = vadd.f32 %v3702, %v3772
  %v3774 = vpop.f32.mrb[0].mxu0
  %v3775 = vadd.f32 %v3704, %v3774
  %v3776 = vpop.f32.mrb[0].mxu0
  %v3777 = vadd.f32 %v3706, %v3776
  %3778 = vmatprep.mubr.bf16.mxu0 %v733
  %3779 = vmatmul.mubr.bf16.gmra.mrb[0].mxu0 %v732
  %v3780 = vpop.f32.mrb[0].mxu0
  %v3781 = vadd.f32 %v3710, %v3780
  %v3782 = vpop.f32.mrb[0].mxu0
  %v3783 = vadd.f32 %v3712, %v3782
  %v3784 = vpop.f32.mrb[0].mxu0
  %v3785 = vpop.f32.mrb[0].mxu0
  %3786 = vdwg.mxu0
  %3787 = vmatprep.subr.bf16.mxu0 %v2282
  %3788 = vmatpush1.bf16.msra.mxu0 %v2281
  %3789 = vmatprep.subr.bf16.mxu0 %v2286
  %3790 = vmatpush1.bf16.msra.mxu0 %v2285
  %3791 = vmatprep.subr.bf16.mxu0 %v2290
  %3792 = vmatpush1.bf16.msra.mxu0 %v2289
  %3793 = vmatprep.subr.bf16.mxu0 %v2294
  %3794 = vmatpush1.bf16.msra.mxu0 %v2293
  %3795 = vmatprep.subr.bf16.mxu0 %v2298
  %3796 = vmatpush1.bf16.msra.mxu0 %v2297
  %3797 = vmatprep.subr.bf16.mxu0 %v2302
  %3798 = vmatpush1.bf16.msra.mxu0 %v2301
  %3799 = vmatprep.subr.bf16.mxu0 %v2306
  %3800 = vmatpush1.bf16.msra.mxu0 %v2305
  %3801 = vmatprep.subr.bf16.mxu0 %v2310
  %3802 = vmatpush1.bf16.msra.mxu0 %v2309
  %3803 = vmatprep.subr.bf16.mxu0 %v2314
  %3804 = vmatpush1.bf16.msra.mxu0 %v2313
  %3805 = vmatprep.subr.bf16.mxu0 %v2318
  %3806 = vmatpush1.bf16.msra.mxu0 %v2317
  %3807 = vmatprep.subr.bf16.mxu0 %v2322
  %3808 = vmatpush1.bf16.msra.mxu0 %v2321
  %3809 = vmatprep.subr.bf16.mxu0 %v2326
  %3810 = vmatpush1.bf16.msra.mxu0 %v2325
  %3811 = vmatprep.subr.bf16.mxu0 %v2330
  %3812 = vmatpush1.bf16.msra.mxu0 %v2329
  %3813 = vmatprep.subr.bf16.mxu0 %v2334
  %3814 = vmatpush1.bf16.msra.mxu0 %v2333
  %3815 = vmatprep.subr.bf16.mxu0 %v2338
  %3816 = vmatpush1.bf16.msra.mxu0 %v2337
  %3817 = vmatprep.subr.bf16.mxu0 %v2342
  %3818 = vmatpush1.bf16.msra.mxu0 %v2341
  %3819 = vmatprep.mubr.bf16.mxu0 %v690
  %3820 = vmatmul.mubr.bf16.gmra.mrb[0].mxu0 %v689
  %v3821 = vpop.f32.mrb[0].mxu0
  %v3822 = vadd.f32 %v3751, %v3821
  %v3823 = vpop.f32.mrb[0].mxu0
  %v3824 = vadd.f32 %v3753, %v3823
  %v3825 = vpop.f32.mrb[0].mxu0
  %v3826 = vadd.f32 %v3755, %v3825
  %v3827 = vpop.f32.mrb[0].mxu0
  %v3828 = vadd.f32 %v3757, %v3827
  %3829 = vmatprep.mubr.bf16.mxu0 %v705
  %3830 = vmatmul.mubr.bf16.gmra.mrb[0].mxu0 %v704
  %v3831 = vpop.f32.mrb[0].mxu0
  %v3832 = vadd.f32 %v3761, %v3831
  %v3833 = vpop.f32.mrb[0].mxu0
  %v3834 = vadd.f32 %v3763, %v3833
  %v3835 = vpop.f32.mrb[0].mxu0
  %v3836 = vadd.f32 %v3765, %v3835
  %v3837 = vpop.f32.mrb[0].mxu0
  %v3838 = vadd.f32 %v3767, %v3837
  %3839 = vmatprep.mubr.bf16.mxu0 %v720
  %3840 = vmatmul.mubr.bf16.gmra.mrb[0].mxu0 %v719
  %v3841 = vpop.f32.mrb[0].mxu0
  %v3842 = vadd.f32 %v3771, %v3841
  %v3843 = vpop.f32.mrb[0].mxu0
  %v3844 = vadd.f32 %v3773, %v3843
  %v3845 = vpop.f32.mrb[0].mxu0
  %v3846 = vadd.f32 %v3775, %v3845
  %v3847 = vpop.f32.mrb[0].mxu0
  %v3848 = vadd.f32 %v3777, %v3847
  %3849 = vmatprep.mubr.bf16.mxu0 %v735
  %3850 = vmatmul.mubr.bf16.gmra.mrb[0].mxu0 %v734
  %v3851 = vpop.f32.mrb[0].mxu0
  %v3852 = vadd.f32 %v3781, %v3851
  %v3853 = vpop.f32.mrb[0].mxu0
  %v3854 = vadd.f32 %v3783, %v3853
  %v3855 = vpop.f32.mrb[0].mxu0
  %v3856 = vpop.f32.mrb[0].mxu0
  %3857 = vdwg.mxu0
  %3858 = vmatprep.subr.bf16.mxu0 %v2346
  %3859 = vmatpush1.bf16.msra.mxu0 %v2345
  %3860 = vmatprep.subr.bf16.mxu0 %v2350
  %3861 = vmatpush1.bf16.msra.mxu0 %v2349
  %3862 = vmatprep.subr.bf16.mxu0 %v2354
  %3863 = vmatpush1.bf16.msra.mxu0 %v2353
  %3864 = vmatprep.subr.bf16.mxu0 %v2358
  %3865 = vmatpush1.bf16.msra.mxu0 %v2357
  %3866 = vmatprep.subr.bf16.mxu0 %v2362
  %3867 = vmatpush1.bf16.msra.mxu0 %v2361
  %3868 = vmatprep.subr.bf16.mxu0 %v2366
  %3869 = vmatpush1.bf16.msra.mxu0 %v2365
  %3870 = vmatprep.subr.bf16.mxu0 %v2370
  %3871 = vmatpush1.bf16.msra.mxu0 %v2369
  %3872 = vmatprep.subr.bf16.mxu0 %v2374
  %3873 = vmatpush1.bf16.msra.mxu0 %v2373
  %3874 = vmatprep.subr.bf16.mxu0 %v2378
  %3875 = vmatpush1.bf16.msra.mxu0 %v2377
  %3876 = vmatprep.subr.bf16.mxu0 %v2382
  %3877 = vmatpush1.bf16.msra.mxu0 %v2381
  %3878 = vmatprep.subr.bf16.mxu0 %v2386
  %3879 = vmatpush1.bf16.msra.mxu0 %v2385
  %3880 = vmatprep.subr.bf16.mxu0 %v2390
  %3881 = vmatpush1.bf16.msra.mxu0 %v2389
  %3882 = vmatprep.subr.bf16.mxu0 %v2394
  %3883 = vmatpush1.bf16.msra.mxu0 %v2393
  %3884 = vmatprep.subr.bf16.mxu0 %v2398
  %3885 = vmatpush1.bf16.msra.mxu0 %v2397
  %3886 = vmatprep.subr.bf16.mxu0 %v2402
  %3887 = vmatpush1.bf16.msra.mxu0 %v2401
  %3888 = vmatprep.subr.bf16.mxu0 %v2406
  %3889 = vmatpush1.bf16.msra.mxu0 %v2405
  %3890 = vmatprep.mubr.bf16.mxu0 %v692
  %3891 = vmatmul.mubr.bf16.gmra.mrb[0].mxu0 %v691
  %v3892 = vpop.f32.mrb[0].mxu0
  %v3893 = vadd.f32 %v3822, %v3892
  %v3894 = vpop.f32.mrb[0].mxu0
  %v3895 = vadd.f32 %v3824, %v3894
  %v3896 = vpop.f32.mrb[0].mxu0
  %v3897 = vadd.f32 %v3826, %v3896
  %v3898 = vpop.f32.mrb[0].mxu0
  %v3899 = vadd.f32 %v3828, %v3898
  %3900 = vmatprep.mubr.bf16.mxu0 %v707
  %3901 = vmatmul.mubr.bf16.gmra.mrb[0].mxu0 %v706
  %v3902 = vpop.f32.mrb[0].mxu0
  %v3903 = vadd.f32 %v3832, %v3902
  %v3904 = vpop.f32.mrb[0].mxu0
  %v3905 = vadd.f32 %v3834, %v3904
  %v3906 = vpop.f32.mrb[0].mxu0
  %v3907 = vadd.f32 %v3836, %v3906
  %v3908 = vpop.f32.mrb[0].mxu0
  %v3909 = vadd.f32 %v3838, %v3908
  %3910 = vmatprep.mubr.bf16.mxu0 %v722
  %3911 = vmatmul.mubr.bf16.gmra.mrb[0].mxu0 %v721
  %v3912 = vpop.f32.mrb[0].mxu0
  %v3913 = vadd.f32 %v3842, %v3912
  %v3914 = vpop.f32.mrb[0].mxu0
  %v3915 = vadd.f32 %v3844, %v3914
  %v3916 = vpop.f32.mrb[0].mxu0
  %v3917 = vadd.f32 %v3846, %v3916
  %v3918 = vpop.f32.mrb[0].mxu0
  %v3919 = vadd.f32 %v3848, %v3918
  %3920 = vmatprep.mubr.bf16.mxu0 %v737
  %3921 = vmatmul.mubr.bf16.gmra.mrb[0].mxu0 %v736
  %v3922 = vpop.f32.mrb[0].mxu0
  %v3923 = vadd.f32 %v3852, %v3922
  %v3924 = vpop.f32.mrb[0].mxu0
  %v3925 = vadd.f32 %v3854, %v3924
  %v3926 = vpop.f32.mrb[0].mxu0
  %v3927 = vpop.f32.mrb[0].mxu0
  %3928 = vdwg.mxu0
  %3929 = vmatprep.subr.bf16.mxu0 %v2410
  %3930 = vmatpush1.bf16.msra.mxu0 %v2409
  %3931 = vmatprep.subr.bf16.mxu0 %v2414
  %3932 = vmatpush1.bf16.msra.mxu0 %v2413
  %3933 = vmatprep.subr.bf16.mxu0 %v2418
  %3934 = vmatpush1.bf16.msra.mxu0 %v2417
  %3935 = vmatprep.subr.bf16.mxu0 %v2422
  %3936 = vmatpush1.bf16.msra.mxu0 %v2421
  %3937 = vmatprep.subr.bf16.mxu0 %v2426
  %3938 = vmatpush1.bf16.msra.mxu0 %v2425
  %3939 = vmatprep.subr.bf16.mxu0 %v2430
  %3940 = vmatpush1.bf16.msra.mxu0 %v2429
  %3941 = vmatprep.subr.bf16.mxu0 %v2434
  %3942 = vmatpush1.bf16.msra.mxu0 %v2433
  %3943 = vmatprep.subr.bf16.mxu0 %v2438
  %3944 = vmatpush1.bf16.msra.mxu0 %v2437
  %3945 = vmatprep.subr.bf16.mxu0 %v2442
  %3946 = vmatpush1.bf16.msra.mxu0 %v2441
  %3947 = vmatprep.subr.bf16.mxu0 %v2446
  %3948 = vmatpush1.bf16.msra.mxu0 %v2445
  %3949 = vmatprep.subr.bf16.mxu0 %v2450
  %3950 = vmatpush1.bf16.msra.mxu0 %v2449
  %3951 = vmatprep.subr.bf16.mxu0 %v2454
  %3952 = vmatpush1.bf16.msra.mxu0 %v2453
  %3953 = vmatprep.subr.bf16.mxu0 %v2458
  %3954 = vmatpush1.bf16.msra.mxu0 %v2457
  %3955 = vmatprep.subr.bf16.mxu0 %v2462
  %3956 = vmatpush1.bf16.msra.mxu0 %v2461
  %3957 = vmatprep.subr.bf16.mxu0 %v2466
  %3958 = vmatpush1.bf16.msra.mxu0 %v2465
  %3959 = vmatprep.subr.bf16.mxu0 %v2470
  %3960 = vmatpush1.bf16.msra.mxu0 %v2469
  %3961 = vmatprep.mubr.bf16.mxu0 %v694
  %3962 = vmatmul.mubr.bf16.gmra.mrb[0].mxu0 %v693
  %v3963 = vpop.f32.mrb[0].mxu0
  %v3964 = vadd.f32 %v3893, %v3963
  %v3965 = vpop.f32.mrb[0].mxu0
  %v3966 = vadd.f32 %v3895, %v3965
  %v3967 = vpop.f32.mrb[0].mxu0
  %v3968 = vadd.f32 %v3897, %v3967
  %v3969 = vpop.f32.mrb[0].mxu0
  %v3970 = vadd.f32 %v3899, %v3969
  %3971 = vmatprep.mubr.bf16.mxu0 %v709
  %3972 = vmatmul.mubr.bf16.gmra.mrb[0].mxu0 %v708
  %v3973 = vpop.f32.mrb[0].mxu0
  %v3974 = vadd.f32 %v3903, %v3973
  %v3975 = vpop.f32.mrb[0].mxu0
  %v3976 = vadd.f32 %v3905, %v3975
  %v3977 = vpop.f32.mrb[0].mxu0
  %v3978 = vadd.f32 %v3907, %v3977
  %v3979 = vpop.f32.mrb[0].mxu0
  %v3980 = vadd.f32 %v3909, %v3979
  %3981 = vmatprep.mubr.bf16.mxu0 %v724
  %3982 = vmatmul.mubr.bf16.gmra.mrb[0].mxu0 %v723
  %v3983 = vpop.f32.mrb[0].mxu0
  %v3984 = vadd.f32 %v3913, %v3983
  %v3985 = vpop.f32.mrb[0].mxu0
  %v3986 = vadd.f32 %v3915, %v3985
  %v3987 = vpop.f32.mrb[0].mxu0
  %v3988 = vadd.f32 %v3917, %v3987
  %v3989 = vpop.f32.mrb[0].mxu0
  %v3990 = vadd.f32 %v3919, %v3989
  %3991 = vmatprep.mubr.bf16.mxu0 %v739
  %3992 = vmatmul.mubr.bf16.gmra.mrb[0].mxu0 %v738
  %v3993 = vpop.f32.mrb[0].mxu0
  %v3994 = vadd.f32 %v3923, %v3993
  %v3995 = vpop.f32.mrb[0].mxu0
  %v3996 = vadd.f32 %v3925, %v3995
  %v3997 = vpop.f32.mrb[0].mxu0
  %v3998 = vpop.f32.mrb[0].mxu0
  %3999 = vdwg.mxu0
  %4000 = vmatprep.subr.bf16.mxu0 %v2474
  %4001 = vmatpush1.bf16.msra.mxu0 %v2473
  %4002 = vmatprep.subr.bf16.mxu0 %v2478
  %4003 = vmatpush1.bf16.msra.mxu0 %v2477
  %4004 = vmatprep.subr.bf16.mxu0 %v2482
  %4005 = vmatpush1.bf16.msra.mxu0 %v2481
  %4006 = vmatprep.subr.bf16.mxu0 %v2486
  %4007 = vmatpush1.bf16.msra.mxu0 %v2485
  %4008 = vmatprep.subr.bf16.mxu0 %v2490
  %4009 = vmatpush1.bf16.msra.mxu0 %v2489
  %4010 = vmatprep.subr.bf16.mxu0 %v2494
  %4011 = vmatpush1.bf16.msra.mxu0 %v2493
  %4012 = vmatprep.subr.bf16.mxu0 %v2498
  %4013 = vmatpush1.bf16.msra.mxu0 %v2497
  %4014 = vmatprep.subr.bf16.mxu0 %v2502
  %4015 = vmatpush1.bf16.msra.mxu0 %v2501
  %4016 = vmatprep.subr.bf16.mxu0 %v2506
  %4017 = vmatpush1.bf16.msra.mxu0 %v2505
  %4018 = vmatprep.subr.bf16.mxu0 %v2510
  %4019 = vmatpush1.bf16.msra.mxu0 %v2509
  %4020 = vmatprep.subr.bf16.mxu0 %v2514
  %4021 = vmatpush1.bf16.msra.mxu0 %v2513
  %4022 = vmatprep.subr.bf16.mxu0 %v2518
  %4023 = vmatpush1.bf16.msra.mxu0 %v2517
  %4024 = vmatprep.subr.bf16.mxu0 %v2522
  %4025 = vmatpush1.bf16.msra.mxu0 %v2521
  %4026 = vmatprep.subr.bf16.mxu0 %v2526
  %4027 = vmatpush1.bf16.msra.mxu0 %v2525
  %4028 = vmatprep.subr.bf16.mxu0 %v2530
  %4029 = vmatpush1.bf16.msra.mxu0 %v2529
  %4030 = vmatprep.subr.bf16.mxu0 %v2534
  %4031 = vmatpush1.bf16.msra.mxu0 %v2533
  %4032 = vmatprep.mubr.bf16.mxu0 %v696
  %4033 = vmatmul.mubr.bf16.gmra.mrb[0].mxu0 %v695
  %v4034 = vpop.f32.mrb[0].mxu0
  %v4035 = vadd.f32 %v3964, %v4034
  %v4036 = vpop.f32.mrb[0].mxu0
  %v4037 = vadd.f32 %v3966, %v4036
  %v4038 = vpop.f32.mrb[0].mxu0
  %v4039 = vadd.f32 %v3968, %v4038
  %v4040 = vpop.f32.mrb[0].mxu0
  %v4041 = vadd.f32 %v3970, %v4040
  %4042 = vmatprep.mubr.bf16.mxu0 %v711
  %4043 = vmatmul.mubr.bf16.gmra.mrb[0].mxu0 %v710
  %v4044 = vpop.f32.mrb[0].mxu0
  %v4045 = vadd.f32 %v3974, %v4044
  %v4046 = vpop.f32.mrb[0].mxu0
  %v4047 = vadd.f32 %v3976, %v4046
  %v4048 = vpop.f32.mrb[0].mxu0
  %v4049 = vadd.f32 %v3978, %v4048
  %v4050 = vpop.f32.mrb[0].mxu0
  %v4051 = vadd.f32 %v3980, %v4050
  %4052 = vmatprep.mubr.bf16.mxu0 %v726
  %4053 = vmatmul.mubr.bf16.gmra.mrb[0].mxu0 %v725
  %v4054 = vpop.f32.mrb[0].mxu0
  %v4055 = vadd.f32 %v3984, %v4054
  %v4056 = vpop.f32.mrb[0].mxu0
  %v4057 = vadd.f32 %v3986, %v4056
  %v4058 = vpop.f32.mrb[0].mxu0
  %v4059 = vadd.f32 %v3988, %v4058
  %v4060 = vpop.f32.mrb[0].mxu0
  %v4061 = vadd.f32 %v3990, %v4060
  %4062 = vmatprep.mubr.bf16.mxu0 %v741
  %4063 = vmatmul.mubr.bf16.gmra.mrb[0].mxu0 %v740
  %v4064 = vpop.f32.mrb[0].mxu0
  %v4065 = vadd.f32 %v3994, %v4064
  %v4066 = vpop.f32.mrb[0].mxu0
  %v4067 = vadd.f32 %v3996, %v4066
  %v4068 = vpop.f32.mrb[0].mxu0
  %v4069 = vpop.f32.mrb[0].mxu0
  %4070 = vdwg.mxu0
  %4071 = vmatprep.subr.bf16.mxu0 %v2538
  %4072 = vmatpush1.bf16.msra.mxu0 %v2537
  %4073 = vmatprep.subr.bf16.mxu0 %v2542
  %4074 = vmatpush1.bf16.msra.mxu0 %v2541
  %4075 = vmatprep.subr.bf16.mxu0 %v2546
  %4076 = vmatpush1.bf16.msra.mxu0 %v2545
  %4077 = vmatprep.subr.bf16.mxu0 %v2550
  %4078 = vmatpush1.bf16.msra.mxu0 %v2549
  %4079 = vmatprep.subr.bf16.mxu0 %v2554
  %4080 = vmatpush1.bf16.msra.mxu0 %v2553
  %4081 = vmatprep.subr.bf16.mxu0 %v2558
  %4082 = vmatpush1.bf16.msra.mxu0 %v2557
  %4083 = vmatprep.subr.bf16.mxu0 %v2562
  %4084 = vmatpush1.bf16.msra.mxu0 %v2561
  %4085 = vmatprep.subr.bf16.mxu0 %v2566
  %4086 = vmatpush1.bf16.msra.mxu0 %v2565
  %4087 = vmatprep.subr.bf16.mxu0 %v2570
  %4088 = vmatpush1.bf16.msra.mxu0 %v2569
  %4089 = vmatprep.subr.bf16.mxu0 %v2574
  %4090 = vmatpush1.bf16.msra.mxu0 %v2573
  %4091 = vmatprep.subr.bf16.mxu0 %v2578
  %4092 = vmatpush1.bf16.msra.mxu0 %v2577
  %4093 = vmatprep.subr.bf16.mxu0 %v2582
  %4094 = vmatpush1.bf16.msra.mxu0 %v2581
  %4095 = vmatprep.subr.bf16.mxu0 %v2586
  %4096 = vmatpush1.bf16.msra.mxu0 %v2585
  %4097 = vmatprep.subr.bf16.mxu0 %v2590
  %4098 = vmatpush1.bf16.msra.mxu0 %v2589
  %4099 = vmatprep.subr.bf16.mxu0 %v2594
  %4100 = vmatpush1.bf16.msra.mxu0 %v2593
  %4101 = vmatprep.subr.bf16.mxu0 %v2598
  %4102 = vmatpush1.bf16.msra.mxu0 %v2597
  %4103 = vmatprep.mubr.bf16.mxu0 %v698
  %4104 = vmatmul.mubr.bf16.gmra.mrb[0].mxu0 %v697
  %v4105 = vpop.f32.mrb[0].mxu0
  %v4106 = vadd.f32 %v4035, %v4105
  %v4107 = vpop.f32.mrb[0].mxu0
  %v4108 = vadd.f32 %v4037, %v4107
  %v4109 = vpop.f32.mrb[0].mxu0
  %v4110 = vadd.f32 %v4039, %v4109
  %v4111 = vpop.f32.mrb[0].mxu0
  %v4112 = vadd.f32 %v4041, %v4111
  %4113 = vmatprep.mubr.bf16.mxu0 %v713
  %4114 = vmatmul.mubr.bf16.gmra.mrb[0].mxu0 %v712
  %v4115 = vpop.f32.mrb[0].mxu0
  %v4116 = vadd.f32 %v4045, %v4115
  %v4117 = vpop.f32.mrb[0].mxu0
  %v4118 = vadd.f32 %v4047, %v4117
  %v4119 = vpop.f32.mrb[0].mxu0
  %v4120 = vadd.f32 %v4049, %v4119
  %v4121 = vpop.f32.mrb[0].mxu0
  %v4122 = vadd.f32 %v4051, %v4121
  %4123 = vmatprep.mubr.bf16.mxu0 %v728
  %4124 = vmatmul.mubr.bf16.gmra.mrb[0].mxu0 %v727
  %v4125 = vpop.f32.mrb[0].mxu0
  %v4126 = vadd.f32 %v4055, %v4125
  %v4127 = vpop.f32.mrb[0].mxu0
  %v4128 = vadd.f32 %v4057, %v4127
  %v4129 = vpop.f32.mrb[0].mxu0
  %v4130 = vadd.f32 %v4059, %v4129
  %v4131 = vpop.f32.mrb[0].mxu0
  %v4132 = vadd.f32 %v4061, %v4131
  %4133 = vmatprep.mubr.bf16.mxu0 %v743
  %4134 = vmatmul.mubr.bf16.gmra.mrb[0].mxu0 %v742
  %v4135 = vpop.f32.mrb[0].mxu0
  %v4136 = vadd.f32 %v4065, %v4135
  %v4137 = vpop.f32.mrb[0].mxu0
  %v4138 = vadd.f32 %v4067, %v4137
  %v4139 = vpop.f32.mrb[0].mxu0
  %v4140 = vpop.f32.mrb[0].mxu0
  %4141 = vdwg.mxu0
  %4142 = vmatprep.subr.bf16.mxu0 %v3075
  %4143 = vmatpush1.bf16.msra.mxu0 %v3072
  %4144 = vmatprep.subr.bf16.mxu0 0
  %4145 = vmatpush1.bf16.msra.mxu0 0
  %4146 = vmatprep.subr.bf16.mxu0 0
  %4147 = vmatpush1.bf16.msra.mxu0 0
  %4148 = vmatprep.subr.bf16.mxu0 0
  %4149 = vmatpush1.bf16.msra.mxu0 0
  %4150 = vmatprep.subr.bf16.mxu0 0
  %4151 = vmatpush1.bf16.msra.mxu0 0
  %4152 = vmatprep.subr.bf16.mxu0 0
  %4153 = vmatpush1.bf16.msra.mxu0 0
  %4154 = vmatprep.subr.bf16.mxu0 0
  %4155 = vmatpush1.bf16.msra.mxu0 0
  %4156 = vmatprep.subr.bf16.mxu0 0
  %4157 = vmatpush1.bf16.msra.mxu0 0
  %4158 = vmatprep.subr.bf16.mxu0 0
  %4159 = vmatpush1.bf16.msra.mxu0 0
  %4160 = vmatprep.subr.bf16.mxu0 0
  %4161 = vmatpush1.bf16.msra.mxu0 0
  %4162 = vmatprep.subr.bf16.mxu0 0
  %4163 = vmatpush1.bf16.msra.mxu0 0
  %4164 = vmatprep.subr.bf16.mxu0 0
  %4165 = vmatpush1.bf16.msra.mxu0 0
  %4166 = vmatprep.subr.bf16.mxu0 0
  %4167 = vmatpush1.bf16.msra.mxu0 0
  %4168 = vmatprep.subr.bf16.mxu0 0
  %4169 = vmatpush1.bf16.msra.mxu0 0
  %4170 = vmatprep.subr.bf16.mxu0 0
  %4171 = vmatpush1.bf16.msra.mxu0 0
  %4172 = vmatprep.subr.bf16.mxu0 0
  %4173 = vmatpush1.bf16.msra.mxu0 0
  %4174 = vmatprep.mubr.bf16.mxu0 0
  %4175 = vmatmul.mubr.bf16.gmra.mrb[0].mxu0 %v3053
  %v4176 = vpop.f32.mrb[0].mxu0
  %v4177 = vadd.f32 %v4106, %v4176
  %v4178 = vpop.f32.mrb[0].mxu0
  %v4179 = vadd.f32 %v4108, %v4178
  %v4180 = vpop.f32.mrb[0].mxu0
  %v4181 = vadd.f32 %v4110, %v4180
  %v4182 = vpop.f32.mrb[0].mxu0
  %v4183 = vadd.f32 %v4112, %v4182
  %4184 = vmatprep.mubr.bf16.mxu0 0
  %4185 = vmatmul.mubr.bf16.gmra.mrb[0].mxu0 %v3056
  %v4186 = vpop.f32.mrb[0].mxu0
  %v4187 = vadd.f32 %v4116, %v4186
  %v4188 = vpop.f32.mrb[0].mxu0
  %v4189 = vadd.f32 %v4118, %v4188
  %v4190 = vpop.f32.mrb[0].mxu0
  %v4191 = vadd.f32 %v4120, %v4190
  %v4192 = vpop.f32.mrb[0].mxu0
  %v4193 = vadd.f32 %v4122, %v4192
  %4194 = vmatprep.mubr.bf16.mxu0 0
  %4195 = vmatmul.mubr.bf16.gmra.mrb[0].mxu0 %v3059
  %v4196 = vpop.f32.mrb[0].mxu0
  %v4197 = vadd.f32 %v4126, %v4196
  %v4198 = vpop.f32.mrb[0].mxu0
  %v4199 = vadd.f32 %v4128, %v4198
  %v4200 = vpop.f32.mrb[0].mxu0
  %v4201 = vadd.f32 %v4130, %v4200
  %v4202 = vpop.f32.mrb[0].mxu0
  %v4203 = vadd.f32 %v4132, %v4202
  %4204 = vmatprep.mubr.bf16.mxu0 0
  %4205 = vmatmul.mubr.bf16.gmra.mrb[0].mxu0 %v3062
  %v4206 = vpop.f32.mrb[0].mxu0
  %v4207 = vadd.f32 %v4136, %v4206
  %v4208 = vpop.f32.mrb[0].mxu0
  %v4209 = vadd.f32 %v4138, %v4208
  %v4210 = vpop.f32.mrb[0].mxu0
  %v4211 = vpop.f32.mrb[0].mxu0
  %4212 = vdwg.mxu0
  %v4213 = vld [vmem:[%s2] sm:$0xf]
  %v4215 = vlaneseq
  %v4216 = vshrl.u32 %v4215, 7
  %v4217 = vsub.s32 0, %v4216
  %v4218 = vrot.slane %v4213, %v4217
  %v4219 = vlaneseq
  %v4220 = vshrl.u32 %v4219, 7
  %v4221 = vsub.s32 1, %v4220
  %v4222 = vrot.slane %v4213, %v4221
  %v4223 = vlaneseq
  %v4224 = vshrl.u32 %v4223, 7
  %v4225 = vsub.s32 2, %v4224
  %v4226 = vrot.slane %v4213, %v4225
  %v4227 = vlaneseq
  %v4228 = vshrl.u32 %v4227, 7
  %v4229 = vsub.s32 3, %v4228
  %v4230 = vrot.slane %v4213, %v4229
  %v4235 = vmul.f32 %v3609, %v4218
  %v4236 = vmul.f32 %v3611, %v4222
  %v4237 = vmul.f32 %v4177, %v4226
  %v4238 = vmul.f32 %v4179, %v4230
  %v4239 = vmul.f32 %v3613, %v4218
  %v4240 = vmul.f32 %v3615, %v4222
  %v4241 = vmul.f32 %v4181, %v4226
  %v4242 = vmul.f32 %v4183, %v4230
  %v4243 = vmul.f32 %v3619, %v4218
  %v4244 = vmul.f32 %v3621, %v4222
  %v4245 = vmul.f32 %v4187, %v4226
  %v4246 = vmul.f32 %v4189, %v4230
  %v4247 = vmul.f32 %v3623, %v4218
  %v4248 = vmul.f32 %v3625, %v4222
  %v4249 = vmul.f32 %v4191, %v4226
  %v4250 = vmul.f32 %v4193, %v4230
  %v4251 = vmul.f32 %v3629, %v4218
  %v4252 = vmul.f32 %v3631, %v4222
  %v4253 = vmul.f32 %v4197, %v4226
  %v4254 = vmul.f32 %v4199, %v4230
  %v4255 = vmul.f32 %v3633, %v4218
  %v4256 = vmul.f32 %v3635, %v4222
  %v4257 = vmul.f32 %v4201, %v4226
  %v4258 = vmul.f32 %v4203, %v4230
  %v4259 = vmul.f32 %v3639, %v4218
  %v4260 = vmul.f32 %v3641, %v4222
  %v4261 = vmul.f32 %v4207, %v4226
  %v4262 = vmul.f32 %v4209, %v4230
  %v4263 = vld [vmem:[%s3] sm:$0xf]
  %v4265 = vlaneseq
  %v4266 = vshrl.u32 %v4265, 7
  %v4267 = vsub.s32 0, %v4266
  %v4268 = vrot.slane %v4263, %v4267
  %v4269 = vlaneseq
  %v4270 = vshrl.u32 %v4269, 7
  %v4271 = vsub.s32 1, %v4270
  %v4272 = vrot.slane %v4263, %v4271
  %v4273 = vlaneseq
  %v4274 = vshrl.u32 %v4273, 7
  %v4275 = vsub.s32 2, %v4274
  %v4276 = vrot.slane %v4263, %v4275
  %v4277 = vlaneseq
  %v4278 = vshrl.u32 %v4277, 7
  %v4279 = vsub.s32 3, %v4278
  %v4280 = vrot.slane %v4263, %v4279
  %v4285 = vadd.f32 %v4235, %v4268
  %v4286 = vadd.f32 %v4236, %v4272
  %v4287 = vadd.f32 %v4237, %v4276
  %v4288 = vadd.f32 %v4238, %v4280
  %v4289 = vadd.f32 %v4239, %v4268
  %v4290 = vadd.f32 %v4240, %v4272
  %v4291 = vadd.f32 %v4241, %v4276
  %v4292 = vadd.f32 %v4242, %v4280
  %v4293 = vadd.f32 %v4243, %v4268
  %v4294 = vadd.f32 %v4244, %v4272
  %v4295 = vadd.f32 %v4245, %v4276
  %v4296 = vadd.f32 %v4246, %v4280
  %v4297 = vadd.f32 %v4247, %v4268
  %v4298 = vadd.f32 %v4248, %v4272
  %v4299 = vadd.f32 %v4249, %v4276
  %v4300 = vadd.f32 %v4250, %v4280
  %v4301 = vadd.f32 %v4251, %v4268
  %v4302 = vadd.f32 %v4252, %v4272
  %v4303 = vadd.f32 %v4253, %v4276
  %v4304 = vadd.f32 %v4254, %v4280
  %v4305 = vadd.f32 %v4255, %v4268
  %v4306 = vadd.f32 %v4256, %v4272
  %v4307 = vadd.f32 %v4257, %v4276
  %v4308 = vadd.f32 %v4258, %v4280
  %v4309 = vadd.f32 %v4259, %v4268
  %v4310 = vadd.f32 %v4260, %v4272
  %v4311 = vadd.f32 %v4261, %v4276
  %v4312 = vadd.f32 %v4262, %v4280
  %vm4313 = vcmp.ge.f32.partialorder %v4285, 0.0
  %vm4314 = vcmp.ge.f32.partialorder %v4286, 0.0
  %vm4315 = vcmp.ge.f32.partialorder %v4287, 0.0
  %vm4316 = vcmp.ge.f32.partialorder %v4288, 0.0
  %vm4317 = vcmp.ge.f32.partialorder %v4289, 0.0
  %vm4318 = vcmp.ge.f32.partialorder %v4290, 0.0
  %vm4319 = vcmp.ge.f32.partialorder %v4291, 0.0
  %vm4320 = vcmp.ge.f32.partialorder %v4292, 0.0
  %vm4321 = vcmp.ge.f32.partialorder %v4293, 0.0
  %vm4322 = vcmp.ge.f32.partialorder %v4294, 0.0
  %vm4323 = vcmp.ge.f32.partialorder %v4295, 0.0
  %vm4324 = vcmp.ge.f32.partialorder %v4296, 0.0
  %vm4325 = vcmp.ge.f32.partialorder %v4297, 0.0
  %vm4326 = vcmp.ge.f32.partialorder %v4298, 0.0
  %vm4327 = vcmp.ge.f32.partialorder %v4299, 0.0
  %vm4328 = vcmp.ge.f32.partialorder %v4300, 0.0
  %vm4329 = vcmp.ge.f32.partialorder %v4301, 0.0
  %vm4330 = vcmp.ge.f32.partialorder %v4302, 0.0
  %vm4331 = vcmp.ge.f32.partialorder %v4303, 0.0
  %vm4332 = vcmp.ge.f32.partialorder %v4304, 0.0
  %vm4333 = vcmp.ge.f32.partialorder %v4305, 0.0
  %vm4334 = vcmp.ge.f32.partialorder %v4306, 0.0
  %vm4335 = vcmp.ge.f32.partialorder %v4307, 0.0
  %vm4336 = vcmp.ge.f32.partialorder %v4308, 0.0
  %vm4337 = vcmp.ge.f32.partialorder %v4309, 0.0
  %vm4338 = vcmp.ge.f32.partialorder %v4310, 0.0
  %vm4339 = vcmp.ge.f32.partialorder %v4311, 0.0
  %vm4340 = vcmp.ge.f32.partialorder %v4312, 0.0
  %v4341 = vmul.f32 %v4285, 0.2
  %v4342 = vmul.f32 %v4286, 0.2
  %v4343 = vmul.f32 %v4287, 0.2
  %v4344 = vmul.f32 %v4288, 0.2
  %v4345 = vmul.f32 %v4289, 0.2
  %v4346 = vmul.f32 %v4290, 0.2
  %v4347 = vmul.f32 %v4291, 0.2
  %v4348 = vmul.f32 %v4292, 0.2
  %v4349 = vmul.f32 %v4293, 0.2
  %v4350 = vmul.f32 %v4294, 0.2
  %v4351 = vmul.f32 %v4295, 0.2
  %v4352 = vmul.f32 %v4296, 0.2
  %v4353 = vmul.f32 %v4297, 0.2
  %v4354 = vmul.f32 %v4298, 0.2
  %v4355 = vmul.f32 %v4299, 0.2
  %v4356 = vmul.f32 %v4300, 0.2
  %v4357 = vmul.f32 %v4301, 0.2
  %v4358 = vmul.f32 %v4302, 0.2
  %v4359 = vmul.f32 %v4303, 0.2
  %v4360 = vmul.f32 %v4304, 0.2
  %v4361 = vmul.f32 %v4305, 0.2
  %v4362 = vmul.f32 %v4306, 0.2
  %v4363 = vmul.f32 %v4307, 0.2
  %v4364 = vmul.f32 %v4308, 0.2
  %v4365 = vmul.f32 %v4309, 0.2
  %v4366 = vmul.f32 %v4310, 0.2
  %v4367 = vmul.f32 %v4311, 0.2
  %v4368 = vmul.f32 %v4312, 0.2
  %v4369 = vsel %vm4313, %v4285, %v4341
  %v4370 = vsel %vm4314, %v4286, %v4342
  %v4371 = vsel %vm4315, %v4287, %v4343
  %v4372 = vsel %vm4316, %v4288, %v4344
  %v4373 = vsel %vm4317, %v4289, %v4345
  %v4374 = vsel %vm4318, %v4290, %v4346
  %v4375 = vsel %vm4319, %v4291, %v4347
  %v4376 = vsel %vm4320, %v4292, %v4348
  %v4377 = vsel %vm4321, %v4293, %v4349
  %v4378 = vsel %vm4322, %v4294, %v4350
  %v4379 = vsel %vm4323, %v4295, %v4351
  %v4380 = vsel %vm4324, %v4296, %v4352
  %v4381 = vsel %vm4325, %v4297, %v4353
  %v4382 = vsel %vm4326, %v4298, %v4354
  %v4383 = vsel %vm4327, %v4299, %v4355
  %v4384 = vsel %vm4328, %v4300, %v4356
  %v4385 = vsel %vm4329, %v4301, %v4357
  %v4386 = vsel %vm4330, %v4302, %v4358
  %v4387 = vsel %vm4331, %v4303, %v4359
  %v4388 = vsel %vm4332, %v4304, %v4360
  %v4389 = vsel %vm4333, %v4305, %v4361
  %v4390 = vsel %vm4334, %v4306, %v4362
  %v4391 = vsel %vm4335, %v4307, %v4363
  %v4392 = vsel %vm4336, %v4308, %v4364
  %v4393 = vsel %vm4337, %v4309, %v4365
  %v4394 = vsel %vm4338, %v4310, %v4366
  %v4395 = vsel %vm4339, %v4311, %v4367
  %v4396 = vsel %vm4340, %v4312, %v4368
  %v4397 = vpack.c.bf16 %v4373, %v4369
  %v4398 = vpack.c.bf16 %v4374, %v4370
  %v4399 = vpack.c.bf16 %v4375, %v4371
  %v4400 = vpack.c.bf16 %v4376, %v4372
  %v4401 = vpack.c.bf16 %v4381, %v4377
  %v4402 = vpack.c.bf16 %v4382, %v4378
  %v4403 = vpack.c.bf16 %v4383, %v4379
  %v4404 = vpack.c.bf16 %v4384, %v4380
  %v4405 = vpack.c.bf16 %v4389, %v4385
  %v4406 = vpack.c.bf16 %v4390, %v4386
  %v4407 = vpack.c.bf16 %v4391, %v4387
  %v4408 = vpack.c.bf16 %v4392, %v4388
  %v4409 = vpack.c.bf16 %v4393, %v4393
  %v4410 = vpack.c.bf16 %v4394, %v4394
  %v4411 = vpack.c.bf16 %v4395, %v4395
  %v4412 = vpack.c.bf16 %v4396, %v4396
  %v4429 = vunpack.c.l.b16 %v4397
  %v4430 = vunpack.c.l.b16 %v4398
  %v4431 = vunpack.c.l.b16 %v4399
  %v4432 = vunpack.c.l.b16 %v4400
  %v4433 = vunpack.c.h.b16 %v4397
  %v4434 = vunpack.c.h.b16 %v4398
  %v4435 = vunpack.c.h.b16 %v4399
  %v4436 = vunpack.c.h.b16 %v4400
  %v4437 = vunpack.c.l.b16 %v4401
  %v4438 = vunpack.c.l.b16 %v4402
  %v4439 = vunpack.c.l.b16 %v4403
  %v4440 = vunpack.c.l.b16 %v4404
  %v4441 = vunpack.c.h.b16 %v4401
  %v4442 = vunpack.c.h.b16 %v4402
  %v4443 = vunpack.c.h.b16 %v4403
  %v4444 = vunpack.c.h.b16 %v4404
  %v4445 = vunpack.c.l.b16 %v4405
  %v4446 = vunpack.c.l.b16 %v4406
  %v4447 = vunpack.c.l.b16 %v4407
  %v4448 = vunpack.c.l.b16 %v4408
  %v4449 = vunpack.c.h.b16 %v4405
  %v4450 = vunpack.c.h.b16 %v4406
  %v4451 = vunpack.c.h.b16 %v4407
  %v4452 = vunpack.c.h.b16 %v4408
  %v4453 = vunpack.c.l.b16 %v4409
  %v4454 = vunpack.c.l.b16 %v4410
  %v4455 = vunpack.c.l.b16 %v4411
  %v4456 = vunpack.c.l.b16 %v4412
  %v4457 = vpack.c.b16 %v4430, %v4429
  %v4458 = vpack.c.b16 %v4432, %v4431
  %v4459 = vpack.c.b16 %v4434, %v4433
  %v4460 = vpack.c.b16 %v4436, %v4435
  %v4461 = vpack.c.b16 %v4438, %v4437
  %v4462 = vpack.c.b16 %v4440, %v4439
  %v4463 = vpack.c.b16 %v4442, %v4441
  %v4464 = vpack.c.b16 %v4444, %v4443
  %v4465 = vpack.c.b16 %v4446, %v4445
  %v4466 = vpack.c.b16 %v4448, %v4447
  %v4467 = vpack.c.b16 %v4450, %v4449
  %v4468 = vpack.c.b16 %v4452, %v4451
  %v4469 = vpack.c.b16 %v4454, %v4453
  %v4470 = vpack.c.b16 %v4456, %v4455
  %4485 = vst [vmem:[%s4] sm:$0xff] %v4457
  %vm4486 = vcmask 130052
  %vm4487 = vmor %vm4486, %vm3064
  %4488 = vst.msk [vmem:[%s4 + $0x8] sm:$0xff] %vm4487, %v4458
  %4489 = vst [vmem:[%s4 + $0x10] sm:$0xff] %v4459
  %4490 = vst.msk [vmem:[%s4 + $0x18] sm:$0xff] %vm4487, %v4460
  %4491 = vst [vmem:[%s4 + $0x20] sm:$0xff] %v4461
  %4492 = vst.msk [vmem:[%s4 + $0x28] sm:$0xff] %vm4487, %v4462
  %4493 = vst [vmem:[%s4 + $0x30] sm:$0xff] %v4463
  %4494 = vst.msk [vmem:[%s4 + $0x38] sm:$0xff] %vm4487, %v4464
  %4495 = vst [vmem:[%s4 + $0x40] sm:$0xff] %v4465
  %4496 = vst.msk [vmem:[%s4 + $0x48] sm:$0xff] %vm4487, %v4466
  %4497 = vst [vmem:[%s4 + $0x50] sm:$0xff] %v4467
  %4498 = vst.msk [vmem:[%s4 + $0x58] sm:$0xff] %vm4487, %v4468
  %4499 = vst [vmem:[%s4 + $0x60] sm:$0x11] %v4469
  %vm4500 = vcmask 1040384
  %vm4501 = vcmask 126980
  %vm4502 = vmor %vm4501, %vm4500
  %4503 = vst.msk [vmem:[%s4 + $0x68] sm:$0x11] %vm4502, %v4470
  // Predicated region
  $region18: #{subpixel_conv_forward.6} parent=0 // pred_check
    _
  $region19: #{subpixel_conv_forward.6} parent=0 // pred_check_branch
    %4505 = sbr.rel (0) target = $region21
  $region20: #{subpixel_conv_forward.6} parent=0 // pred_region
    _
  $region21: #{subpixel_conv_forward.6} parent=0 // pred_fallthru
    _
  // Predicated region
  $region22: #{subpixel_conv_forward.6} parent=0 // pred_check
    _
  $region23: #{subpixel_conv_forward.6} parent=0 // pred_check_branch
    %4507 = sbr.rel (0) target = $region25
  $region24: #{subpixel_conv_forward.6} parent=0 // pred_region
    _
  $region25: #{subpixel_conv_forward.6} parent=0 // pred_fallthru
    _

</llo_original>
